<compile_context>
chip_gen: v7x
topology: tpu7x:2x2x1
jax: 0.10.0
libtpu: 0.0.40
codegen_flags: <defaults>
</compile_context>

<pallas_src>
import jax
import jax.numpy as jnp
from jax import lax
from jax.experimental import pallas as pl
from jax.experimental.pallas import tpu as pltpu

NEG_SLOPE = 0.01  # nn.LeakyReLU default negative_slope


def _leaky(y):
    return jnp.where(y >= 0, y, NEG_SLOPE * y)


# -----------------------------------------------------------------------------
# Fused forward kernel (whole network in one pallas_call)
# -----------------------------------------------------------------------------
def _make_fused_kernel(conv_cfg, batch):
    """conv_cfg: list of dicts with K, stride, pad, c_in, c_out, l_in, l_out."""
    n_conv = len(conv_cfg)
    pow2 = (batch & (batch - 1)) == 0
    shift = batch.bit_length() - 1 if pow2 else None

    def kernel(*refs):
        # refs = x, (w_i, b_i)*n_conv, (w_j, b_j)*n_fc, out
        x_ref = refs[0]
        conv_refs = refs[1:1 + 2 * n_conv]
        fc_refs = refs[1 + 2 * n_conv:-1]
        out_ref = refs[-1]
        n_fc = len(fc_refs) // 2

        # ---------------- conv stack ----------------
        # h: (C, L*batch), column index = l*batch + b
        h = x_ref[...]
        for li, cfg in enumerate(conv_cfg):
            w = conv_refs[2 * li][...]        # (K*C_out, C_in)
            bias = conv_refs[2 * li + 1][...]  # (C_out, 1)
            K, s, pad = cfg["K"], cfg["stride"], cfg["pad"]
            c_in, c_out = cfg["c_in"], cfg["c_out"]
            n_in = cfg["l_in"] * batch
            n_out = cfg["l_out"] * batch

            # Hoisted iota machinery for the per-tap selection matrices.
            rows = lax.broadcasted_iota(jnp.int32, (n_in, n_out), 0)
            cols = lax.broadcasted_iota(jnp.int32, (n_in, n_out), 1)
            if pow2:
                same_b = (rows & (batch - 1)) == (cols & (batch - 1))
                rr = rows >> shift
                cc = s * (cols >> shift)
            else:
                same_b = (rows % batch) == (cols % batch)
                rr = rows // batch
                cc = s * (cols // batch)

            acc = jnp.zeros((c_out, n_out), jnp.float32)
            for k in range(K):  # static, unrolled
                wk = w[k * c_out:(k + 1) * c_out, :]          # (C_out, C_in)
                if c_in == 1:
                    # first layer: broadcast multiply on the VPU
                    pk = wk * h                                # (C_out, n_in)
                else:
                    pk = jnp.dot(wk, h, preferred_element_type=jnp.float32)
                # sel[i, j] = 1 iff column j of the output pulls column i of
                # the input for tap k (same batch, l_in == s*l_out + k - pad,
                # zero outside => zero padding handled for free).
                sel = jnp.where(
                    jnp.logical_and(same_b, rr == cc + (k - pad)), 1.0, 0.0)
                acc = acc + jnp.dot(pk, sel,
                                    preferred_element_type=jnp.float32)
            h = _leaky(acc + bias)                             # (C_out, n_out)

        # ---------------- flatten + FC head ----------------
        # h: (C_last, L_last*batch).  The PyTorch flatten order (c*L + l) is
        # folded into w1 on the host:  w1p[l*D1 + d, c] == W1[d, c*L + l].
        l_last = conv_cfg[-1]["l_out"]
        n5 = l_last * batch
        w1 = fc_refs[0][...]                 # (L_last*D1, C_last)
        b1 = fc_refs[1][...]                 # (D1, 1)
        d1 = b1.shape[0]

        rows5 = lax.broadcasted_iota(jnp.int32, (n5, batch), 0)
        cols5 = lax.broadcasted_iota(jnp.int32, (n5, batch), 1)
        acc1 = jnp.zeros((d1, batch), jnp.float32)
        for l in range(l_last):  # static, unrolled
            # pick the `batch` columns belonging to spatial position l
            sel = jnp.where(rows5 == (l * batch + cols5), 1.0, 0.0)  # (n5, B)
            hcols = jnp.dot(h, sel, preferred_element_type=jnp.float32)  # (C,B)
            w1l = w1[l * d1:(l + 1) * d1, :]                         # (D1, C)
            acc1 = acc1 + jnp.dot(w1l, hcols,
                                  preferred_element_type=jnp.float32)
        a = _leaky(acc1 + b1)                                        # (D1, B)

        for j in range(1, n_fc):  # remaining FC layers, transposed form
            wj = fc_refs[2 * j][...]          # (Dout, Din)
            bj = fc_refs[2 * j + 1][...]      # (Dout, 1)
            a = _leaky(jnp.dot(wj, a, preferred_element_type=jnp.float32) + bj)

        out_ref[...] = a.astype(out_ref.dtype)   # (num_curves, B)

    return kernel


# -----------------------------------------------------------------------------
# Wrapper: host-side operand packing + single pallas_call
# -----------------------------------------------------------------------------
def conv_model_forward(x, conv_params, fc_params):
    """x: (B, L).  conv_params: [(w (C_out,C_in,K), b (C_out,), stride)].
    fc_params: [(w (Dout,Din), b (Dout,))]."""
    B, L = x.shape

    # Static per-layer geometry.
    conv_cfg = []
    l_in = L
    for (w, b, s) in conv_params:
        c_out, c_in, K = w.shape
        pad = (K - 1) // 2
        l_out = (l_in + 2 * pad - K) // s + 1
        conv_cfg.append(dict(K=K, stride=s, pad=pad, c_in=c_in, c_out=c_out,
                             l_in=l_in, l_out=l_out))
        l_in = l_out
    c_last = conv_cfg[-1]["c_out"]
    l_last = conv_cfg[-1]["l_out"]

    # ---- host-side packing (tiny ops, outside the kernel) ----
    # input columns ordered l*B + b  (batch packed into the lane axis)
    x_packed = x.T.reshape(1, B * L)

    kernel_inputs = [x_packed]
    for (w, b, s) in conv_params:
        c_out, c_in, K = w.shape
        w_flat = jnp.transpose(w, (2, 0, 1)).reshape(K * c_out, c_in)
        kernel_inputs += [w_flat, b.reshape(c_out, 1)]

    (w1, b1) = fc_params[0]
    d1 = w1.shape[0]
    # fold the PyTorch (c*L + l) flatten order into the first FC weight
    w1_packed = jnp.transpose(
        w1.reshape(d1, c_last, l_last), (2, 0, 1)).reshape(l_last * d1, c_last)
    kernel_inputs += [w1_packed, b1.reshape(-1, 1)]
    for (w, b) in fc_params[1:]:
        kernel_inputs += [w, b.reshape(-1, 1)]

    n_curves = fc_params[-1][0].shape[0]
    kernel = _make_fused_kernel(conv_cfg, B)

    out_t = pl.pallas_call(
        kernel,
        out_shape=jax.ShapeDtypeStruct((n_curves, B), x.dtype),
        grid=(1,),
        in_specs=[pl.BlockSpec(a.shape, lambda i: (0, 0)) for a in kernel_inputs],
        out_specs=pl.BlockSpec((n_curves, B), lambda i: (0, 0)),
        compiler_params=pltpu.CompilerParams(
            dimension_semantics=("arbitrary",)),
    )(*kernel_inputs)
    return out_t.T  # (B, num_curves)


# -----------------------------------------------------------------------------
# Pure-JAX reference (correctness check only)
# -----------------------------------------------------------------------------
def reference_forward(x, conv_params, fc_params):
    h = x[:, None, :]
    for w, b, s in conv_params:
        k = w.shape[2]
        p = (k - 1) // 2
        h = jax.lax.conv_general_dilated(
            h, w, window_strides=(s,), padding=[(p, p)],
            dimension_numbers=("NCH", "OIH", "NCH"))
        h = h + b[None, :, None]
        h = jnp.where(h >= 0, h, NEG_SLOPE * h)
    h = h.reshape(h.shape[0], -1)
    for w, b in fc_params:
        h = h @ w.T + b
        h = jnp.where(h >= 0, h, NEG_SLOPE * h)
    return h


# -----------------------------------------------------------------------------
# Deterministic parameter init (PyTorch-style uniform(-1/sqrt(fan_in), ...))
# -----------------------------------------------------------------------------
def init_conv(key, c_in, c_out, k):
    fan_in = c_in * k
    bound = 1.0 / (fan_in ** 0.5)
    kw, kb = jax.random.split(key)
    w = jax.random.uniform(kw, (c_out, c_in, k), jnp.float32, -bound, bound)
    b = jax.random.uniform(kb, (c_out,), jnp.float32, -bound, bound)
    return w, b


def init_linear(key, d_in, d_out):
    bound = 1.0 / (d_in ** 0.5)
    kw, kb = jax.random.split(key)
    w = jax.random.uniform(kw, (d_out, d_in), jnp.float32, -bound, bound)
    b = jax.random.uniform(kb, (d_out,), jnp.float32, -bound, bound)
    return w, b


if __name__ == "__main__":
    # Small configuration consistent with the ConvModel architecture.
    num_wavenumbers = 128
    num_curves = 5
    channels = [1, 16, 16, 16, 16, 32]   # channels with the inserted input=1
    kernel_sizes = [7, 5, 5, 3, 3]
    strides = [1, 2, 2, 2, 1]
    hiddens_mid = [64, 32]
    batch = 2

    # Derive conv_out_size exactly as the conv stack produces it.
    L = num_wavenumbers
    for k, s in zip(kernel_sizes, strides):
        p = (k - 1) // 2
        L = (L + 2 * p - k) // s + 1
    conv_out_size = L
    conv_out_params = conv_out_size * channels[-1]
    hiddens = [conv_out_params] + hiddens_mid + [num_curves]

    root = jax.random.PRNGKey(0)
    kx, kc, kf = jax.random.split(root, 3)

    x = jax.random.normal(kx, (batch, num_wavenumbers), jnp.float32)

    conv_keys = jax.random.split(kc, len(kernel_sizes))
    conv_params = []
    for i in range(len(kernel_sizes)):
        w, b = init_conv(conv_keys[i], channels[i], channels[i + 1], kernel_sizes[i])
        conv_params.append((w, b, strides[i]))

    fc_keys = jax.random.split(kf, len(hiddens) - 1)
    fc_params = []
    for i in range(len(hiddens) - 1):
        fc_params.append(init_linear(fc_keys[i], hiddens[i], hiddens[i + 1]))

    out = conv_model_forward(x, conv_params, fc_params)
    out = jax.block_until_ready(out)
    assert out.shape == (batch, num_curves), out.shape

    ref = reference_forward(x, conv_params, fc_params)
    assert jnp.allclose(out, ref, rtol=2e-3, atol=2e-3), (
        "mismatch vs pure-JAX reference: "
        f"max abs diff {jnp.max(jnp.abs(out - ref))}"
    )

    print("KERNEL_OK")
</pallas_src>

<mosaic_0001>
module attributes {stable_mosaic.version = 11 : i64} {
  func.func @kernel(%arg0: i32, %arg1: memref<1x256xf32, #tpu.memory_space<vmem>>, %arg2: memref<112x1xf32, #tpu.memory_space<vmem>>, %arg3: memref<16x1xf32, #tpu.memory_space<vmem>>, %arg4: memref<80x16xf32, #tpu.memory_space<vmem>>, %arg5: memref<16x1xf32, #tpu.memory_space<vmem>>, %arg6: memref<80x16xf32, #tpu.memory_space<vmem>>, %arg7: memref<16x1xf32, #tpu.memory_space<vmem>>, %arg8: memref<48x16xf32, #tpu.memory_space<vmem>>, %arg9: memref<16x1xf32, #tpu.memory_space<vmem>>, %arg10: memref<96x16xf32, #tpu.memory_space<vmem>>, %arg11: memref<32x1xf32, #tpu.memory_space<vmem>>, %arg12: memref<1024x32xf32, #tpu.memory_space<vmem>>, %arg13: memref<64x1xf32, #tpu.memory_space<vmem>>, %arg14: memref<32x64xf32, #tpu.memory_space<vmem>>, %arg15: memref<32x1xf32, #tpu.memory_space<vmem>>, %arg16: memref<5x32xf32, #tpu.memory_space<vmem>>, %arg17: memref<5x1xf32, #tpu.memory_space<vmem>>, %arg18: memref<5x2xf32, #tpu.memory_space<vmem>>) attributes {dimension_semantics = [#tpu.dimension_semantics<arbitrary>], iteration_bounds = array<i64: 1>, scalar_prefetch = 0 : i64, scratch_operands = 0 : i64, tpu.core_type = #tpu.core_type<tc>, window_params = [{pipeline_mode = #tpu.pipeline_mode<synchronous>, transform_indices = @transform_0, window_bounds = array<i64: 1, 256>}, {pipeline_mode = #tpu.pipeline_mode<synchronous>, transform_indices = @transform_1, window_bounds = array<i64: 112, 1>}, {pipeline_mode = #tpu.pipeline_mode<synchronous>, transform_indices = @transform_2, window_bounds = array<i64: 16, 1>}, {pipeline_mode = #tpu.pipeline_mode<synchronous>, transform_indices = @transform_3, window_bounds = array<i64: 80, 16>}, {pipeline_mode = #tpu.pipeline_mode<synchronous>, transform_indices = @transform_4, window_bounds = array<i64: 16, 1>}, {pipeline_mode = #tpu.pipeline_mode<synchronous>, transform_indices = @transform_5, window_bounds = array<i64: 80, 16>}, {pipeline_mode = #tpu.pipeline_mode<synchronous>, transform_indices = @transform_6, window_bounds = array<i64: 16, 1>}, {pipeline_mode = #tpu.pipeline_mode<synchronous>, transform_indices = @transform_7, window_bounds = array<i64: 48, 16>}, {pipeline_mode = #tpu.pipeline_mode<synchronous>, transform_indices = @transform_8, window_bounds = array<i64: 16, 1>}, {pipeline_mode = #tpu.pipeline_mode<synchronous>, transform_indices = @transform_9, window_bounds = array<i64: 96, 16>}, {pipeline_mode = #tpu.pipeline_mode<synchronous>, transform_indices = @transform_10, window_bounds = array<i64: 32, 1>}, {pipeline_mode = #tpu.pipeline_mode<synchronous>, transform_indices = @transform_11, window_bounds = array<i64: 1024, 32>}, {pipeline_mode = #tpu.pipeline_mode<synchronous>, transform_indices = @transform_12, window_bounds = array<i64: 64, 1>}, {pipeline_mode = #tpu.pipeline_mode<synchronous>, transform_indices = @transform_13, window_bounds = array<i64: 32, 64>}, {pipeline_mode = #tpu.pipeline_mode<synchronous>, transform_indices = @transform_14, window_bounds = array<i64: 32, 1>}, {pipeline_mode = #tpu.pipeline_mode<synchronous>, transform_indices = @transform_15, window_bounds = array<i64: 5, 32>}, {pipeline_mode = #tpu.pipeline_mode<synchronous>, transform_indices = @transform_16, window_bounds = array<i64: 5, 1>}, {pipeline_mode = #tpu.pipeline_mode<synchronous>, transform_indices = @transform_17, window_bounds = array<i64: 5, 2>}]} {
    %c0 = arith.constant 0 : index
    %c0_0 = arith.constant 0 : index
    %0 = vector.load %arg1[%c0, %c0_0] : memref<1x256xf32, #tpu.memory_space<vmem>>, vector<1x256xf32>
    %c0_1 = arith.constant 0 : index
    %c0_2 = arith.constant 0 : index
    %1 = vector.load %arg2[%c0_1, %c0_2] : memref<112x1xf32, #tpu.memory_space<vmem>>, vector<112x1xf32>
    %c0_3 = arith.constant 0 : index
    %c0_4 = arith.constant 0 : index
    %2 = vector.load %arg3[%c0_3, %c0_4] : memref<16x1xf32, #tpu.memory_space<vmem>>, vector<16x1xf32>
    %3 = tpu.iota {dimensions = array<i32: 0>} : vector<256x256xi32>
    %4 = tpu.iota {dimensions = array<i32: 1>} : vector<256x256xi32>
    %c1_i32 = arith.constant 1 : i32
    %5 = vector.broadcast %c1_i32 : i32 to vector<256x256xi32>
    %6 = arith.andi %3, %5 : vector<256x256xi32>
    %c1_i32_5 = arith.constant 1 : i32
    %7 = vector.broadcast %c1_i32_5 : i32 to vector<256x256xi32>
    %8 = arith.andi %4, %7 : vector<256x256xi32>
    %9 = arith.cmpi eq, %6, %8 : vector<256x256xi32>
    %c1_i32_6 = arith.constant 1 : i32
    %10 = vector.broadcast %c1_i32_6 : i32 to vector<256x256xi32>
    %11 = arith.shrsi %3, %10 : vector<256x256xi32>
    %c1_i32_7 = arith.constant 1 : i32
    %12 = vector.broadcast %c1_i32_7 : i32 to vector<256x256xi32>
    %13 = arith.shrsi %4, %12 : vector<256x256xi32>
    %c1_i32_8 = arith.constant 1 : i32
    %14 = vector.broadcast %c1_i32_8 : i32 to vector<256x256xi32>
    %15 = arith.muli %14, %13 : vector<256x256xi32>
    %cst = arith.constant 0.000000e+00 : f32
    %16 = vector.broadcast %cst : f32 to vector<16x256xf32>
    %17 = vector.extract_strided_slice %1 {offsets = [0, 0], sizes = [16, 1], strides = [1, 1]} : vector<112x1xf32> to vector<16x1xf32>
    %18 = vector.broadcast %17 : vector<16x1xf32> to vector<16x256xf32>
    %19 = vector.broadcast %0 : vector<1x256xf32> to vector<16x256xf32>
    %20 = arith.mulf %18, %19 : vector<16x256xf32>
    %c-3_i32 = arith.constant -3 : i32
    %21 = vector.broadcast %c-3_i32 : i32 to vector<256x256xi32>
    %22 = arith.addi %15, %21 : vector<256x256xi32>
    %23 = arith.cmpi eq, %11, %22 : vector<256x256xi32>
    %24 = arith.andi %9, %23 : vector<256x256xi1>
    %cst_9 = arith.constant 1.000000e+00 : f32
    %cst_10 = arith.constant 0.000000e+00 : f32
    %25 = vector.broadcast %cst_9 : f32 to vector<256x256xf32>
    %26 = vector.broadcast %cst_10 : f32 to vector<256x256xf32>
    %27 = arith.select %24, %25, %26 : vector<256x256xi1>, vector<256x256xf32>
    %cst_11 = arith.constant dense<0.000000e+00> : vector<16x256xf32>
    %28 = tpu.matmul %20, %27, %cst_11 {dimension_numbers = #tpu.dot_dimension_numbers<[1], [0], [0], [1], [0, 0, 1, 1], [], []>} : vector<16x256xf32>, vector<256x256xf32>, vector<16x256xf32> -> vector<16x256xf32>
    %29 = arith.addf %16, %28 : vector<16x256xf32>
    %30 = vector.extract_strided_slice %1 {offsets = [16, 0], sizes = [16, 1], strides = [1, 1]} : vector<112x1xf32> to vector<16x1xf32>
    %31 = vector.broadcast %30 : vector<16x1xf32> to vector<16x256xf32>
    %32 = vector.broadcast %0 : vector<1x256xf32> to vector<16x256xf32>
    %33 = arith.mulf %31, %32 : vector<16x256xf32>
    %c-2_i32 = arith.constant -2 : i32
    %34 = vector.broadcast %c-2_i32 : i32 to vector<256x256xi32>
    %35 = arith.addi %15, %34 : vector<256x256xi32>
    %36 = arith.cmpi eq, %11, %35 : vector<256x256xi32>
    %37 = arith.andi %9, %36 : vector<256x256xi1>
    %cst_12 = arith.constant 1.000000e+00 : f32
    %cst_13 = arith.constant 0.000000e+00 : f32
    %38 = vector.broadcast %cst_12 : f32 to vector<256x256xf32>
    %39 = vector.broadcast %cst_13 : f32 to vector<256x256xf32>
    %40 = arith.select %37, %38, %39 : vector<256x256xi1>, vector<256x256xf32>
    %cst_14 = arith.constant dense<0.000000e+00> : vector<16x256xf32>
    %41 = tpu.matmul %33, %40, %cst_14 {dimension_numbers = #tpu.dot_dimension_numbers<[1], [0], [0], [1], [0, 0, 1, 1], [], []>} : vector<16x256xf32>, vector<256x256xf32>, vector<16x256xf32> -> vector<16x256xf32>
    %42 = arith.addf %29, %41 : vector<16x256xf32>
    %43 = vector.extract_strided_slice %1 {offsets = [32, 0], sizes = [16, 1], strides = [1, 1]} : vector<112x1xf32> to vector<16x1xf32>
    %44 = vector.broadcast %43 : vector<16x1xf32> to vector<16x256xf32>
    %45 = vector.broadcast %0 : vector<1x256xf32> to vector<16x256xf32>
    %46 = arith.mulf %44, %45 : vector<16x256xf32>
    %c-1_i32 = arith.constant -1 : i32
    %47 = vector.broadcast %c-1_i32 : i32 to vector<256x256xi32>
    %48 = arith.addi %15, %47 : vector<256x256xi32>
    %49 = arith.cmpi eq, %11, %48 : vector<256x256xi32>
    %50 = arith.andi %9, %49 : vector<256x256xi1>
    %cst_15 = arith.constant 1.000000e+00 : f32
    %cst_16 = arith.constant 0.000000e+00 : f32
    %51 = vector.broadcast %cst_15 : f32 to vector<256x256xf32>
    %52 = vector.broadcast %cst_16 : f32 to vector<256x256xf32>
    %53 = arith.select %50, %51, %52 : vector<256x256xi1>, vector<256x256xf32>
    %cst_17 = arith.constant dense<0.000000e+00> : vector<16x256xf32>
    %54 = tpu.matmul %46, %53, %cst_17 {dimension_numbers = #tpu.dot_dimension_numbers<[1], [0], [0], [1], [0, 0, 1, 1], [], []>} : vector<16x256xf32>, vector<256x256xf32>, vector<16x256xf32> -> vector<16x256xf32>
    %55 = arith.addf %42, %54 : vector<16x256xf32>
    %56 = vector.extract_strided_slice %1 {offsets = [48, 0], sizes = [16, 1], strides = [1, 1]} : vector<112x1xf32> to vector<16x1xf32>
    %57 = vector.broadcast %56 : vector<16x1xf32> to vector<16x256xf32>
    %58 = vector.broadcast %0 : vector<1x256xf32> to vector<16x256xf32>
    %59 = arith.mulf %57, %58 : vector<16x256xf32>
    %c0_i32 = arith.constant 0 : i32
    %60 = vector.broadcast %c0_i32 : i32 to vector<256x256xi32>
    %61 = arith.addi %15, %60 : vector<256x256xi32>
    %62 = arith.cmpi eq, %11, %61 : vector<256x256xi32>
    %63 = arith.andi %9, %62 : vector<256x256xi1>
    %cst_18 = arith.constant 1.000000e+00 : f32
    %cst_19 = arith.constant 0.000000e+00 : f32
    %64 = vector.broadcast %cst_18 : f32 to vector<256x256xf32>
    %65 = vector.broadcast %cst_19 : f32 to vector<256x256xf32>
    %66 = arith.select %63, %64, %65 : vector<256x256xi1>, vector<256x256xf32>
    %cst_20 = arith.constant dense<0.000000e+00> : vector<16x256xf32>
    %67 = tpu.matmul %59, %66, %cst_20 {dimension_numbers = #tpu.dot_dimension_numbers<[1], [0], [0], [1], [0, 0, 1, 1], [], []>} : vector<16x256xf32>, vector<256x256xf32>, vector<16x256xf32> -> vector<16x256xf32>
    %68 = arith.addf %55, %67 : vector<16x256xf32>
    %69 = vector.extract_strided_slice %1 {offsets = [64, 0], sizes = [16, 1], strides = [1, 1]} : vector<112x1xf32> to vector<16x1xf32>
    %70 = vector.broadcast %69 : vector<16x1xf32> to vector<16x256xf32>
    %71 = vector.broadcast %0 : vector<1x256xf32> to vector<16x256xf32>
    %72 = arith.mulf %70, %71 : vector<16x256xf32>
    %c1_i32_21 = arith.constant 1 : i32
    %73 = vector.broadcast %c1_i32_21 : i32 to vector<256x256xi32>
    %74 = arith.addi %15, %73 : vector<256x256xi32>
    %75 = arith.cmpi eq, %11, %74 : vector<256x256xi32>
    %76 = arith.andi %9, %75 : vector<256x256xi1>
    %cst_22 = arith.constant 1.000000e+00 : f32
    %cst_23 = arith.constant 0.000000e+00 : f32
    %77 = vector.broadcast %cst_22 : f32 to vector<256x256xf32>
    %78 = vector.broadcast %cst_23 : f32 to vector<256x256xf32>
    %79 = arith.select %76, %77, %78 : vector<256x256xi1>, vector<256x256xf32>
    %cst_24 = arith.constant dense<0.000000e+00> : vector<16x256xf32>
    %80 = tpu.matmul %72, %79, %cst_24 {dimension_numbers = #tpu.dot_dimension_numbers<[1], [0], [0], [1], [0, 0, 1, 1], [], []>} : vector<16x256xf32>, vector<256x256xf32>, vector<16x256xf32> -> vector<16x256xf32>
    %81 = arith.addf %68, %80 : vector<16x256xf32>
    %82 = vector.extract_strided_slice %1 {offsets = [80, 0], sizes = [16, 1], strides = [1, 1]} : vector<112x1xf32> to vector<16x1xf32>
    %83 = vector.broadcast %82 : vector<16x1xf32> to vector<16x256xf32>
    %84 = vector.broadcast %0 : vector<1x256xf32> to vector<16x256xf32>
    %85 = arith.mulf %83, %84 : vector<16x256xf32>
    %c2_i32 = arith.constant 2 : i32
    %86 = vector.broadcast %c2_i32 : i32 to vector<256x256xi32>
    %87 = arith.addi %15, %86 : vector<256x256xi32>
    %88 = arith.cmpi eq, %11, %87 : vector<256x256xi32>
    %89 = arith.andi %9, %88 : vector<256x256xi1>
    %cst_25 = arith.constant 1.000000e+00 : f32
    %cst_26 = arith.constant 0.000000e+00 : f32
    %90 = vector.broadcast %cst_25 : f32 to vector<256x256xf32>
    %91 = vector.broadcast %cst_26 : f32 to vector<256x256xf32>
    %92 = arith.select %89, %90, %91 : vector<256x256xi1>, vector<256x256xf32>
    %cst_27 = arith.constant dense<0.000000e+00> : vector<16x256xf32>
    %93 = tpu.matmul %85, %92, %cst_27 {dimension_numbers = #tpu.dot_dimension_numbers<[1], [0], [0], [1], [0, 0, 1, 1], [], []>} : vector<16x256xf32>, vector<256x256xf32>, vector<16x256xf32> -> vector<16x256xf32>
    %94 = arith.addf %81, %93 : vector<16x256xf32>
    %95 = vector.extract_strided_slice %1 {offsets = [96, 0], sizes = [16, 1], strides = [1, 1]} : vector<112x1xf32> to vector<16x1xf32>
    %96 = vector.broadcast %95 : vector<16x1xf32> to vector<16x256xf32>
    %97 = vector.broadcast %0 : vector<1x256xf32> to vector<16x256xf32>
    %98 = arith.mulf %96, %97 : vector<16x256xf32>
    %c3_i32 = arith.constant 3 : i32
    %99 = vector.broadcast %c3_i32 : i32 to vector<256x256xi32>
    %100 = arith.addi %15, %99 : vector<256x256xi32>
    %101 = arith.cmpi eq, %11, %100 : vector<256x256xi32>
    %102 = arith.andi %9, %101 : vector<256x256xi1>
    %cst_28 = arith.constant 1.000000e+00 : f32
    %cst_29 = arith.constant 0.000000e+00 : f32
    %103 = vector.broadcast %cst_28 : f32 to vector<256x256xf32>
    %104 = vector.broadcast %cst_29 : f32 to vector<256x256xf32>
    %105 = arith.select %102, %103, %104 : vector<256x256xi1>, vector<256x256xf32>
    %cst_30 = arith.constant dense<0.000000e+00> : vector<16x256xf32>
    %106 = tpu.matmul %98, %105, %cst_30 {dimension_numbers = #tpu.dot_dimension_numbers<[1], [0], [0], [1], [0, 0, 1, 1], [], []>} : vector<16x256xf32>, vector<256x256xf32>, vector<16x256xf32> -> vector<16x256xf32>
    %107 = arith.addf %94, %106 : vector<16x256xf32>
    %108 = vector.broadcast %2 : vector<16x1xf32> to vector<16x256xf32>
    %109 = arith.addf %107, %108 : vector<16x256xf32>
    %cst_31 = arith.constant 0.000000e+00 : f32
    %110 = vector.broadcast %cst_31 : f32 to vector<16x256xf32>
    %111 = arith.cmpf oge, %109, %110 : vector<16x256xf32>
    %cst_32 = arith.constant 0.00999999977 : f32
    %112 = vector.broadcast %cst_32 : f32 to vector<16x256xf32>
    %113 = arith.mulf %112, %109 : vector<16x256xf32>
    %114 = arith.select %111, %109, %113 : vector<16x256xi1>, vector<16x256xf32>
    %c0_33 = arith.constant 0 : index
    %c0_34 = arith.constant 0 : index
    %115 = vector.load %arg4[%c0_33, %c0_34] : memref<80x16xf32, #tpu.memory_space<vmem>>, vector<80x16xf32>
    %c0_35 = arith.constant 0 : index
    %c0_36 = arith.constant 0 : index
    %116 = vector.load %arg5[%c0_35, %c0_36] : memref<16x1xf32, #tpu.memory_space<vmem>>, vector<16x1xf32>
    %117 = tpu.iota {dimensions = array<i32: 0>} : vector<256x128xi32>
    %118 = tpu.iota {dimensions = array<i32: 1>} : vector<256x128xi32>
    %c1_i32_37 = arith.constant 1 : i32
    %119 = vector.broadcast %c1_i32_37 : i32 to vector<256x128xi32>
    %120 = arith.andi %117, %119 : vector<256x128xi32>
    %c1_i32_38 = arith.constant 1 : i32
    %121 = vector.broadcast %c1_i32_38 : i32 to vector<256x128xi32>
    %122 = arith.andi %118, %121 : vector<256x128xi32>
    %123 = arith.cmpi eq, %120, %122 : vector<256x128xi32>
    %c1_i32_39 = arith.constant 1 : i32
    %124 = vector.broadcast %c1_i32_39 : i32 to vector<256x128xi32>
    %125 = arith.shrsi %117, %124 : vector<256x128xi32>
    %c1_i32_40 = arith.constant 1 : i32
    %126 = vector.broadcast %c1_i32_40 : i32 to vector<256x128xi32>
    %127 = arith.shrsi %118, %126 : vector<256x128xi32>
    %c2_i32_41 = arith.constant 2 : i32
    %128 = vector.broadcast %c2_i32_41 : i32 to vector<256x128xi32>
    %129 = arith.muli %128, %127 : vector<256x128xi32>
    %cst_42 = arith.constant 0.000000e+00 : f32
    %130 = vector.broadcast %cst_42 : f32 to vector<16x128xf32>
    %131 = vector.extract_strided_slice %115 {offsets = [0, 0], sizes = [16, 16], strides = [1, 1]} : vector<80x16xf32> to vector<16x16xf32>
    %cst_43 = arith.constant dense<0.000000e+00> : vector<16x256xf32>
    %132 = tpu.matmul %131, %114, %cst_43 {dimension_numbers = #tpu.dot_dimension_numbers<[1], [0], [0], [1], [0, 0, 1, 1], [], []>} : vector<16x16xf32>, vector<16x256xf32>, vector<16x256xf32> -> vector<16x256xf32>
    %c-2_i32_44 = arith.constant -2 : i32
    %133 = vector.broadcast %c-2_i32_44 : i32 to vector<256x128xi32>
    %134 = arith.addi %129, %133 : vector<256x128xi32>
    %135 = arith.cmpi eq, %125, %134 : vector<256x128xi32>
    %136 = arith.andi %123, %135 : vector<256x128xi1>
    %cst_45 = arith.constant 1.000000e+00 : f32
    %cst_46 = arith.constant 0.000000e+00 : f32
    %137 = vector.broadcast %cst_45 : f32 to vector<256x128xf32>
    %138 = vector.broadcast %cst_46 : f32 to vector<256x128xf32>
    %139 = arith.select %136, %137, %138 : vector<256x128xi1>, vector<256x128xf32>
    %cst_47 = arith.constant dense<0.000000e+00> : vector<16x128xf32>
    %140 = tpu.matmul %132, %139, %cst_47 {dimension_numbers = #tpu.dot_dimension_numbers<[1], [0], [0], [1], [0, 0, 1, 1], [], []>} : vector<16x256xf32>, vector<256x128xf32>, vector<16x128xf32> -> vector<16x128xf32>
    %141 = arith.addf %130, %140 : vector<16x128xf32>
    %142 = vector.extract_strided_slice %115 {offsets = [16, 0], sizes = [16, 16], strides = [1, 1]} : vector<80x16xf32> to vector<16x16xf32>
    %cst_48 = arith.constant dense<0.000000e+00> : vector<16x256xf32>
    %143 = tpu.matmul %142, %114, %cst_48 {dimension_numbers = #tpu.dot_dimension_numbers<[1], [0], [0], [1], [0, 0, 1, 1], [], []>} : vector<16x16xf32>, vector<16x256xf32>, vector<16x256xf32> -> vector<16x256xf32>
    %c-1_i32_49 = arith.constant -1 : i32
    %144 = vector.broadcast %c-1_i32_49 : i32 to vector<256x128xi32>
    %145 = arith.addi %129, %144 : vector<256x128xi32>
    %146 = arith.cmpi eq, %125, %145 : vector<256x128xi32>
    %147 = arith.andi %123, %146 : vector<256x128xi1>
    %cst_50 = arith.constant 1.000000e+00 : f32
    %cst_51 = arith.constant 0.000000e+00 : f32
    %148 = vector.broadcast %cst_50 : f32 to vector<256x128xf32>
    %149 = vector.broadcast %cst_51 : f32 to vector<256x128xf32>
    %150 = arith.select %147, %148, %149 : vector<256x128xi1>, vector<256x128xf32>
    %cst_52 = arith.constant dense<0.000000e+00> : vector<16x128xf32>
    %151 = tpu.matmul %143, %150, %cst_52 {dimension_numbers = #tpu.dot_dimension_numbers<[1], [0], [0], [1], [0, 0, 1, 1], [], []>} : vector<16x256xf32>, vector<256x128xf32>, vector<16x128xf32> -> vector<16x128xf32>
    %152 = arith.addf %141, %151 : vector<16x128xf32>
    %153 = vector.extract_strided_slice %115 {offsets = [32, 0], sizes = [16, 16], strides = [1, 1]} : vector<80x16xf32> to vector<16x16xf32>
    %cst_53 = arith.constant dense<0.000000e+00> : vector<16x256xf32>
    %154 = tpu.matmul %153, %114, %cst_53 {dimension_numbers = #tpu.dot_dimension_numbers<[1], [0], [0], [1], [0, 0, 1, 1], [], []>} : vector<16x16xf32>, vector<16x256xf32>, vector<16x256xf32> -> vector<16x256xf32>
    %c0_i32_54 = arith.constant 0 : i32
    %155 = vector.broadcast %c0_i32_54 : i32 to vector<256x128xi32>
    %156 = arith.addi %129, %155 : vector<256x128xi32>
    %157 = arith.cmpi eq, %125, %156 : vector<256x128xi32>
    %158 = arith.andi %123, %157 : vector<256x128xi1>
    %cst_55 = arith.constant 1.000000e+00 : f32
    %cst_56 = arith.constant 0.000000e+00 : f32
    %159 = vector.broadcast %cst_55 : f32 to vector<256x128xf32>
    %160 = vector.broadcast %cst_56 : f32 to vector<256x128xf32>
    %161 = arith.select %158, %159, %160 : vector<256x128xi1>, vector<256x128xf32>
    %cst_57 = arith.constant dense<0.000000e+00> : vector<16x128xf32>
    %162 = tpu.matmul %154, %161, %cst_57 {dimension_numbers = #tpu.dot_dimension_numbers<[1], [0], [0], [1], [0, 0, 1, 1], [], []>} : vector<16x256xf32>, vector<256x128xf32>, vector<16x128xf32> -> vector<16x128xf32>
    %163 = arith.addf %152, %162 : vector<16x128xf32>
    %164 = vector.extract_strided_slice %115 {offsets = [48, 0], sizes = [16, 16], strides = [1, 1]} : vector<80x16xf32> to vector<16x16xf32>
    %cst_58 = arith.constant dense<0.000000e+00> : vector<16x256xf32>
    %165 = tpu.matmul %164, %114, %cst_58 {dimension_numbers = #tpu.dot_dimension_numbers<[1], [0], [0], [1], [0, 0, 1, 1], [], []>} : vector<16x16xf32>, vector<16x256xf32>, vector<16x256xf32> -> vector<16x256xf32>
    %c1_i32_59 = arith.constant 1 : i32
    %166 = vector.broadcast %c1_i32_59 : i32 to vector<256x128xi32>
    %167 = arith.addi %129, %166 : vector<256x128xi32>
    %168 = arith.cmpi eq, %125, %167 : vector<256x128xi32>
    %169 = arith.andi %123, %168 : vector<256x128xi1>
    %cst_60 = arith.constant 1.000000e+00 : f32
    %cst_61 = arith.constant 0.000000e+00 : f32
    %170 = vector.broadcast %cst_60 : f32 to vector<256x128xf32>
    %171 = vector.broadcast %cst_61 : f32 to vector<256x128xf32>
    %172 = arith.select %169, %170, %171 : vector<256x128xi1>, vector<256x128xf32>
    %cst_62 = arith.constant dense<0.000000e+00> : vector<16x128xf32>
    %173 = tpu.matmul %165, %172, %cst_62 {dimension_numbers = #tpu.dot_dimension_numbers<[1], [0], [0], [1], [0, 0, 1, 1], [], []>} : vector<16x256xf32>, vector<256x128xf32>, vector<16x128xf32> -> vector<16x128xf32>
    %174 = arith.addf %163, %173 : vector<16x128xf32>
    %175 = vector.extract_strided_slice %115 {offsets = [64, 0], sizes = [16, 16], strides = [1, 1]} : vector<80x16xf32> to vector<16x16xf32>
    %cst_63 = arith.constant dense<0.000000e+00> : vector<16x256xf32>
    %176 = tpu.matmul %175, %114, %cst_63 {dimension_numbers = #tpu.dot_dimension_numbers<[1], [0], [0], [1], [0, 0, 1, 1], [], []>} : vector<16x16xf32>, vector<16x256xf32>, vector<16x256xf32> -> vector<16x256xf32>
    %c2_i32_64 = arith.constant 2 : i32
    %177 = vector.broadcast %c2_i32_64 : i32 to vector<256x128xi32>
    %178 = arith.addi %129, %177 : vector<256x128xi32>
    %179 = arith.cmpi eq, %125, %178 : vector<256x128xi32>
    %180 = arith.andi %123, %179 : vector<256x128xi1>
    %cst_65 = arith.constant 1.000000e+00 : f32
    %cst_66 = arith.constant 0.000000e+00 : f32
    %181 = vector.broadcast %cst_65 : f32 to vector<256x128xf32>
    %182 = vector.broadcast %cst_66 : f32 to vector<256x128xf32>
    %183 = arith.select %180, %181, %182 : vector<256x128xi1>, vector<256x128xf32>
    %cst_67 = arith.constant dense<0.000000e+00> : vector<16x128xf32>
    %184 = tpu.matmul %176, %183, %cst_67 {dimension_numbers = #tpu.dot_dimension_numbers<[1], [0], [0], [1], [0, 0, 1, 1], [], []>} : vector<16x256xf32>, vector<256x128xf32>, vector<16x128xf32> -> vector<16x128xf32>
    %185 = arith.addf %174, %184 : vector<16x128xf32>
    %186 = vector.broadcast %116 : vector<16x1xf32> to vector<16x128xf32>
    %187 = arith.addf %185, %186 : vector<16x128xf32>
    %cst_68 = arith.constant 0.000000e+00 : f32
    %188 = vector.broadcast %cst_68 : f32 to vector<16x128xf32>
    %189 = arith.cmpf oge, %187, %188 : vector<16x128xf32>
    %cst_69 = arith.constant 0.00999999977 : f32
    %190 = vector.broadcast %cst_69 : f32 to vector<16x128xf32>
    %191 = arith.mulf %190, %187 : vector<16x128xf32>
    %192 = arith.select %189, %187, %191 : vector<16x128xi1>, vector<16x128xf32>
    %c0_70 = arith.constant 0 : index
    %c0_71 = arith.constant 0 : index
    %193 = vector.load %arg6[%c0_70, %c0_71] : memref<80x16xf32, #tpu.memory_space<vmem>>, vector<80x16xf32>
    %c0_72 = arith.constant 0 : index
    %c0_73 = arith.constant 0 : index
    %194 = vector.load %arg7[%c0_72, %c0_73] : memref<16x1xf32, #tpu.memory_space<vmem>>, vector<16x1xf32>
    %195 = tpu.iota {dimensions = array<i32: 0>} : vector<128x64xi32>
    %196 = tpu.iota {dimensions = array<i32: 1>} : vector<128x64xi32>
    %c1_i32_74 = arith.constant 1 : i32
    %197 = vector.broadcast %c1_i32_74 : i32 to vector<128x64xi32>
    %198 = arith.andi %195, %197 : vector<128x64xi32>
    %c1_i32_75 = arith.constant 1 : i32
    %199 = vector.broadcast %c1_i32_75 : i32 to vector<128x64xi32>
    %200 = arith.andi %196, %199 : vector<128x64xi32>
    %201 = arith.cmpi eq, %198, %200 : vector<128x64xi32>
    %c1_i32_76 = arith.constant 1 : i32
    %202 = vector.broadcast %c1_i32_76 : i32 to vector<128x64xi32>
    %203 = arith.shrsi %195, %202 : vector<128x64xi32>
    %c1_i32_77 = arith.constant 1 : i32
    %204 = vector.broadcast %c1_i32_77 : i32 to vector<128x64xi32>
    %205 = arith.shrsi %196, %204 : vector<128x64xi32>
    %c2_i32_78 = arith.constant 2 : i32
    %206 = vector.broadcast %c2_i32_78 : i32 to vector<128x64xi32>
    %207 = arith.muli %206, %205 : vector<128x64xi32>
    %cst_79 = arith.constant 0.000000e+00 : f32
    %208 = vector.broadcast %cst_79 : f32 to vector<16x64xf32>
    %209 = vector.extract_strided_slice %193 {offsets = [0, 0], sizes = [16, 16], strides = [1, 1]} : vector<80x16xf32> to vector<16x16xf32>
    %cst_80 = arith.constant dense<0.000000e+00> : vector<16x128xf32>
    %210 = tpu.matmul %209, %192, %cst_80 {dimension_numbers = #tpu.dot_dimension_numbers<[1], [0], [0], [1], [0, 0, 1, 1], [], []>} : vector<16x16xf32>, vector<16x128xf32>, vector<16x128xf32> -> vector<16x128xf32>
    %c-2_i32_81 = arith.constant -2 : i32
    %211 = vector.broadcast %c-2_i32_81 : i32 to vector<128x64xi32>
    %212 = arith.addi %207, %211 : vector<128x64xi32>
    %213 = arith.cmpi eq, %203, %212 : vector<128x64xi32>
    %214 = arith.andi %201, %213 : vector<128x64xi1>
    %cst_82 = arith.constant 1.000000e+00 : f32
    %cst_83 = arith.constant 0.000000e+00 : f32
    %215 = vector.broadcast %cst_82 : f32 to vector<128x64xf32>
    %216 = vector.broadcast %cst_83 : f32 to vector<128x64xf32>
    %217 = arith.select %214, %215, %216 : vector<128x64xi1>, vector<128x64xf32>
    %cst_84 = arith.constant dense<0.000000e+00> : vector<16x64xf32>
    %218 = tpu.matmul %210, %217, %cst_84 {dimension_numbers = #tpu.dot_dimension_numbers<[1], [0], [0], [1], [0, 0, 1, 1], [], []>} : vector<16x128xf32>, vector<128x64xf32>, vector<16x64xf32> -> vector<16x64xf32>
    %219 = arith.addf %208, %218 : vector<16x64xf32>
    %220 = vector.extract_strided_slice %193 {offsets = [16, 0], sizes = [16, 16], strides = [1, 1]} : vector<80x16xf32> to vector<16x16xf32>
    %cst_85 = arith.constant dense<0.000000e+00> : vector<16x128xf32>
    %221 = tpu.matmul %220, %192, %cst_85 {dimension_numbers = #tpu.dot_dimension_numbers<[1], [0], [0], [1], [0, 0, 1, 1], [], []>} : vector<16x16xf32>, vector<16x128xf32>, vector<16x128xf32> -> vector<16x128xf32>
    %c-1_i32_86 = arith.constant -1 : i32
    %222 = vector.broadcast %c-1_i32_86 : i32 to vector<128x64xi32>
    %223 = arith.addi %207, %222 : vector<128x64xi32>
    %224 = arith.cmpi eq, %203, %223 : vector<128x64xi32>
    %225 = arith.andi %201, %224 : vector<128x64xi1>
    %cst_87 = arith.constant 1.000000e+00 : f32
    %cst_88 = arith.constant 0.000000e+00 : f32
    %226 = vector.broadcast %cst_87 : f32 to vector<128x64xf32>
    %227 = vector.broadcast %cst_88 : f32 to vector<128x64xf32>
    %228 = arith.select %225, %226, %227 : vector<128x64xi1>, vector<128x64xf32>
    %cst_89 = arith.constant dense<0.000000e+00> : vector<16x64xf32>
    %229 = tpu.matmul %221, %228, %cst_89 {dimension_numbers = #tpu.dot_dimension_numbers<[1], [0], [0], [1], [0, 0, 1, 1], [], []>} : vector<16x128xf32>, vector<128x64xf32>, vector<16x64xf32> -> vector<16x64xf32>
    %230 = arith.addf %219, %229 : vector<16x64xf32>
    %231 = vector.extract_strided_slice %193 {offsets = [32, 0], sizes = [16, 16], strides = [1, 1]} : vector<80x16xf32> to vector<16x16xf32>
    %cst_90 = arith.constant dense<0.000000e+00> : vector<16x128xf32>
    %232 = tpu.matmul %231, %192, %cst_90 {dimension_numbers = #tpu.dot_dimension_numbers<[1], [0], [0], [1], [0, 0, 1, 1], [], []>} : vector<16x16xf32>, vector<16x128xf32>, vector<16x128xf32> -> vector<16x128xf32>
    %c0_i32_91 = arith.constant 0 : i32
    %233 = vector.broadcast %c0_i32_91 : i32 to vector<128x64xi32>
    %234 = arith.addi %207, %233 : vector<128x64xi32>
    %235 = arith.cmpi eq, %203, %234 : vector<128x64xi32>
    %236 = arith.andi %201, %235 : vector<128x64xi1>
    %cst_92 = arith.constant 1.000000e+00 : f32
    %cst_93 = arith.constant 0.000000e+00 : f32
    %237 = vector.broadcast %cst_92 : f32 to vector<128x64xf32>
    %238 = vector.broadcast %cst_93 : f32 to vector<128x64xf32>
    %239 = arith.select %236, %237, %238 : vector<128x64xi1>, vector<128x64xf32>
    %cst_94 = arith.constant dense<0.000000e+00> : vector<16x64xf32>
    %240 = tpu.matmul %232, %239, %cst_94 {dimension_numbers = #tpu.dot_dimension_numbers<[1], [0], [0], [1], [0, 0, 1, 1], [], []>} : vector<16x128xf32>, vector<128x64xf32>, vector<16x64xf32> -> vector<16x64xf32>
    %241 = arith.addf %230, %240 : vector<16x64xf32>
    %242 = vector.extract_strided_slice %193 {offsets = [48, 0], sizes = [16, 16], strides = [1, 1]} : vector<80x16xf32> to vector<16x16xf32>
    %cst_95 = arith.constant dense<0.000000e+00> : vector<16x128xf32>
    %243 = tpu.matmul %242, %192, %cst_95 {dimension_numbers = #tpu.dot_dimension_numbers<[1], [0], [0], [1], [0, 0, 1, 1], [], []>} : vector<16x16xf32>, vector<16x128xf32>, vector<16x128xf32> -> vector<16x128xf32>
    %c1_i32_96 = arith.constant 1 : i32
    %244 = vector.broadcast %c1_i32_96 : i32 to vector<128x64xi32>
    %245 = arith.addi %207, %244 : vector<128x64xi32>
    %246 = arith.cmpi eq, %203, %245 : vector<128x64xi32>
    %247 = arith.andi %201, %246 : vector<128x64xi1>
    %cst_97 = arith.constant 1.000000e+00 : f32
    %cst_98 = arith.constant 0.000000e+00 : f32
    %248 = vector.broadcast %cst_97 : f32 to vector<128x64xf32>
    %249 = vector.broadcast %cst_98 : f32 to vector<128x64xf32>
    %250 = arith.select %247, %248, %249 : vector<128x64xi1>, vector<128x64xf32>
    %cst_99 = arith.constant dense<0.000000e+00> : vector<16x64xf32>
    %251 = tpu.matmul %243, %250, %cst_99 {dimension_numbers = #tpu.dot_dimension_numbers<[1], [0], [0], [1], [0, 0, 1, 1], [], []>} : vector<16x128xf32>, vector<128x64xf32>, vector<16x64xf32> -> vector<16x64xf32>
    %252 = arith.addf %241, %251 : vector<16x64xf32>
    %253 = vector.extract_strided_slice %193 {offsets = [64, 0], sizes = [16, 16], strides = [1, 1]} : vector<80x16xf32> to vector<16x16xf32>
    %cst_100 = arith.constant dense<0.000000e+00> : vector<16x128xf32>
    %254 = tpu.matmul %253, %192, %cst_100 {dimension_numbers = #tpu.dot_dimension_numbers<[1], [0], [0], [1], [0, 0, 1, 1], [], []>} : vector<16x16xf32>, vector<16x128xf32>, vector<16x128xf32> -> vector<16x128xf32>
    %c2_i32_101 = arith.constant 2 : i32
    %255 = vector.broadcast %c2_i32_101 : i32 to vector<128x64xi32>
    %256 = arith.addi %207, %255 : vector<128x64xi32>
    %257 = arith.cmpi eq, %203, %256 : vector<128x64xi32>
    %258 = arith.andi %201, %257 : vector<128x64xi1>
    %cst_102 = arith.constant 1.000000e+00 : f32
    %cst_103 = arith.constant 0.000000e+00 : f32
    %259 = vector.broadcast %cst_102 : f32 to vector<128x64xf32>
    %260 = vector.broadcast %cst_103 : f32 to vector<128x64xf32>
    %261 = arith.select %258, %259, %260 : vector<128x64xi1>, vector<128x64xf32>
    %cst_104 = arith.constant dense<0.000000e+00> : vector<16x64xf32>
    %262 = tpu.matmul %254, %261, %cst_104 {dimension_numbers = #tpu.dot_dimension_numbers<[1], [0], [0], [1], [0, 0, 1, 1], [], []>} : vector<16x128xf32>, vector<128x64xf32>, vector<16x64xf32> -> vector<16x64xf32>
    %263 = arith.addf %252, %262 : vector<16x64xf32>
    %264 = vector.broadcast %194 : vector<16x1xf32> to vector<16x64xf32>
    %265 = arith.addf %263, %264 : vector<16x64xf32>
    %cst_105 = arith.constant 0.000000e+00 : f32
    %266 = vector.broadcast %cst_105 : f32 to vector<16x64xf32>
    %267 = arith.cmpf oge, %265, %266 : vector<16x64xf32>
    %cst_106 = arith.constant 0.00999999977 : f32
    %268 = vector.broadcast %cst_106 : f32 to vector<16x64xf32>
    %269 = arith.mulf %268, %265 : vector<16x64xf32>
    %270 = arith.select %267, %265, %269 : vector<16x64xi1>, vector<16x64xf32>
    %c0_107 = arith.constant 0 : index
    %c0_108 = arith.constant 0 : index
    %271 = vector.load %arg8[%c0_107, %c0_108] : memref<48x16xf32, #tpu.memory_space<vmem>>, vector<48x16xf32>
    %c0_109 = arith.constant 0 : index
    %c0_110 = arith.constant 0 : index
    %272 = vector.load %arg9[%c0_109, %c0_110] : memref<16x1xf32, #tpu.memory_space<vmem>>, vector<16x1xf32>
    %273 = tpu.iota {dimensions = array<i32: 0>} : vector<64x32xi32>
    %274 = tpu.iota {dimensions = array<i32: 1>} : vector<64x32xi32>
    %c1_i32_111 = arith.constant 1 : i32
    %275 = vector.broadcast %c1_i32_111 : i32 to vector<64x32xi32>
    %276 = arith.andi %273, %275 : vector<64x32xi32>
    %c1_i32_112 = arith.constant 1 : i32
    %277 = vector.broadcast %c1_i32_112 : i32 to vector<64x32xi32>
    %278 = arith.andi %274, %277 : vector<64x32xi32>
    %279 = arith.cmpi eq, %276, %278 : vector<64x32xi32>
    %c1_i32_113 = arith.constant 1 : i32
    %280 = vector.broadcast %c1_i32_113 : i32 to vector<64x32xi32>
    %281 = arith.shrsi %273, %280 : vector<64x32xi32>
    %c1_i32_114 = arith.constant 1 : i32
    %282 = vector.broadcast %c1_i32_114 : i32 to vector<64x32xi32>
    %283 = arith.shrsi %274, %282 : vector<64x32xi32>
    %c2_i32_115 = arith.constant 2 : i32
    %284 = vector.broadcast %c2_i32_115 : i32 to vector<64x32xi32>
    %285 = arith.muli %284, %283 : vector<64x32xi32>
    %cst_116 = arith.constant 0.000000e+00 : f32
    %286 = vector.broadcast %cst_116 : f32 to vector<16x32xf32>
    %287 = vector.extract_strided_slice %271 {offsets = [0, 0], sizes = [16, 16], strides = [1, 1]} : vector<48x16xf32> to vector<16x16xf32>
    %cst_117 = arith.constant dense<0.000000e+00> : vector<16x64xf32>
    %288 = tpu.matmul %287, %270, %cst_117 {dimension_numbers = #tpu.dot_dimension_numbers<[1], [0], [0], [1], [0, 0, 1, 1], [], []>} : vector<16x16xf32>, vector<16x64xf32>, vector<16x64xf32> -> vector<16x64xf32>
    %c-1_i32_118 = arith.constant -1 : i32
    %289 = vector.broadcast %c-1_i32_118 : i32 to vector<64x32xi32>
    %290 = arith.addi %285, %289 : vector<64x32xi32>
    %291 = arith.cmpi eq, %281, %290 : vector<64x32xi32>
    %292 = arith.andi %279, %291 : vector<64x32xi1>
    %cst_119 = arith.constant 1.000000e+00 : f32
    %cst_120 = arith.constant 0.000000e+00 : f32
    %293 = vector.broadcast %cst_119 : f32 to vector<64x32xf32>
    %294 = vector.broadcast %cst_120 : f32 to vector<64x32xf32>
    %295 = arith.select %292, %293, %294 : vector<64x32xi1>, vector<64x32xf32>
    %cst_121 = arith.constant dense<0.000000e+00> : vector<16x32xf32>
    %296 = tpu.matmul %288, %295, %cst_121 {dimension_numbers = #tpu.dot_dimension_numbers<[1], [0], [0], [1], [0, 0, 1, 1], [], []>} : vector<16x64xf32>, vector<64x32xf32>, vector<16x32xf32> -> vector<16x32xf32>
    %297 = arith.addf %286, %296 : vector<16x32xf32>
    %298 = vector.extract_strided_slice %271 {offsets = [16, 0], sizes = [16, 16], strides = [1, 1]} : vector<48x16xf32> to vector<16x16xf32>
    %cst_122 = arith.constant dense<0.000000e+00> : vector<16x64xf32>
    %299 = tpu.matmul %298, %270, %cst_122 {dimension_numbers = #tpu.dot_dimension_numbers<[1], [0], [0], [1], [0, 0, 1, 1], [], []>} : vector<16x16xf32>, vector<16x64xf32>, vector<16x64xf32> -> vector<16x64xf32>
    %c0_i32_123 = arith.constant 0 : i32
    %300 = vector.broadcast %c0_i32_123 : i32 to vector<64x32xi32>
    %301 = arith.addi %285, %300 : vector<64x32xi32>
    %302 = arith.cmpi eq, %281, %301 : vector<64x32xi32>
    %303 = arith.andi %279, %302 : vector<64x32xi1>
    %cst_124 = arith.constant 1.000000e+00 : f32
    %cst_125 = arith.constant 0.000000e+00 : f32
    %304 = vector.broadcast %cst_124 : f32 to vector<64x32xf32>
    %305 = vector.broadcast %cst_125 : f32 to vector<64x32xf32>
    %306 = arith.select %303, %304, %305 : vector<64x32xi1>, vector<64x32xf32>
    %cst_126 = arith.constant dense<0.000000e+00> : vector<16x32xf32>
    %307 = tpu.matmul %299, %306, %cst_126 {dimension_numbers = #tpu.dot_dimension_numbers<[1], [0], [0], [1], [0, 0, 1, 1], [], []>} : vector<16x64xf32>, vector<64x32xf32>, vector<16x32xf32> -> vector<16x32xf32>
    %308 = arith.addf %297, %307 : vector<16x32xf32>
    %309 = vector.extract_strided_slice %271 {offsets = [32, 0], sizes = [16, 16], strides = [1, 1]} : vector<48x16xf32> to vector<16x16xf32>
    %cst_127 = arith.constant dense<0.000000e+00> : vector<16x64xf32>
    %310 = tpu.matmul %309, %270, %cst_127 {dimension_numbers = #tpu.dot_dimension_numbers<[1], [0], [0], [1], [0, 0, 1, 1], [], []>} : vector<16x16xf32>, vector<16x64xf32>, vector<16x64xf32> -> vector<16x64xf32>
    %c1_i32_128 = arith.constant 1 : i32
    %311 = vector.broadcast %c1_i32_128 : i32 to vector<64x32xi32>
    %312 = arith.addi %285, %311 : vector<64x32xi32>
    %313 = arith.cmpi eq, %281, %312 : vector<64x32xi32>
    %314 = arith.andi %279, %313 : vector<64x32xi1>
    %cst_129 = arith.constant 1.000000e+00 : f32
    %cst_130 = arith.constant 0.000000e+00 : f32
    %315 = vector.broadcast %cst_129 : f32 to vector<64x32xf32>
    %316 = vector.broadcast %cst_130 : f32 to vector<64x32xf32>
    %317 = arith.select %314, %315, %316 : vector<64x32xi1>, vector<64x32xf32>
    %cst_131 = arith.constant dense<0.000000e+00> : vector<16x32xf32>
    %318 = tpu.matmul %310, %317, %cst_131 {dimension_numbers = #tpu.dot_dimension_numbers<[1], [0], [0], [1], [0, 0, 1, 1], [], []>} : vector<16x64xf32>, vector<64x32xf32>, vector<16x32xf32> -> vector<16x32xf32>
    %319 = arith.addf %308, %318 : vector<16x32xf32>
    %320 = vector.broadcast %272 : vector<16x1xf32> to vector<16x32xf32>
    %321 = arith.addf %319, %320 : vector<16x32xf32>
    %cst_132 = arith.constant 0.000000e+00 : f32
    %322 = vector.broadcast %cst_132 : f32 to vector<16x32xf32>
    %323 = arith.cmpf oge, %321, %322 : vector<16x32xf32>
    %cst_133 = arith.constant 0.00999999977 : f32
    %324 = vector.broadcast %cst_133 : f32 to vector<16x32xf32>
    %325 = arith.mulf %324, %321 : vector<16x32xf32>
    %326 = arith.select %323, %321, %325 : vector<16x32xi1>, vector<16x32xf32>
    %c0_134 = arith.constant 0 : index
    %c0_135 = arith.constant 0 : index
    %327 = vector.load %arg10[%c0_134, %c0_135] : memref<96x16xf32, #tpu.memory_space<vmem>>, vector<96x16xf32>
    %c0_136 = arith.constant 0 : index
    %c0_137 = arith.constant 0 : index
    %328 = vector.load %arg11[%c0_136, %c0_137] : memref<32x1xf32, #tpu.memory_space<vmem>>, vector<32x1xf32>
    %329 = tpu.iota {dimensions = array<i32: 0>} : vector<32x32xi32>
    %330 = tpu.iota {dimensions = array<i32: 1>} : vector<32x32xi32>
    %c1_i32_138 = arith.constant 1 : i32
    %331 = vector.broadcast %c1_i32_138 : i32 to vector<32x32xi32>
    %332 = arith.andi %329, %331 : vector<32x32xi32>
    %c1_i32_139 = arith.constant 1 : i32
    %333 = vector.broadcast %c1_i32_139 : i32 to vector<32x32xi32>
    %334 = arith.andi %330, %333 : vector<32x32xi32>
    %335 = arith.cmpi eq, %332, %334 : vector<32x32xi32>
    %c1_i32_140 = arith.constant 1 : i32
    %336 = vector.broadcast %c1_i32_140 : i32 to vector<32x32xi32>
    %337 = arith.shrsi %329, %336 : vector<32x32xi32>
    %c1_i32_141 = arith.constant 1 : i32
    %338 = vector.broadcast %c1_i32_141 : i32 to vector<32x32xi32>
    %339 = arith.shrsi %330, %338 : vector<32x32xi32>
    %c1_i32_142 = arith.constant 1 : i32
    %340 = vector.broadcast %c1_i32_142 : i32 to vector<32x32xi32>
    %341 = arith.muli %340, %339 : vector<32x32xi32>
    %cst_143 = arith.constant 0.000000e+00 : f32
    %342 = vector.broadcast %cst_143 : f32 to vector<32x32xf32>
    %343 = vector.extract_strided_slice %327 {offsets = [0, 0], sizes = [32, 16], strides = [1, 1]} : vector<96x16xf32> to vector<32x16xf32>
    %cst_144 = arith.constant dense<0.000000e+00> : vector<32x32xf32>
    %344 = tpu.matmul %343, %326, %cst_144 {dimension_numbers = #tpu.dot_dimension_numbers<[1], [0], [0], [1], [0, 0, 1, 1], [], []>} : vector<32x16xf32>, vector<16x32xf32>, vector<32x32xf32> -> vector<32x32xf32>
    %c-1_i32_145 = arith.constant -1 : i32
    %345 = vector.broadcast %c-1_i32_145 : i32 to vector<32x32xi32>
    %346 = arith.addi %341, %345 : vector<32x32xi32>
    %347 = arith.cmpi eq, %337, %346 : vector<32x32xi32>
    %348 = arith.andi %335, %347 : vector<32x32xi1>
    %cst_146 = arith.constant 1.000000e+00 : f32
    %cst_147 = arith.constant 0.000000e+00 : f32
    %349 = vector.broadcast %cst_146 : f32 to vector<32x32xf32>
    %350 = vector.broadcast %cst_147 : f32 to vector<32x32xf32>
    %351 = arith.select %348, %349, %350 : vector<32x32xi1>, vector<32x32xf32>
    %cst_148 = arith.constant dense<0.000000e+00> : vector<32x32xf32>
    %352 = tpu.matmul %344, %351, %cst_148 {dimension_numbers = #tpu.dot_dimension_numbers<[1], [0], [0], [1], [0, 0, 1, 1], [], []>} : vector<32x32xf32>, vector<32x32xf32>, vector<32x32xf32> -> vector<32x32xf32>
    %353 = arith.addf %342, %352 : vector<32x32xf32>
    %354 = vector.extract_strided_slice %327 {offsets = [32, 0], sizes = [32, 16], strides = [1, 1]} : vector<96x16xf32> to vector<32x16xf32>
    %cst_149 = arith.constant dense<0.000000e+00> : vector<32x32xf32>
    %355 = tpu.matmul %354, %326, %cst_149 {dimension_numbers = #tpu.dot_dimension_numbers<[1], [0], [0], [1], [0, 0, 1, 1], [], []>} : vector<32x16xf32>, vector<16x32xf32>, vector<32x32xf32> -> vector<32x32xf32>
    %c0_i32_150 = arith.constant 0 : i32
    %356 = vector.broadcast %c0_i32_150 : i32 to vector<32x32xi32>
    %357 = arith.addi %341, %356 : vector<32x32xi32>
    %358 = arith.cmpi eq, %337, %357 : vector<32x32xi32>
    %359 = arith.andi %335, %358 : vector<32x32xi1>
    %cst_151 = arith.constant 1.000000e+00 : f32
    %cst_152 = arith.constant 0.000000e+00 : f32
    %360 = vector.broadcast %cst_151 : f32 to vector<32x32xf32>
    %361 = vector.broadcast %cst_152 : f32 to vector<32x32xf32>
    %362 = arith.select %359, %360, %361 : vector<32x32xi1>, vector<32x32xf32>
    %cst_153 = arith.constant dense<0.000000e+00> : vector<32x32xf32>
    %363 = tpu.matmul %355, %362, %cst_153 {dimension_numbers = #tpu.dot_dimension_numbers<[1], [0], [0], [1], [0, 0, 1, 1], [], []>} : vector<32x32xf32>, vector<32x32xf32>, vector<32x32xf32> -> vector<32x32xf32>
    %364 = arith.addf %353, %363 : vector<32x32xf32>
    %365 = vector.extract_strided_slice %327 {offsets = [64, 0], sizes = [32, 16], strides = [1, 1]} : vector<96x16xf32> to vector<32x16xf32>
    %cst_154 = arith.constant dense<0.000000e+00> : vector<32x32xf32>
    %366 = tpu.matmul %365, %326, %cst_154 {dimension_numbers = #tpu.dot_dimension_numbers<[1], [0], [0], [1], [0, 0, 1, 1], [], []>} : vector<32x16xf32>, vector<16x32xf32>, vector<32x32xf32> -> vector<32x32xf32>
    %c1_i32_155 = arith.constant 1 : i32
    %367 = vector.broadcast %c1_i32_155 : i32 to vector<32x32xi32>
    %368 = arith.addi %341, %367 : vector<32x32xi32>
    %369 = arith.cmpi eq, %337, %368 : vector<32x32xi32>
    %370 = arith.andi %335, %369 : vector<32x32xi1>
    %cst_156 = arith.constant 1.000000e+00 : f32
    %cst_157 = arith.constant 0.000000e+00 : f32
    %371 = vector.broadcast %cst_156 : f32 to vector<32x32xf32>
    %372 = vector.broadcast %cst_157 : f32 to vector<32x32xf32>
    %373 = arith.select %370, %371, %372 : vector<32x32xi1>, vector<32x32xf32>
    %cst_158 = arith.constant dense<0.000000e+00> : vector<32x32xf32>
    %374 = tpu.matmul %366, %373, %cst_158 {dimension_numbers = #tpu.dot_dimension_numbers<[1], [0], [0], [1], [0, 0, 1, 1], [], []>} : vector<32x32xf32>, vector<32x32xf32>, vector<32x32xf32> -> vector<32x32xf32>
    %375 = arith.addf %364, %374 : vector<32x32xf32>
    %376 = vector.broadcast %328 : vector<32x1xf32> to vector<32x32xf32>
    %377 = arith.addf %375, %376 : vector<32x32xf32>
    %cst_159 = arith.constant 0.000000e+00 : f32
    %378 = vector.broadcast %cst_159 : f32 to vector<32x32xf32>
    %379 = arith.cmpf oge, %377, %378 : vector<32x32xf32>
    %cst_160 = arith.constant 0.00999999977 : f32
    %380 = vector.broadcast %cst_160 : f32 to vector<32x32xf32>
    %381 = arith.mulf %380, %377 : vector<32x32xf32>
    %382 = arith.select %379, %377, %381 : vector<32x32xi1>, vector<32x32xf32>
    %c0_161 = arith.constant 0 : index
    %c0_162 = arith.constant 0 : index
    %383 = vector.load %arg12[%c0_161, %c0_162] : memref<1024x32xf32, #tpu.memory_space<vmem>>, vector<1024x32xf32>
    %c0_163 = arith.constant 0 : index
    %c0_164 = arith.constant 0 : index
    %384 = vector.load %arg13[%c0_163, %c0_164] : memref<64x1xf32, #tpu.memory_space<vmem>>, vector<64x1xf32>
    %385 = tpu.iota {dimensions = array<i32: 0>} : vector<32x2xi32>
    %386 = tpu.iota {dimensions = array<i32: 1>} : vector<32x2xi32>
    %cst_165 = arith.constant 0.000000e+00 : f32
    %387 = vector.broadcast %cst_165 : f32 to vector<64x2xf32>
    %c0_i32_166 = arith.constant 0 : i32
    %388 = vector.broadcast %c0_i32_166 : i32 to vector<32x2xi32>
    %389 = arith.addi %388, %386 : vector<32x2xi32>
    %390 = arith.cmpi eq, %385, %389 : vector<32x2xi32>
    %cst_167 = arith.constant 1.000000e+00 : f32
    %cst_168 = arith.constant 0.000000e+00 : f32
    %391 = vector.broadcast %cst_167 : f32 to vector<32x2xf32>
    %392 = vector.broadcast %cst_168 : f32 to vector<32x2xf32>
    %393 = arith.select %390, %391, %392 : vector<32x2xi1>, vector<32x2xf32>
    %cst_169 = arith.constant dense<0.000000e+00> : vector<32x2xf32>
    %394 = tpu.matmul %382, %393, %cst_169 {dimension_numbers = #tpu.dot_dimension_numbers<[1], [0], [0], [1], [0, 0, 1, 1], [], []>} : vector<32x32xf32>, vector<32x2xf32>, vector<32x2xf32> -> vector<32x2xf32>
    %395 = vector.extract_strided_slice %383 {offsets = [0, 0], sizes = [64, 32], strides = [1, 1]} : vector<1024x32xf32> to vector<64x32xf32>
    %cst_170 = arith.constant dense<0.000000e+00> : vector<64x2xf32>
    %396 = tpu.matmul %395, %394, %cst_170 {dimension_numbers = #tpu.dot_dimension_numbers<[1], [0], [0], [1], [0, 0, 1, 1], [], []>} : vector<64x32xf32>, vector<32x2xf32>, vector<64x2xf32> -> vector<64x2xf32>
    %397 = arith.addf %387, %396 : vector<64x2xf32>
    %c2_i32_171 = arith.constant 2 : i32
    %398 = vector.broadcast %c2_i32_171 : i32 to vector<32x2xi32>
    %399 = arith.addi %398, %386 : vector<32x2xi32>
    %400 = arith.cmpi eq, %385, %399 : vector<32x2xi32>
    %cst_172 = arith.constant 1.000000e+00 : f32
    %cst_173 = arith.constant 0.000000e+00 : f32
    %401 = vector.broadcast %cst_172 : f32 to vector<32x2xf32>
    %402 = vector.broadcast %cst_173 : f32 to vector<32x2xf32>
    %403 = arith.select %400, %401, %402 : vector<32x2xi1>, vector<32x2xf32>
    %cst_174 = arith.constant dense<0.000000e+00> : vector<32x2xf32>
    %404 = tpu.matmul %382, %403, %cst_174 {dimension_numbers = #tpu.dot_dimension_numbers<[1], [0], [0], [1], [0, 0, 1, 1], [], []>} : vector<32x32xf32>, vector<32x2xf32>, vector<32x2xf32> -> vector<32x2xf32>
    %405 = vector.extract_strided_slice %383 {offsets = [64, 0], sizes = [64, 32], strides = [1, 1]} : vector<1024x32xf32> to vector<64x32xf32>
    %cst_175 = arith.constant dense<0.000000e+00> : vector<64x2xf32>
    %406 = tpu.matmul %405, %404, %cst_175 {dimension_numbers = #tpu.dot_dimension_numbers<[1], [0], [0], [1], [0, 0, 1, 1], [], []>} : vector<64x32xf32>, vector<32x2xf32>, vector<64x2xf32> -> vector<64x2xf32>
    %407 = arith.addf %397, %406 : vector<64x2xf32>
    %c4_i32 = arith.constant 4 : i32
    %408 = vector.broadcast %c4_i32 : i32 to vector<32x2xi32>
    %409 = arith.addi %408, %386 : vector<32x2xi32>
    %410 = arith.cmpi eq, %385, %409 : vector<32x2xi32>
    %cst_176 = arith.constant 1.000000e+00 : f32
    %cst_177 = arith.constant 0.000000e+00 : f32
    %411 = vector.broadcast %cst_176 : f32 to vector<32x2xf32>
    %412 = vector.broadcast %cst_177 : f32 to vector<32x2xf32>
    %413 = arith.select %410, %411, %412 : vector<32x2xi1>, vector<32x2xf32>
    %cst_178 = arith.constant dense<0.000000e+00> : vector<32x2xf32>
    %414 = tpu.matmul %382, %413, %cst_178 {dimension_numbers = #tpu.dot_dimension_numbers<[1], [0], [0], [1], [0, 0, 1, 1], [], []>} : vector<32x32xf32>, vector<32x2xf32>, vector<32x2xf32> -> vector<32x2xf32>
    %415 = vector.extract_strided_slice %383 {offsets = [128, 0], sizes = [64, 32], strides = [1, 1]} : vector<1024x32xf32> to vector<64x32xf32>
    %cst_179 = arith.constant dense<0.000000e+00> : vector<64x2xf32>
    %416 = tpu.matmul %415, %414, %cst_179 {dimension_numbers = #tpu.dot_dimension_numbers<[1], [0], [0], [1], [0, 0, 1, 1], [], []>} : vector<64x32xf32>, vector<32x2xf32>, vector<64x2xf32> -> vector<64x2xf32>
    %417 = arith.addf %407, %416 : vector<64x2xf32>
    %c6_i32 = arith.constant 6 : i32
    %418 = vector.broadcast %c6_i32 : i32 to vector<32x2xi32>
    %419 = arith.addi %418, %386 : vector<32x2xi32>
    %420 = arith.cmpi eq, %385, %419 : vector<32x2xi32>
    %cst_180 = arith.constant 1.000000e+00 : f32
    %cst_181 = arith.constant 0.000000e+00 : f32
    %421 = vector.broadcast %cst_180 : f32 to vector<32x2xf32>
    %422 = vector.broadcast %cst_181 : f32 to vector<32x2xf32>
    %423 = arith.select %420, %421, %422 : vector<32x2xi1>, vector<32x2xf32>
    %cst_182 = arith.constant dense<0.000000e+00> : vector<32x2xf32>
    %424 = tpu.matmul %382, %423, %cst_182 {dimension_numbers = #tpu.dot_dimension_numbers<[1], [0], [0], [1], [0, 0, 1, 1], [], []>} : vector<32x32xf32>, vector<32x2xf32>, vector<32x2xf32> -> vector<32x2xf32>
    %425 = vector.extract_strided_slice %383 {offsets = [192, 0], sizes = [64, 32], strides = [1, 1]} : vector<1024x32xf32> to vector<64x32xf32>
    %cst_183 = arith.constant dense<0.000000e+00> : vector<64x2xf32>
    %426 = tpu.matmul %425, %424, %cst_183 {dimension_numbers = #tpu.dot_dimension_numbers<[1], [0], [0], [1], [0, 0, 1, 1], [], []>} : vector<64x32xf32>, vector<32x2xf32>, vector<64x2xf32> -> vector<64x2xf32>
    %427 = arith.addf %417, %426 : vector<64x2xf32>
    %c8_i32 = arith.constant 8 : i32
    %428 = vector.broadcast %c8_i32 : i32 to vector<32x2xi32>
    %429 = arith.addi %428, %386 : vector<32x2xi32>
    %430 = arith.cmpi eq, %385, %429 : vector<32x2xi32>
    %cst_184 = arith.constant 1.000000e+00 : f32
    %cst_185 = arith.constant 0.000000e+00 : f32
    %431 = vector.broadcast %cst_184 : f32 to vector<32x2xf32>
    %432 = vector.broadcast %cst_185 : f32 to vector<32x2xf32>
    %433 = arith.select %430, %431, %432 : vector<32x2xi1>, vector<32x2xf32>
    %cst_186 = arith.constant dense<0.000000e+00> : vector<32x2xf32>
    %434 = tpu.matmul %382, %433, %cst_186 {dimension_numbers = #tpu.dot_dimension_numbers<[1], [0], [0], [1], [0, 0, 1, 1], [], []>} : vector<32x32xf32>, vector<32x2xf32>, vector<32x2xf32> -> vector<32x2xf32>
    %435 = vector.extract_strided_slice %383 {offsets = [256, 0], sizes = [64, 32], strides = [1, 1]} : vector<1024x32xf32> to vector<64x32xf32>
    %cst_187 = arith.constant dense<0.000000e+00> : vector<64x2xf32>
    %436 = tpu.matmul %435, %434, %cst_187 {dimension_numbers = #tpu.dot_dimension_numbers<[1], [0], [0], [1], [0, 0, 1, 1], [], []>} : vector<64x32xf32>, vector<32x2xf32>, vector<64x2xf32> -> vector<64x2xf32>
    %437 = arith.addf %427, %436 : vector<64x2xf32>
    %c10_i32 = arith.constant 10 : i32
    %438 = vector.broadcast %c10_i32 : i32 to vector<32x2xi32>
    %439 = arith.addi %438, %386 : vector<32x2xi32>
    %440 = arith.cmpi eq, %385, %439 : vector<32x2xi32>
    %cst_188 = arith.constant 1.000000e+00 : f32
    %cst_189 = arith.constant 0.000000e+00 : f32
    %441 = vector.broadcast %cst_188 : f32 to vector<32x2xf32>
    %442 = vector.broadcast %cst_189 : f32 to vector<32x2xf32>
    %443 = arith.select %440, %441, %442 : vector<32x2xi1>, vector<32x2xf32>
    %cst_190 = arith.constant dense<0.000000e+00> : vector<32x2xf32>
    %444 = tpu.matmul %382, %443, %cst_190 {dimension_numbers = #tpu.dot_dimension_numbers<[1], [0], [0], [1], [0, 0, 1, 1], [], []>} : vector<32x32xf32>, vector<32x2xf32>, vector<32x2xf32> -> vector<32x2xf32>
    %445 = vector.extract_strided_slice %383 {offsets = [320, 0], sizes = [64, 32], strides = [1, 1]} : vector<1024x32xf32> to vector<64x32xf32>
    %cst_191 = arith.constant dense<0.000000e+00> : vector<64x2xf32>
    %446 = tpu.matmul %445, %444, %cst_191 {dimension_numbers = #tpu.dot_dimension_numbers<[1], [0], [0], [1], [0, 0, 1, 1], [], []>} : vector<64x32xf32>, vector<32x2xf32>, vector<64x2xf32> -> vector<64x2xf32>
    %447 = arith.addf %437, %446 : vector<64x2xf32>
    %c12_i32 = arith.constant 12 : i32
    %448 = vector.broadcast %c12_i32 : i32 to vector<32x2xi32>
    %449 = arith.addi %448, %386 : vector<32x2xi32>
    %450 = arith.cmpi eq, %385, %449 : vector<32x2xi32>
    %cst_192 = arith.constant 1.000000e+00 : f32
    %cst_193 = arith.constant 0.000000e+00 : f32
    %451 = vector.broadcast %cst_192 : f32 to vector<32x2xf32>
    %452 = vector.broadcast %cst_193 : f32 to vector<32x2xf32>
    %453 = arith.select %450, %451, %452 : vector<32x2xi1>, vector<32x2xf32>
    %cst_194 = arith.constant dense<0.000000e+00> : vector<32x2xf32>
    %454 = tpu.matmul %382, %453, %cst_194 {dimension_numbers = #tpu.dot_dimension_numbers<[1], [0], [0], [1], [0, 0, 1, 1], [], []>} : vector<32x32xf32>, vector<32x2xf32>, vector<32x2xf32> -> vector<32x2xf32>
    %455 = vector.extract_strided_slice %383 {offsets = [384, 0], sizes = [64, 32], strides = [1, 1]} : vector<1024x32xf32> to vector<64x32xf32>
    %cst_195 = arith.constant dense<0.000000e+00> : vector<64x2xf32>
    %456 = tpu.matmul %455, %454, %cst_195 {dimension_numbers = #tpu.dot_dimension_numbers<[1], [0], [0], [1], [0, 0, 1, 1], [], []>} : vector<64x32xf32>, vector<32x2xf32>, vector<64x2xf32> -> vector<64x2xf32>
    %457 = arith.addf %447, %456 : vector<64x2xf32>
    %c14_i32 = arith.constant 14 : i32
    %458 = vector.broadcast %c14_i32 : i32 to vector<32x2xi32>
    %459 = arith.addi %458, %386 : vector<32x2xi32>
    %460 = arith.cmpi eq, %385, %459 : vector<32x2xi32>
    %cst_196 = arith.constant 1.000000e+00 : f32
    %cst_197 = arith.constant 0.000000e+00 : f32
    %461 = vector.broadcast %cst_196 : f32 to vector<32x2xf32>
    %462 = vector.broadcast %cst_197 : f32 to vector<32x2xf32>
    %463 = arith.select %460, %461, %462 : vector<32x2xi1>, vector<32x2xf32>
    %cst_198 = arith.constant dense<0.000000e+00> : vector<32x2xf32>
    %464 = tpu.matmul %382, %463, %cst_198 {dimension_numbers = #tpu.dot_dimension_numbers<[1], [0], [0], [1], [0, 0, 1, 1], [], []>} : vector<32x32xf32>, vector<32x2xf32>, vector<32x2xf32> -> vector<32x2xf32>
    %465 = vector.extract_strided_slice %383 {offsets = [448, 0], sizes = [64, 32], strides = [1, 1]} : vector<1024x32xf32> to vector<64x32xf32>
    %cst_199 = arith.constant dense<0.000000e+00> : vector<64x2xf32>
    %466 = tpu.matmul %465, %464, %cst_199 {dimension_numbers = #tpu.dot_dimension_numbers<[1], [0], [0], [1], [0, 0, 1, 1], [], []>} : vector<64x32xf32>, vector<32x2xf32>, vector<64x2xf32> -> vector<64x2xf32>
    %467 = arith.addf %457, %466 : vector<64x2xf32>
    %c16_i32 = arith.constant 16 : i32
    %468 = vector.broadcast %c16_i32 : i32 to vector<32x2xi32>
    %469 = arith.addi %468, %386 : vector<32x2xi32>
    %470 = arith.cmpi eq, %385, %469 : vector<32x2xi32>
    %cst_200 = arith.constant 1.000000e+00 : f32
    %cst_201 = arith.constant 0.000000e+00 : f32
    %471 = vector.broadcast %cst_200 : f32 to vector<32x2xf32>
    %472 = vector.broadcast %cst_201 : f32 to vector<32x2xf32>
    %473 = arith.select %470, %471, %472 : vector<32x2xi1>, vector<32x2xf32>
    %cst_202 = arith.constant dense<0.000000e+00> : vector<32x2xf32>
    %474 = tpu.matmul %382, %473, %cst_202 {dimension_numbers = #tpu.dot_dimension_numbers<[1], [0], [0], [1], [0, 0, 1, 1], [], []>} : vector<32x32xf32>, vector<32x2xf32>, vector<32x2xf32> -> vector<32x2xf32>
    %475 = vector.extract_strided_slice %383 {offsets = [512, 0], sizes = [64, 32], strides = [1, 1]} : vector<1024x32xf32> to vector<64x32xf32>
    %cst_203 = arith.constant dense<0.000000e+00> : vector<64x2xf32>
    %476 = tpu.matmul %475, %474, %cst_203 {dimension_numbers = #tpu.dot_dimension_numbers<[1], [0], [0], [1], [0, 0, 1, 1], [], []>} : vector<64x32xf32>, vector<32x2xf32>, vector<64x2xf32> -> vector<64x2xf32>
    %477 = arith.addf %467, %476 : vector<64x2xf32>
    %c18_i32 = arith.constant 18 : i32
    %478 = vector.broadcast %c18_i32 : i32 to vector<32x2xi32>
    %479 = arith.addi %478, %386 : vector<32x2xi32>
    %480 = arith.cmpi eq, %385, %479 : vector<32x2xi32>
    %cst_204 = arith.constant 1.000000e+00 : f32
    %cst_205 = arith.constant 0.000000e+00 : f32
    %481 = vector.broadcast %cst_204 : f32 to vector<32x2xf32>
    %482 = vector.broadcast %cst_205 : f32 to vector<32x2xf32>
    %483 = arith.select %480, %481, %482 : vector<32x2xi1>, vector<32x2xf32>
    %cst_206 = arith.constant dense<0.000000e+00> : vector<32x2xf32>
    %484 = tpu.matmul %382, %483, %cst_206 {dimension_numbers = #tpu.dot_dimension_numbers<[1], [0], [0], [1], [0, 0, 1, 1], [], []>} : vector<32x32xf32>, vector<32x2xf32>, vector<32x2xf32> -> vector<32x2xf32>
    %485 = vector.extract_strided_slice %383 {offsets = [576, 0], sizes = [64, 32], strides = [1, 1]} : vector<1024x32xf32> to vector<64x32xf32>
    %cst_207 = arith.constant dense<0.000000e+00> : vector<64x2xf32>
    %486 = tpu.matmul %485, %484, %cst_207 {dimension_numbers = #tpu.dot_dimension_numbers<[1], [0], [0], [1], [0, 0, 1, 1], [], []>} : vector<64x32xf32>, vector<32x2xf32>, vector<64x2xf32> -> vector<64x2xf32>
    %487 = arith.addf %477, %486 : vector<64x2xf32>
    %c20_i32 = arith.constant 20 : i32
    %488 = vector.broadcast %c20_i32 : i32 to vector<32x2xi32>
    %489 = arith.addi %488, %386 : vector<32x2xi32>
    %490 = arith.cmpi eq, %385, %489 : vector<32x2xi32>
    %cst_208 = arith.constant 1.000000e+00 : f32
    %cst_209 = arith.constant 0.000000e+00 : f32
    %491 = vector.broadcast %cst_208 : f32 to vector<32x2xf32>
    %492 = vector.broadcast %cst_209 : f32 to vector<32x2xf32>
    %493 = arith.select %490, %491, %492 : vector<32x2xi1>, vector<32x2xf32>
    %cst_210 = arith.constant dense<0.000000e+00> : vector<32x2xf32>
    %494 = tpu.matmul %382, %493, %cst_210 {dimension_numbers = #tpu.dot_dimension_numbers<[1], [0], [0], [1], [0, 0, 1, 1], [], []>} : vector<32x32xf32>, vector<32x2xf32>, vector<32x2xf32> -> vector<32x2xf32>
    %495 = vector.extract_strided_slice %383 {offsets = [640, 0], sizes = [64, 32], strides = [1, 1]} : vector<1024x32xf32> to vector<64x32xf32>
    %cst_211 = arith.constant dense<0.000000e+00> : vector<64x2xf32>
    %496 = tpu.matmul %495, %494, %cst_211 {dimension_numbers = #tpu.dot_dimension_numbers<[1], [0], [0], [1], [0, 0, 1, 1], [], []>} : vector<64x32xf32>, vector<32x2xf32>, vector<64x2xf32> -> vector<64x2xf32>
    %497 = arith.addf %487, %496 : vector<64x2xf32>
    %c22_i32 = arith.constant 22 : i32
    %498 = vector.broadcast %c22_i32 : i32 to vector<32x2xi32>
    %499 = arith.addi %498, %386 : vector<32x2xi32>
    %500 = arith.cmpi eq, %385, %499 : vector<32x2xi32>
    %cst_212 = arith.constant 1.000000e+00 : f32
    %cst_213 = arith.constant 0.000000e+00 : f32
    %501 = vector.broadcast %cst_212 : f32 to vector<32x2xf32>
    %502 = vector.broadcast %cst_213 : f32 to vector<32x2xf32>
    %503 = arith.select %500, %501, %502 : vector<32x2xi1>, vector<32x2xf32>
    %cst_214 = arith.constant dense<0.000000e+00> : vector<32x2xf32>
    %504 = tpu.matmul %382, %503, %cst_214 {dimension_numbers = #tpu.dot_dimension_numbers<[1], [0], [0], [1], [0, 0, 1, 1], [], []>} : vector<32x32xf32>, vector<32x2xf32>, vector<32x2xf32> -> vector<32x2xf32>
    %505 = vector.extract_strided_slice %383 {offsets = [704, 0], sizes = [64, 32], strides = [1, 1]} : vector<1024x32xf32> to vector<64x32xf32>
    %cst_215 = arith.constant dense<0.000000e+00> : vector<64x2xf32>
    %506 = tpu.matmul %505, %504, %cst_215 {dimension_numbers = #tpu.dot_dimension_numbers<[1], [0], [0], [1], [0, 0, 1, 1], [], []>} : vector<64x32xf32>, vector<32x2xf32>, vector<64x2xf32> -> vector<64x2xf32>
    %507 = arith.addf %497, %506 : vector<64x2xf32>
    %c24_i32 = arith.constant 24 : i32
    %508 = vector.broadcast %c24_i32 : i32 to vector<32x2xi32>
    %509 = arith.addi %508, %386 : vector<32x2xi32>
    %510 = arith.cmpi eq, %385, %509 : vector<32x2xi32>
    %cst_216 = arith.constant 1.000000e+00 : f32
    %cst_217 = arith.constant 0.000000e+00 : f32
    %511 = vector.broadcast %cst_216 : f32 to vector<32x2xf32>
    %512 = vector.broadcast %cst_217 : f32 to vector<32x2xf32>
    %513 = arith.select %510, %511, %512 : vector<32x2xi1>, vector<32x2xf32>
    %cst_218 = arith.constant dense<0.000000e+00> : vector<32x2xf32>
    %514 = tpu.matmul %382, %513, %cst_218 {dimension_numbers = #tpu.dot_dimension_numbers<[1], [0], [0], [1], [0, 0, 1, 1], [], []>} : vector<32x32xf32>, vector<32x2xf32>, vector<32x2xf32> -> vector<32x2xf32>
    %515 = vector.extract_strided_slice %383 {offsets = [768, 0], sizes = [64, 32], strides = [1, 1]} : vector<1024x32xf32> to vector<64x32xf32>
    %cst_219 = arith.constant dense<0.000000e+00> : vector<64x2xf32>
    %516 = tpu.matmul %515, %514, %cst_219 {dimension_numbers = #tpu.dot_dimension_numbers<[1], [0], [0], [1], [0, 0, 1, 1], [], []>} : vector<64x32xf32>, vector<32x2xf32>, vector<64x2xf32> -> vector<64x2xf32>
    %517 = arith.addf %507, %516 : vector<64x2xf32>
    %c26_i32 = arith.constant 26 : i32
    %518 = vector.broadcast %c26_i32 : i32 to vector<32x2xi32>
    %519 = arith.addi %518, %386 : vector<32x2xi32>
    %520 = arith.cmpi eq, %385, %519 : vector<32x2xi32>
    %cst_220 = arith.constant 1.000000e+00 : f32
    %cst_221 = arith.constant 0.000000e+00 : f32
    %521 = vector.broadcast %cst_220 : f32 to vector<32x2xf32>
    %522 = vector.broadcast %cst_221 : f32 to vector<32x2xf32>
    %523 = arith.select %520, %521, %522 : vector<32x2xi1>, vector<32x2xf32>
    %cst_222 = arith.constant dense<0.000000e+00> : vector<32x2xf32>
    %524 = tpu.matmul %382, %523, %cst_222 {dimension_numbers = #tpu.dot_dimension_numbers<[1], [0], [0], [1], [0, 0, 1, 1], [], []>} : vector<32x32xf32>, vector<32x2xf32>, vector<32x2xf32> -> vector<32x2xf32>
    %525 = vector.extract_strided_slice %383 {offsets = [832, 0], sizes = [64, 32], strides = [1, 1]} : vector<1024x32xf32> to vector<64x32xf32>
    %cst_223 = arith.constant dense<0.000000e+00> : vector<64x2xf32>
    %526 = tpu.matmul %525, %524, %cst_223 {dimension_numbers = #tpu.dot_dimension_numbers<[1], [0], [0], [1], [0, 0, 1, 1], [], []>} : vector<64x32xf32>, vector<32x2xf32>, vector<64x2xf32> -> vector<64x2xf32>
    %527 = arith.addf %517, %526 : vector<64x2xf32>
    %c28_i32 = arith.constant 28 : i32
    %528 = vector.broadcast %c28_i32 : i32 to vector<32x2xi32>
    %529 = arith.addi %528, %386 : vector<32x2xi32>
    %530 = arith.cmpi eq, %385, %529 : vector<32x2xi32>
    %cst_224 = arith.constant 1.000000e+00 : f32
    %cst_225 = arith.constant 0.000000e+00 : f32
    %531 = vector.broadcast %cst_224 : f32 to vector<32x2xf32>
    %532 = vector.broadcast %cst_225 : f32 to vector<32x2xf32>
    %533 = arith.select %530, %531, %532 : vector<32x2xi1>, vector<32x2xf32>
    %cst_226 = arith.constant dense<0.000000e+00> : vector<32x2xf32>
    %534 = tpu.matmul %382, %533, %cst_226 {dimension_numbers = #tpu.dot_dimension_numbers<[1], [0], [0], [1], [0, 0, 1, 1], [], []>} : vector<32x32xf32>, vector<32x2xf32>, vector<32x2xf32> -> vector<32x2xf32>
    %535 = vector.extract_strided_slice %383 {offsets = [896, 0], sizes = [64, 32], strides = [1, 1]} : vector<1024x32xf32> to vector<64x32xf32>
    %cst_227 = arith.constant dense<0.000000e+00> : vector<64x2xf32>
    %536 = tpu.matmul %535, %534, %cst_227 {dimension_numbers = #tpu.dot_dimension_numbers<[1], [0], [0], [1], [0, 0, 1, 1], [], []>} : vector<64x32xf32>, vector<32x2xf32>, vector<64x2xf32> -> vector<64x2xf32>
    %537 = arith.addf %527, %536 : vector<64x2xf32>
    %c30_i32 = arith.constant 30 : i32
    %538 = vector.broadcast %c30_i32 : i32 to vector<32x2xi32>
    %539 = arith.addi %538, %386 : vector<32x2xi32>
    %540 = arith.cmpi eq, %385, %539 : vector<32x2xi32>
    %cst_228 = arith.constant 1.000000e+00 : f32
    %cst_229 = arith.constant 0.000000e+00 : f32
    %541 = vector.broadcast %cst_228 : f32 to vector<32x2xf32>
    %542 = vector.broadcast %cst_229 : f32 to vector<32x2xf32>
    %543 = arith.select %540, %541, %542 : vector<32x2xi1>, vector<32x2xf32>
    %cst_230 = arith.constant dense<0.000000e+00> : vector<32x2xf32>
    %544 = tpu.matmul %382, %543, %cst_230 {dimension_numbers = #tpu.dot_dimension_numbers<[1], [0], [0], [1], [0, 0, 1, 1], [], []>} : vector<32x32xf32>, vector<32x2xf32>, vector<32x2xf32> -> vector<32x2xf32>
    %545 = vector.extract_strided_slice %383 {offsets = [960, 0], sizes = [64, 32], strides = [1, 1]} : vector<1024x32xf32> to vector<64x32xf32>
    %cst_231 = arith.constant dense<0.000000e+00> : vector<64x2xf32>
    %546 = tpu.matmul %545, %544, %cst_231 {dimension_numbers = #tpu.dot_dimension_numbers<[1], [0], [0], [1], [0, 0, 1, 1], [], []>} : vector<64x32xf32>, vector<32x2xf32>, vector<64x2xf32> -> vector<64x2xf32>
    %547 = arith.addf %537, %546 : vector<64x2xf32>
    %548 = vector.broadcast %384 : vector<64x1xf32> to vector<64x2xf32>
    %549 = arith.addf %547, %548 : vector<64x2xf32>
    %cst_232 = arith.constant 0.000000e+00 : f32
    %550 = vector.broadcast %cst_232 : f32 to vector<64x2xf32>
    %551 = arith.cmpf oge, %549, %550 : vector<64x2xf32>
    %cst_233 = arith.constant 0.00999999977 : f32
    %552 = vector.broadcast %cst_233 : f32 to vector<64x2xf32>
    %553 = arith.mulf %552, %549 : vector<64x2xf32>
    %554 = arith.select %551, %549, %553 : vector<64x2xi1>, vector<64x2xf32>
    %c0_234 = arith.constant 0 : index
    %c0_235 = arith.constant 0 : index
    %555 = vector.load %arg14[%c0_234, %c0_235] : memref<32x64xf32, #tpu.memory_space<vmem>>, vector<32x64xf32>
    %c0_236 = arith.constant 0 : index
    %c0_237 = arith.constant 0 : index
    %556 = vector.load %arg15[%c0_236, %c0_237] : memref<32x1xf32, #tpu.memory_space<vmem>>, vector<32x1xf32>
    %cst_238 = arith.constant dense<0.000000e+00> : vector<32x2xf32>
    %557 = tpu.matmul %555, %554, %cst_238 {dimension_numbers = #tpu.dot_dimension_numbers<[1], [0], [0], [1], [0, 0, 1, 1], [], []>} : vector<32x64xf32>, vector<64x2xf32>, vector<32x2xf32> -> vector<32x2xf32>
    %558 = vector.broadcast %556 : vector<32x1xf32> to vector<32x2xf32>
    %559 = arith.addf %557, %558 : vector<32x2xf32>
    %cst_239 = arith.constant 0.000000e+00 : f32
    %560 = vector.broadcast %cst_239 : f32 to vector<32x2xf32>
    %561 = arith.cmpf oge, %559, %560 : vector<32x2xf32>
    %cst_240 = arith.constant 0.00999999977 : f32
    %562 = vector.broadcast %cst_240 : f32 to vector<32x2xf32>
    %563 = arith.mulf %562, %559 : vector<32x2xf32>
    %564 = arith.select %561, %559, %563 : vector<32x2xi1>, vector<32x2xf32>
    %c0_241 = arith.constant 0 : index
    %c0_242 = arith.constant 0 : index
    %565 = vector.load %arg16[%c0_241, %c0_242] : memref<5x32xf32, #tpu.memory_space<vmem>>, vector<5x32xf32>
    %c0_243 = arith.constant 0 : index
    %c0_244 = arith.constant 0 : index
    %566 = vector.load %arg17[%c0_243, %c0_244] : memref<5x1xf32, #tpu.memory_space<vmem>>, vector<5x1xf32>
    %cst_245 = arith.constant dense<0.000000e+00> : vector<5x2xf32>
    %567 = tpu.matmul %565, %564, %cst_245 {dimension_numbers = #tpu.dot_dimension_numbers<[1], [0], [0], [1], [0, 0, 1, 1], [], []>} : vector<5x32xf32>, vector<32x2xf32>, vector<5x2xf32> -> vector<5x2xf32>
    %568 = vector.broadcast %566 : vector<5x1xf32> to vector<5x2xf32>
    %569 = arith.addf %567, %568 : vector<5x2xf32>
    %cst_246 = arith.constant 0.000000e+00 : f32
    %570 = vector.broadcast %cst_246 : f32 to vector<5x2xf32>
    %571 = arith.cmpf oge, %569, %570 : vector<5x2xf32>
    %cst_247 = arith.constant 0.00999999977 : f32
    %572 = vector.broadcast %cst_247 : f32 to vector<5x2xf32>
    %573 = arith.mulf %572, %569 : vector<5x2xf32>
    %574 = arith.select %571, %569, %573 : vector<5x2xi1>, vector<5x2xf32>
    %c0_248 = arith.constant 0 : index
    %c0_249 = arith.constant 0 : index
    %575 = vector.load %arg18[%c0_248, %c0_249] : memref<5x2xf32, #tpu.memory_space<vmem>>, vector<5x2xf32>
    tpu.vector_store %arg18[%c0_248, %c0_249], %574 {strides = array<i32>} : memref<5x2xf32, #tpu.memory_space<vmem>>, vector<5x2xf32>,
    return
  }
  func.func @transform_0(%arg0: i32) -> (i32, i32) {
    %c0_i32 = arith.constant 0 : i32
    %c0_i32_0 = arith.constant 0 : i32
    %c0_i32_1 = arith.constant 0 : i32
    return %c0_i32, %c0_i32_0 : i32, i32
  }
  func.func @transform_1(%arg0: i32) -> (i32, i32) {
    %c0_i32 = arith.constant 0 : i32
    %c0_i32_0 = arith.constant 0 : i32
    %c0_i32_1 = arith.constant 0 : i32
    return %c0_i32, %c0_i32_0 : i32, i32
  }
  func.func @transform_2(%arg0: i32) -> (i32, i32) {
    %c0_i32 = arith.constant 0 : i32
    %c0_i32_0 = arith.constant 0 : i32
    %c0_i32_1 = arith.constant 0 : i32
    return %c0_i32, %c0_i32_0 : i32, i32
  }
  func.func @transform_3(%arg0: i32) -> (i32, i32) {
    %c0_i32 = arith.constant 0 : i32
    %c0_i32_0 = arith.constant 0 : i32
    %c0_i32_1 = arith.constant 0 : i32
    return %c0_i32, %c0_i32_0 : i32, i32
  }
  func.func @transform_4(%arg0: i32) -> (i32, i32) {
    %c0_i32 = arith.constant 0 : i32
    %c0_i32_0 = arith.constant 0 : i32
    %c0_i32_1 = arith.constant 0 : i32
    return %c0_i32, %c0_i32_0 : i32, i32
  }
  func.func @transform_5(%arg0: i32) -> (i32, i32) {
    %c0_i32 = arith.constant 0 : i32
    %c0_i32_0 = arith.constant 0 : i32
    %c0_i32_1 = arith.constant 0 : i32
    return %c0_i32, %c0_i32_0 : i32, i32
  }
  func.func @transform_6(%arg0: i32) -> (i32, i32) {
    %c0_i32 = arith.constant 0 : i32
    %c0_i32_0 = arith.constant 0 : i32
    %c0_i32_1 = arith.constant 0 : i32
    return %c0_i32, %c0_i32_0 : i32, i32
  }
  func.func @transform_7(%arg0: i32) -> (i32, i32) {
    %c0_i32 = arith.constant 0 : i32
    %c0_i32_0 = arith.constant 0 : i32
    %c0_i32_1 = arith.constant 0 : i32
    return %c0_i32, %c0_i32_0 : i32, i32
  }
  func.func @transform_8(%arg0: i32) -> (i32, i32) {
    %c0_i32 = arith.constant 0 : i32
    %c0_i32_0 = arith.constant 0 : i32
    %c0_i32_1 = arith.constant 0 : i32
    return %c0_i32, %c0_i32_0 : i32, i32
  }
  func.func @transform_9(%arg0: i32) -> (i32, i32) {
    %c0_i32 = arith.constant 0 : i32
    %c0_i32_0 = arith.constant 0 : i32
    %c0_i32_1 = arith.constant 0 : i32
    return %c0_i32, %c0_i32_0 : i32, i32
  }
  func.func @transform_10(%arg0: i32) -> (i32, i32) {
    %c0_i32 = arith.constant 0 : i32
    %c0_i32_0 = arith.constant 0 : i32
    %c0_i32_1 = arith.constant 0 : i32
    return %c0_i32, %c0_i32_0 : i32, i32
  }
  func.func @transform_11(%arg0: i32) -> (i32, i32) {
    %c0_i32 = arith.constant 0 : i32
    %c0_i32_0 = arith.constant 0 : i32
    %c0_i32_1 = arith.constant 0 : i32
    return %c0_i32, %c0_i32_0 : i32, i32
  }
  func.func @transform_12(%arg0: i32) -> (i32, i32) {
    %c0_i32 = arith.constant 0 : i32
    %c0_i32_0 = arith.constant 0 : i32
    %c0_i32_1 = arith.constant 0 : i32
    return %c0_i32, %c0_i32_0 : i32, i32
  }
  func.func @transform_13(%arg0: i32) -> (i32, i32) {
    %c0_i32 = arith.constant 0 : i32
    %c0_i32_0 = arith.constant 0 : i32
    %c0_i32_1 = arith.constant 0 : i32
    return %c0_i32, %c0_i32_0 : i32, i32
  }
  func.func @transform_14(%arg0: i32) -> (i32, i32) {
    %c0_i32 = arith.constant 0 : i32
    %c0_i32_0 = arith.constant 0 : i32
    %c0_i32_1 = arith.constant 0 : i32
    return %c0_i32, %c0_i32_0 : i32, i32
  }
  func.func @transform_15(%arg0: i32) -> (i32, i32) {
    %c0_i32 = arith.constant 0 : i32
    %c0_i32_0 = arith.constant 0 : i32
    %c0_i32_1 = arith.constant 0 : i32
    return %c0_i32, %c0_i32_0 : i32, i32
  }
  func.func @transform_16(%arg0: i32) -> (i32, i32) {
    %c0_i32 = arith.constant 0 : i32
    %c0_i32_0 = arith.constant 0 : i32
    %c0_i32_1 = arith.constant 0 : i32
    return %c0_i32, %c0_i32_0 : i32, i32
  }
  func.func @transform_17(%arg0: i32) -> (i32, i32) {
    %c0_i32 = arith.constant 0 : i32
    %c0_i32_0 = arith.constant 0 : i32
    %c0_i32_1 = arith.constant 0 : i32
    return %c0_i32, %c0_i32_0 : i32, i32
  }
}

</mosaic_0001>

<llo_original>
// kernel: tpu_custom_call.1
$region0: #{tpu_custom_call.1}
  #allocation0 [shape = 'u32[]', space=smem, size = 0x4, offset = 0x4, fixed_abs, tag = 'smem constant byte address 0x4 - core index']
  #allocation1 [shape = 'u32[144,128]{1,0:T(1,128)}', space=vmem, size = 0x12000, scoped, tag = 'internal scratch']
  %s0 = inlined_call_operand.vmem [shape: f32[1,256], index: 0, kind: input, shape index: {}]
  %s1 = inlined_call_operand.vmem [shape: f32[112,1], index: 1, kind: input, shape index: {}]
  %s2 = inlined_call_operand.vmem [shape: f32[16,1], index: 2, kind: input, shape index: {}]
  %s3 = inlined_call_operand.vmem [shape: f32[80,16], index: 3, kind: input, shape index: {}]
  %s4 = inlined_call_operand.vmem [shape: f32[16,1], index: 4, kind: input, shape index: {}]
  %s5 = inlined_call_operand.vmem [shape: f32[80,16], index: 5, kind: input, shape index: {}]
  %s6 = inlined_call_operand.vmem [shape: f32[16,1], index: 6, kind: input, shape index: {}]
  %s7 = inlined_call_operand.vmem [shape: f32[48,16], index: 7, kind: input, shape index: {}]
  %s8 = inlined_call_operand.vmem [shape: f32[16,1], index: 8, kind: input, shape index: {}]
  %s9 = inlined_call_operand.vmem [shape: f32[96,16], index: 9, kind: input, shape index: {}]
  %s10 = inlined_call_operand.vmem [shape: f32[32,1], index: 10, kind: input, shape index: {}]
  %s11 = inlined_call_operand.vmem [shape: f32[1024,32], index: 11, kind: input, shape index: {}]
  %s12 = inlined_call_operand.vmem [shape: f32[64,1], index: 12, kind: input, shape index: {}]
  %s13 = inlined_call_operand.vmem [shape: f32[32,64], index: 13, kind: input, shape index: {}]
  %s14 = inlined_call_operand.vmem [shape: f32[32,1], index: 14, kind: input, shape index: {}]
  %s15 = inlined_call_operand.vmem [shape: f32[5,32], index: 15, kind: input, shape index: {}]
  %s16 = inlined_call_operand.vmem [shape: f32[5,1], index: 16, kind: input, shape index: {}]
  %s17 = inlined_call_operand.vmem [shape: f32[5,2], index: 17, kind: output, shape index: {}]
  %s18 = sld [smem:[#allocation0]]
  $region78: #{tpu_custom_call.1} parent=0
    _
  %s20 = ssub.s32 1, %s18
  %s21 = scalar_select 0, %s20, %s18
  // Predicated region
  $region2: #{tpu_custom_call.1} parent=0 // pred_check
    _
  $region3: #{tpu_custom_call.1} parent=0 // pred_check_branch
    %23 = sbr.rel (0) target = $region5
  $region4: #{tpu_custom_call.1} parent=0 // pred_region
    _
  $region5: #{tpu_custom_call.1} parent=0 // pred_fallthru
    _
  // Predicated region
  $region6: #{tpu_custom_call.1} parent=0 // pred_check
    _
  $region7: #{tpu_custom_call.1} parent=0 // pred_check_branch
    %25 = sbr.rel (0) target = $region9
  $region8: #{tpu_custom_call.1} parent=0 // pred_region
    _
  $region9: #{tpu_custom_call.1} parent=0 // pred_fallthru
    _
  // Predicated region
  $region10: #{tpu_custom_call.1} parent=0 // pred_check
    _
  $region11: #{tpu_custom_call.1} parent=0 // pred_check_branch
    %27 = sbr.rel (0) target = $region13
  $region12: #{tpu_custom_call.1} parent=0 // pred_region
    _
  $region13: #{tpu_custom_call.1} parent=0 // pred_fallthru
    _
  // Predicated region
  $region14: #{tpu_custom_call.1} parent=0 // pred_check
    _
  $region15: #{tpu_custom_call.1} parent=0 // pred_check_branch
    %29 = sbr.rel (0) target = $region17
  $region16: #{tpu_custom_call.1} parent=0 // pred_region
    _
  $region17: #{tpu_custom_call.1} parent=0 // pred_fallthru
    _
  // Predicated region
  $region18: #{tpu_custom_call.1} parent=0 // pred_check
    _
  $region19: #{tpu_custom_call.1} parent=0 // pred_check_branch
    %31 = sbr.rel (0) target = $region21
  $region20: #{tpu_custom_call.1} parent=0 // pred_region
    _
  $region21: #{tpu_custom_call.1} parent=0 // pred_fallthru
    _
  // Predicated region
  $region22: #{tpu_custom_call.1} parent=0 // pred_check
    _
  $region23: #{tpu_custom_call.1} parent=0 // pred_check_branch
    %33 = sbr.rel (0) target = $region25
  $region24: #{tpu_custom_call.1} parent=0 // pred_region
    _
  $region25: #{tpu_custom_call.1} parent=0 // pred_fallthru
    _
  // Predicated region
  $region26: #{tpu_custom_call.1} parent=0 // pred_check
    _
  $region27: #{tpu_custom_call.1} parent=0 // pred_check_branch
    %35 = sbr.rel (0) target = $region29
  $region28: #{tpu_custom_call.1} parent=0 // pred_region
    _
  $region29: #{tpu_custom_call.1} parent=0 // pred_fallthru
    _
  // Predicated region
  $region30: #{tpu_custom_call.1} parent=0 // pred_check
    _
  $region31: #{tpu_custom_call.1} parent=0 // pred_check_branch
    %37 = sbr.rel (0) target = $region33
  $region32: #{tpu_custom_call.1} parent=0 // pred_region
    _
  $region33: #{tpu_custom_call.1} parent=0 // pred_fallthru
    _
  // Predicated region
  $region34: #{tpu_custom_call.1} parent=0 // pred_check
    _
  $region35: #{tpu_custom_call.1} parent=0 // pred_check_branch
    %39 = sbr.rel (0) target = $region37
  $region36: #{tpu_custom_call.1} parent=0 // pred_region
    _
  $region37: #{tpu_custom_call.1} parent=0 // pred_fallthru
    _
  // Predicated region
  $region38: #{tpu_custom_call.1} parent=0 // pred_check
    _
  $region39: #{tpu_custom_call.1} parent=0 // pred_check_branch
    %41 = sbr.rel (0) target = $region41
  $region40: #{tpu_custom_call.1} parent=0 // pred_region
    _
  $region41: #{tpu_custom_call.1} parent=0 // pred_fallthru
    _
  // Predicated region
  $region42: #{tpu_custom_call.1} parent=0 // pred_check
    _
  $region43: #{tpu_custom_call.1} parent=0 // pred_check_branch
    %43 = sbr.rel (0) target = $region45
  $region44: #{tpu_custom_call.1} parent=0 // pred_region
    _
  $region45: #{tpu_custom_call.1} parent=0 // pred_fallthru
    _
  // Predicated region
  $region46: #{tpu_custom_call.1} parent=0 // pred_check
    _
  $region47: #{tpu_custom_call.1} parent=0 // pred_check_branch
    %45 = sbr.rel (0) target = $region49
  $region48: #{tpu_custom_call.1} parent=0 // pred_region
    _
  $region49: #{tpu_custom_call.1} parent=0 // pred_fallthru
    _
  // Predicated region
  $region50: #{tpu_custom_call.1} parent=0 // pred_check
    _
  $region51: #{tpu_custom_call.1} parent=0 // pred_check_branch
    %47 = sbr.rel (0) target = $region53
  $region52: #{tpu_custom_call.1} parent=0 // pred_region
    _
  $region53: #{tpu_custom_call.1} parent=0 // pred_fallthru
    _
  // Predicated region
  $region54: #{tpu_custom_call.1} parent=0 // pred_check
    _
  $region55: #{tpu_custom_call.1} parent=0 // pred_check_branch
    %49 = sbr.rel (0) target = $region57
  $region56: #{tpu_custom_call.1} parent=0 // pred_region
    _
  $region57: #{tpu_custom_call.1} parent=0 // pred_fallthru
    _
  // Predicated region
  $region58: #{tpu_custom_call.1} parent=0 // pred_check
    _
  $region59: #{tpu_custom_call.1} parent=0 // pred_check_branch
    %51 = sbr.rel (0) target = $region61
  $region60: #{tpu_custom_call.1} parent=0 // pred_region
    _
  $region61: #{tpu_custom_call.1} parent=0 // pred_fallthru
    _
  // Predicated region
  $region62: #{tpu_custom_call.1} parent=0 // pred_check
    _
  $region63: #{tpu_custom_call.1} parent=0 // pred_check_branch
    %53 = sbr.rel (0) target = $region65
  $region64: #{tpu_custom_call.1} parent=0 // pred_region
    _
  $region65: #{tpu_custom_call.1} parent=0 // pred_fallthru
    _
  // Predicated region
  $region66: #{tpu_custom_call.1} parent=0 // pred_check
    _
  $region67: #{tpu_custom_call.1} parent=0 // pred_check_branch
    %55 = sbr.rel (0) target = $region69
  $region68: #{tpu_custom_call.1} parent=0 // pred_region
    _
  $region69: #{tpu_custom_call.1} parent=0 // pred_fallthru
    _
  %v56 = vld [vmem:[%s0] sm:$0x3]
  %v57 = vld [vmem:[%s1] sm:$0xff]
  %v58 = vld [vmem:[%s1 + $0x8] sm:$0xff]
  %v59 = vld [vmem:[%s1 + $0x10] sm:$0xff]
  %v60 = vld [vmem:[%s1 + $0x18] sm:$0xff]
  %v61 = vld [vmem:[%s1 + $0x20] sm:$0xff]
  %v62 = vld [vmem:[%s1 + $0x28] sm:$0xff]
  %v63 = vld [vmem:[%s1 + $0x30] sm:$0xff]
  %v64 = vld [vmem:[%s1 + $0x38] sm:$0xff]
  %v65 = vld [vmem:[%s1 + $0x40] sm:$0xff]
  %v66 = vld [vmem:[%s1 + $0x48] sm:$0xff]
  %v67 = vld [vmem:[%s1 + $0x50] sm:$0xff]
  %v68 = vld [vmem:[%s1 + $0x58] sm:$0xff]
  %v69 = vld [vmem:[%s1 + $0x60] sm:$0xff]
  %v70 = vld [vmem:[%s1 + $0x68] sm:$0xff]
  %v71 = vld [vmem:[%s2] sm:$0xff]
  %v72 = vld [vmem:[%s2 + $0x8] sm:$0xff]
  %v73 = vlaneseq
  %v74 = vshrl.u32 %v73, 7
  %v75 = vadd.s32 %v74, 8
  %v76 = vadd.s32 %v74, 16
  %v77 = vadd.s32 %v74, 24
  %v78 = vadd.s32 %v74, 32
  %v79 = vadd.s32 %v74, 40
  %v80 = vadd.s32 %v74, 48
  %v81 = vadd.s32 %v74, 56
  %v82 = vadd.s32 %v74, 64
  %v83 = vadd.s32 %v74, 72
  %v84 = vadd.s32 %v74, 80
  %v85 = vadd.s32 %v74, 88
  %v86 = vadd.s32 %v74, 96
  %v87 = vadd.s32 %v74, 104
  %v88 = vadd.s32 %v74, 112
  %v89 = vadd.s32 %v74, 120
  %v90 = vadd.s32 %v74, 128
  %v91 = vadd.s32 %v74, 136
  %v92 = vadd.s32 %v74, 144
  %v93 = vadd.s32 %v74, 152
  %v94 = vadd.s32 %v74, 160
  %v95 = vadd.s32 %v74, 168
  %v96 = vadd.s32 %v74, 176
  %v97 = vadd.s32 %v74, 184
  %v98 = vadd.s32 %v74, 192
  %v99 = vadd.s32 %v74, 200
  %v100 = vadd.s32 %v74, 208
  %v101 = vadd.s32 %v74, 216
  %v102 = vadd.s32 %v74, 224
  %v103 = vadd.s32 %v74, 232
  %v104 = vadd.s32 %v74, 240
  %v105 = vadd.s32 %v74, 248
  %v106 = vlaneseq
  %v107 = vand.u32 %v106, 127
  %v108 = vadd.s32 %v107, 128
  %v109 = vand.u32 %v74, 1
  %v110 = vand.u32 %v75, 1
  %v111 = vand.u32 %v76, 1
  %v112 = vand.u32 %v77, 1
  %v113 = vand.u32 %v78, 1
  %v114 = vand.u32 %v79, 1
  %v115 = vand.u32 %v80, 1
  %v116 = vand.u32 %v81, 1
  %v117 = vand.u32 %v82, 1
  %v118 = vand.u32 %v83, 1
  %v119 = vand.u32 %v84, 1
  %v120 = vand.u32 %v85, 1
  %v121 = vand.u32 %v86, 1
  %v122 = vand.u32 %v87, 1
  %v123 = vand.u32 %v88, 1
  %v124 = vand.u32 %v89, 1
  %v125 = vand.u32 %v90, 1
  %v126 = vand.u32 %v91, 1
  %v127 = vand.u32 %v92, 1
  %v128 = vand.u32 %v93, 1
  %v129 = vand.u32 %v94, 1
  %v130 = vand.u32 %v95, 1
  %v131 = vand.u32 %v96, 1
  %v132 = vand.u32 %v97, 1
  %v133 = vand.u32 %v98, 1
  %v134 = vand.u32 %v99, 1
  %v135 = vand.u32 %v100, 1
  %v136 = vand.u32 %v101, 1
  %v137 = vand.u32 %v102, 1
  %v138 = vand.u32 %v103, 1
  %v139 = vand.u32 %v104, 1
  %v140 = vand.u32 %v105, 1
  %v141 = vand.u32 %v107, 1
  %v142 = vand.u32 %v108, 1
  %vm143 = vcmp.eq.s32.totalorder %v109, %v141
  %vm144 = vcmp.eq.s32.totalorder %v109, %v142
  %vm145 = vcmp.eq.s32.totalorder %v110, %v141
  %vm146 = vcmp.eq.s32.totalorder %v110, %v142
  %vm147 = vcmp.eq.s32.totalorder %v111, %v141
  %vm148 = vcmp.eq.s32.totalorder %v111, %v142
  %vm149 = vcmp.eq.s32.totalorder %v112, %v141
  %vm150 = vcmp.eq.s32.totalorder %v112, %v142
  %vm151 = vcmp.eq.s32.totalorder %v113, %v141
  %vm152 = vcmp.eq.s32.totalorder %v113, %v142
  %vm153 = vcmp.eq.s32.totalorder %v114, %v141
  %vm154 = vcmp.eq.s32.totalorder %v114, %v142
  %vm155 = vcmp.eq.s32.totalorder %v115, %v141
  %vm156 = vcmp.eq.s32.totalorder %v115, %v142
  %vm157 = vcmp.eq.s32.totalorder %v116, %v141
  %vm158 = vcmp.eq.s32.totalorder %v116, %v142
  %vm159 = vcmp.eq.s32.totalorder %v117, %v141
  %vm160 = vcmp.eq.s32.totalorder %v117, %v142
  %vm161 = vcmp.eq.s32.totalorder %v118, %v141
  %vm162 = vcmp.eq.s32.totalorder %v118, %v142
  %vm163 = vcmp.eq.s32.totalorder %v119, %v141
  %vm164 = vcmp.eq.s32.totalorder %v119, %v142
  %vm165 = vcmp.eq.s32.totalorder %v120, %v141
  %vm166 = vcmp.eq.s32.totalorder %v120, %v142
  %vm167 = vcmp.eq.s32.totalorder %v121, %v141
  %vm168 = vcmp.eq.s32.totalorder %v121, %v142
  %vm169 = vcmp.eq.s32.totalorder %v122, %v141
  %vm170 = vcmp.eq.s32.totalorder %v122, %v142
  %vm171 = vcmp.eq.s32.totalorder %v123, %v141
  %vm172 = vcmp.eq.s32.totalorder %v123, %v142
  %vm173 = vcmp.eq.s32.totalorder %v124, %v141
  %vm174 = vcmp.eq.s32.totalorder %v124, %v142
  %vm175 = vcmp.eq.s32.totalorder %v125, %v141
  %vm176 = vcmp.eq.s32.totalorder %v125, %v142
  %vm177 = vcmp.eq.s32.totalorder %v126, %v141
  %vm178 = vcmp.eq.s32.totalorder %v126, %v142
  %vm179 = vcmp.eq.s32.totalorder %v127, %v141
  %vm180 = vcmp.eq.s32.totalorder %v127, %v142
  %vm181 = vcmp.eq.s32.totalorder %v128, %v141
  %vm182 = vcmp.eq.s32.totalorder %v128, %v142
  %vm183 = vcmp.eq.s32.totalorder %v129, %v141
  %vm184 = vcmp.eq.s32.totalorder %v129, %v142
  %vm185 = vcmp.eq.s32.totalorder %v130, %v141
  %vm186 = vcmp.eq.s32.totalorder %v130, %v142
  %vm187 = vcmp.eq.s32.totalorder %v131, %v141
  %vm188 = vcmp.eq.s32.totalorder %v131, %v142
  %vm189 = vcmp.eq.s32.totalorder %v132, %v141
  %vm190 = vcmp.eq.s32.totalorder %v132, %v142
  %vm191 = vcmp.eq.s32.totalorder %v133, %v141
  %vm192 = vcmp.eq.s32.totalorder %v133, %v142
  %vm193 = vcmp.eq.s32.totalorder %v134, %v141
  %vm194 = vcmp.eq.s32.totalorder %v134, %v142
  %vm195 = vcmp.eq.s32.totalorder %v135, %v141
  %vm196 = vcmp.eq.s32.totalorder %v135, %v142
  %vm197 = vcmp.eq.s32.totalorder %v136, %v141
  %vm198 = vcmp.eq.s32.totalorder %v136, %v142
  %vm199 = vcmp.eq.s32.totalorder %v137, %v141
  %vm200 = vcmp.eq.s32.totalorder %v137, %v142
  %vm201 = vcmp.eq.s32.totalorder %v138, %v141
  %vm202 = vcmp.eq.s32.totalorder %v138, %v142
  %vm203 = vcmp.eq.s32.totalorder %v139, %v141
  %vm204 = vcmp.eq.s32.totalorder %v139, %v142
  %vm205 = vcmp.eq.s32.totalorder %v140, %v141
  %vm206 = vcmp.eq.s32.totalorder %v140, %v142
  %v207 = vshra.s32 %v74, 1
  %v208 = vshra.s32 %v75, 1
  %v209 = vshra.s32 %v76, 1
  %v210 = vshra.s32 %v77, 1
  %v211 = vshra.s32 %v78, 1
  %v212 = vshra.s32 %v79, 1
  %v213 = vshra.s32 %v80, 1
  %v214 = vshra.s32 %v81, 1
  %v215 = vshra.s32 %v82, 1
  %v216 = vshra.s32 %v83, 1
  %v217 = vshra.s32 %v84, 1
  %v218 = vshra.s32 %v85, 1
  %v219 = vshra.s32 %v86, 1
  %v220 = vshra.s32 %v87, 1
  %v221 = vshra.s32 %v88, 1
  %v222 = vshra.s32 %v89, 1
  %v223 = vshra.s32 %v90, 1
  %v224 = vshra.s32 %v91, 1
  %v225 = vshra.s32 %v92, 1
  %v226 = vshra.s32 %v93, 1
  %v227 = vshra.s32 %v94, 1
  %v228 = vshra.s32 %v95, 1
  %v229 = vshra.s32 %v96, 1
  %v230 = vshra.s32 %v97, 1
  %v231 = vshra.s32 %v98, 1
  %v232 = vshra.s32 %v99, 1
  %v233 = vshra.s32 %v100, 1
  %v234 = vshra.s32 %v101, 1
  %v235 = vshra.s32 %v102, 1
  %v236 = vshra.s32 %v103, 1
  %v237 = vshra.s32 %v104, 1
  %v238 = vshra.s32 %v105, 1
  %v239 = vshra.s32 %v107, 1
  %v240 = vshra.s32 %v108, 1
  %242 = vset.pattern.permute.xlu0 0
  %243 = vperm.xlu0 %242, %v57
  %v244 = vpop.permute.xlu0 %243
  %247 = vset.pattern.permute.xlu0 0
  %248 = vperm.xlu0 %247, %v58
  %v249 = vpop.permute.xlu0 %248
  %v252 = vlaneseq
  %v253 = vshrl.u32 %v252, 7
  %v254 = vsub.s32 0, %v253
  %v255 = vrot.slane %v56, %v254
  %v256 = vlaneseq
  %v257 = vshrl.u32 %v256, 7
  %v258 = vsub.s32 1, %v257
  %v259 = vrot.slane %v56, %v258
  %v262 = vmul.f32 %v244, %v255
  %v263 = vmul.f32 %v244, %v259
  %v264 = vmul.f32 %v249, %v255
  %v265 = vmul.f32 %v249, %v259
  %v266 = vadd.s32 %v239, 4294967293
  %v267 = vadd.s32 %v240, 4294967293
  %vm268 = vcmp.eq.s32.totalorder %v207, %v266
  %vm269 = vcmp.eq.s32.totalorder %v207, %v267
  %vm270 = vcmp.eq.s32.totalorder %v208, %v266
  %vm271 = vcmp.eq.s32.totalorder %v208, %v267
  %vm272 = vcmp.eq.s32.totalorder %v209, %v266
  %vm273 = vcmp.eq.s32.totalorder %v209, %v267
  %vm274 = vcmp.eq.s32.totalorder %v210, %v266
  %vm275 = vcmp.eq.s32.totalorder %v210, %v267
  %vm276 = vcmp.eq.s32.totalorder %v211, %v266
  %vm277 = vcmp.eq.s32.totalorder %v211, %v267
  %vm278 = vcmp.eq.s32.totalorder %v212, %v266
  %vm279 = vcmp.eq.s32.totalorder %v212, %v267
  %vm280 = vcmp.eq.s32.totalorder %v213, %v266
  %vm281 = vcmp.eq.s32.totalorder %v213, %v267
  %vm282 = vcmp.eq.s32.totalorder %v214, %v266
  %vm283 = vcmp.eq.s32.totalorder %v214, %v267
  %vm284 = vcmp.eq.s32.totalorder %v215, %v266
  %vm285 = vcmp.eq.s32.totalorder %v215, %v267
  %vm286 = vcmp.eq.s32.totalorder %v216, %v266
  %vm287 = vcmp.eq.s32.totalorder %v216, %v267
  %vm288 = vcmp.eq.s32.totalorder %v217, %v266
  %vm289 = vcmp.eq.s32.totalorder %v217, %v267
  %vm290 = vcmp.eq.s32.totalorder %v218, %v266
  %vm291 = vcmp.eq.s32.totalorder %v218, %v267
  %vm292 = vcmp.eq.s32.totalorder %v219, %v266
  %vm293 = vcmp.eq.s32.totalorder %v219, %v267
  %vm294 = vcmp.eq.s32.totalorder %v220, %v266
  %vm295 = vcmp.eq.s32.totalorder %v220, %v267
  %vm296 = vcmp.eq.s32.totalorder %v221, %v266
  %vm297 = vcmp.eq.s32.totalorder %v221, %v267
  %vm298 = vcmp.eq.s32.totalorder %v222, %v266
  %vm299 = vcmp.eq.s32.totalorder %v222, %v267
  %vm300 = vcmp.eq.s32.totalorder %v223, %v266
  %vm301 = vcmp.eq.s32.totalorder %v223, %v267
  %vm302 = vcmp.eq.s32.totalorder %v224, %v266
  %vm303 = vcmp.eq.s32.totalorder %v224, %v267
  %vm304 = vcmp.eq.s32.totalorder %v225, %v266
  %vm305 = vcmp.eq.s32.totalorder %v225, %v267
  %vm306 = vcmp.eq.s32.totalorder %v226, %v266
  %vm307 = vcmp.eq.s32.totalorder %v226, %v267
  %vm308 = vcmp.eq.s32.totalorder %v227, %v266
  %vm309 = vcmp.eq.s32.totalorder %v227, %v267
  %vm310 = vcmp.eq.s32.totalorder %v228, %v266
  %vm311 = vcmp.eq.s32.totalorder %v228, %v267
  %vm312 = vcmp.eq.s32.totalorder %v229, %v266
  %vm313 = vcmp.eq.s32.totalorder %v229, %v267
  %vm314 = vcmp.eq.s32.totalorder %v230, %v266
  %vm315 = vcmp.eq.s32.totalorder %v230, %v267
  %vm316 = vcmp.eq.s32.totalorder %v231, %v266
  %vm317 = vcmp.eq.s32.totalorder %v231, %v267
  %vm318 = vcmp.eq.s32.totalorder %v232, %v266
  %vm319 = vcmp.eq.s32.totalorder %v232, %v267
  %vm320 = vcmp.eq.s32.totalorder %v233, %v266
  %vm321 = vcmp.eq.s32.totalorder %v233, %v267
  %vm322 = vcmp.eq.s32.totalorder %v234, %v266
  %vm323 = vcmp.eq.s32.totalorder %v234, %v267
  %vm324 = vcmp.eq.s32.totalorder %v235, %v266
  %vm325 = vcmp.eq.s32.totalorder %v235, %v267
  %vm326 = vcmp.eq.s32.totalorder %v236, %v266
  %vm327 = vcmp.eq.s32.totalorder %v236, %v267
  %vm328 = vcmp.eq.s32.totalorder %v237, %v266
  %vm329 = vcmp.eq.s32.totalorder %v237, %v267
  %vm330 = vcmp.eq.s32.totalorder %v238, %v266
  %vm331 = vcmp.eq.s32.totalorder %v238, %v267
  %vm332 = vmand %vm143, %vm268
  %vm333 = vmand %vm144, %vm269
  %vm334 = vmand %vm145, %vm270
  %vm335 = vmand %vm146, %vm271
  %vm336 = vmand %vm147, %vm272
  %vm337 = vmand %vm148, %vm273
  %vm338 = vmand %vm149, %vm274
  %vm339 = vmand %vm150, %vm275
  %vm340 = vmand %vm151, %vm276
  %vm341 = vmand %vm152, %vm277
  %vm342 = vmand %vm153, %vm278
  %vm343 = vmand %vm154, %vm279
  %vm344 = vmand %vm155, %vm280
  %vm345 = vmand %vm156, %vm281
  %vm346 = vmand %vm157, %vm282
  %vm347 = vmand %vm158, %vm283
  %vm348 = vmand %vm159, %vm284
  %vm349 = vmand %vm160, %vm285
  %vm350 = vmand %vm161, %vm286
  %vm351 = vmand %vm162, %vm287
  %vm352 = vmand %vm163, %vm288
  %vm353 = vmand %vm164, %vm289
  %vm354 = vmand %vm165, %vm290
  %vm355 = vmand %vm166, %vm291
  %vm356 = vmand %vm167, %vm292
  %vm357 = vmand %vm168, %vm293
  %vm358 = vmand %vm169, %vm294
  %vm359 = vmand %vm170, %vm295
  %vm360 = vmand %vm171, %vm296
  %vm361 = vmand %vm172, %vm297
  %vm362 = vmand %vm173, %vm298
  %vm363 = vmand %vm174, %vm299
  %vm364 = vmand %vm175, %vm300
  %vm365 = vmand %vm176, %vm301
  %vm366 = vmand %vm177, %vm302
  %vm367 = vmand %vm178, %vm303
  %vm368 = vmand %vm179, %vm304
  %vm369 = vmand %vm180, %vm305
  %vm370 = vmand %vm181, %vm306
  %vm371 = vmand %vm182, %vm307
  %vm372 = vmand %vm183, %vm308
  %vm373 = vmand %vm184, %vm309
  %vm374 = vmand %vm185, %vm310
  %vm375 = vmand %vm186, %vm311
  %vm376 = vmand %vm187, %vm312
  %vm377 = vmand %vm188, %vm313
  %vm378 = vmand %vm189, %vm314
  %vm379 = vmand %vm190, %vm315
  %vm380 = vmand %vm191, %vm316
  %vm381 = vmand %vm192, %vm317
  %vm382 = vmand %vm193, %vm318
  %vm383 = vmand %vm194, %vm319
  %vm384 = vmand %vm195, %vm320
  %vm385 = vmand %vm196, %vm321
  %vm386 = vmand %vm197, %vm322
  %vm387 = vmand %vm198, %vm323
  %vm388 = vmand %vm199, %vm324
  %vm389 = vmand %vm200, %vm325
  %vm390 = vmand %vm201, %vm326
  %vm391 = vmand %vm202, %vm327
  %vm392 = vmand %vm203, %vm328
  %vm393 = vmand %vm204, %vm329
  %vm394 = vmand %vm205, %vm330
  %vm395 = vmand %vm206, %vm331
  %v396 = vsel %vm332, 1.0, 0.0
  %v397 = vsel %vm333, 1.0, 0.0
  %v398 = vsel %vm334, 1.0, 0.0
  %v399 = vsel %vm335, 1.0, 0.0
  %v400 = vsel %vm336, 1.0, 0.0
  %v401 = vsel %vm337, 1.0, 0.0
  %v402 = vsel %vm338, 1.0, 0.0
  %v403 = vsel %vm339, 1.0, 0.0
  %v404 = vsel %vm340, 1.0, 0.0
  %v405 = vsel %vm341, 1.0, 0.0
  %v406 = vsel %vm342, 1.0, 0.0
  %v407 = vsel %vm343, 1.0, 0.0
  %v408 = vsel %vm344, 1.0, 0.0
  %v409 = vsel %vm345, 1.0, 0.0
  %v410 = vsel %vm346, 1.0, 0.0
  %v411 = vsel %vm347, 1.0, 0.0
  %v412 = vsel %vm348, 1.0, 0.0
  %v413 = vsel %vm349, 1.0, 0.0
  %v414 = vsel %vm350, 1.0, 0.0
  %v415 = vsel %vm351, 1.0, 0.0
  %v416 = vsel %vm352, 1.0, 0.0
  %v417 = vsel %vm353, 1.0, 0.0
  %v418 = vsel %vm354, 1.0, 0.0
  %v419 = vsel %vm355, 1.0, 0.0
  %v420 = vsel %vm356, 1.0, 0.0
  %v421 = vsel %vm357, 1.0, 0.0
  %v422 = vsel %vm358, 1.0, 0.0
  %v423 = vsel %vm359, 1.0, 0.0
  %v424 = vsel %vm360, 1.0, 0.0
  %v425 = vsel %vm361, 1.0, 0.0
  %v426 = vsel %vm362, 1.0, 0.0
  %v427 = vsel %vm363, 1.0, 0.0
  %v428 = vsel %vm364, 1.0, 0.0
  %v429 = vsel %vm365, 1.0, 0.0
  %v430 = vsel %vm366, 1.0, 0.0
  %v431 = vsel %vm367, 1.0, 0.0
  %v432 = vsel %vm368, 1.0, 0.0
  %v433 = vsel %vm369, 1.0, 0.0
  %v434 = vsel %vm370, 1.0, 0.0
  %v435 = vsel %vm371, 1.0, 0.0
  %v436 = vsel %vm372, 1.0, 0.0
  %v437 = vsel %vm373, 1.0, 0.0
  %v438 = vsel %vm374, 1.0, 0.0
  %v439 = vsel %vm375, 1.0, 0.0
  %v440 = vsel %vm376, 1.0, 0.0
  %v441 = vsel %vm377, 1.0, 0.0
  %v442 = vsel %vm378, 1.0, 0.0
  %v443 = vsel %vm379, 1.0, 0.0
  %v444 = vsel %vm380, 1.0, 0.0
  %v445 = vsel %vm381, 1.0, 0.0
  %v446 = vsel %vm382, 1.0, 0.0
  %v447 = vsel %vm383, 1.0, 0.0
  %v448 = vsel %vm384, 1.0, 0.0
  %v449 = vsel %vm385, 1.0, 0.0
  %v450 = vsel %vm386, 1.0, 0.0
  %v451 = vsel %vm387, 1.0, 0.0
  %v452 = vsel %vm388, 1.0, 0.0
  %v453 = vsel %vm389, 1.0, 0.0
  %v454 = vsel %vm390, 1.0, 0.0
  %v455 = vsel %vm391, 1.0, 0.0
  %v456 = vsel %vm392, 1.0, 0.0
  %v457 = vsel %vm393, 1.0, 0.0
  %v458 = vsel %vm394, 1.0, 0.0
  %v459 = vsel %vm395, 1.0, 0.0
  %461 = vset.pattern.permute.xlu0 0
  %462 = vperm.xlu0 %461, %v59
  %v463 = vpop.permute.xlu0 %462
  %466 = vset.pattern.permute.xlu0 0
  %467 = vperm.xlu0 %466, %v60
  %v468 = vpop.permute.xlu0 %467
  %v470 = vmul.f32 %v463, %v255
  %v471 = vmul.f32 %v463, %v259
  %v472 = vmul.f32 %v468, %v255
  %v473 = vmul.f32 %v468, %v259
  %v474 = vadd.s32 %v239, 4294967294
  %v475 = vadd.s32 %v240, 4294967294
  %vm476 = vcmp.eq.s32.totalorder %v207, %v474
  %vm477 = vcmp.eq.s32.totalorder %v207, %v475
  %vm478 = vcmp.eq.s32.totalorder %v208, %v474
  %vm479 = vcmp.eq.s32.totalorder %v208, %v475
  %vm480 = vcmp.eq.s32.totalorder %v209, %v474
  %vm481 = vcmp.eq.s32.totalorder %v209, %v475
  %vm482 = vcmp.eq.s32.totalorder %v210, %v474
  %vm483 = vcmp.eq.s32.totalorder %v210, %v475
  %vm484 = vcmp.eq.s32.totalorder %v211, %v474
  %vm485 = vcmp.eq.s32.totalorder %v211, %v475
  %vm486 = vcmp.eq.s32.totalorder %v212, %v474
  %vm487 = vcmp.eq.s32.totalorder %v212, %v475
  %vm488 = vcmp.eq.s32.totalorder %v213, %v474
  %vm489 = vcmp.eq.s32.totalorder %v213, %v475
  %vm490 = vcmp.eq.s32.totalorder %v214, %v474
  %vm491 = vcmp.eq.s32.totalorder %v214, %v475
  %vm492 = vcmp.eq.s32.totalorder %v215, %v474
  %vm493 = vcmp.eq.s32.totalorder %v215, %v475
  %vm494 = vcmp.eq.s32.totalorder %v216, %v474
  %vm495 = vcmp.eq.s32.totalorder %v216, %v475
  %vm496 = vcmp.eq.s32.totalorder %v217, %v474
  %vm497 = vcmp.eq.s32.totalorder %v217, %v475
  %vm498 = vcmp.eq.s32.totalorder %v218, %v474
  %vm499 = vcmp.eq.s32.totalorder %v218, %v475
  %vm500 = vcmp.eq.s32.totalorder %v219, %v474
  %vm501 = vcmp.eq.s32.totalorder %v219, %v475
  %vm502 = vcmp.eq.s32.totalorder %v220, %v474
  %vm503 = vcmp.eq.s32.totalorder %v220, %v475
  %vm504 = vcmp.eq.s32.totalorder %v221, %v474
  %vm505 = vcmp.eq.s32.totalorder %v221, %v475
  %vm506 = vcmp.eq.s32.totalorder %v222, %v474
  %vm507 = vcmp.eq.s32.totalorder %v222, %v475
  %vm508 = vcmp.eq.s32.totalorder %v223, %v474
  %vm509 = vcmp.eq.s32.totalorder %v223, %v475
  %vm510 = vcmp.eq.s32.totalorder %v224, %v474
  %vm511 = vcmp.eq.s32.totalorder %v224, %v475
  %vm512 = vcmp.eq.s32.totalorder %v225, %v474
  %vm513 = vcmp.eq.s32.totalorder %v225, %v475
  %vm514 = vcmp.eq.s32.totalorder %v226, %v474
  %vm515 = vcmp.eq.s32.totalorder %v226, %v475
  %vm516 = vcmp.eq.s32.totalorder %v227, %v474
  %vm517 = vcmp.eq.s32.totalorder %v227, %v475
  %vm518 = vcmp.eq.s32.totalorder %v228, %v474
  %vm519 = vcmp.eq.s32.totalorder %v228, %v475
  %vm520 = vcmp.eq.s32.totalorder %v229, %v474
  %vm521 = vcmp.eq.s32.totalorder %v229, %v475
  %vm522 = vcmp.eq.s32.totalorder %v230, %v474
  %vm523 = vcmp.eq.s32.totalorder %v230, %v475
  %vm524 = vcmp.eq.s32.totalorder %v231, %v474
  %vm525 = vcmp.eq.s32.totalorder %v231, %v475
  %vm526 = vcmp.eq.s32.totalorder %v232, %v474
  %vm527 = vcmp.eq.s32.totalorder %v232, %v475
  %vm528 = vcmp.eq.s32.totalorder %v233, %v474
  %vm529 = vcmp.eq.s32.totalorder %v233, %v475
  %vm530 = vcmp.eq.s32.totalorder %v234, %v474
  %vm531 = vcmp.eq.s32.totalorder %v234, %v475
  %vm532 = vcmp.eq.s32.totalorder %v235, %v474
  %vm533 = vcmp.eq.s32.totalorder %v235, %v475
  %vm534 = vcmp.eq.s32.totalorder %v236, %v474
  %vm535 = vcmp.eq.s32.totalorder %v236, %v475
  %vm536 = vcmp.eq.s32.totalorder %v237, %v474
  %vm537 = vcmp.eq.s32.totalorder %v237, %v475
  %vm538 = vcmp.eq.s32.totalorder %v238, %v474
  %vm539 = vcmp.eq.s32.totalorder %v238, %v475
  %vm540 = vmand %vm143, %vm476
  %vm541 = vmand %vm144, %vm477
  %vm542 = vmand %vm145, %vm478
  %vm543 = vmand %vm146, %vm479
  %vm544 = vmand %vm147, %vm480
  %vm545 = vmand %vm148, %vm481
  %vm546 = vmand %vm149, %vm482
  %vm547 = vmand %vm150, %vm483
  %vm548 = vmand %vm151, %vm484
  %vm549 = vmand %vm152, %vm485
  %vm550 = vmand %vm153, %vm486
  %vm551 = vmand %vm154, %vm487
  %vm552 = vmand %vm155, %vm488
  %vm553 = vmand %vm156, %vm489
  %vm554 = vmand %vm157, %vm490
  %vm555 = vmand %vm158, %vm491
  %vm556 = vmand %vm159, %vm492
  %vm557 = vmand %vm160, %vm493
  %vm558 = vmand %vm161, %vm494
  %vm559 = vmand %vm162, %vm495
  %vm560 = vmand %vm163, %vm496
  %vm561 = vmand %vm164, %vm497
  %vm562 = vmand %vm165, %vm498
  %vm563 = vmand %vm166, %vm499
  %vm564 = vmand %vm167, %vm500
  %vm565 = vmand %vm168, %vm501
  %vm566 = vmand %vm169, %vm502
  %vm567 = vmand %vm170, %vm503
  %vm568 = vmand %vm171, %vm504
  %vm569 = vmand %vm172, %vm505
  %vm570 = vmand %vm173, %vm506
  %vm571 = vmand %vm174, %vm507
  %vm572 = vmand %vm175, %vm508
  %vm573 = vmand %vm176, %vm509
  %vm574 = vmand %vm177, %vm510
  %vm575 = vmand %vm178, %vm511
  %vm576 = vmand %vm179, %vm512
  %vm577 = vmand %vm180, %vm513
  %vm578 = vmand %vm181, %vm514
  %vm579 = vmand %vm182, %vm515
  %vm580 = vmand %vm183, %vm516
  %vm581 = vmand %vm184, %vm517
  %vm582 = vmand %vm185, %vm518
  %vm583 = vmand %vm186, %vm519
  %vm584 = vmand %vm187, %vm520
  %vm585 = vmand %vm188, %vm521
  %vm586 = vmand %vm189, %vm522
  %vm587 = vmand %vm190, %vm523
  %vm588 = vmand %vm191, %vm524
  %vm589 = vmand %vm192, %vm525
  %vm590 = vmand %vm193, %vm526
  %vm591 = vmand %vm194, %vm527
  %vm592 = vmand %vm195, %vm528
  %vm593 = vmand %vm196, %vm529
  %vm594 = vmand %vm197, %vm530
  %vm595 = vmand %vm198, %vm531
  %vm596 = vmand %vm199, %vm532
  %vm597 = vmand %vm200, %vm533
  %vm598 = vmand %vm201, %vm534
  %vm599 = vmand %vm202, %vm535
  %vm600 = vmand %vm203, %vm536
  %vm601 = vmand %vm204, %vm537
  %vm602 = vmand %vm205, %vm538
  %vm603 = vmand %vm206, %vm539
  %v604 = vsel %vm540, 1.0, 0.0
  %v605 = vsel %vm541, 1.0, 0.0
  %v606 = vsel %vm542, 1.0, 0.0
  %v607 = vsel %vm543, 1.0, 0.0
  %v608 = vsel %vm544, 1.0, 0.0
  %v609 = vsel %vm545, 1.0, 0.0
  %v610 = vsel %vm546, 1.0, 0.0
  %v611 = vsel %vm547, 1.0, 0.0
  %v612 = vsel %vm548, 1.0, 0.0
  %v613 = vsel %vm549, 1.0, 0.0
  %v614 = vsel %vm550, 1.0, 0.0
  %v615 = vsel %vm551, 1.0, 0.0
  %v616 = vsel %vm552, 1.0, 0.0
  %v617 = vsel %vm553, 1.0, 0.0
  %v618 = vsel %vm554, 1.0, 0.0
  %v619 = vsel %vm555, 1.0, 0.0
  %v620 = vsel %vm556, 1.0, 0.0
  %v621 = vsel %vm557, 1.0, 0.0
  %v622 = vsel %vm558, 1.0, 0.0
  %v623 = vsel %vm559, 1.0, 0.0
  %v624 = vsel %vm560, 1.0, 0.0
  %v625 = vsel %vm561, 1.0, 0.0
  %v626 = vsel %vm562, 1.0, 0.0
  %v627 = vsel %vm563, 1.0, 0.0
  %v628 = vsel %vm564, 1.0, 0.0
  %v629 = vsel %vm565, 1.0, 0.0
  %v630 = vsel %vm566, 1.0, 0.0
  %v631 = vsel %vm567, 1.0, 0.0
  %v632 = vsel %vm568, 1.0, 0.0
  %v633 = vsel %vm569, 1.0, 0.0
  %v634 = vsel %vm570, 1.0, 0.0
  %v635 = vsel %vm571, 1.0, 0.0
  %v636 = vsel %vm572, 1.0, 0.0
  %v637 = vsel %vm573, 1.0, 0.0
  %v638 = vsel %vm574, 1.0, 0.0
  %v639 = vsel %vm575, 1.0, 0.0
  %v640 = vsel %vm576, 1.0, 0.0
  %v641 = vsel %vm577, 1.0, 0.0
  %v642 = vsel %vm578, 1.0, 0.0
  %v643 = vsel %vm579, 1.0, 0.0
  %v644 = vsel %vm580, 1.0, 0.0
  %v645 = vsel %vm581, 1.0, 0.0
  %v646 = vsel %vm582, 1.0, 0.0
  %v647 = vsel %vm583, 1.0, 0.0
  %v648 = vsel %vm584, 1.0, 0.0
  %v649 = vsel %vm585, 1.0, 0.0
  %v650 = vsel %vm586, 1.0, 0.0
  %v651 = vsel %vm587, 1.0, 0.0
  %v652 = vsel %vm588, 1.0, 0.0
  %v653 = vsel %vm589, 1.0, 0.0
  %v654 = vsel %vm590, 1.0, 0.0
  %v655 = vsel %vm591, 1.0, 0.0
  %v656 = vsel %vm592, 1.0, 0.0
  %v657 = vsel %vm593, 1.0, 0.0
  %v658 = vsel %vm594, 1.0, 0.0
  %v659 = vsel %vm595, 1.0, 0.0
  %v660 = vsel %vm596, 1.0, 0.0
  %v661 = vsel %vm597, 1.0, 0.0
  %v662 = vsel %vm598, 1.0, 0.0
  %v663 = vsel %vm599, 1.0, 0.0
  %v664 = vsel %vm600, 1.0, 0.0
  %v665 = vsel %vm601, 1.0, 0.0
  %v666 = vsel %vm602, 1.0, 0.0
  %v667 = vsel %vm603, 1.0, 0.0
  %668 = vmatprep.subr.mxu0 %v605
  %669 = vmatpush1.msra.mxu0 %v604
  %670 = vmatprep.subr.mxu0 %v607
  %671 = vmatpush1.msra.mxu0 %v606
  %672 = vmatprep.subr.mxu0 %v609
  %673 = vmatpush1.msra.mxu0 %v608
  %674 = vmatprep.subr.mxu0 %v611
  %675 = vmatpush1.msra.mxu0 %v610
  %676 = vmatprep.subr.mxu0 %v613
  %677 = vmatpush1.msra.mxu0 %v612
  %678 = vmatprep.subr.mxu0 %v615
  %679 = vmatpush1.msra.mxu0 %v614
  %680 = vmatprep.subr.mxu0 %v617
  %681 = vmatpush1.msra.mxu0 %v616
  %682 = vmatprep.subr.mxu0 %v619
  %683 = vmatpush1.msra.mxu0 %v618
  %684 = vmatprep.subr.mxu0 %v621
  %685 = vmatpush1.msra.mxu0 %v620
  %686 = vmatprep.subr.mxu0 %v623
  %687 = vmatpush1.msra.mxu0 %v622
  %688 = vmatprep.subr.mxu0 %v625
  %689 = vmatpush1.msra.mxu0 %v624
  %690 = vmatprep.subr.mxu0 %v627
  %691 = vmatpush1.msra.mxu0 %v626
  %692 = vmatprep.subr.mxu0 %v629
  %693 = vmatpush1.msra.mxu0 %v628
  %694 = vmatprep.subr.mxu0 %v631
  %695 = vmatpush1.msra.mxu0 %v630
  %696 = vmatprep.subr.mxu0 %v633
  %697 = vmatpush1.msra.mxu0 %v632
  %698 = vmatprep.subr.mxu0 %v635
  %699 = vmatpush1.msra.mxu0 %v634
  %700 = vmatprep.subr.mxu0 %v637
  %701 = vmatpush1.msra.mxu0 %v636
  %702 = vmatprep.subr.mxu0 %v639
  %703 = vmatpush1.msra.mxu0 %v638
  %704 = vmatprep.subr.mxu0 %v641
  %705 = vmatpush1.msra.mxu0 %v640
  %706 = vmatprep.subr.mxu0 %v643
  %707 = vmatpush1.msra.mxu0 %v642
  %708 = vmatprep.subr.mxu0 %v645
  %709 = vmatpush1.msra.mxu0 %v644
  %710 = vmatprep.subr.mxu0 %v647
  %711 = vmatpush1.msra.mxu0 %v646
  %712 = vmatprep.subr.mxu0 %v649
  %713 = vmatpush1.msra.mxu0 %v648
  %714 = vmatprep.subr.mxu0 %v651
  %715 = vmatpush1.msra.mxu0 %v650
  %716 = vmatprep.subr.mxu0 %v653
  %717 = vmatpush1.msra.mxu0 %v652
  %718 = vmatprep.subr.mxu0 %v655
  %719 = vmatpush1.msra.mxu0 %v654
  %720 = vmatprep.subr.mxu0 %v657
  %721 = vmatpush1.msra.mxu0 %v656
  %722 = vmatprep.subr.mxu0 %v659
  %723 = vmatpush1.msra.mxu0 %v658
  %724 = vmatprep.subr.mxu0 %v661
  %725 = vmatpush1.msra.mxu0 %v660
  %726 = vmatprep.subr.mxu0 %v663
  %727 = vmatpush1.msra.mxu0 %v662
  %728 = vmatprep.subr.mxu0 %v665
  %729 = vmatpush1.msra.mxu0 %v664
  %730 = vmatprep.subr.mxu0 %v667
  %731 = vmatpush1.msra.mxu0 %v666
  %732 = vmatprep.mubr.f32.mxu0 %v471
  %733 = vmatmul.mubr.f32.gmra.mrb[0].mxu0 %v470
  %v734 = vpop.f32.mrb[0].mxu0
  %v735 = vadd.f32 0.0, %v734
  %v736 = vpop.f32.mrb[0].mxu0
  %v737 = vadd.f32 0.0, %v736
  %738 = vmatprep.mubr.f32.mxu0 %v473
  %739 = vmatmul.mubr.f32.gmra.mrb[0].mxu0 %v472
  %v740 = vpop.f32.mrb[0].mxu0
  %v741 = vadd.f32 0.0, %v740
  %v742 = vpop.f32.mrb[0].mxu0
  %v743 = vadd.f32 0.0, %v742
  %744 = vdwg.mxu0
  %745 = vmatprep.subr.mxu0 %v397
  %746 = vmatpush1.msra.mxu0 %v396
  %747 = vmatprep.subr.mxu0 %v399
  %748 = vmatpush1.msra.mxu0 %v398
  %749 = vmatprep.subr.mxu0 %v401
  %750 = vmatpush1.msra.mxu0 %v400
  %751 = vmatprep.subr.mxu0 %v403
  %752 = vmatpush1.msra.mxu0 %v402
  %753 = vmatprep.subr.mxu0 %v405
  %754 = vmatpush1.msra.mxu0 %v404
  %755 = vmatprep.subr.mxu0 %v407
  %756 = vmatpush1.msra.mxu0 %v406
  %757 = vmatprep.subr.mxu0 %v409
  %758 = vmatpush1.msra.mxu0 %v408
  %759 = vmatprep.subr.mxu0 %v411
  %760 = vmatpush1.msra.mxu0 %v410
  %761 = vmatprep.subr.mxu0 %v413
  %762 = vmatpush1.msra.mxu0 %v412
  %763 = vmatprep.subr.mxu0 %v415
  %764 = vmatpush1.msra.mxu0 %v414
  %765 = vmatprep.subr.mxu0 %v417
  %766 = vmatpush1.msra.mxu0 %v416
  %767 = vmatprep.subr.mxu0 %v419
  %768 = vmatpush1.msra.mxu0 %v418
  %769 = vmatprep.subr.mxu0 %v421
  %770 = vmatpush1.msra.mxu0 %v420
  %771 = vmatprep.subr.mxu0 %v423
  %772 = vmatpush1.msra.mxu0 %v422
  %773 = vmatprep.subr.mxu0 %v425
  %774 = vmatpush1.msra.mxu0 %v424
  %775 = vmatprep.subr.mxu0 %v427
  %776 = vmatpush1.msra.mxu0 %v426
  %777 = vmatprep.subr.mxu0 %v429
  %778 = vmatpush1.msra.mxu0 %v428
  %779 = vmatprep.subr.mxu0 %v431
  %780 = vmatpush1.msra.mxu0 %v430
  %781 = vmatprep.subr.mxu0 %v433
  %782 = vmatpush1.msra.mxu0 %v432
  %783 = vmatprep.subr.mxu0 %v435
  %784 = vmatpush1.msra.mxu0 %v434
  %785 = vmatprep.subr.mxu0 %v437
  %786 = vmatpush1.msra.mxu0 %v436
  %787 = vmatprep.subr.mxu0 %v439
  %788 = vmatpush1.msra.mxu0 %v438
  %789 = vmatprep.subr.mxu0 %v441
  %790 = vmatpush1.msra.mxu0 %v440
  %791 = vmatprep.subr.mxu0 %v443
  %792 = vmatpush1.msra.mxu0 %v442
  %793 = vmatprep.subr.mxu0 %v445
  %794 = vmatpush1.msra.mxu0 %v444
  %795 = vmatprep.subr.mxu0 %v447
  %796 = vmatpush1.msra.mxu0 %v446
  %797 = vmatprep.subr.mxu0 %v449
  %798 = vmatpush1.msra.mxu0 %v448
  %799 = vmatprep.subr.mxu0 %v451
  %800 = vmatpush1.msra.mxu0 %v450
  %801 = vmatprep.subr.mxu0 %v453
  %802 = vmatpush1.msra.mxu0 %v452
  %803 = vmatprep.subr.mxu0 %v455
  %804 = vmatpush1.msra.mxu0 %v454
  %805 = vmatprep.subr.mxu0 %v457
  %806 = vmatpush1.msra.mxu0 %v456
  %807 = vmatprep.subr.mxu0 %v459
  %808 = vmatpush1.msra.mxu0 %v458
  %809 = vmatprep.mubr.f32.mxu0 %v263
  %810 = vmatmul.mubr.f32.gmra.mrb[0].mxu0 %v262
  %v811 = vpop.f32.mrb[0].mxu0
  %v812 = vadd.f32 %v735, %v811
  %v813 = vpop.f32.mrb[0].mxu0
  %v814 = vadd.f32 %v737, %v813
  %815 = vmatprep.mubr.f32.mxu0 %v265
  %816 = vmatmul.mubr.f32.gmra.mrb[0].mxu0 %v264
  %v817 = vpop.f32.mrb[0].mxu0
  %v818 = vadd.f32 %v741, %v817
  %v819 = vpop.f32.mrb[0].mxu0
  %v820 = vadd.f32 %v743, %v819
  %821 = vdwg.mxu0
  %823 = vset.pattern.permute.xlu0 0
  %824 = vperm.xlu0 %823, %v61
  %v825 = vpop.permute.xlu0 %824
  %828 = vset.pattern.permute.xlu0 0
  %829 = vperm.xlu0 %828, %v62
  %v830 = vpop.permute.xlu0 %829
  %v832 = vmul.f32 %v825, %v255
  %v833 = vmul.f32 %v825, %v259
  %v834 = vmul.f32 %v830, %v255
  %v835 = vmul.f32 %v830, %v259
  %v836 = vadd.s32 %v239, 4294967295
  %v837 = vadd.s32 %v240, 4294967295
  %vm838 = vcmp.eq.s32.totalorder %v207, %v836
  %vm839 = vcmp.eq.s32.totalorder %v207, %v837
  %vm840 = vcmp.eq.s32.totalorder %v208, %v836
  %vm841 = vcmp.eq.s32.totalorder %v208, %v837
  %vm842 = vcmp.eq.s32.totalorder %v209, %v836
  %vm843 = vcmp.eq.s32.totalorder %v209, %v837
  %vm844 = vcmp.eq.s32.totalorder %v210, %v836
  %vm845 = vcmp.eq.s32.totalorder %v210, %v837
  %vm846 = vcmp.eq.s32.totalorder %v211, %v836
  %vm847 = vcmp.eq.s32.totalorder %v211, %v837
  %vm848 = vcmp.eq.s32.totalorder %v212, %v836
  %vm849 = vcmp.eq.s32.totalorder %v212, %v837
  %vm850 = vcmp.eq.s32.totalorder %v213, %v836
  %vm851 = vcmp.eq.s32.totalorder %v213, %v837
  %vm852 = vcmp.eq.s32.totalorder %v214, %v836
  %vm853 = vcmp.eq.s32.totalorder %v214, %v837
  %vm854 = vcmp.eq.s32.totalorder %v215, %v836
  %vm855 = vcmp.eq.s32.totalorder %v215, %v837
  %vm856 = vcmp.eq.s32.totalorder %v216, %v836
  %vm857 = vcmp.eq.s32.totalorder %v216, %v837
  %vm858 = vcmp.eq.s32.totalorder %v217, %v836
  %vm859 = vcmp.eq.s32.totalorder %v217, %v837
  %vm860 = vcmp.eq.s32.totalorder %v218, %v836
  %vm861 = vcmp.eq.s32.totalorder %v218, %v837
  %vm862 = vcmp.eq.s32.totalorder %v219, %v836
  %vm863 = vcmp.eq.s32.totalorder %v219, %v837
  %vm864 = vcmp.eq.s32.totalorder %v220, %v836
  %vm865 = vcmp.eq.s32.totalorder %v220, %v837
  %vm866 = vcmp.eq.s32.totalorder %v221, %v836
  %vm867 = vcmp.eq.s32.totalorder %v221, %v837
  %vm868 = vcmp.eq.s32.totalorder %v222, %v836
  %vm869 = vcmp.eq.s32.totalorder %v222, %v837
  %vm870 = vcmp.eq.s32.totalorder %v223, %v836
  %vm871 = vcmp.eq.s32.totalorder %v223, %v837
  %vm872 = vcmp.eq.s32.totalorder %v224, %v836
  %vm873 = vcmp.eq.s32.totalorder %v224, %v837
  %vm874 = vcmp.eq.s32.totalorder %v225, %v836
  %vm875 = vcmp.eq.s32.totalorder %v225, %v837
  %vm876 = vcmp.eq.s32.totalorder %v226, %v836
  %vm877 = vcmp.eq.s32.totalorder %v226, %v837
  %vm878 = vcmp.eq.s32.totalorder %v227, %v836
  %vm879 = vcmp.eq.s32.totalorder %v227, %v837
  %vm880 = vcmp.eq.s32.totalorder %v228, %v836
  %vm881 = vcmp.eq.s32.totalorder %v228, %v837
  %vm882 = vcmp.eq.s32.totalorder %v229, %v836
  %vm883 = vcmp.eq.s32.totalorder %v229, %v837
  %vm884 = vcmp.eq.s32.totalorder %v230, %v836
  %vm885 = vcmp.eq.s32.totalorder %v230, %v837
  %vm886 = vcmp.eq.s32.totalorder %v231, %v836
  %vm887 = vcmp.eq.s32.totalorder %v231, %v837
  %vm888 = vcmp.eq.s32.totalorder %v232, %v836
  %vm889 = vcmp.eq.s32.totalorder %v232, %v837
  %vm890 = vcmp.eq.s32.totalorder %v233, %v836
  %vm891 = vcmp.eq.s32.totalorder %v233, %v837
  %vm892 = vcmp.eq.s32.totalorder %v234, %v836
  %vm893 = vcmp.eq.s32.totalorder %v234, %v837
  %vm894 = vcmp.eq.s32.totalorder %v235, %v836
  %vm895 = vcmp.eq.s32.totalorder %v235, %v837
  %vm896 = vcmp.eq.s32.totalorder %v236, %v836
  %vm897 = vcmp.eq.s32.totalorder %v236, %v837
  %vm898 = vcmp.eq.s32.totalorder %v237, %v836
  %vm899 = vcmp.eq.s32.totalorder %v237, %v837
  %vm900 = vcmp.eq.s32.totalorder %v238, %v836
  %vm901 = vcmp.eq.s32.totalorder %v238, %v837
  %vm902 = vmand %vm143, %vm838
  %vm903 = vmand %vm144, %vm839
  %vm904 = vmand %vm145, %vm840
  %vm905 = vmand %vm146, %vm841
  %vm906 = vmand %vm147, %vm842
  %vm907 = vmand %vm148, %vm843
  %vm908 = vmand %vm149, %vm844
  %vm909 = vmand %vm150, %vm845
  %vm910 = vmand %vm151, %vm846
  %vm911 = vmand %vm152, %vm847
  %vm912 = vmand %vm153, %vm848
  %vm913 = vmand %vm154, %vm849
  %vm914 = vmand %vm155, %vm850
  %vm915 = vmand %vm156, %vm851
  %vm916 = vmand %vm157, %vm852
  %vm917 = vmand %vm158, %vm853
  %vm918 = vmand %vm159, %vm854
  %vm919 = vmand %vm160, %vm855
  %vm920 = vmand %vm161, %vm856
  %vm921 = vmand %vm162, %vm857
  %vm922 = vmand %vm163, %vm858
  %vm923 = vmand %vm164, %vm859
  %vm924 = vmand %vm165, %vm860
  %vm925 = vmand %vm166, %vm861
  %vm926 = vmand %vm167, %vm862
  %vm927 = vmand %vm168, %vm863
  %vm928 = vmand %vm169, %vm864
  %vm929 = vmand %vm170, %vm865
  %vm930 = vmand %vm171, %vm866
  %vm931 = vmand %vm172, %vm867
  %vm932 = vmand %vm173, %vm868
  %vm933 = vmand %vm174, %vm869
  %vm934 = vmand %vm175, %vm870
  %vm935 = vmand %vm176, %vm871
  %vm936 = vmand %vm177, %vm872
  %vm937 = vmand %vm178, %vm873
  %vm938 = vmand %vm179, %vm874
  %vm939 = vmand %vm180, %vm875
  %vm940 = vmand %vm181, %vm876
  %vm941 = vmand %vm182, %vm877
  %vm942 = vmand %vm183, %vm878
  %vm943 = vmand %vm184, %vm879
  %vm944 = vmand %vm185, %vm880
  %vm945 = vmand %vm186, %vm881
  %vm946 = vmand %vm187, %vm882
  %vm947 = vmand %vm188, %vm883
  %vm948 = vmand %vm189, %vm884
  %vm949 = vmand %vm190, %vm885
  %vm950 = vmand %vm191, %vm886
  %vm951 = vmand %vm192, %vm887
  %vm952 = vmand %vm193, %vm888
  %vm953 = vmand %vm194, %vm889
  %vm954 = vmand %vm195, %vm890
  %vm955 = vmand %vm196, %vm891
  %vm956 = vmand %vm197, %vm892
  %vm957 = vmand %vm198, %vm893
  %vm958 = vmand %vm199, %vm894
  %vm959 = vmand %vm200, %vm895
  %vm960 = vmand %vm201, %vm896
  %vm961 = vmand %vm202, %vm897
  %vm962 = vmand %vm203, %vm898
  %vm963 = vmand %vm204, %vm899
  %vm964 = vmand %vm205, %vm900
  %vm965 = vmand %vm206, %vm901
  %v966 = vsel %vm902, 1.0, 0.0
  %v967 = vsel %vm903, 1.0, 0.0
  %v968 = vsel %vm904, 1.0, 0.0
  %v969 = vsel %vm905, 1.0, 0.0
  %v970 = vsel %vm906, 1.0, 0.0
  %v971 = vsel %vm907, 1.0, 0.0
  %v972 = vsel %vm908, 1.0, 0.0
  %v973 = vsel %vm909, 1.0, 0.0
  %v974 = vsel %vm910, 1.0, 0.0
  %v975 = vsel %vm911, 1.0, 0.0
  %v976 = vsel %vm912, 1.0, 0.0
  %v977 = vsel %vm913, 1.0, 0.0
  %v978 = vsel %vm914, 1.0, 0.0
  %v979 = vsel %vm915, 1.0, 0.0
  %v980 = vsel %vm916, 1.0, 0.0
  %v981 = vsel %vm917, 1.0, 0.0
  %v982 = vsel %vm918, 1.0, 0.0
  %v983 = vsel %vm919, 1.0, 0.0
  %v984 = vsel %vm920, 1.0, 0.0
  %v985 = vsel %vm921, 1.0, 0.0
  %v986 = vsel %vm922, 1.0, 0.0
  %v987 = vsel %vm923, 1.0, 0.0
  %v988 = vsel %vm924, 1.0, 0.0
  %v989 = vsel %vm925, 1.0, 0.0
  %v990 = vsel %vm926, 1.0, 0.0
  %v991 = vsel %vm927, 1.0, 0.0
  %v992 = vsel %vm928, 1.0, 0.0
  %v993 = vsel %vm929, 1.0, 0.0
  %v994 = vsel %vm930, 1.0, 0.0
  %v995 = vsel %vm931, 1.0, 0.0
  %v996 = vsel %vm932, 1.0, 0.0
  %v997 = vsel %vm933, 1.0, 0.0
  %v998 = vsel %vm934, 1.0, 0.0
  %v999 = vsel %vm935, 1.0, 0.0
  %v1000 = vsel %vm936, 1.0, 0.0
  %v1001 = vsel %vm937, 1.0, 0.0
  %v1002 = vsel %vm938, 1.0, 0.0
  %v1003 = vsel %vm939, 1.0, 0.0
  %v1004 = vsel %vm940, 1.0, 0.0
  %v1005 = vsel %vm941, 1.0, 0.0
  %v1006 = vsel %vm942, 1.0, 0.0
  %v1007 = vsel %vm943, 1.0, 0.0
  %v1008 = vsel %vm944, 1.0, 0.0
  %v1009 = vsel %vm945, 1.0, 0.0
  %v1010 = vsel %vm946, 1.0, 0.0
  %v1011 = vsel %vm947, 1.0, 0.0
  %v1012 = vsel %vm948, 1.0, 0.0
  %v1013 = vsel %vm949, 1.0, 0.0
  %v1014 = vsel %vm950, 1.0, 0.0
  %v1015 = vsel %vm951, 1.0, 0.0
  %v1016 = vsel %vm952, 1.0, 0.0
  %v1017 = vsel %vm953, 1.0, 0.0
  %v1018 = vsel %vm954, 1.0, 0.0
  %v1019 = vsel %vm955, 1.0, 0.0
  %v1020 = vsel %vm956, 1.0, 0.0
  %v1021 = vsel %vm957, 1.0, 0.0
  %v1022 = vsel %vm958, 1.0, 0.0
  %v1023 = vsel %vm959, 1.0, 0.0
  %v1024 = vsel %vm960, 1.0, 0.0
  %v1025 = vsel %vm961, 1.0, 0.0
  %v1026 = vsel %vm962, 1.0, 0.0
  %v1027 = vsel %vm963, 1.0, 0.0
  %v1028 = vsel %vm964, 1.0, 0.0
  %v1029 = vsel %vm965, 1.0, 0.0
  %1030 = vmatprep.subr.mxu0 %v967
  %1031 = vmatpush1.msra.mxu0 %v966
  %1032 = vmatprep.subr.mxu0 %v969
  %1033 = vmatpush1.msra.mxu0 %v968
  %1034 = vmatprep.subr.mxu0 %v971
  %1035 = vmatpush1.msra.mxu0 %v970
  %1036 = vmatprep.subr.mxu0 %v973
  %1037 = vmatpush1.msra.mxu0 %v972
  %1038 = vmatprep.subr.mxu0 %v975
  %1039 = vmatpush1.msra.mxu0 %v974
  %1040 = vmatprep.subr.mxu0 %v977
  %1041 = vmatpush1.msra.mxu0 %v976
  %1042 = vmatprep.subr.mxu0 %v979
  %1043 = vmatpush1.msra.mxu0 %v978
  %1044 = vmatprep.subr.mxu0 %v981
  %1045 = vmatpush1.msra.mxu0 %v980
  %1046 = vmatprep.subr.mxu0 %v983
  %1047 = vmatpush1.msra.mxu0 %v982
  %1048 = vmatprep.subr.mxu0 %v985
  %1049 = vmatpush1.msra.mxu0 %v984
  %1050 = vmatprep.subr.mxu0 %v987
  %1051 = vmatpush1.msra.mxu0 %v986
  %1052 = vmatprep.subr.mxu0 %v989
  %1053 = vmatpush1.msra.mxu0 %v988
  %1054 = vmatprep.subr.mxu0 %v991
  %1055 = vmatpush1.msra.mxu0 %v990
  %1056 = vmatprep.subr.mxu0 %v993
  %1057 = vmatpush1.msra.mxu0 %v992
  %1058 = vmatprep.subr.mxu0 %v995
  %1059 = vmatpush1.msra.mxu0 %v994
  %1060 = vmatprep.subr.mxu0 %v997
  %1061 = vmatpush1.msra.mxu0 %v996
  %1062 = vmatprep.subr.mxu0 %v999
  %1063 = vmatpush1.msra.mxu0 %v998
  %1064 = vmatprep.subr.mxu0 %v1001
  %1065 = vmatpush1.msra.mxu0 %v1000
  %1066 = vmatprep.subr.mxu0 %v1003
  %1067 = vmatpush1.msra.mxu0 %v1002
  %1068 = vmatprep.subr.mxu0 %v1005
  %1069 = vmatpush1.msra.mxu0 %v1004
  %1070 = vmatprep.subr.mxu0 %v1007
  %1071 = vmatpush1.msra.mxu0 %v1006
  %1072 = vmatprep.subr.mxu0 %v1009
  %1073 = vmatpush1.msra.mxu0 %v1008
  %1074 = vmatprep.subr.mxu0 %v1011
  %1075 = vmatpush1.msra.mxu0 %v1010
  %1076 = vmatprep.subr.mxu0 %v1013
  %1077 = vmatpush1.msra.mxu0 %v1012
  %1078 = vmatprep.subr.mxu0 %v1015
  %1079 = vmatpush1.msra.mxu0 %v1014
  %1080 = vmatprep.subr.mxu0 %v1017
  %1081 = vmatpush1.msra.mxu0 %v1016
  %1082 = vmatprep.subr.mxu0 %v1019
  %1083 = vmatpush1.msra.mxu0 %v1018
  %1084 = vmatprep.subr.mxu0 %v1021
  %1085 = vmatpush1.msra.mxu0 %v1020
  %1086 = vmatprep.subr.mxu0 %v1023
  %1087 = vmatpush1.msra.mxu0 %v1022
  %1088 = vmatprep.subr.mxu0 %v1025
  %1089 = vmatpush1.msra.mxu0 %v1024
  %1090 = vmatprep.subr.mxu0 %v1027
  %1091 = vmatpush1.msra.mxu0 %v1026
  %1092 = vmatprep.subr.mxu0 %v1029
  %1093 = vmatpush1.msra.mxu0 %v1028
  %1094 = vmatprep.mubr.f32.mxu0 %v833
  %1095 = vmatmul.mubr.f32.gmra.mrb[0].mxu0 %v832
  %v1096 = vpop.f32.mrb[0].mxu0
  %v1097 = vadd.f32 0.0, %v1096
  %v1098 = vpop.f32.mrb[0].mxu0
  %v1099 = vadd.f32 0.0, %v1098
  %1100 = vmatprep.mubr.f32.mxu0 %v835
  %1101 = vmatmul.mubr.f32.gmra.mrb[0].mxu0 %v834
  %v1102 = vpop.f32.mrb[0].mxu0
  %v1103 = vadd.f32 0.0, %v1102
  %v1104 = vpop.f32.mrb[0].mxu0
  %v1105 = vadd.f32 0.0, %v1104
  %1106 = vdwg.mxu0
  %v1107 = vadd.f32 %v812, %v1097
  %v1108 = vadd.f32 %v814, %v1099
  %v1109 = vadd.f32 %v818, %v1103
  %v1110 = vadd.f32 %v820, %v1105
  %1112 = vset.pattern.permute.xlu0 0
  %1113 = vperm.xlu0 %1112, %v63
  %v1114 = vpop.permute.xlu0 %1113
  %1117 = vset.pattern.permute.xlu0 0
  %1118 = vperm.xlu0 %1117, %v64
  %v1119 = vpop.permute.xlu0 %1118
  %v1121 = vmul.f32 %v1114, %v255
  %v1122 = vmul.f32 %v1114, %v259
  %v1123 = vmul.f32 %v1119, %v255
  %v1124 = vmul.f32 %v1119, %v259
  %vm1125 = vcmp.eq.s32.totalorder %v207, %v239
  %vm1126 = vcmp.eq.s32.totalorder %v207, %v240
  %vm1127 = vcmp.eq.s32.totalorder %v208, %v239
  %vm1128 = vcmp.eq.s32.totalorder %v208, %v240
  %vm1129 = vcmp.eq.s32.totalorder %v209, %v239
  %vm1130 = vcmp.eq.s32.totalorder %v209, %v240
  %vm1131 = vcmp.eq.s32.totalorder %v210, %v239
  %vm1132 = vcmp.eq.s32.totalorder %v210, %v240
  %vm1133 = vcmp.eq.s32.totalorder %v211, %v239
  %vm1134 = vcmp.eq.s32.totalorder %v211, %v240
  %vm1135 = vcmp.eq.s32.totalorder %v212, %v239
  %vm1136 = vcmp.eq.s32.totalorder %v212, %v240
  %vm1137 = vcmp.eq.s32.totalorder %v213, %v239
  %vm1138 = vcmp.eq.s32.totalorder %v213, %v240
  %vm1139 = vcmp.eq.s32.totalorder %v214, %v239
  %vm1140 = vcmp.eq.s32.totalorder %v214, %v240
  %vm1141 = vcmp.eq.s32.totalorder %v215, %v239
  %vm1142 = vcmp.eq.s32.totalorder %v215, %v240
  %vm1143 = vcmp.eq.s32.totalorder %v216, %v239
  %vm1144 = vcmp.eq.s32.totalorder %v216, %v240
  %vm1145 = vcmp.eq.s32.totalorder %v217, %v239
  %vm1146 = vcmp.eq.s32.totalorder %v217, %v240
  %vm1147 = vcmp.eq.s32.totalorder %v218, %v239
  %vm1148 = vcmp.eq.s32.totalorder %v218, %v240
  %vm1149 = vcmp.eq.s32.totalorder %v219, %v239
  %vm1150 = vcmp.eq.s32.totalorder %v219, %v240
  %vm1151 = vcmp.eq.s32.totalorder %v220, %v239
  %vm1152 = vcmp.eq.s32.totalorder %v220, %v240
  %vm1153 = vcmp.eq.s32.totalorder %v221, %v239
  %vm1154 = vcmp.eq.s32.totalorder %v221, %v240
  %vm1155 = vcmp.eq.s32.totalorder %v222, %v239
  %vm1156 = vcmp.eq.s32.totalorder %v222, %v240
  %vm1157 = vcmp.eq.s32.totalorder %v223, %v239
  %vm1158 = vcmp.eq.s32.totalorder %v223, %v240
  %vm1159 = vcmp.eq.s32.totalorder %v224, %v239
  %vm1160 = vcmp.eq.s32.totalorder %v224, %v240
  %vm1161 = vcmp.eq.s32.totalorder %v225, %v239
  %vm1162 = vcmp.eq.s32.totalorder %v225, %v240
  %vm1163 = vcmp.eq.s32.totalorder %v226, %v239
  %vm1164 = vcmp.eq.s32.totalorder %v226, %v240
  %vm1165 = vcmp.eq.s32.totalorder %v227, %v239
  %vm1166 = vcmp.eq.s32.totalorder %v227, %v240
  %vm1167 = vcmp.eq.s32.totalorder %v228, %v239
  %vm1168 = vcmp.eq.s32.totalorder %v228, %v240
  %vm1169 = vcmp.eq.s32.totalorder %v229, %v239
  %vm1170 = vcmp.eq.s32.totalorder %v229, %v240
  %vm1171 = vcmp.eq.s32.totalorder %v230, %v239
  %vm1172 = vcmp.eq.s32.totalorder %v230, %v240
  %vm1173 = vcmp.eq.s32.totalorder %v231, %v239
  %vm1174 = vcmp.eq.s32.totalorder %v231, %v240
  %vm1175 = vcmp.eq.s32.totalorder %v232, %v239
  %vm1176 = vcmp.eq.s32.totalorder %v232, %v240
  %vm1177 = vcmp.eq.s32.totalorder %v233, %v239
  %vm1178 = vcmp.eq.s32.totalorder %v233, %v240
  %vm1179 = vcmp.eq.s32.totalorder %v234, %v239
  %vm1180 = vcmp.eq.s32.totalorder %v234, %v240
  %vm1181 = vcmp.eq.s32.totalorder %v235, %v239
  %vm1182 = vcmp.eq.s32.totalorder %v235, %v240
  %vm1183 = vcmp.eq.s32.totalorder %v236, %v239
  %vm1184 = vcmp.eq.s32.totalorder %v236, %v240
  %vm1185 = vcmp.eq.s32.totalorder %v237, %v239
  %vm1186 = vcmp.eq.s32.totalorder %v237, %v240
  %vm1187 = vcmp.eq.s32.totalorder %v238, %v239
  %vm1188 = vcmp.eq.s32.totalorder %v238, %v240
  %vm1189 = vmand %vm143, %vm1125
  %vm1190 = vmand %vm144, %vm1126
  %vm1191 = vmand %vm145, %vm1127
  %vm1192 = vmand %vm146, %vm1128
  %vm1193 = vmand %vm147, %vm1129
  %vm1194 = vmand %vm148, %vm1130
  %vm1195 = vmand %vm149, %vm1131
  %vm1196 = vmand %vm150, %vm1132
  %vm1197 = vmand %vm151, %vm1133
  %vm1198 = vmand %vm152, %vm1134
  %vm1199 = vmand %vm153, %vm1135
  %vm1200 = vmand %vm154, %vm1136
  %vm1201 = vmand %vm155, %vm1137
  %vm1202 = vmand %vm156, %vm1138
  %vm1203 = vmand %vm157, %vm1139
  %vm1204 = vmand %vm158, %vm1140
  %vm1205 = vmand %vm159, %vm1141
  %vm1206 = vmand %vm160, %vm1142
  %vm1207 = vmand %vm161, %vm1143
  %vm1208 = vmand %vm162, %vm1144
  %vm1209 = vmand %vm163, %vm1145
  %vm1210 = vmand %vm164, %vm1146
  %vm1211 = vmand %vm165, %vm1147
  %vm1212 = vmand %vm166, %vm1148
  %vm1213 = vmand %vm167, %vm1149
  %vm1214 = vmand %vm168, %vm1150
  %vm1215 = vmand %vm169, %vm1151
  %vm1216 = vmand %vm170, %vm1152
  %vm1217 = vmand %vm171, %vm1153
  %vm1218 = vmand %vm172, %vm1154
  %vm1219 = vmand %vm173, %vm1155
  %vm1220 = vmand %vm174, %vm1156
  %vm1221 = vmand %vm175, %vm1157
  %vm1222 = vmand %vm176, %vm1158
  %vm1223 = vmand %vm177, %vm1159
  %vm1224 = vmand %vm178, %vm1160
  %vm1225 = vmand %vm179, %vm1161
  %vm1226 = vmand %vm180, %vm1162
  %vm1227 = vmand %vm181, %vm1163
  %vm1228 = vmand %vm182, %vm1164
  %vm1229 = vmand %vm183, %vm1165
  %vm1230 = vmand %vm184, %vm1166
  %vm1231 = vmand %vm185, %vm1167
  %vm1232 = vmand %vm186, %vm1168
  %vm1233 = vmand %vm187, %vm1169
  %vm1234 = vmand %vm188, %vm1170
  %vm1235 = vmand %vm189, %vm1171
  %vm1236 = vmand %vm190, %vm1172
  %vm1237 = vmand %vm191, %vm1173
  %vm1238 = vmand %vm192, %vm1174
  %vm1239 = vmand %vm193, %vm1175
  %vm1240 = vmand %vm194, %vm1176
  %vm1241 = vmand %vm195, %vm1177
  %vm1242 = vmand %vm196, %vm1178
  %vm1243 = vmand %vm197, %vm1179
  %vm1244 = vmand %vm198, %vm1180
  %vm1245 = vmand %vm199, %vm1181
  %vm1246 = vmand %vm200, %vm1182
  %vm1247 = vmand %vm201, %vm1183
  %vm1248 = vmand %vm202, %vm1184
  %vm1249 = vmand %vm203, %vm1185
  %vm1250 = vmand %vm204, %vm1186
  %vm1251 = vmand %vm205, %vm1187
  %vm1252 = vmand %vm206, %vm1188
  %v1253 = vsel %vm1189, 1.0, 0.0
  %v1254 = vsel %vm1190, 1.0, 0.0
  %v1255 = vsel %vm1191, 1.0, 0.0
  %v1256 = vsel %vm1192, 1.0, 0.0
  %v1257 = vsel %vm1193, 1.0, 0.0
  %v1258 = vsel %vm1194, 1.0, 0.0
  %v1259 = vsel %vm1195, 1.0, 0.0
  %v1260 = vsel %vm1196, 1.0, 0.0
  %v1261 = vsel %vm1197, 1.0, 0.0
  %v1262 = vsel %vm1198, 1.0, 0.0
  %v1263 = vsel %vm1199, 1.0, 0.0
  %v1264 = vsel %vm1200, 1.0, 0.0
  %v1265 = vsel %vm1201, 1.0, 0.0
  %v1266 = vsel %vm1202, 1.0, 0.0
  %v1267 = vsel %vm1203, 1.0, 0.0
  %v1268 = vsel %vm1204, 1.0, 0.0
  %v1269 = vsel %vm1205, 1.0, 0.0
  %v1270 = vsel %vm1206, 1.0, 0.0
  %v1271 = vsel %vm1207, 1.0, 0.0
  %v1272 = vsel %vm1208, 1.0, 0.0
  %v1273 = vsel %vm1209, 1.0, 0.0
  %v1274 = vsel %vm1210, 1.0, 0.0
  %v1275 = vsel %vm1211, 1.0, 0.0
  %v1276 = vsel %vm1212, 1.0, 0.0
  %v1277 = vsel %vm1213, 1.0, 0.0
  %v1278 = vsel %vm1214, 1.0, 0.0
  %v1279 = vsel %vm1215, 1.0, 0.0
  %v1280 = vsel %vm1216, 1.0, 0.0
  %v1281 = vsel %vm1217, 1.0, 0.0
  %v1282 = vsel %vm1218, 1.0, 0.0
  %v1283 = vsel %vm1219, 1.0, 0.0
  %v1284 = vsel %vm1220, 1.0, 0.0
  %v1285 = vsel %vm1221, 1.0, 0.0
  %v1286 = vsel %vm1222, 1.0, 0.0
  %v1287 = vsel %vm1223, 1.0, 0.0
  %v1288 = vsel %vm1224, 1.0, 0.0
  %v1289 = vsel %vm1225, 1.0, 0.0
  %v1290 = vsel %vm1226, 1.0, 0.0
  %v1291 = vsel %vm1227, 1.0, 0.0
  %v1292 = vsel %vm1228, 1.0, 0.0
  %v1293 = vsel %vm1229, 1.0, 0.0
  %v1294 = vsel %vm1230, 1.0, 0.0
  %v1295 = vsel %vm1231, 1.0, 0.0
  %v1296 = vsel %vm1232, 1.0, 0.0
  %v1297 = vsel %vm1233, 1.0, 0.0
  %v1298 = vsel %vm1234, 1.0, 0.0
  %v1299 = vsel %vm1235, 1.0, 0.0
  %v1300 = vsel %vm1236, 1.0, 0.0
  %v1301 = vsel %vm1237, 1.0, 0.0
  %v1302 = vsel %vm1238, 1.0, 0.0
  %v1303 = vsel %vm1239, 1.0, 0.0
  %v1304 = vsel %vm1240, 1.0, 0.0
  %v1305 = vsel %vm1241, 1.0, 0.0
  %v1306 = vsel %vm1242, 1.0, 0.0
  %v1307 = vsel %vm1243, 1.0, 0.0
  %v1308 = vsel %vm1244, 1.0, 0.0
  %v1309 = vsel %vm1245, 1.0, 0.0
  %v1310 = vsel %vm1246, 1.0, 0.0
  %v1311 = vsel %vm1247, 1.0, 0.0
  %v1312 = vsel %vm1248, 1.0, 0.0
  %v1313 = vsel %vm1249, 1.0, 0.0
  %v1314 = vsel %vm1250, 1.0, 0.0
  %v1315 = vsel %vm1251, 1.0, 0.0
  %v1316 = vsel %vm1252, 1.0, 0.0
  %1317 = vmatprep.subr.mxu0 %v1254
  %1318 = vmatpush1.msra.mxu0 %v1253
  %1319 = vmatprep.subr.mxu0 %v1256
  %1320 = vmatpush1.msra.mxu0 %v1255
  %1321 = vmatprep.subr.mxu0 %v1258
  %1322 = vmatpush1.msra.mxu0 %v1257
  %1323 = vmatprep.subr.mxu0 %v1260
  %1324 = vmatpush1.msra.mxu0 %v1259
  %1325 = vmatprep.subr.mxu0 %v1262
  %1326 = vmatpush1.msra.mxu0 %v1261
  %1327 = vmatprep.subr.mxu0 %v1264
  %1328 = vmatpush1.msra.mxu0 %v1263
  %1329 = vmatprep.subr.mxu0 %v1266
  %1330 = vmatpush1.msra.mxu0 %v1265
  %1331 = vmatprep.subr.mxu0 %v1268
  %1332 = vmatpush1.msra.mxu0 %v1267
  %1333 = vmatprep.subr.mxu0 %v1270
  %1334 = vmatpush1.msra.mxu0 %v1269
  %1335 = vmatprep.subr.mxu0 %v1272
  %1336 = vmatpush1.msra.mxu0 %v1271
  %1337 = vmatprep.subr.mxu0 %v1274
  %1338 = vmatpush1.msra.mxu0 %v1273
  %1339 = vmatprep.subr.mxu0 %v1276
  %1340 = vmatpush1.msra.mxu0 %v1275
  %1341 = vmatprep.subr.mxu0 %v1278
  %1342 = vmatpush1.msra.mxu0 %v1277
  %1343 = vmatprep.subr.mxu0 %v1280
  %1344 = vmatpush1.msra.mxu0 %v1279
  %1345 = vmatprep.subr.mxu0 %v1282
  %1346 = vmatpush1.msra.mxu0 %v1281
  %1347 = vmatprep.subr.mxu0 %v1284
  %1348 = vmatpush1.msra.mxu0 %v1283
  %1349 = vmatprep.subr.mxu0 %v1286
  %1350 = vmatpush1.msra.mxu0 %v1285
  %1351 = vmatprep.subr.mxu0 %v1288
  %1352 = vmatpush1.msra.mxu0 %v1287
  %1353 = vmatprep.subr.mxu0 %v1290
  %1354 = vmatpush1.msra.mxu0 %v1289
  %1355 = vmatprep.subr.mxu0 %v1292
  %1356 = vmatpush1.msra.mxu0 %v1291
  %1357 = vmatprep.subr.mxu0 %v1294
  %1358 = vmatpush1.msra.mxu0 %v1293
  %1359 = vmatprep.subr.mxu0 %v1296
  %1360 = vmatpush1.msra.mxu0 %v1295
  %1361 = vmatprep.subr.mxu0 %v1298
  %1362 = vmatpush1.msra.mxu0 %v1297
  %1363 = vmatprep.subr.mxu0 %v1300
  %1364 = vmatpush1.msra.mxu0 %v1299
  %1365 = vmatprep.subr.mxu0 %v1302
  %1366 = vmatpush1.msra.mxu0 %v1301
  %1367 = vmatprep.subr.mxu0 %v1304
  %1368 = vmatpush1.msra.mxu0 %v1303
  %1369 = vmatprep.subr.mxu0 %v1306
  %1370 = vmatpush1.msra.mxu0 %v1305
  %1371 = vmatprep.subr.mxu0 %v1308
  %1372 = vmatpush1.msra.mxu0 %v1307
  %1373 = vmatprep.subr.mxu0 %v1310
  %1374 = vmatpush1.msra.mxu0 %v1309
  %1375 = vmatprep.subr.mxu0 %v1312
  %1376 = vmatpush1.msra.mxu0 %v1311
  %1377 = vmatprep.subr.mxu0 %v1314
  %1378 = vmatpush1.msra.mxu0 %v1313
  %1379 = vmatprep.subr.mxu0 %v1316
  %1380 = vmatpush1.msra.mxu0 %v1315
  %1381 = vmatprep.mubr.f32.mxu0 %v1122
  %1382 = vmatmul.mubr.f32.gmra.mrb[0].mxu0 %v1121
  %v1383 = vpop.f32.mrb[0].mxu0
  %v1384 = vadd.f32 0.0, %v1383
  %v1385 = vpop.f32.mrb[0].mxu0
  %v1386 = vadd.f32 0.0, %v1385
  %1387 = vmatprep.mubr.f32.mxu0 %v1124
  %1388 = vmatmul.mubr.f32.gmra.mrb[0].mxu0 %v1123
  %v1389 = vpop.f32.mrb[0].mxu0
  %v1390 = vadd.f32 0.0, %v1389
  %v1391 = vpop.f32.mrb[0].mxu0
  %v1392 = vadd.f32 0.0, %v1391
  %1393 = vdwg.mxu0
  %v1394 = vadd.f32 %v1107, %v1384
  %v1395 = vadd.f32 %v1108, %v1386
  %v1396 = vadd.f32 %v1109, %v1390
  %v1397 = vadd.f32 %v1110, %v1392
  %1399 = vset.pattern.permute.xlu0 0
  %1400 = vperm.xlu0 %1399, %v65
  %v1401 = vpop.permute.xlu0 %1400
  %1404 = vset.pattern.permute.xlu0 0
  %1405 = vperm.xlu0 %1404, %v66
  %v1406 = vpop.permute.xlu0 %1405
  %v1408 = vmul.f32 %v1401, %v255
  %v1409 = vmul.f32 %v1401, %v259
  %v1410 = vmul.f32 %v1406, %v255
  %v1411 = vmul.f32 %v1406, %v259
  %v1412 = vadd.s32 %v239, 1
  %v1413 = vadd.s32 %v240, 1
  %vm1414 = vcmp.eq.s32.totalorder %v207, %v1412
  %vm1415 = vcmp.eq.s32.totalorder %v207, %v1413
  %vm1416 = vcmp.eq.s32.totalorder %v208, %v1412
  %vm1417 = vcmp.eq.s32.totalorder %v208, %v1413
  %vm1418 = vcmp.eq.s32.totalorder %v209, %v1412
  %vm1419 = vcmp.eq.s32.totalorder %v209, %v1413
  %vm1420 = vcmp.eq.s32.totalorder %v210, %v1412
  %vm1421 = vcmp.eq.s32.totalorder %v210, %v1413
  %vm1422 = vcmp.eq.s32.totalorder %v211, %v1412
  %vm1423 = vcmp.eq.s32.totalorder %v211, %v1413
  %vm1424 = vcmp.eq.s32.totalorder %v212, %v1412
  %vm1425 = vcmp.eq.s32.totalorder %v212, %v1413
  %vm1426 = vcmp.eq.s32.totalorder %v213, %v1412
  %vm1427 = vcmp.eq.s32.totalorder %v213, %v1413
  %vm1428 = vcmp.eq.s32.totalorder %v214, %v1412
  %vm1429 = vcmp.eq.s32.totalorder %v214, %v1413
  %vm1430 = vcmp.eq.s32.totalorder %v215, %v1412
  %vm1431 = vcmp.eq.s32.totalorder %v215, %v1413
  %vm1432 = vcmp.eq.s32.totalorder %v216, %v1412
  %vm1433 = vcmp.eq.s32.totalorder %v216, %v1413
  %vm1434 = vcmp.eq.s32.totalorder %v217, %v1412
  %vm1435 = vcmp.eq.s32.totalorder %v217, %v1413
  %vm1436 = vcmp.eq.s32.totalorder %v218, %v1412
  %vm1437 = vcmp.eq.s32.totalorder %v218, %v1413
  %vm1438 = vcmp.eq.s32.totalorder %v219, %v1412
  %vm1439 = vcmp.eq.s32.totalorder %v219, %v1413
  %vm1440 = vcmp.eq.s32.totalorder %v220, %v1412
  %vm1441 = vcmp.eq.s32.totalorder %v220, %v1413
  %vm1442 = vcmp.eq.s32.totalorder %v221, %v1412
  %vm1443 = vcmp.eq.s32.totalorder %v221, %v1413
  %vm1444 = vcmp.eq.s32.totalorder %v222, %v1412
  %vm1445 = vcmp.eq.s32.totalorder %v222, %v1413
  %vm1446 = vcmp.eq.s32.totalorder %v223, %v1412
  %vm1447 = vcmp.eq.s32.totalorder %v223, %v1413
  %vm1448 = vcmp.eq.s32.totalorder %v224, %v1412
  %vm1449 = vcmp.eq.s32.totalorder %v224, %v1413
  %vm1450 = vcmp.eq.s32.totalorder %v225, %v1412
  %vm1451 = vcmp.eq.s32.totalorder %v225, %v1413
  %vm1452 = vcmp.eq.s32.totalorder %v226, %v1412
  %vm1453 = vcmp.eq.s32.totalorder %v226, %v1413
  %vm1454 = vcmp.eq.s32.totalorder %v227, %v1412
  %vm1455 = vcmp.eq.s32.totalorder %v227, %v1413
  %vm1456 = vcmp.eq.s32.totalorder %v228, %v1412
  %vm1457 = vcmp.eq.s32.totalorder %v228, %v1413
  %vm1458 = vcmp.eq.s32.totalorder %v229, %v1412
  %vm1459 = vcmp.eq.s32.totalorder %v229, %v1413
  %vm1460 = vcmp.eq.s32.totalorder %v230, %v1412
  %vm1461 = vcmp.eq.s32.totalorder %v230, %v1413
  %vm1462 = vcmp.eq.s32.totalorder %v231, %v1412
  %vm1463 = vcmp.eq.s32.totalorder %v231, %v1413
  %vm1464 = vcmp.eq.s32.totalorder %v232, %v1412
  %vm1465 = vcmp.eq.s32.totalorder %v232, %v1413
  %vm1466 = vcmp.eq.s32.totalorder %v233, %v1412
  %vm1467 = vcmp.eq.s32.totalorder %v233, %v1413
  %vm1468 = vcmp.eq.s32.totalorder %v234, %v1412
  %vm1469 = vcmp.eq.s32.totalorder %v234, %v1413
  %vm1470 = vcmp.eq.s32.totalorder %v235, %v1412
  %vm1471 = vcmp.eq.s32.totalorder %v235, %v1413
  %vm1472 = vcmp.eq.s32.totalorder %v236, %v1412
  %vm1473 = vcmp.eq.s32.totalorder %v236, %v1413
  %vm1474 = vcmp.eq.s32.totalorder %v237, %v1412
  %vm1475 = vcmp.eq.s32.totalorder %v237, %v1413
  %vm1476 = vcmp.eq.s32.totalorder %v238, %v1412
  %vm1477 = vcmp.eq.s32.totalorder %v238, %v1413
  %vm1478 = vmand %vm143, %vm1414
  %vm1479 = vmand %vm144, %vm1415
  %vm1480 = vmand %vm145, %vm1416
  %vm1481 = vmand %vm146, %vm1417
  %vm1482 = vmand %vm147, %vm1418
  %vm1483 = vmand %vm148, %vm1419
  %vm1484 = vmand %vm149, %vm1420
  %vm1485 = vmand %vm150, %vm1421
  %vm1486 = vmand %vm151, %vm1422
  %vm1487 = vmand %vm152, %vm1423
  %vm1488 = vmand %vm153, %vm1424
  %vm1489 = vmand %vm154, %vm1425
  %vm1490 = vmand %vm155, %vm1426
  %vm1491 = vmand %vm156, %vm1427
  %vm1492 = vmand %vm157, %vm1428
  %vm1493 = vmand %vm158, %vm1429
  %vm1494 = vmand %vm159, %vm1430
  %vm1495 = vmand %vm160, %vm1431
  %vm1496 = vmand %vm161, %vm1432
  %vm1497 = vmand %vm162, %vm1433
  %vm1498 = vmand %vm163, %vm1434
  %vm1499 = vmand %vm164, %vm1435
  %vm1500 = vmand %vm165, %vm1436
  %vm1501 = vmand %vm166, %vm1437
  %vm1502 = vmand %vm167, %vm1438
  %vm1503 = vmand %vm168, %vm1439
  %vm1504 = vmand %vm169, %vm1440
  %vm1505 = vmand %vm170, %vm1441
  %vm1506 = vmand %vm171, %vm1442
  %vm1507 = vmand %vm172, %vm1443
  %vm1508 = vmand %vm173, %vm1444
  %vm1509 = vmand %vm174, %vm1445
  %vm1510 = vmand %vm175, %vm1446
  %vm1511 = vmand %vm176, %vm1447
  %vm1512 = vmand %vm177, %vm1448
  %vm1513 = vmand %vm178, %vm1449
  %vm1514 = vmand %vm179, %vm1450
  %vm1515 = vmand %vm180, %vm1451
  %vm1516 = vmand %vm181, %vm1452
  %vm1517 = vmand %vm182, %vm1453
  %vm1518 = vmand %vm183, %vm1454
  %vm1519 = vmand %vm184, %vm1455
  %vm1520 = vmand %vm185, %vm1456
  %vm1521 = vmand %vm186, %vm1457
  %vm1522 = vmand %vm187, %vm1458
  %vm1523 = vmand %vm188, %vm1459
  %vm1524 = vmand %vm189, %vm1460
  %vm1525 = vmand %vm190, %vm1461
  %vm1526 = vmand %vm191, %vm1462
  %vm1527 = vmand %vm192, %vm1463
  %vm1528 = vmand %vm193, %vm1464
  %vm1529 = vmand %vm194, %vm1465
  %vm1530 = vmand %vm195, %vm1466
  %vm1531 = vmand %vm196, %vm1467
  %vm1532 = vmand %vm197, %vm1468
  %vm1533 = vmand %vm198, %vm1469
  %vm1534 = vmand %vm199, %vm1470
  %vm1535 = vmand %vm200, %vm1471
  %vm1536 = vmand %vm201, %vm1472
  %vm1537 = vmand %vm202, %vm1473
  %vm1538 = vmand %vm203, %vm1474
  %vm1539 = vmand %vm204, %vm1475
  %vm1540 = vmand %vm205, %vm1476
  %vm1541 = vmand %vm206, %vm1477
  %v1542 = vsel %vm1478, 1.0, 0.0
  %v1543 = vsel %vm1479, 1.0, 0.0
  %v1544 = vsel %vm1480, 1.0, 0.0
  %v1545 = vsel %vm1481, 1.0, 0.0
  %v1546 = vsel %vm1482, 1.0, 0.0
  %v1547 = vsel %vm1483, 1.0, 0.0
  %v1548 = vsel %vm1484, 1.0, 0.0
  %v1549 = vsel %vm1485, 1.0, 0.0
  %v1550 = vsel %vm1486, 1.0, 0.0
  %v1551 = vsel %vm1487, 1.0, 0.0
  %v1552 = vsel %vm1488, 1.0, 0.0
  %v1553 = vsel %vm1489, 1.0, 0.0
  %v1554 = vsel %vm1490, 1.0, 0.0
  %v1555 = vsel %vm1491, 1.0, 0.0
  %v1556 = vsel %vm1492, 1.0, 0.0
  %v1557 = vsel %vm1493, 1.0, 0.0
  %v1558 = vsel %vm1494, 1.0, 0.0
  %v1559 = vsel %vm1495, 1.0, 0.0
  %v1560 = vsel %vm1496, 1.0, 0.0
  %v1561 = vsel %vm1497, 1.0, 0.0
  %v1562 = vsel %vm1498, 1.0, 0.0
  %v1563 = vsel %vm1499, 1.0, 0.0
  %v1564 = vsel %vm1500, 1.0, 0.0
  %v1565 = vsel %vm1501, 1.0, 0.0
  %v1566 = vsel %vm1502, 1.0, 0.0
  %v1567 = vsel %vm1503, 1.0, 0.0
  %v1568 = vsel %vm1504, 1.0, 0.0
  %v1569 = vsel %vm1505, 1.0, 0.0
  %v1570 = vsel %vm1506, 1.0, 0.0
  %v1571 = vsel %vm1507, 1.0, 0.0
  %v1572 = vsel %vm1508, 1.0, 0.0
  %v1573 = vsel %vm1509, 1.0, 0.0
  %v1574 = vsel %vm1510, 1.0, 0.0
  %v1575 = vsel %vm1511, 1.0, 0.0
  %v1576 = vsel %vm1512, 1.0, 0.0
  %v1577 = vsel %vm1513, 1.0, 0.0
  %v1578 = vsel %vm1514, 1.0, 0.0
  %v1579 = vsel %vm1515, 1.0, 0.0
  %v1580 = vsel %vm1516, 1.0, 0.0
  %v1581 = vsel %vm1517, 1.0, 0.0
  %v1582 = vsel %vm1518, 1.0, 0.0
  %v1583 = vsel %vm1519, 1.0, 0.0
  %v1584 = vsel %vm1520, 1.0, 0.0
  %v1585 = vsel %vm1521, 1.0, 0.0
  %v1586 = vsel %vm1522, 1.0, 0.0
  %v1587 = vsel %vm1523, 1.0, 0.0
  %v1588 = vsel %vm1524, 1.0, 0.0
  %v1589 = vsel %vm1525, 1.0, 0.0
  %v1590 = vsel %vm1526, 1.0, 0.0
  %v1591 = vsel %vm1527, 1.0, 0.0
  %v1592 = vsel %vm1528, 1.0, 0.0
  %v1593 = vsel %vm1529, 1.0, 0.0
  %v1594 = vsel %vm1530, 1.0, 0.0
  %v1595 = vsel %vm1531, 1.0, 0.0
  %v1596 = vsel %vm1532, 1.0, 0.0
  %v1597 = vsel %vm1533, 1.0, 0.0
  %v1598 = vsel %vm1534, 1.0, 0.0
  %v1599 = vsel %vm1535, 1.0, 0.0
  %v1600 = vsel %vm1536, 1.0, 0.0
  %v1601 = vsel %vm1537, 1.0, 0.0
  %v1602 = vsel %vm1538, 1.0, 0.0
  %v1603 = vsel %vm1539, 1.0, 0.0
  %v1604 = vsel %vm1540, 1.0, 0.0
  %v1605 = vsel %vm1541, 1.0, 0.0
  %1606 = vmatprep.subr.mxu0 %v1543
  %1607 = vmatpush1.msra.mxu0 %v1542
  %1608 = vmatprep.subr.mxu0 %v1545
  %1609 = vmatpush1.msra.mxu0 %v1544
  %1610 = vmatprep.subr.mxu0 %v1547
  %1611 = vmatpush1.msra.mxu0 %v1546
  %1612 = vmatprep.subr.mxu0 %v1549
  %1613 = vmatpush1.msra.mxu0 %v1548
  %1614 = vmatprep.subr.mxu0 %v1551
  %1615 = vmatpush1.msra.mxu0 %v1550
  %1616 = vmatprep.subr.mxu0 %v1553
  %1617 = vmatpush1.msra.mxu0 %v1552
  %1618 = vmatprep.subr.mxu0 %v1555
  %1619 = vmatpush1.msra.mxu0 %v1554
  %1620 = vmatprep.subr.mxu0 %v1557
  %1621 = vmatpush1.msra.mxu0 %v1556
  %1622 = vmatprep.subr.mxu0 %v1559
  %1623 = vmatpush1.msra.mxu0 %v1558
  %1624 = vmatprep.subr.mxu0 %v1561
  %1625 = vmatpush1.msra.mxu0 %v1560
  %1626 = vmatprep.subr.mxu0 %v1563
  %1627 = vmatpush1.msra.mxu0 %v1562
  %1628 = vmatprep.subr.mxu0 %v1565
  %1629 = vmatpush1.msra.mxu0 %v1564
  %1630 = vmatprep.subr.mxu0 %v1567
  %1631 = vmatpush1.msra.mxu0 %v1566
  %1632 = vmatprep.subr.mxu0 %v1569
  %1633 = vmatpush1.msra.mxu0 %v1568
  %1634 = vmatprep.subr.mxu0 %v1571
  %1635 = vmatpush1.msra.mxu0 %v1570
  %1636 = vmatprep.subr.mxu0 %v1573
  %1637 = vmatpush1.msra.mxu0 %v1572
  %1638 = vmatprep.subr.mxu0 %v1575
  %1639 = vmatpush1.msra.mxu0 %v1574
  %1640 = vmatprep.subr.mxu0 %v1577
  %1641 = vmatpush1.msra.mxu0 %v1576
  %1642 = vmatprep.subr.mxu0 %v1579
  %1643 = vmatpush1.msra.mxu0 %v1578
  %1644 = vmatprep.subr.mxu0 %v1581
  %1645 = vmatpush1.msra.mxu0 %v1580
  %1646 = vmatprep.subr.mxu0 %v1583
  %1647 = vmatpush1.msra.mxu0 %v1582
  %1648 = vmatprep.subr.mxu0 %v1585
  %1649 = vmatpush1.msra.mxu0 %v1584
  %1650 = vmatprep.subr.mxu0 %v1587
  %1651 = vmatpush1.msra.mxu0 %v1586
  %1652 = vmatprep.subr.mxu0 %v1589
  %1653 = vmatpush1.msra.mxu0 %v1588
  %1654 = vmatprep.subr.mxu0 %v1591
  %1655 = vmatpush1.msra.mxu0 %v1590
  %1656 = vmatprep.subr.mxu0 %v1593
  %1657 = vmatpush1.msra.mxu0 %v1592
  %1658 = vmatprep.subr.mxu0 %v1595
  %1659 = vmatpush1.msra.mxu0 %v1594
  %1660 = vmatprep.subr.mxu0 %v1597
  %1661 = vmatpush1.msra.mxu0 %v1596
  %1662 = vmatprep.subr.mxu0 %v1599
  %1663 = vmatpush1.msra.mxu0 %v1598
  %1664 = vmatprep.subr.mxu0 %v1601
  %1665 = vmatpush1.msra.mxu0 %v1600
  %1666 = vmatprep.subr.mxu0 %v1603
  %1667 = vmatpush1.msra.mxu0 %v1602
  %1668 = vmatprep.subr.mxu0 %v1605
  %1669 = vmatpush1.msra.mxu0 %v1604
  %1670 = vmatprep.mubr.f32.mxu0 %v1409
  %1671 = vmatmul.mubr.f32.gmra.mrb[0].mxu0 %v1408
  %v1672 = vpop.f32.mrb[0].mxu0
  %v1673 = vadd.f32 0.0, %v1672
  %v1674 = vpop.f32.mrb[0].mxu0
  %v1675 = vadd.f32 0.0, %v1674
  %1676 = vmatprep.mubr.f32.mxu0 %v1411
  %1677 = vmatmul.mubr.f32.gmra.mrb[0].mxu0 %v1410
  %v1678 = vpop.f32.mrb[0].mxu0
  %v1679 = vadd.f32 0.0, %v1678
  %v1680 = vpop.f32.mrb[0].mxu0
  %v1681 = vadd.f32 0.0, %v1680
  %1682 = vdwg.mxu0
  %v1683 = vadd.f32 %v1394, %v1673
  %v1684 = vadd.f32 %v1395, %v1675
  %v1685 = vadd.f32 %v1396, %v1679
  %v1686 = vadd.f32 %v1397, %v1681
  %1688 = vset.pattern.permute.xlu0 0
  %1689 = vperm.xlu0 %1688, %v67
  %v1690 = vpop.permute.xlu0 %1689
  %1693 = vset.pattern.permute.xlu0 0
  %1694 = vperm.xlu0 %1693, %v68
  %v1695 = vpop.permute.xlu0 %1694
  %v1697 = vmul.f32 %v1690, %v255
  %v1698 = vmul.f32 %v1690, %v259
  %v1699 = vmul.f32 %v1695, %v255
  %v1700 = vmul.f32 %v1695, %v259
  %v1701 = vadd.s32 %v239, 2
  %v1702 = vadd.s32 %v240, 2
  %vm1703 = vcmp.eq.s32.totalorder %v207, %v1701
  %vm1704 = vcmp.eq.s32.totalorder %v207, %v1702
  %vm1705 = vcmp.eq.s32.totalorder %v208, %v1701
  %vm1706 = vcmp.eq.s32.totalorder %v208, %v1702
  %vm1707 = vcmp.eq.s32.totalorder %v209, %v1701
  %vm1708 = vcmp.eq.s32.totalorder %v209, %v1702
  %vm1709 = vcmp.eq.s32.totalorder %v210, %v1701
  %vm1710 = vcmp.eq.s32.totalorder %v210, %v1702
  %vm1711 = vcmp.eq.s32.totalorder %v211, %v1701
  %vm1712 = vcmp.eq.s32.totalorder %v211, %v1702
  %vm1713 = vcmp.eq.s32.totalorder %v212, %v1701
  %vm1714 = vcmp.eq.s32.totalorder %v212, %v1702
  %vm1715 = vcmp.eq.s32.totalorder %v213, %v1701
  %vm1716 = vcmp.eq.s32.totalorder %v213, %v1702
  %vm1717 = vcmp.eq.s32.totalorder %v214, %v1701
  %vm1718 = vcmp.eq.s32.totalorder %v214, %v1702
  %vm1719 = vcmp.eq.s32.totalorder %v215, %v1701
  %vm1720 = vcmp.eq.s32.totalorder %v215, %v1702
  %vm1721 = vcmp.eq.s32.totalorder %v216, %v1701
  %vm1722 = vcmp.eq.s32.totalorder %v216, %v1702
  %vm1723 = vcmp.eq.s32.totalorder %v217, %v1701
  %vm1724 = vcmp.eq.s32.totalorder %v217, %v1702
  %vm1725 = vcmp.eq.s32.totalorder %v218, %v1701
  %vm1726 = vcmp.eq.s32.totalorder %v218, %v1702
  %vm1727 = vcmp.eq.s32.totalorder %v219, %v1701
  %vm1728 = vcmp.eq.s32.totalorder %v219, %v1702
  %vm1729 = vcmp.eq.s32.totalorder %v220, %v1701
  %vm1730 = vcmp.eq.s32.totalorder %v220, %v1702
  %vm1731 = vcmp.eq.s32.totalorder %v221, %v1701
  %vm1732 = vcmp.eq.s32.totalorder %v221, %v1702
  %vm1733 = vcmp.eq.s32.totalorder %v222, %v1701
  %vm1734 = vcmp.eq.s32.totalorder %v222, %v1702
  %vm1735 = vcmp.eq.s32.totalorder %v223, %v1701
  %vm1736 = vcmp.eq.s32.totalorder %v223, %v1702
  %vm1737 = vcmp.eq.s32.totalorder %v224, %v1701
  %vm1738 = vcmp.eq.s32.totalorder %v224, %v1702
  %vm1739 = vcmp.eq.s32.totalorder %v225, %v1701
  %vm1740 = vcmp.eq.s32.totalorder %v225, %v1702
  %vm1741 = vcmp.eq.s32.totalorder %v226, %v1701
  %vm1742 = vcmp.eq.s32.totalorder %v226, %v1702
  %vm1743 = vcmp.eq.s32.totalorder %v227, %v1701
  %vm1744 = vcmp.eq.s32.totalorder %v227, %v1702
  %vm1745 = vcmp.eq.s32.totalorder %v228, %v1701
  %vm1746 = vcmp.eq.s32.totalorder %v228, %v1702
  %vm1747 = vcmp.eq.s32.totalorder %v229, %v1701
  %vm1748 = vcmp.eq.s32.totalorder %v229, %v1702
  %vm1749 = vcmp.eq.s32.totalorder %v230, %v1701
  %vm1750 = vcmp.eq.s32.totalorder %v230, %v1702
  %vm1751 = vcmp.eq.s32.totalorder %v231, %v1701
  %vm1752 = vcmp.eq.s32.totalorder %v231, %v1702
  %vm1753 = vcmp.eq.s32.totalorder %v232, %v1701
  %vm1754 = vcmp.eq.s32.totalorder %v232, %v1702
  %vm1755 = vcmp.eq.s32.totalorder %v233, %v1701
  %vm1756 = vcmp.eq.s32.totalorder %v233, %v1702
  %vm1757 = vcmp.eq.s32.totalorder %v234, %v1701
  %vm1758 = vcmp.eq.s32.totalorder %v234, %v1702
  %vm1759 = vcmp.eq.s32.totalorder %v235, %v1701
  %vm1760 = vcmp.eq.s32.totalorder %v235, %v1702
  %vm1761 = vcmp.eq.s32.totalorder %v236, %v1701
  %vm1762 = vcmp.eq.s32.totalorder %v236, %v1702
  %vm1763 = vcmp.eq.s32.totalorder %v237, %v1701
  %vm1764 = vcmp.eq.s32.totalorder %v237, %v1702
  %vm1765 = vcmp.eq.s32.totalorder %v238, %v1701
  %vm1766 = vcmp.eq.s32.totalorder %v238, %v1702
  %vm1767 = vmand %vm143, %vm1703
  %vm1768 = vmand %vm144, %vm1704
  %vm1769 = vmand %vm145, %vm1705
  %vm1770 = vmand %vm146, %vm1706
  %vm1771 = vmand %vm147, %vm1707
  %vm1772 = vmand %vm148, %vm1708
  %vm1773 = vmand %vm149, %vm1709
  %vm1774 = vmand %vm150, %vm1710
  %vm1775 = vmand %vm151, %vm1711
  %vm1776 = vmand %vm152, %vm1712
  %vm1777 = vmand %vm153, %vm1713
  %vm1778 = vmand %vm154, %vm1714
  %vm1779 = vmand %vm155, %vm1715
  %vm1780 = vmand %vm156, %vm1716
  %vm1781 = vmand %vm157, %vm1717
  %vm1782 = vmand %vm158, %vm1718
  %vm1783 = vmand %vm159, %vm1719
  %vm1784 = vmand %vm160, %vm1720
  %vm1785 = vmand %vm161, %vm1721
  %vm1786 = vmand %vm162, %vm1722
  %vm1787 = vmand %vm163, %vm1723
  %vm1788 = vmand %vm164, %vm1724
  %vm1789 = vmand %vm165, %vm1725
  %vm1790 = vmand %vm166, %vm1726
  %vm1791 = vmand %vm167, %vm1727
  %vm1792 = vmand %vm168, %vm1728
  %vm1793 = vmand %vm169, %vm1729
  %vm1794 = vmand %vm170, %vm1730
  %vm1795 = vmand %vm171, %vm1731
  %vm1796 = vmand %vm172, %vm1732
  %vm1797 = vmand %vm173, %vm1733
  %vm1798 = vmand %vm174, %vm1734
  %vm1799 = vmand %vm175, %vm1735
  %vm1800 = vmand %vm176, %vm1736
  %vm1801 = vmand %vm177, %vm1737
  %vm1802 = vmand %vm178, %vm1738
  %vm1803 = vmand %vm179, %vm1739
  %vm1804 = vmand %vm180, %vm1740
  %vm1805 = vmand %vm181, %vm1741
  %vm1806 = vmand %vm182, %vm1742
  %vm1807 = vmand %vm183, %vm1743
  %vm1808 = vmand %vm184, %vm1744
  %vm1809 = vmand %vm185, %vm1745
  %vm1810 = vmand %vm186, %vm1746
  %vm1811 = vmand %vm187, %vm1747
  %vm1812 = vmand %vm188, %vm1748
  %vm1813 = vmand %vm189, %vm1749
  %vm1814 = vmand %vm190, %vm1750
  %vm1815 = vmand %vm191, %vm1751
  %vm1816 = vmand %vm192, %vm1752
  %vm1817 = vmand %vm193, %vm1753
  %vm1818 = vmand %vm194, %vm1754
  %vm1819 = vmand %vm195, %vm1755
  %vm1820 = vmand %vm196, %vm1756
  %vm1821 = vmand %vm197, %vm1757
  %vm1822 = vmand %vm198, %vm1758
  %vm1823 = vmand %vm199, %vm1759
  %vm1824 = vmand %vm200, %vm1760
  %vm1825 = vmand %vm201, %vm1761
  %vm1826 = vmand %vm202, %vm1762
  %vm1827 = vmand %vm203, %vm1763
  %vm1828 = vmand %vm204, %vm1764
  %vm1829 = vmand %vm205, %vm1765
  %vm1830 = vmand %vm206, %vm1766
  %v1831 = vsel %vm1767, 1.0, 0.0
  %v1832 = vsel %vm1768, 1.0, 0.0
  %v1833 = vsel %vm1769, 1.0, 0.0
  %v1834 = vsel %vm1770, 1.0, 0.0
  %v1835 = vsel %vm1771, 1.0, 0.0
  %v1836 = vsel %vm1772, 1.0, 0.0
  %v1837 = vsel %vm1773, 1.0, 0.0
  %v1838 = vsel %vm1774, 1.0, 0.0
  %v1839 = vsel %vm1775, 1.0, 0.0
  %v1840 = vsel %vm1776, 1.0, 0.0
  %v1841 = vsel %vm1777, 1.0, 0.0
  %v1842 = vsel %vm1778, 1.0, 0.0
  %v1843 = vsel %vm1779, 1.0, 0.0
  %v1844 = vsel %vm1780, 1.0, 0.0
  %v1845 = vsel %vm1781, 1.0, 0.0
  %v1846 = vsel %vm1782, 1.0, 0.0
  %v1847 = vsel %vm1783, 1.0, 0.0
  %v1848 = vsel %vm1784, 1.0, 0.0
  %v1849 = vsel %vm1785, 1.0, 0.0
  %v1850 = vsel %vm1786, 1.0, 0.0
  %v1851 = vsel %vm1787, 1.0, 0.0
  %v1852 = vsel %vm1788, 1.0, 0.0
  %v1853 = vsel %vm1789, 1.0, 0.0
  %v1854 = vsel %vm1790, 1.0, 0.0
  %v1855 = vsel %vm1791, 1.0, 0.0
  %v1856 = vsel %vm1792, 1.0, 0.0
  %v1857 = vsel %vm1793, 1.0, 0.0
  %v1858 = vsel %vm1794, 1.0, 0.0
  %v1859 = vsel %vm1795, 1.0, 0.0
  %v1860 = vsel %vm1796, 1.0, 0.0
  %v1861 = vsel %vm1797, 1.0, 0.0
  %v1862 = vsel %vm1798, 1.0, 0.0
  %v1863 = vsel %vm1799, 1.0, 0.0
  %v1864 = vsel %vm1800, 1.0, 0.0
  %v1865 = vsel %vm1801, 1.0, 0.0
  %v1866 = vsel %vm1802, 1.0, 0.0
  %v1867 = vsel %vm1803, 1.0, 0.0
  %v1868 = vsel %vm1804, 1.0, 0.0
  %v1869 = vsel %vm1805, 1.0, 0.0
  %v1870 = vsel %vm1806, 1.0, 0.0
  %v1871 = vsel %vm1807, 1.0, 0.0
  %v1872 = vsel %vm1808, 1.0, 0.0
  %v1873 = vsel %vm1809, 1.0, 0.0
  %v1874 = vsel %vm1810, 1.0, 0.0
  %v1875 = vsel %vm1811, 1.0, 0.0
  %v1876 = vsel %vm1812, 1.0, 0.0
  %v1877 = vsel %vm1813, 1.0, 0.0
  %v1878 = vsel %vm1814, 1.0, 0.0
  %v1879 = vsel %vm1815, 1.0, 0.0
  %v1880 = vsel %vm1816, 1.0, 0.0
  %v1881 = vsel %vm1817, 1.0, 0.0
  %v1882 = vsel %vm1818, 1.0, 0.0
  %v1883 = vsel %vm1819, 1.0, 0.0
  %v1884 = vsel %vm1820, 1.0, 0.0
  %v1885 = vsel %vm1821, 1.0, 0.0
  %v1886 = vsel %vm1822, 1.0, 0.0
  %v1887 = vsel %vm1823, 1.0, 0.0
  %v1888 = vsel %vm1824, 1.0, 0.0
  %v1889 = vsel %vm1825, 1.0, 0.0
  %v1890 = vsel %vm1826, 1.0, 0.0
  %v1891 = vsel %vm1827, 1.0, 0.0
  %v1892 = vsel %vm1828, 1.0, 0.0
  %v1893 = vsel %vm1829, 1.0, 0.0
  %v1894 = vsel %vm1830, 1.0, 0.0
  %1895 = vmatprep.subr.mxu0 %v1832
  %1896 = vmatpush1.msra.mxu0 %v1831
  %1897 = vmatprep.subr.mxu0 %v1834
  %1898 = vmatpush1.msra.mxu0 %v1833
  %1899 = vmatprep.subr.mxu0 %v1836
  %1900 = vmatpush1.msra.mxu0 %v1835
  %1901 = vmatprep.subr.mxu0 %v1838
  %1902 = vmatpush1.msra.mxu0 %v1837
  %1903 = vmatprep.subr.mxu0 %v1840
  %1904 = vmatpush1.msra.mxu0 %v1839
  %1905 = vmatprep.subr.mxu0 %v1842
  %1906 = vmatpush1.msra.mxu0 %v1841
  %1907 = vmatprep.subr.mxu0 %v1844
  %1908 = vmatpush1.msra.mxu0 %v1843
  %1909 = vmatprep.subr.mxu0 %v1846
  %1910 = vmatpush1.msra.mxu0 %v1845
  %1911 = vmatprep.subr.mxu0 %v1848
  %1912 = vmatpush1.msra.mxu0 %v1847
  %1913 = vmatprep.subr.mxu0 %v1850
  %1914 = vmatpush1.msra.mxu0 %v1849
  %1915 = vmatprep.subr.mxu0 %v1852
  %1916 = vmatpush1.msra.mxu0 %v1851
  %1917 = vmatprep.subr.mxu0 %v1854
  %1918 = vmatpush1.msra.mxu0 %v1853
  %1919 = vmatprep.subr.mxu0 %v1856
  %1920 = vmatpush1.msra.mxu0 %v1855
  %1921 = vmatprep.subr.mxu0 %v1858
  %1922 = vmatpush1.msra.mxu0 %v1857
  %1923 = vmatprep.subr.mxu0 %v1860
  %1924 = vmatpush1.msra.mxu0 %v1859
  %1925 = vmatprep.subr.mxu0 %v1862
  %1926 = vmatpush1.msra.mxu0 %v1861
  %1927 = vmatprep.subr.mxu0 %v1864
  %1928 = vmatpush1.msra.mxu0 %v1863
  %1929 = vmatprep.subr.mxu0 %v1866
  %1930 = vmatpush1.msra.mxu0 %v1865
  %1931 = vmatprep.subr.mxu0 %v1868
  %1932 = vmatpush1.msra.mxu0 %v1867
  %1933 = vmatprep.subr.mxu0 %v1870
  %1934 = vmatpush1.msra.mxu0 %v1869
  %1935 = vmatprep.subr.mxu0 %v1872
  %1936 = vmatpush1.msra.mxu0 %v1871
  %1937 = vmatprep.subr.mxu0 %v1874
  %1938 = vmatpush1.msra.mxu0 %v1873
  %1939 = vmatprep.subr.mxu0 %v1876
  %1940 = vmatpush1.msra.mxu0 %v1875
  %1941 = vmatprep.subr.mxu0 %v1878
  %1942 = vmatpush1.msra.mxu0 %v1877
  %1943 = vmatprep.subr.mxu0 %v1880
  %1944 = vmatpush1.msra.mxu0 %v1879
  %1945 = vmatprep.subr.mxu0 %v1882
  %1946 = vmatpush1.msra.mxu0 %v1881
  %1947 = vmatprep.subr.mxu0 %v1884
  %1948 = vmatpush1.msra.mxu0 %v1883
  %1949 = vmatprep.subr.mxu0 %v1886
  %1950 = vmatpush1.msra.mxu0 %v1885
  %1951 = vmatprep.subr.mxu0 %v1888
  %1952 = vmatpush1.msra.mxu0 %v1887
  %1953 = vmatprep.subr.mxu0 %v1890
  %1954 = vmatpush1.msra.mxu0 %v1889
  %1955 = vmatprep.subr.mxu0 %v1892
  %1956 = vmatpush1.msra.mxu0 %v1891
  %1957 = vmatprep.subr.mxu0 %v1894
  %1958 = vmatpush1.msra.mxu0 %v1893
  %1959 = vmatprep.mubr.f32.mxu0 %v1698
  %1960 = vmatmul.mubr.f32.gmra.mrb[0].mxu0 %v1697
  %v1961 = vpop.f32.mrb[0].mxu0
  %v1962 = vadd.f32 0.0, %v1961
  %v1963 = vpop.f32.mrb[0].mxu0
  %v1964 = vadd.f32 0.0, %v1963
  %1965 = vmatprep.mubr.f32.mxu0 %v1700
  %1966 = vmatmul.mubr.f32.gmra.mrb[0].mxu0 %v1699
  %v1967 = vpop.f32.mrb[0].mxu0
  %v1968 = vadd.f32 0.0, %v1967
  %v1969 = vpop.f32.mrb[0].mxu0
  %v1970 = vadd.f32 0.0, %v1969
  %1971 = vdwg.mxu0
  %v1972 = vadd.f32 %v1683, %v1962
  %v1973 = vadd.f32 %v1684, %v1964
  %v1974 = vadd.f32 %v1685, %v1968
  %v1975 = vadd.f32 %v1686, %v1970
  %1977 = vset.pattern.permute.xlu0 0
  %1978 = vperm.xlu0 %1977, %v69
  %v1979 = vpop.permute.xlu0 %1978
  %1982 = vset.pattern.permute.xlu0 0
  %1983 = vperm.xlu0 %1982, %v70
  %v1984 = vpop.permute.xlu0 %1983
  %v1986 = vmul.f32 %v1979, %v255
  %v1987 = vmul.f32 %v1979, %v259
  %v1988 = vmul.f32 %v1984, %v255
  %v1989 = vmul.f32 %v1984, %v259
  %v1990 = vadd.s32 %v239, 3
  %v1991 = vadd.s32 %v240, 3
  %vm1992 = vcmp.eq.s32.totalorder %v207, %v1990
  %vm1993 = vcmp.eq.s32.totalorder %v207, %v1991
  %vm1994 = vcmp.eq.s32.totalorder %v208, %v1990
  %vm1995 = vcmp.eq.s32.totalorder %v208, %v1991
  %vm1996 = vcmp.eq.s32.totalorder %v209, %v1990
  %vm1997 = vcmp.eq.s32.totalorder %v209, %v1991
  %vm1998 = vcmp.eq.s32.totalorder %v210, %v1990
  %vm1999 = vcmp.eq.s32.totalorder %v210, %v1991
  %vm2000 = vcmp.eq.s32.totalorder %v211, %v1990
  %vm2001 = vcmp.eq.s32.totalorder %v211, %v1991
  %vm2002 = vcmp.eq.s32.totalorder %v212, %v1990
  %vm2003 = vcmp.eq.s32.totalorder %v212, %v1991
  %vm2004 = vcmp.eq.s32.totalorder %v213, %v1990
  %vm2005 = vcmp.eq.s32.totalorder %v213, %v1991
  %vm2006 = vcmp.eq.s32.totalorder %v214, %v1990
  %vm2007 = vcmp.eq.s32.totalorder %v214, %v1991
  %vm2008 = vcmp.eq.s32.totalorder %v215, %v1990
  %vm2009 = vcmp.eq.s32.totalorder %v215, %v1991
  %vm2010 = vcmp.eq.s32.totalorder %v216, %v1990
  %vm2011 = vcmp.eq.s32.totalorder %v216, %v1991
  %vm2012 = vcmp.eq.s32.totalorder %v217, %v1990
  %vm2013 = vcmp.eq.s32.totalorder %v217, %v1991
  %vm2014 = vcmp.eq.s32.totalorder %v218, %v1990
  %vm2015 = vcmp.eq.s32.totalorder %v218, %v1991
  %vm2016 = vcmp.eq.s32.totalorder %v219, %v1990
  %vm2017 = vcmp.eq.s32.totalorder %v219, %v1991
  %vm2018 = vcmp.eq.s32.totalorder %v220, %v1990
  %vm2019 = vcmp.eq.s32.totalorder %v220, %v1991
  %vm2020 = vcmp.eq.s32.totalorder %v221, %v1990
  %vm2021 = vcmp.eq.s32.totalorder %v221, %v1991
  %vm2022 = vcmp.eq.s32.totalorder %v222, %v1990
  %vm2023 = vcmp.eq.s32.totalorder %v222, %v1991
  %vm2024 = vcmp.eq.s32.totalorder %v223, %v1990
  %vm2025 = vcmp.eq.s32.totalorder %v223, %v1991
  %vm2026 = vcmp.eq.s32.totalorder %v224, %v1990
  %vm2027 = vcmp.eq.s32.totalorder %v224, %v1991
  %vm2028 = vcmp.eq.s32.totalorder %v225, %v1990
  %vm2029 = vcmp.eq.s32.totalorder %v225, %v1991
  %vm2030 = vcmp.eq.s32.totalorder %v226, %v1990
  %vm2031 = vcmp.eq.s32.totalorder %v226, %v1991
  %vm2032 = vcmp.eq.s32.totalorder %v227, %v1990
  %vm2033 = vcmp.eq.s32.totalorder %v227, %v1991
  %vm2034 = vcmp.eq.s32.totalorder %v228, %v1990
  %vm2035 = vcmp.eq.s32.totalorder %v228, %v1991
  %vm2036 = vcmp.eq.s32.totalorder %v229, %v1990
  %vm2037 = vcmp.eq.s32.totalorder %v229, %v1991
  %vm2038 = vcmp.eq.s32.totalorder %v230, %v1990
  %vm2039 = vcmp.eq.s32.totalorder %v230, %v1991
  %vm2040 = vcmp.eq.s32.totalorder %v231, %v1990
  %vm2041 = vcmp.eq.s32.totalorder %v231, %v1991
  %vm2042 = vcmp.eq.s32.totalorder %v232, %v1990
  %vm2043 = vcmp.eq.s32.totalorder %v232, %v1991
  %vm2044 = vcmp.eq.s32.totalorder %v233, %v1990
  %vm2045 = vcmp.eq.s32.totalorder %v233, %v1991
  %vm2046 = vcmp.eq.s32.totalorder %v234, %v1990
  %vm2047 = vcmp.eq.s32.totalorder %v234, %v1991
  %vm2048 = vcmp.eq.s32.totalorder %v235, %v1990
  %vm2049 = vcmp.eq.s32.totalorder %v235, %v1991
  %vm2050 = vcmp.eq.s32.totalorder %v236, %v1990
  %vm2051 = vcmp.eq.s32.totalorder %v236, %v1991
  %vm2052 = vcmp.eq.s32.totalorder %v237, %v1990
  %vm2053 = vcmp.eq.s32.totalorder %v237, %v1991
  %vm2054 = vcmp.eq.s32.totalorder %v238, %v1990
  %vm2055 = vcmp.eq.s32.totalorder %v238, %v1991
  %vm2056 = vmand %vm143, %vm1992
  %vm2057 = vmand %vm144, %vm1993
  %vm2058 = vmand %vm145, %vm1994
  %vm2059 = vmand %vm146, %vm1995
  %vm2060 = vmand %vm147, %vm1996
  %vm2061 = vmand %vm148, %vm1997
  %vm2062 = vmand %vm149, %vm1998
  %vm2063 = vmand %vm150, %vm1999
  %vm2064 = vmand %vm151, %vm2000
  %vm2065 = vmand %vm152, %vm2001
  %vm2066 = vmand %vm153, %vm2002
  %vm2067 = vmand %vm154, %vm2003
  %vm2068 = vmand %vm155, %vm2004
  %vm2069 = vmand %vm156, %vm2005
  %vm2070 = vmand %vm157, %vm2006
  %vm2071 = vmand %vm158, %vm2007
  %vm2072 = vmand %vm159, %vm2008
  %vm2073 = vmand %vm160, %vm2009
  %vm2074 = vmand %vm161, %vm2010
  %vm2075 = vmand %vm162, %vm2011
  %vm2076 = vmand %vm163, %vm2012
  %vm2077 = vmand %vm164, %vm2013
  %vm2078 = vmand %vm165, %vm2014
  %vm2079 = vmand %vm166, %vm2015
  %vm2080 = vmand %vm167, %vm2016
  %vm2081 = vmand %vm168, %vm2017
  %vm2082 = vmand %vm169, %vm2018
  %vm2083 = vmand %vm170, %vm2019
  %vm2084 = vmand %vm171, %vm2020
  %vm2085 = vmand %vm172, %vm2021
  %vm2086 = vmand %vm173, %vm2022
  %vm2087 = vmand %vm174, %vm2023
  %vm2088 = vmand %vm175, %vm2024
  %vm2089 = vmand %vm176, %vm2025
  %vm2090 = vmand %vm177, %vm2026
  %vm2091 = vmand %vm178, %vm2027
  %vm2092 = vmand %vm179, %vm2028
  %vm2093 = vmand %vm180, %vm2029
  %vm2094 = vmand %vm181, %vm2030
  %vm2095 = vmand %vm182, %vm2031
  %vm2096 = vmand %vm183, %vm2032
  %vm2097 = vmand %vm184, %vm2033
  %vm2098 = vmand %vm185, %vm2034
  %vm2099 = vmand %vm186, %vm2035
  %vm2100 = vmand %vm187, %vm2036
  %vm2101 = vmand %vm188, %vm2037
  %vm2102 = vmand %vm189, %vm2038
  %vm2103 = vmand %vm190, %vm2039
  %vm2104 = vmand %vm191, %vm2040
  %vm2105 = vmand %vm192, %vm2041
  %vm2106 = vmand %vm193, %vm2042
  %vm2107 = vmand %vm194, %vm2043
  %vm2108 = vmand %vm195, %vm2044
  %vm2109 = vmand %vm196, %vm2045
  %vm2110 = vmand %vm197, %vm2046
  %vm2111 = vmand %vm198, %vm2047
  %vm2112 = vmand %vm199, %vm2048
  %vm2113 = vmand %vm200, %vm2049
  %vm2114 = vmand %vm201, %vm2050
  %vm2115 = vmand %vm202, %vm2051
  %vm2116 = vmand %vm203, %vm2052
  %vm2117 = vmand %vm204, %vm2053
  %vm2118 = vmand %vm205, %vm2054
  %vm2119 = vmand %vm206, %vm2055
  %v2120 = vsel %vm2056, 1.0, 0.0
  %v2121 = vsel %vm2057, 1.0, 0.0
  %v2122 = vsel %vm2058, 1.0, 0.0
  %v2123 = vsel %vm2059, 1.0, 0.0
  %v2124 = vsel %vm2060, 1.0, 0.0
  %v2125 = vsel %vm2061, 1.0, 0.0
  %v2126 = vsel %vm2062, 1.0, 0.0
  %v2127 = vsel %vm2063, 1.0, 0.0
  %v2128 = vsel %vm2064, 1.0, 0.0
  %v2129 = vsel %vm2065, 1.0, 0.0
  %v2130 = vsel %vm2066, 1.0, 0.0
  %v2131 = vsel %vm2067, 1.0, 0.0
  %v2132 = vsel %vm2068, 1.0, 0.0
  %v2133 = vsel %vm2069, 1.0, 0.0
  %v2134 = vsel %vm2070, 1.0, 0.0
  %v2135 = vsel %vm2071, 1.0, 0.0
  %v2136 = vsel %vm2072, 1.0, 0.0
  %v2137 = vsel %vm2073, 1.0, 0.0
  %v2138 = vsel %vm2074, 1.0, 0.0
  %v2139 = vsel %vm2075, 1.0, 0.0
  %v2140 = vsel %vm2076, 1.0, 0.0
  %v2141 = vsel %vm2077, 1.0, 0.0
  %v2142 = vsel %vm2078, 1.0, 0.0
  %v2143 = vsel %vm2079, 1.0, 0.0
  %v2144 = vsel %vm2080, 1.0, 0.0
  %v2145 = vsel %vm2081, 1.0, 0.0
  %v2146 = vsel %vm2082, 1.0, 0.0
  %v2147 = vsel %vm2083, 1.0, 0.0
  %v2148 = vsel %vm2084, 1.0, 0.0
  %v2149 = vsel %vm2085, 1.0, 0.0
  %v2150 = vsel %vm2086, 1.0, 0.0
  %v2151 = vsel %vm2087, 1.0, 0.0
  %v2152 = vsel %vm2088, 1.0, 0.0
  %v2153 = vsel %vm2089, 1.0, 0.0
  %v2154 = vsel %vm2090, 1.0, 0.0
  %v2155 = vsel %vm2091, 1.0, 0.0
  %v2156 = vsel %vm2092, 1.0, 0.0
  %v2157 = vsel %vm2093, 1.0, 0.0
  %v2158 = vsel %vm2094, 1.0, 0.0
  %v2159 = vsel %vm2095, 1.0, 0.0
  %v2160 = vsel %vm2096, 1.0, 0.0
  %v2161 = vsel %vm2097, 1.0, 0.0
  %v2162 = vsel %vm2098, 1.0, 0.0
  %v2163 = vsel %vm2099, 1.0, 0.0
  %v2164 = vsel %vm2100, 1.0, 0.0
  %v2165 = vsel %vm2101, 1.0, 0.0
  %v2166 = vsel %vm2102, 1.0, 0.0
  %v2167 = vsel %vm2103, 1.0, 0.0
  %v2168 = vsel %vm2104, 1.0, 0.0
  %v2169 = vsel %vm2105, 1.0, 0.0
  %v2170 = vsel %vm2106, 1.0, 0.0
  %v2171 = vsel %vm2107, 1.0, 0.0
  %v2172 = vsel %vm2108, 1.0, 0.0
  %v2173 = vsel %vm2109, 1.0, 0.0
  %v2174 = vsel %vm2110, 1.0, 0.0
  %v2175 = vsel %vm2111, 1.0, 0.0
  %v2176 = vsel %vm2112, 1.0, 0.0
  %v2177 = vsel %vm2113, 1.0, 0.0
  %v2178 = vsel %vm2114, 1.0, 0.0
  %v2179 = vsel %vm2115, 1.0, 0.0
  %v2180 = vsel %vm2116, 1.0, 0.0
  %v2181 = vsel %vm2117, 1.0, 0.0
  %v2182 = vsel %vm2118, 1.0, 0.0
  %v2183 = vsel %vm2119, 1.0, 0.0
  %2184 = vmatprep.subr.mxu0 %v2121
  %2185 = vmatpush1.msra.mxu0 %v2120
  %2186 = vmatprep.subr.mxu0 %v2123
  %2187 = vmatpush1.msra.mxu0 %v2122
  %2188 = vmatprep.subr.mxu0 %v2125
  %2189 = vmatpush1.msra.mxu0 %v2124
  %2190 = vmatprep.subr.mxu0 %v2127
  %2191 = vmatpush1.msra.mxu0 %v2126
  %2192 = vmatprep.subr.mxu0 %v2129
  %2193 = vmatpush1.msra.mxu0 %v2128
  %2194 = vmatprep.subr.mxu0 %v2131
  %2195 = vmatpush1.msra.mxu0 %v2130
  %2196 = vmatprep.subr.mxu0 %v2133
  %2197 = vmatpush1.msra.mxu0 %v2132
  %2198 = vmatprep.subr.mxu0 %v2135
  %2199 = vmatpush1.msra.mxu0 %v2134
  %2200 = vmatprep.subr.mxu0 %v2137
  %2201 = vmatpush1.msra.mxu0 %v2136
  %2202 = vmatprep.subr.mxu0 %v2139
  %2203 = vmatpush1.msra.mxu0 %v2138
  %2204 = vmatprep.subr.mxu0 %v2141
  %2205 = vmatpush1.msra.mxu0 %v2140
  %2206 = vmatprep.subr.mxu0 %v2143
  %2207 = vmatpush1.msra.mxu0 %v2142
  %2208 = vmatprep.subr.mxu0 %v2145
  %2209 = vmatpush1.msra.mxu0 %v2144
  %2210 = vmatprep.subr.mxu0 %v2147
  %2211 = vmatpush1.msra.mxu0 %v2146
  %2212 = vmatprep.subr.mxu0 %v2149
  %2213 = vmatpush1.msra.mxu0 %v2148
  %2214 = vmatprep.subr.mxu0 %v2151
  %2215 = vmatpush1.msra.mxu0 %v2150
  %2216 = vmatprep.subr.mxu0 %v2153
  %2217 = vmatpush1.msra.mxu0 %v2152
  %2218 = vmatprep.subr.mxu0 %v2155
  %2219 = vmatpush1.msra.mxu0 %v2154
  %2220 = vmatprep.subr.mxu0 %v2157
  %2221 = vmatpush1.msra.mxu0 %v2156
  %2222 = vmatprep.subr.mxu0 %v2159
  %2223 = vmatpush1.msra.mxu0 %v2158
  %2224 = vmatprep.subr.mxu0 %v2161
  %2225 = vmatpush1.msra.mxu0 %v2160
  %2226 = vmatprep.subr.mxu0 %v2163
  %2227 = vmatpush1.msra.mxu0 %v2162
  %2228 = vmatprep.subr.mxu0 %v2165
  %2229 = vmatpush1.msra.mxu0 %v2164
  %2230 = vmatprep.subr.mxu0 %v2167
  %2231 = vmatpush1.msra.mxu0 %v2166
  %2232 = vmatprep.subr.mxu0 %v2169
  %2233 = vmatpush1.msra.mxu0 %v2168
  %2234 = vmatprep.subr.mxu0 %v2171
  %2235 = vmatpush1.msra.mxu0 %v2170
  %2236 = vmatprep.subr.mxu0 %v2173
  %2237 = vmatpush1.msra.mxu0 %v2172
  %2238 = vmatprep.subr.mxu0 %v2175
  %2239 = vmatpush1.msra.mxu0 %v2174
  %2240 = vmatprep.subr.mxu0 %v2177
  %2241 = vmatpush1.msra.mxu0 %v2176
  %2242 = vmatprep.subr.mxu0 %v2179
  %2243 = vmatpush1.msra.mxu0 %v2178
  %2244 = vmatprep.subr.mxu0 %v2181
  %2245 = vmatpush1.msra.mxu0 %v2180
  %2246 = vmatprep.subr.mxu0 %v2183
  %2247 = vmatpush1.msra.mxu0 %v2182
  %2248 = vmatprep.mubr.f32.mxu0 %v1987
  %2249 = vmatmul.mubr.f32.gmra.mrb[0].mxu0 %v1986
  %v2250 = vpop.f32.mrb[0].mxu0
  %v2251 = vadd.f32 0.0, %v2250
  %v2252 = vpop.f32.mrb[0].mxu0
  %v2253 = vadd.f32 0.0, %v2252
  %2254 = vmatprep.mubr.f32.mxu0 %v1989
  %2255 = vmatmul.mubr.f32.gmra.mrb[0].mxu0 %v1988
  %v2256 = vpop.f32.mrb[0].mxu0
  %v2257 = vadd.f32 0.0, %v2256
  %v2258 = vpop.f32.mrb[0].mxu0
  %v2259 = vadd.f32 0.0, %v2258
  %2260 = vdwg.mxu0
  %v2261 = vadd.f32 %v1972, %v2251
  %v2262 = vadd.f32 %v1973, %v2253
  %v2263 = vadd.f32 %v1974, %v2257
  %v2264 = vadd.f32 %v1975, %v2259
  %2266 = vset.pattern.permute.xlu0 0
  %2267 = vperm.xlu0 %2266, %v71
  %v2268 = vpop.permute.xlu0 %2267
  %2271 = vset.pattern.permute.xlu0 0
  %2272 = vperm.xlu0 %2271, %v72
  %v2273 = vpop.permute.xlu0 %2272
  %v2275 = vadd.f32 %v2261, %v2268
  %v2276 = vadd.f32 %v2262, %v2268
  %v2277 = vadd.f32 %v2263, %v2273
  %v2278 = vadd.f32 %v2264, %v2273
  %vm2279 = vcmp.ge.f32.partialorder %v2275, 0.0
  %vm2280 = vcmp.ge.f32.partialorder %v2276, 0.0
  %vm2281 = vcmp.ge.f32.partialorder %v2277, 0.0
  %vm2282 = vcmp.ge.f32.partialorder %v2278, 0.0
  %v2283 = vmul.f32 %v2275, 0.01
  %v2284 = vmul.f32 %v2276, 0.01
  %v2285 = vmul.f32 %v2277, 0.01
  %v2286 = vmul.f32 %v2278, 0.01
  %v2287 = vsel %vm2279, %v2275, %v2283
  %v2288 = vsel %vm2280, %v2276, %v2284
  %v2289 = vsel %vm2281, %v2277, %v2285
  %v2290 = vsel %vm2282, %v2278, %v2286
  %v2291 = vld [vmem:[%s3] sm:$0xff]
  %v2292 = vld [vmem:[%s3 + $0x8] sm:$0xff]
  %v2293 = vld [vmem:[%s3 + $0x10] sm:$0xff]
  %v2294 = vld [vmem:[%s3 + $0x18] sm:$0xff]
  %v2295 = vld [vmem:[%s3 + $0x20] sm:$0xff]
  %v2296 = vld [vmem:[%s3 + $0x28] sm:$0xff]
  %v2297 = vld [vmem:[%s3 + $0x30] sm:$0xff]
  %v2298 = vld [vmem:[%s3 + $0x38] sm:$0xff]
  %v2299 = vld [vmem:[%s3 + $0x40] sm:$0xff]
  %v2300 = vld [vmem:[%s3 + $0x48] sm:$0xff]
  %v2301 = vld [vmem:[%s4] sm:$0xff]
  %v2302 = vld [vmem:[%s4 + $0x8] sm:$0xff]
  %v2303 = vmul.u32 %v239, 2
  %vm2304 = vcmask 130048
  %v2306 = vsel %vm2304, %v2291, 0
  %v2309 = vsel %vm2304, %v2292, 0
  %2311 = vmatprep.subr.mxu0 %v2288
  %2312 = vmatpush1.msra.mxu0 %v2287
  %2313 = vmatprep.subr.mxu0 %v2290
  %2314 = vmatpush1.msra.mxu0 %v2289
  %2315 = vmatprep.subr.mxu0 0.0
  %2316 = vmatpush1.msra.mxu0 0.0
  %2317 = vmatprep.subr.mxu0 0.0
  %2318 = vmatpush1.msra.mxu0 0.0
  %2319 = vmatprep.subr.mxu0 0.0
  %2320 = vmatpush1.msra.mxu0 0.0
  %2321 = vmatprep.subr.mxu0 0.0
  %2322 = vmatpush1.msra.mxu0 0.0
  %2323 = vmatprep.subr.mxu0 0.0
  %2324 = vmatpush1.msra.mxu0 0.0
  %2325 = vmatprep.subr.mxu0 0.0
  %2326 = vmatpush1.msra.mxu0 0.0
  %2327 = vmatprep.subr.mxu0 0.0
  %2328 = vmatpush1.msra.mxu0 0.0
  %2329 = vmatprep.subr.mxu0 0.0
  %2330 = vmatpush1.msra.mxu0 0.0
  %2331 = vmatprep.subr.mxu0 0.0
  %2332 = vmatpush1.msra.mxu0 0.0
  %2333 = vmatprep.subr.mxu0 0.0
  %2334 = vmatpush1.msra.mxu0 0.0
  %2335 = vmatprep.subr.mxu0 0.0
  %2336 = vmatpush1.msra.mxu0 0.0
  %2337 = vmatprep.subr.mxu0 0.0
  %2338 = vmatpush1.msra.mxu0 0.0
  %2339 = vmatprep.subr.mxu0 0.0
  %2340 = vmatpush1.msra.mxu0 0.0
  %2341 = vmatprep.subr.mxu0 0.0
  %2342 = vmatpush1.msra.mxu0 0.0
  %2343 = vmatprep.subr.mxu0 0.0
  %2344 = vmatpush1.msra.mxu0 0.0
  %2345 = vmatprep.subr.mxu0 0.0
  %2346 = vmatpush1.msra.mxu0 0.0
  %2347 = vmatprep.subr.mxu0 0.0
  %2348 = vmatpush1.msra.mxu0 0.0
  %2349 = vmatprep.subr.mxu0 0.0
  %2350 = vmatpush1.msra.mxu0 0.0
  %2351 = vmatprep.subr.mxu0 0.0
  %2352 = vmatpush1.msra.mxu0 0.0
  %2353 = vmatprep.subr.mxu0 0.0
  %2354 = vmatpush1.msra.mxu0 0.0
  %2355 = vmatprep.subr.mxu0 0.0
  %2356 = vmatpush1.msra.mxu0 0.0
  %2357 = vmatprep.subr.mxu0 0.0
  %2358 = vmatpush1.msra.mxu0 0.0
  %2359 = vmatprep.subr.mxu0 0.0
  %2360 = vmatpush1.msra.mxu0 0.0
  %2361 = vmatprep.subr.mxu0 0.0
  %2362 = vmatpush1.msra.mxu0 0.0
  %2363 = vmatprep.subr.mxu0 0.0
  %2364 = vmatpush1.msra.mxu0 0.0
  %2365 = vmatprep.subr.mxu0 0.0
  %2366 = vmatpush1.msra.mxu0 0.0
  %2367 = vmatprep.subr.mxu0 0.0
  %2368 = vmatpush1.msra.mxu0 0.0
  %2369 = vmatprep.subr.mxu0 0.0
  %2370 = vmatpush1.msra.mxu0 0.0
  %2371 = vmatprep.subr.mxu0 0.0
  %2372 = vmatpush1.msra.mxu0 0.0
  %2373 = vmatprep.subr.mxu0 0.0
  %2374 = vmatpush1.msra.mxu0 0.0
  %2375 = vmatprep.mubr.f32.mxu0 0.0
  %2376 = vmatmul.mubr.f32.gmra.mrb[0].mxu0 %v2306
  %v2377 = vpop.f32.mrb[0].mxu0
  %v2378 = vadd.f32 0.0, %v2377
  %v2379 = vpop.f32.mrb[0].mxu0
  %v2380 = vadd.f32 0.0, %v2379
  %2381 = vmatprep.mubr.f32.mxu0 0.0
  %2382 = vmatmul.mubr.f32.gmra.mrb[0].mxu0 %v2309
  %v2383 = vpop.f32.mrb[0].mxu0
  %v2384 = vadd.f32 0.0, %v2383
  %v2385 = vpop.f32.mrb[0].mxu0
  %v2386 = vadd.f32 0.0, %v2385
  %2387 = vdwg.mxu0
  %v2388 = vadd.s32 %v2303, 4294967294
  %vm2389 = vcmp.eq.s32.totalorder %v207, %v2388
  %vm2390 = vcmp.eq.s32.totalorder %v208, %v2388
  %vm2391 = vcmp.eq.s32.totalorder %v209, %v2388
  %vm2392 = vcmp.eq.s32.totalorder %v210, %v2388
  %vm2393 = vcmp.eq.s32.totalorder %v211, %v2388
  %vm2394 = vcmp.eq.s32.totalorder %v212, %v2388
  %vm2395 = vcmp.eq.s32.totalorder %v213, %v2388
  %vm2396 = vcmp.eq.s32.totalorder %v214, %v2388
  %vm2397 = vcmp.eq.s32.totalorder %v215, %v2388
  %vm2398 = vcmp.eq.s32.totalorder %v216, %v2388
  %vm2399 = vcmp.eq.s32.totalorder %v217, %v2388
  %vm2400 = vcmp.eq.s32.totalorder %v218, %v2388
  %vm2401 = vcmp.eq.s32.totalorder %v219, %v2388
  %vm2402 = vcmp.eq.s32.totalorder %v220, %v2388
  %vm2403 = vcmp.eq.s32.totalorder %v221, %v2388
  %vm2404 = vcmp.eq.s32.totalorder %v222, %v2388
  %vm2405 = vcmp.eq.s32.totalorder %v223, %v2388
  %vm2406 = vcmp.eq.s32.totalorder %v224, %v2388
  %vm2407 = vcmp.eq.s32.totalorder %v225, %v2388
  %vm2408 = vcmp.eq.s32.totalorder %v226, %v2388
  %vm2409 = vcmp.eq.s32.totalorder %v227, %v2388
  %vm2410 = vcmp.eq.s32.totalorder %v228, %v2388
  %vm2411 = vcmp.eq.s32.totalorder %v229, %v2388
  %vm2412 = vcmp.eq.s32.totalorder %v230, %v2388
  %vm2413 = vcmp.eq.s32.totalorder %v231, %v2388
  %vm2414 = vcmp.eq.s32.totalorder %v232, %v2388
  %vm2415 = vcmp.eq.s32.totalorder %v233, %v2388
  %vm2416 = vcmp.eq.s32.totalorder %v234, %v2388
  %vm2417 = vcmp.eq.s32.totalorder %v235, %v2388
  %vm2418 = vcmp.eq.s32.totalorder %v236, %v2388
  %vm2419 = vcmp.eq.s32.totalorder %v237, %v2388
  %vm2420 = vcmp.eq.s32.totalorder %v238, %v2388
  %vm2421 = vmand %vm143, %vm2389
  %vm2422 = vmand %vm145, %vm2390
  %vm2423 = vmand %vm147, %vm2391
  %vm2424 = vmand %vm149, %vm2392
  %vm2425 = vmand %vm151, %vm2393
  %vm2426 = vmand %vm153, %vm2394
  %vm2427 = vmand %vm155, %vm2395
  %vm2428 = vmand %vm157, %vm2396
  %vm2429 = vmand %vm159, %vm2397
  %vm2430 = vmand %vm161, %vm2398
  %vm2431 = vmand %vm163, %vm2399
  %vm2432 = vmand %vm165, %vm2400
  %vm2433 = vmand %vm167, %vm2401
  %vm2434 = vmand %vm169, %vm2402
  %vm2435 = vmand %vm171, %vm2403
  %vm2436 = vmand %vm173, %vm2404
  %vm2437 = vmand %vm175, %vm2405
  %vm2438 = vmand %vm177, %vm2406
  %vm2439 = vmand %vm179, %vm2407
  %vm2440 = vmand %vm181, %vm2408
  %vm2441 = vmand %vm183, %vm2409
  %vm2442 = vmand %vm185, %vm2410
  %vm2443 = vmand %vm187, %vm2411
  %vm2444 = vmand %vm189, %vm2412
  %vm2445 = vmand %vm191, %vm2413
  %vm2446 = vmand %vm193, %vm2414
  %vm2447 = vmand %vm195, %vm2415
  %vm2448 = vmand %vm197, %vm2416
  %vm2449 = vmand %vm199, %vm2417
  %vm2450 = vmand %vm201, %vm2418
  %vm2451 = vmand %vm203, %vm2419
  %vm2452 = vmand %vm205, %vm2420
  %v2453 = vsel %vm2421, 1.0, 0.0
  %v2454 = vsel %vm2422, 1.0, 0.0
  %v2455 = vsel %vm2423, 1.0, 0.0
  %v2456 = vsel %vm2424, 1.0, 0.0
  %v2457 = vsel %vm2425, 1.0, 0.0
  %v2458 = vsel %vm2426, 1.0, 0.0
  %v2459 = vsel %vm2427, 1.0, 0.0
  %v2460 = vsel %vm2428, 1.0, 0.0
  %v2461 = vsel %vm2429, 1.0, 0.0
  %v2462 = vsel %vm2430, 1.0, 0.0
  %v2463 = vsel %vm2431, 1.0, 0.0
  %v2464 = vsel %vm2432, 1.0, 0.0
  %v2465 = vsel %vm2433, 1.0, 0.0
  %v2466 = vsel %vm2434, 1.0, 0.0
  %v2467 = vsel %vm2435, 1.0, 0.0
  %v2468 = vsel %vm2436, 1.0, 0.0
  %v2469 = vsel %vm2437, 1.0, 0.0
  %v2470 = vsel %vm2438, 1.0, 0.0
  %v2471 = vsel %vm2439, 1.0, 0.0
  %v2472 = vsel %vm2440, 1.0, 0.0
  %v2473 = vsel %vm2441, 1.0, 0.0
  %v2474 = vsel %vm2442, 1.0, 0.0
  %v2475 = vsel %vm2443, 1.0, 0.0
  %v2476 = vsel %vm2444, 1.0, 0.0
  %v2477 = vsel %vm2445, 1.0, 0.0
  %v2478 = vsel %vm2446, 1.0, 0.0
  %v2479 = vsel %vm2447, 1.0, 0.0
  %v2480 = vsel %vm2448, 1.0, 0.0
  %v2481 = vsel %vm2449, 1.0, 0.0
  %v2482 = vsel %vm2450, 1.0, 0.0
  %v2483 = vsel %vm2451, 1.0, 0.0
  %v2484 = vsel %vm2452, 1.0, 0.0
  %v2486 = vsel %vm2304, %v2293, 0
  %v2489 = vsel %vm2304, %v2294, 0
  %2491 = vmatprep.subr.mxu0 %v2288
  %2492 = vmatpush1.msra.mxu0 %v2287
  %2493 = vmatprep.subr.mxu0 %v2290
  %2494 = vmatpush1.msra.mxu0 %v2289
  %2495 = vmatprep.subr.mxu0 0.0
  %2496 = vmatpush1.msra.mxu0 0.0
  %2497 = vmatprep.subr.mxu0 0.0
  %2498 = vmatpush1.msra.mxu0 0.0
  %2499 = vmatprep.subr.mxu0 0.0
  %2500 = vmatpush1.msra.mxu0 0.0
  %2501 = vmatprep.subr.mxu0 0.0
  %2502 = vmatpush1.msra.mxu0 0.0
  %2503 = vmatprep.subr.mxu0 0.0
  %2504 = vmatpush1.msra.mxu0 0.0
  %2505 = vmatprep.subr.mxu0 0.0
  %2506 = vmatpush1.msra.mxu0 0.0
  %2507 = vmatprep.subr.mxu0 0.0
  %2508 = vmatpush1.msra.mxu0 0.0
  %2509 = vmatprep.subr.mxu0 0.0
  %2510 = vmatpush1.msra.mxu0 0.0
  %2511 = vmatprep.subr.mxu0 0.0
  %2512 = vmatpush1.msra.mxu0 0.0
  %2513 = vmatprep.subr.mxu0 0.0
  %2514 = vmatpush1.msra.mxu0 0.0
  %2515 = vmatprep.subr.mxu0 0.0
  %2516 = vmatpush1.msra.mxu0 0.0
  %2517 = vmatprep.subr.mxu0 0.0
  %2518 = vmatpush1.msra.mxu0 0.0
  %2519 = vmatprep.subr.mxu0 0.0
  %2520 = vmatpush1.msra.mxu0 0.0
  %2521 = vmatprep.subr.mxu0 0.0
  %2522 = vmatpush1.msra.mxu0 0.0
  %2523 = vmatprep.subr.mxu0 0.0
  %2524 = vmatpush1.msra.mxu0 0.0
  %2525 = vmatprep.subr.mxu0 0.0
  %2526 = vmatpush1.msra.mxu0 0.0
  %2527 = vmatprep.subr.mxu0 0.0
  %2528 = vmatpush1.msra.mxu0 0.0
  %2529 = vmatprep.subr.mxu0 0.0
  %2530 = vmatpush1.msra.mxu0 0.0
  %2531 = vmatprep.subr.mxu0 0.0
  %2532 = vmatpush1.msra.mxu0 0.0
  %2533 = vmatprep.subr.mxu0 0.0
  %2534 = vmatpush1.msra.mxu0 0.0
  %2535 = vmatprep.subr.mxu0 0.0
  %2536 = vmatpush1.msra.mxu0 0.0
  %2537 = vmatprep.subr.mxu0 0.0
  %2538 = vmatpush1.msra.mxu0 0.0
  %2539 = vmatprep.subr.mxu0 0.0
  %2540 = vmatpush1.msra.mxu0 0.0
  %2541 = vmatprep.subr.mxu0 0.0
  %2542 = vmatpush1.msra.mxu0 0.0
  %2543 = vmatprep.subr.mxu0 0.0
  %2544 = vmatpush1.msra.mxu0 0.0
  %2545 = vmatprep.subr.mxu0 0.0
  %2546 = vmatpush1.msra.mxu0 0.0
  %2547 = vmatprep.subr.mxu0 0.0
  %2548 = vmatpush1.msra.mxu0 0.0
  %2549 = vmatprep.subr.mxu0 0.0
  %2550 = vmatpush1.msra.mxu0 0.0
  %2551 = vmatprep.subr.mxu0 0.0
  %2552 = vmatpush1.msra.mxu0 0.0
  %2553 = vmatprep.subr.mxu0 0.0
  %2554 = vmatpush1.msra.mxu0 0.0
  %2555 = vmatprep.mubr.f32.mxu0 0.0
  %2556 = vmatmul.mubr.f32.gmra.mrb[0].mxu0 %v2486
  %v2557 = vpop.f32.mrb[0].mxu0
  %v2558 = vadd.f32 0.0, %v2557
  %v2559 = vpop.f32.mrb[0].mxu0
  %v2560 = vadd.f32 0.0, %v2559
  %2561 = vmatprep.mubr.f32.mxu0 0.0
  %2562 = vmatmul.mubr.f32.gmra.mrb[0].mxu0 %v2489
  %v2563 = vpop.f32.mrb[0].mxu0
  %v2564 = vadd.f32 0.0, %v2563
  %v2565 = vpop.f32.mrb[0].mxu0
  %v2566 = vadd.f32 0.0, %v2565
  %2567 = vdwg.mxu0
  %v2568 = vadd.s32 %v2303, 4294967295
  %vm2569 = vcmp.eq.s32.totalorder %v207, %v2568
  %vm2570 = vcmp.eq.s32.totalorder %v208, %v2568
  %vm2571 = vcmp.eq.s32.totalorder %v209, %v2568
  %vm2572 = vcmp.eq.s32.totalorder %v210, %v2568
  %vm2573 = vcmp.eq.s32.totalorder %v211, %v2568
  %vm2574 = vcmp.eq.s32.totalorder %v212, %v2568
  %vm2575 = vcmp.eq.s32.totalorder %v213, %v2568
  %vm2576 = vcmp.eq.s32.totalorder %v214, %v2568
  %vm2577 = vcmp.eq.s32.totalorder %v215, %v2568
  %vm2578 = vcmp.eq.s32.totalorder %v216, %v2568
  %vm2579 = vcmp.eq.s32.totalorder %v217, %v2568
  %vm2580 = vcmp.eq.s32.totalorder %v218, %v2568
  %vm2581 = vcmp.eq.s32.totalorder %v219, %v2568
  %vm2582 = vcmp.eq.s32.totalorder %v220, %v2568
  %vm2583 = vcmp.eq.s32.totalorder %v221, %v2568
  %vm2584 = vcmp.eq.s32.totalorder %v222, %v2568
  %vm2585 = vcmp.eq.s32.totalorder %v223, %v2568
  %vm2586 = vcmp.eq.s32.totalorder %v224, %v2568
  %vm2587 = vcmp.eq.s32.totalorder %v225, %v2568
  %vm2588 = vcmp.eq.s32.totalorder %v226, %v2568
  %vm2589 = vcmp.eq.s32.totalorder %v227, %v2568
  %vm2590 = vcmp.eq.s32.totalorder %v228, %v2568
  %vm2591 = vcmp.eq.s32.totalorder %v229, %v2568
  %vm2592 = vcmp.eq.s32.totalorder %v230, %v2568
  %vm2593 = vcmp.eq.s32.totalorder %v231, %v2568
  %vm2594 = vcmp.eq.s32.totalorder %v232, %v2568
  %vm2595 = vcmp.eq.s32.totalorder %v233, %v2568
  %vm2596 = vcmp.eq.s32.totalorder %v234, %v2568
  %vm2597 = vcmp.eq.s32.totalorder %v235, %v2568
  %vm2598 = vcmp.eq.s32.totalorder %v236, %v2568
  %vm2599 = vcmp.eq.s32.totalorder %v237, %v2568
  %vm2600 = vcmp.eq.s32.totalorder %v238, %v2568
  %vm2601 = vmand %vm143, %vm2569
  %vm2602 = vmand %vm145, %vm2570
  %vm2603 = vmand %vm147, %vm2571
  %vm2604 = vmand %vm149, %vm2572
  %vm2605 = vmand %vm151, %vm2573
  %vm2606 = vmand %vm153, %vm2574
  %vm2607 = vmand %vm155, %vm2575
  %vm2608 = vmand %vm157, %vm2576
  %vm2609 = vmand %vm159, %vm2577
  %vm2610 = vmand %vm161, %vm2578
  %vm2611 = vmand %vm163, %vm2579
  %vm2612 = vmand %vm165, %vm2580
  %vm2613 = vmand %vm167, %vm2581
  %vm2614 = vmand %vm169, %vm2582
  %vm2615 = vmand %vm171, %vm2583
  %vm2616 = vmand %vm173, %vm2584
  %vm2617 = vmand %vm175, %vm2585
  %vm2618 = vmand %vm177, %vm2586
  %vm2619 = vmand %vm179, %vm2587
  %vm2620 = vmand %vm181, %vm2588
  %vm2621 = vmand %vm183, %vm2589
  %vm2622 = vmand %vm185, %vm2590
  %vm2623 = vmand %vm187, %vm2591
  %vm2624 = vmand %vm189, %vm2592
  %vm2625 = vmand %vm191, %vm2593
  %vm2626 = vmand %vm193, %vm2594
  %vm2627 = vmand %vm195, %vm2595
  %vm2628 = vmand %vm197, %vm2596
  %vm2629 = vmand %vm199, %vm2597
  %vm2630 = vmand %vm201, %vm2598
  %vm2631 = vmand %vm203, %vm2599
  %vm2632 = vmand %vm205, %vm2600
  %v2633 = vsel %vm2601, 1.0, 0.0
  %v2634 = vsel %vm2602, 1.0, 0.0
  %v2635 = vsel %vm2603, 1.0, 0.0
  %v2636 = vsel %vm2604, 1.0, 0.0
  %v2637 = vsel %vm2605, 1.0, 0.0
  %v2638 = vsel %vm2606, 1.0, 0.0
  %v2639 = vsel %vm2607, 1.0, 0.0
  %v2640 = vsel %vm2608, 1.0, 0.0
  %v2641 = vsel %vm2609, 1.0, 0.0
  %v2642 = vsel %vm2610, 1.0, 0.0
  %v2643 = vsel %vm2611, 1.0, 0.0
  %v2644 = vsel %vm2612, 1.0, 0.0
  %v2645 = vsel %vm2613, 1.0, 0.0
  %v2646 = vsel %vm2614, 1.0, 0.0
  %v2647 = vsel %vm2615, 1.0, 0.0
  %v2648 = vsel %vm2616, 1.0, 0.0
  %v2649 = vsel %vm2617, 1.0, 0.0
  %v2650 = vsel %vm2618, 1.0, 0.0
  %v2651 = vsel %vm2619, 1.0, 0.0
  %v2652 = vsel %vm2620, 1.0, 0.0
  %v2653 = vsel %vm2621, 1.0, 0.0
  %v2654 = vsel %vm2622, 1.0, 0.0
  %v2655 = vsel %vm2623, 1.0, 0.0
  %v2656 = vsel %vm2624, 1.0, 0.0
  %v2657 = vsel %vm2625, 1.0, 0.0
  %v2658 = vsel %vm2626, 1.0, 0.0
  %v2659 = vsel %vm2627, 1.0, 0.0
  %v2660 = vsel %vm2628, 1.0, 0.0
  %v2661 = vsel %vm2629, 1.0, 0.0
  %v2662 = vsel %vm2630, 1.0, 0.0
  %v2663 = vsel %vm2631, 1.0, 0.0
  %v2664 = vsel %vm2632, 1.0, 0.0
  %2665 = vmatprep.subr.mxu0 0.0
  %2666 = vmatpush1.msra.mxu0 %v2633
  %2667 = vmatprep.subr.mxu0 0.0
  %2668 = vmatpush1.msra.mxu0 %v2634
  %2669 = vmatprep.subr.mxu0 0.0
  %2670 = vmatpush1.msra.mxu0 %v2635
  %2671 = vmatprep.subr.mxu0 0.0
  %2672 = vmatpush1.msra.mxu0 %v2636
  %2673 = vmatprep.subr.mxu0 0.0
  %2674 = vmatpush1.msra.mxu0 %v2637
  %2675 = vmatprep.subr.mxu0 0.0
  %2676 = vmatpush1.msra.mxu0 %v2638
  %2677 = vmatprep.subr.mxu0 0.0
  %2678 = vmatpush1.msra.mxu0 %v2639
  %2679 = vmatprep.subr.mxu0 0.0
  %2680 = vmatpush1.msra.mxu0 %v2640
  %2681 = vmatprep.subr.mxu0 0.0
  %2682 = vmatpush1.msra.mxu0 %v2641
  %2683 = vmatprep.subr.mxu0 0.0
  %2684 = vmatpush1.msra.mxu0 %v2642
  %2685 = vmatprep.subr.mxu0 0.0
  %2686 = vmatpush1.msra.mxu0 %v2643
  %2687 = vmatprep.subr.mxu0 0.0
  %2688 = vmatpush1.msra.mxu0 %v2644
  %2689 = vmatprep.subr.mxu0 0.0
  %2690 = vmatpush1.msra.mxu0 %v2645
  %2691 = vmatprep.subr.mxu0 0.0
  %2692 = vmatpush1.msra.mxu0 %v2646
  %2693 = vmatprep.subr.mxu0 0.0
  %2694 = vmatpush1.msra.mxu0 %v2647
  %2695 = vmatprep.subr.mxu0 0.0
  %2696 = vmatpush1.msra.mxu0 %v2648
  %2697 = vmatprep.subr.mxu0 0.0
  %2698 = vmatpush1.msra.mxu0 %v2649
  %2699 = vmatprep.subr.mxu0 0.0
  %2700 = vmatpush1.msra.mxu0 %v2650
  %2701 = vmatprep.subr.mxu0 0.0
  %2702 = vmatpush1.msra.mxu0 %v2651
  %2703 = vmatprep.subr.mxu0 0.0
  %2704 = vmatpush1.msra.mxu0 %v2652
  %2705 = vmatprep.subr.mxu0 0.0
  %2706 = vmatpush1.msra.mxu0 %v2653
  %2707 = vmatprep.subr.mxu0 0.0
  %2708 = vmatpush1.msra.mxu0 %v2654
  %2709 = vmatprep.subr.mxu0 0.0
  %2710 = vmatpush1.msra.mxu0 %v2655
  %2711 = vmatprep.subr.mxu0 0.0
  %2712 = vmatpush1.msra.mxu0 %v2656
  %2713 = vmatprep.subr.mxu0 0.0
  %2714 = vmatpush1.msra.mxu0 %v2657
  %2715 = vmatprep.subr.mxu0 0.0
  %2716 = vmatpush1.msra.mxu0 %v2658
  %2717 = vmatprep.subr.mxu0 0.0
  %2718 = vmatpush1.msra.mxu0 %v2659
  %2719 = vmatprep.subr.mxu0 0.0
  %2720 = vmatpush1.msra.mxu0 %v2660
  %2721 = vmatprep.subr.mxu0 0.0
  %2722 = vmatpush1.msra.mxu0 %v2661
  %2723 = vmatprep.subr.mxu0 0.0
  %2724 = vmatpush1.msra.mxu0 %v2662
  %2725 = vmatprep.subr.mxu0 0.0
  %2726 = vmatpush1.msra.mxu0 %v2663
  %2727 = vmatprep.subr.mxu0 0.0
  %2728 = vmatpush1.msra.mxu0 %v2664
  %2729 = vmatprep.mubr.f32.mxu0 %v2560
  %2730 = vmatmul.mubr.f32.gmra.mrb[0].mxu0 %v2558
  %v2731 = vpop.f32.mrb[0].mxu0
  %v2732 = vadd.f32 0.0, %v2731
  %v2733 = vpop.f32.mrb[0].mxu0
  %2734 = vmatprep.mubr.f32.mxu0 %v2566
  %2735 = vmatmul.mubr.f32.gmra.mrb[0].mxu0 %v2564
  %v2736 = vpop.f32.mrb[0].mxu0
  %v2737 = vadd.f32 0.0, %v2736
  %v2738 = vpop.f32.mrb[0].mxu0
  %2739 = vdwg.mxu0
  %2740 = vmatprep.subr.mxu0 0.0
  %2741 = vmatpush1.msra.mxu0 %v2453
  %2742 = vmatprep.subr.mxu0 0.0
  %2743 = vmatpush1.msra.mxu0 %v2454
  %2744 = vmatprep.subr.mxu0 0.0
  %2745 = vmatpush1.msra.mxu0 %v2455
  %2746 = vmatprep.subr.mxu0 0.0
  %2747 = vmatpush1.msra.mxu0 %v2456
  %2748 = vmatprep.subr.mxu0 0.0
  %2749 = vmatpush1.msra.mxu0 %v2457
  %2750 = vmatprep.subr.mxu0 0.0
  %2751 = vmatpush1.msra.mxu0 %v2458
  %2752 = vmatprep.subr.mxu0 0.0
  %2753 = vmatpush1.msra.mxu0 %v2459
  %2754 = vmatprep.subr.mxu0 0.0
  %2755 = vmatpush1.msra.mxu0 %v2460
  %2756 = vmatprep.subr.mxu0 0.0
  %2757 = vmatpush1.msra.mxu0 %v2461
  %2758 = vmatprep.subr.mxu0 0.0
  %2759 = vmatpush1.msra.mxu0 %v2462
  %2760 = vmatprep.subr.mxu0 0.0
  %2761 = vmatpush1.msra.mxu0 %v2463
  %2762 = vmatprep.subr.mxu0 0.0
  %2763 = vmatpush1.msra.mxu0 %v2464
  %2764 = vmatprep.subr.mxu0 0.0
  %2765 = vmatpush1.msra.mxu0 %v2465
  %2766 = vmatprep.subr.mxu0 0.0
  %2767 = vmatpush1.msra.mxu0 %v2466
  %2768 = vmatprep.subr.mxu0 0.0
  %2769 = vmatpush1.msra.mxu0 %v2467
  %2770 = vmatprep.subr.mxu0 0.0
  %2771 = vmatpush1.msra.mxu0 %v2468
  %2772 = vmatprep.subr.mxu0 0.0
  %2773 = vmatpush1.msra.mxu0 %v2469
  %2774 = vmatprep.subr.mxu0 0.0
  %2775 = vmatpush1.msra.mxu0 %v2470
  %2776 = vmatprep.subr.mxu0 0.0
  %2777 = vmatpush1.msra.mxu0 %v2471
  %2778 = vmatprep.subr.mxu0 0.0
  %2779 = vmatpush1.msra.mxu0 %v2472
  %2780 = vmatprep.subr.mxu0 0.0
  %2781 = vmatpush1.msra.mxu0 %v2473
  %2782 = vmatprep.subr.mxu0 0.0
  %2783 = vmatpush1.msra.mxu0 %v2474
  %2784 = vmatprep.subr.mxu0 0.0
  %2785 = vmatpush1.msra.mxu0 %v2475
  %2786 = vmatprep.subr.mxu0 0.0
  %2787 = vmatpush1.msra.mxu0 %v2476
  %2788 = vmatprep.subr.mxu0 0.0
  %2789 = vmatpush1.msra.mxu0 %v2477
  %2790 = vmatprep.subr.mxu0 0.0
  %2791 = vmatpush1.msra.mxu0 %v2478
  %2792 = vmatprep.subr.mxu0 0.0
  %2793 = vmatpush1.msra.mxu0 %v2479
  %2794 = vmatprep.subr.mxu0 0.0
  %2795 = vmatpush1.msra.mxu0 %v2480
  %2796 = vmatprep.subr.mxu0 0.0
  %2797 = vmatpush1.msra.mxu0 %v2481
  %2798 = vmatprep.subr.mxu0 0.0
  %2799 = vmatpush1.msra.mxu0 %v2482
  %2800 = vmatprep.subr.mxu0 0.0
  %2801 = vmatpush1.msra.mxu0 %v2483
  %2802 = vmatprep.subr.mxu0 0.0
  %2803 = vmatpush1.msra.mxu0 %v2484
  %2804 = vmatprep.mubr.f32.mxu0 %v2380
  %2805 = vmatmul.mubr.f32.gmra.mrb[0].mxu0 %v2378
  %v2806 = vpop.f32.mrb[0].mxu0
  %v2807 = vadd.f32 %v2732, %v2806
  %v2808 = vpop.f32.mrb[0].mxu0
  %2809 = vmatprep.mubr.f32.mxu0 %v2386
  %2810 = vmatmul.mubr.f32.gmra.mrb[0].mxu0 %v2384
  %v2811 = vpop.f32.mrb[0].mxu0
  %v2812 = vadd.f32 %v2737, %v2811
  %v2813 = vpop.f32.mrb[0].mxu0
  %2814 = vdwg.mxu0
  %v2816 = vsel %vm2304, %v2295, 0
  %v2819 = vsel %vm2304, %v2296, 0
  %2821 = vmatprep.subr.mxu0 %v2288
  %2822 = vmatpush1.msra.mxu0 %v2287
  %2823 = vmatprep.subr.mxu0 %v2290
  %2824 = vmatpush1.msra.mxu0 %v2289
  %2825 = vmatprep.subr.mxu0 0.0
  %2826 = vmatpush1.msra.mxu0 0.0
  %2827 = vmatprep.subr.mxu0 0.0
  %2828 = vmatpush1.msra.mxu0 0.0
  %2829 = vmatprep.subr.mxu0 0.0
  %2830 = vmatpush1.msra.mxu0 0.0
  %2831 = vmatprep.subr.mxu0 0.0
  %2832 = vmatpush1.msra.mxu0 0.0
  %2833 = vmatprep.subr.mxu0 0.0
  %2834 = vmatpush1.msra.mxu0 0.0
  %2835 = vmatprep.subr.mxu0 0.0
  %2836 = vmatpush1.msra.mxu0 0.0
  %2837 = vmatprep.subr.mxu0 0.0
  %2838 = vmatpush1.msra.mxu0 0.0
  %2839 = vmatprep.subr.mxu0 0.0
  %2840 = vmatpush1.msra.mxu0 0.0
  %2841 = vmatprep.subr.mxu0 0.0
  %2842 = vmatpush1.msra.mxu0 0.0
  %2843 = vmatprep.subr.mxu0 0.0
  %2844 = vmatpush1.msra.mxu0 0.0
  %2845 = vmatprep.subr.mxu0 0.0
  %2846 = vmatpush1.msra.mxu0 0.0
  %2847 = vmatprep.subr.mxu0 0.0
  %2848 = vmatpush1.msra.mxu0 0.0
  %2849 = vmatprep.subr.mxu0 0.0
  %2850 = vmatpush1.msra.mxu0 0.0
  %2851 = vmatprep.subr.mxu0 0.0
  %2852 = vmatpush1.msra.mxu0 0.0
  %2853 = vmatprep.subr.mxu0 0.0
  %2854 = vmatpush1.msra.mxu0 0.0
  %2855 = vmatprep.subr.mxu0 0.0
  %2856 = vmatpush1.msra.mxu0 0.0
  %2857 = vmatprep.subr.mxu0 0.0
  %2858 = vmatpush1.msra.mxu0 0.0
  %2859 = vmatprep.subr.mxu0 0.0
  %2860 = vmatpush1.msra.mxu0 0.0
  %2861 = vmatprep.subr.mxu0 0.0
  %2862 = vmatpush1.msra.mxu0 0.0
  %2863 = vmatprep.subr.mxu0 0.0
  %2864 = vmatpush1.msra.mxu0 0.0
  %2865 = vmatprep.subr.mxu0 0.0
  %2866 = vmatpush1.msra.mxu0 0.0
  %2867 = vmatprep.subr.mxu0 0.0
  %2868 = vmatpush1.msra.mxu0 0.0
  %2869 = vmatprep.subr.mxu0 0.0
  %2870 = vmatpush1.msra.mxu0 0.0
  %2871 = vmatprep.subr.mxu0 0.0
  %2872 = vmatpush1.msra.mxu0 0.0
  %2873 = vmatprep.subr.mxu0 0.0
  %2874 = vmatpush1.msra.mxu0 0.0
  %2875 = vmatprep.subr.mxu0 0.0
  %2876 = vmatpush1.msra.mxu0 0.0
  %2877 = vmatprep.subr.mxu0 0.0
  %2878 = vmatpush1.msra.mxu0 0.0
  %2879 = vmatprep.subr.mxu0 0.0
  %2880 = vmatpush1.msra.mxu0 0.0
  %2881 = vmatprep.subr.mxu0 0.0
  %2882 = vmatpush1.msra.mxu0 0.0
  %2883 = vmatprep.subr.mxu0 0.0
  %2884 = vmatpush1.msra.mxu0 0.0
  %2885 = vmatprep.mubr.f32.mxu0 0.0
  %2886 = vmatmul.mubr.f32.gmra.mrb[0].mxu0 %v2816
  %v2887 = vpop.f32.mrb[0].mxu0
  %v2888 = vadd.f32 0.0, %v2887
  %v2889 = vpop.f32.mrb[0].mxu0
  %v2890 = vadd.f32 0.0, %v2889
  %2891 = vmatprep.mubr.f32.mxu0 0.0
  %2892 = vmatmul.mubr.f32.gmra.mrb[0].mxu0 %v2819
  %v2893 = vpop.f32.mrb[0].mxu0
  %v2894 = vadd.f32 0.0, %v2893
  %v2895 = vpop.f32.mrb[0].mxu0
  %v2896 = vadd.f32 0.0, %v2895
  %2897 = vdwg.mxu0
  %vm2898 = vcmp.eq.s32.totalorder %v207, %v2303
  %vm2899 = vcmp.eq.s32.totalorder %v208, %v2303
  %vm2900 = vcmp.eq.s32.totalorder %v209, %v2303
  %vm2901 = vcmp.eq.s32.totalorder %v210, %v2303
  %vm2902 = vcmp.eq.s32.totalorder %v211, %v2303
  %vm2903 = vcmp.eq.s32.totalorder %v212, %v2303
  %vm2904 = vcmp.eq.s32.totalorder %v213, %v2303
  %vm2905 = vcmp.eq.s32.totalorder %v214, %v2303
  %vm2906 = vcmp.eq.s32.totalorder %v215, %v2303
  %vm2907 = vcmp.eq.s32.totalorder %v216, %v2303
  %vm2908 = vcmp.eq.s32.totalorder %v217, %v2303
  %vm2909 = vcmp.eq.s32.totalorder %v218, %v2303
  %vm2910 = vcmp.eq.s32.totalorder %v219, %v2303
  %vm2911 = vcmp.eq.s32.totalorder %v220, %v2303
  %vm2912 = vcmp.eq.s32.totalorder %v221, %v2303
  %vm2913 = vcmp.eq.s32.totalorder %v222, %v2303
  %vm2914 = vcmp.eq.s32.totalorder %v223, %v2303
  %vm2915 = vcmp.eq.s32.totalorder %v224, %v2303
  %vm2916 = vcmp.eq.s32.totalorder %v225, %v2303
  %vm2917 = vcmp.eq.s32.totalorder %v226, %v2303
  %vm2918 = vcmp.eq.s32.totalorder %v227, %v2303
  %vm2919 = vcmp.eq.s32.totalorder %v228, %v2303
  %vm2920 = vcmp.eq.s32.totalorder %v229, %v2303
  %vm2921 = vcmp.eq.s32.totalorder %v230, %v2303
  %vm2922 = vcmp.eq.s32.totalorder %v231, %v2303
  %vm2923 = vcmp.eq.s32.totalorder %v232, %v2303
  %vm2924 = vcmp.eq.s32.totalorder %v233, %v2303
  %vm2925 = vcmp.eq.s32.totalorder %v234, %v2303
  %vm2926 = vcmp.eq.s32.totalorder %v235, %v2303
  %vm2927 = vcmp.eq.s32.totalorder %v236, %v2303
  %vm2928 = vcmp.eq.s32.totalorder %v237, %v2303
  %vm2929 = vcmp.eq.s32.totalorder %v238, %v2303
  %vm2930 = vmand %vm143, %vm2898
  %vm2931 = vmand %vm145, %vm2899
  %vm2932 = vmand %vm147, %vm2900
  %vm2933 = vmand %vm149, %vm2901
  %vm2934 = vmand %vm151, %vm2902
  %vm2935 = vmand %vm153, %vm2903
  %vm2936 = vmand %vm155, %vm2904
  %vm2937 = vmand %vm157, %vm2905
  %vm2938 = vmand %vm159, %vm2906
  %vm2939 = vmand %vm161, %vm2907
  %vm2940 = vmand %vm163, %vm2908
  %vm2941 = vmand %vm165, %vm2909
  %vm2942 = vmand %vm167, %vm2910
  %vm2943 = vmand %vm169, %vm2911
  %vm2944 = vmand %vm171, %vm2912
  %vm2945 = vmand %vm173, %vm2913
  %vm2946 = vmand %vm175, %vm2914
  %vm2947 = vmand %vm177, %vm2915
  %vm2948 = vmand %vm179, %vm2916
  %vm2949 = vmand %vm181, %vm2917
  %vm2950 = vmand %vm183, %vm2918
  %vm2951 = vmand %vm185, %vm2919
  %vm2952 = vmand %vm187, %vm2920
  %vm2953 = vmand %vm189, %vm2921
  %vm2954 = vmand %vm191, %vm2922
  %vm2955 = vmand %vm193, %vm2923
  %vm2956 = vmand %vm195, %vm2924
  %vm2957 = vmand %vm197, %vm2925
  %vm2958 = vmand %vm199, %vm2926
  %vm2959 = vmand %vm201, %vm2927
  %vm2960 = vmand %vm203, %vm2928
  %vm2961 = vmand %vm205, %vm2929
  %v2962 = vsel %vm2930, 1.0, 0.0
  %v2963 = vsel %vm2931, 1.0, 0.0
  %v2964 = vsel %vm2932, 1.0, 0.0
  %v2965 = vsel %vm2933, 1.0, 0.0
  %v2966 = vsel %vm2934, 1.0, 0.0
  %v2967 = vsel %vm2935, 1.0, 0.0
  %v2968 = vsel %vm2936, 1.0, 0.0
  %v2969 = vsel %vm2937, 1.0, 0.0
  %v2970 = vsel %vm2938, 1.0, 0.0
  %v2971 = vsel %vm2939, 1.0, 0.0
  %v2972 = vsel %vm2940, 1.0, 0.0
  %v2973 = vsel %vm2941, 1.0, 0.0
  %v2974 = vsel %vm2942, 1.0, 0.0
  %v2975 = vsel %vm2943, 1.0, 0.0
  %v2976 = vsel %vm2944, 1.0, 0.0
  %v2977 = vsel %vm2945, 1.0, 0.0
  %v2978 = vsel %vm2946, 1.0, 0.0
  %v2979 = vsel %vm2947, 1.0, 0.0
  %v2980 = vsel %vm2948, 1.0, 0.0
  %v2981 = vsel %vm2949, 1.0, 0.0
  %v2982 = vsel %vm2950, 1.0, 0.0
  %v2983 = vsel %vm2951, 1.0, 0.0
  %v2984 = vsel %vm2952, 1.0, 0.0
  %v2985 = vsel %vm2953, 1.0, 0.0
  %v2986 = vsel %vm2954, 1.0, 0.0
  %v2987 = vsel %vm2955, 1.0, 0.0
  %v2988 = vsel %vm2956, 1.0, 0.0
  %v2989 = vsel %vm2957, 1.0, 0.0
  %v2990 = vsel %vm2958, 1.0, 0.0
  %v2991 = vsel %vm2959, 1.0, 0.0
  %v2992 = vsel %vm2960, 1.0, 0.0
  %v2993 = vsel %vm2961, 1.0, 0.0
  %2994 = vmatprep.subr.mxu0 0.0
  %2995 = vmatpush1.msra.mxu0 %v2962
  %2996 = vmatprep.subr.mxu0 0.0
  %2997 = vmatpush1.msra.mxu0 %v2963
  %2998 = vmatprep.subr.mxu0 0.0
  %2999 = vmatpush1.msra.mxu0 %v2964
  %3000 = vmatprep.subr.mxu0 0.0
  %3001 = vmatpush1.msra.mxu0 %v2965
  %3002 = vmatprep.subr.mxu0 0.0
  %3003 = vmatpush1.msra.mxu0 %v2966
  %3004 = vmatprep.subr.mxu0 0.0
  %3005 = vmatpush1.msra.mxu0 %v2967
  %3006 = vmatprep.subr.mxu0 0.0
  %3007 = vmatpush1.msra.mxu0 %v2968
  %3008 = vmatprep.subr.mxu0 0.0
  %3009 = vmatpush1.msra.mxu0 %v2969
  %3010 = vmatprep.subr.mxu0 0.0
  %3011 = vmatpush1.msra.mxu0 %v2970
  %3012 = vmatprep.subr.mxu0 0.0
  %3013 = vmatpush1.msra.mxu0 %v2971
  %3014 = vmatprep.subr.mxu0 0.0
  %3015 = vmatpush1.msra.mxu0 %v2972
  %3016 = vmatprep.subr.mxu0 0.0
  %3017 = vmatpush1.msra.mxu0 %v2973
  %3018 = vmatprep.subr.mxu0 0.0
  %3019 = vmatpush1.msra.mxu0 %v2974
  %3020 = vmatprep.subr.mxu0 0.0
  %3021 = vmatpush1.msra.mxu0 %v2975
  %3022 = vmatprep.subr.mxu0 0.0
  %3023 = vmatpush1.msra.mxu0 %v2976
  %3024 = vmatprep.subr.mxu0 0.0
  %3025 = vmatpush1.msra.mxu0 %v2977
  %3026 = vmatprep.subr.mxu0 0.0
  %3027 = vmatpush1.msra.mxu0 %v2978
  %3028 = vmatprep.subr.mxu0 0.0
  %3029 = vmatpush1.msra.mxu0 %v2979
  %3030 = vmatprep.subr.mxu0 0.0
  %3031 = vmatpush1.msra.mxu0 %v2980
  %3032 = vmatprep.subr.mxu0 0.0
  %3033 = vmatpush1.msra.mxu0 %v2981
  %3034 = vmatprep.subr.mxu0 0.0
  %3035 = vmatpush1.msra.mxu0 %v2982
  %3036 = vmatprep.subr.mxu0 0.0
  %3037 = vmatpush1.msra.mxu0 %v2983
  %3038 = vmatprep.subr.mxu0 0.0
  %3039 = vmatpush1.msra.mxu0 %v2984
  %3040 = vmatprep.subr.mxu0 0.0
  %3041 = vmatpush1.msra.mxu0 %v2985
  %3042 = vmatprep.subr.mxu0 0.0
  %3043 = vmatpush1.msra.mxu0 %v2986
  %3044 = vmatprep.subr.mxu0 0.0
  %3045 = vmatpush1.msra.mxu0 %v2987
  %3046 = vmatprep.subr.mxu0 0.0
  %3047 = vmatpush1.msra.mxu0 %v2988
  %3048 = vmatprep.subr.mxu0 0.0
  %3049 = vmatpush1.msra.mxu0 %v2989
  %3050 = vmatprep.subr.mxu0 0.0
  %3051 = vmatpush1.msra.mxu0 %v2990
  %3052 = vmatprep.subr.mxu0 0.0
  %3053 = vmatpush1.msra.mxu0 %v2991
  %3054 = vmatprep.subr.mxu0 0.0
  %3055 = vmatpush1.msra.mxu0 %v2992
  %3056 = vmatprep.subr.mxu0 0.0
  %3057 = vmatpush1.msra.mxu0 %v2993
  %3058 = vmatprep.mubr.f32.mxu0 %v2890
  %3059 = vmatmul.mubr.f32.gmra.mrb[0].mxu0 %v2888
  %v3060 = vpop.f32.mrb[0].mxu0
  %v3061 = vadd.f32 0.0, %v3060
  %v3062 = vpop.f32.mrb[0].mxu0
  %3063 = vmatprep.mubr.f32.mxu0 %v2896
  %3064 = vmatmul.mubr.f32.gmra.mrb[0].mxu0 %v2894
  %v3065 = vpop.f32.mrb[0].mxu0
  %v3066 = vadd.f32 0.0, %v3065
  %v3067 = vpop.f32.mrb[0].mxu0
  %3068 = vdwg.mxu0
  %v3069 = vadd.f32 %v2807, %v3061
  %v3070 = vadd.f32 %v2812, %v3066
  %v3072 = vsel %vm2304, %v2297, 0
  %v3075 = vsel %vm2304, %v2298, 0
  %3077 = vmatprep.subr.mxu0 %v2288
  %3078 = vmatpush1.msra.mxu0 %v2287
  %3079 = vmatprep.subr.mxu0 %v2290
  %3080 = vmatpush1.msra.mxu0 %v2289
  %3081 = vmatprep.subr.mxu0 0.0
  %3082 = vmatpush1.msra.mxu0 0.0
  %3083 = vmatprep.subr.mxu0 0.0
  %3084 = vmatpush1.msra.mxu0 0.0
  %3085 = vmatprep.subr.mxu0 0.0
  %3086 = vmatpush1.msra.mxu0 0.0
  %3087 = vmatprep.subr.mxu0 0.0
  %3088 = vmatpush1.msra.mxu0 0.0
  %3089 = vmatprep.subr.mxu0 0.0
  %3090 = vmatpush1.msra.mxu0 0.0
  %3091 = vmatprep.subr.mxu0 0.0
  %3092 = vmatpush1.msra.mxu0 0.0
  %3093 = vmatprep.subr.mxu0 0.0
  %3094 = vmatpush1.msra.mxu0 0.0
  %3095 = vmatprep.subr.mxu0 0.0
  %3096 = vmatpush1.msra.mxu0 0.0
  %3097 = vmatprep.subr.mxu0 0.0
  %3098 = vmatpush1.msra.mxu0 0.0
  %3099 = vmatprep.subr.mxu0 0.0
  %3100 = vmatpush1.msra.mxu0 0.0
  %3101 = vmatprep.subr.mxu0 0.0
  %3102 = vmatpush1.msra.mxu0 0.0
  %3103 = vmatprep.subr.mxu0 0.0
  %3104 = vmatpush1.msra.mxu0 0.0
  %3105 = vmatprep.subr.mxu0 0.0
  %3106 = vmatpush1.msra.mxu0 0.0
  %3107 = vmatprep.subr.mxu0 0.0
  %3108 = vmatpush1.msra.mxu0 0.0
  %3109 = vmatprep.subr.mxu0 0.0
  %3110 = vmatpush1.msra.mxu0 0.0
  %3111 = vmatprep.subr.mxu0 0.0
  %3112 = vmatpush1.msra.mxu0 0.0
  %3113 = vmatprep.subr.mxu0 0.0
  %3114 = vmatpush1.msra.mxu0 0.0
  %3115 = vmatprep.subr.mxu0 0.0
  %3116 = vmatpush1.msra.mxu0 0.0
  %3117 = vmatprep.subr.mxu0 0.0
  %3118 = vmatpush1.msra.mxu0 0.0
  %3119 = vmatprep.subr.mxu0 0.0
  %3120 = vmatpush1.msra.mxu0 0.0
  %3121 = vmatprep.subr.mxu0 0.0
  %3122 = vmatpush1.msra.mxu0 0.0
  %3123 = vmatprep.subr.mxu0 0.0
  %3124 = vmatpush1.msra.mxu0 0.0
  %3125 = vmatprep.subr.mxu0 0.0
  %3126 = vmatpush1.msra.mxu0 0.0
  %3127 = vmatprep.subr.mxu0 0.0
  %3128 = vmatpush1.msra.mxu0 0.0
  %3129 = vmatprep.subr.mxu0 0.0
  %3130 = vmatpush1.msra.mxu0 0.0
  %3131 = vmatprep.subr.mxu0 0.0
  %3132 = vmatpush1.msra.mxu0 0.0
  %3133 = vmatprep.subr.mxu0 0.0
  %3134 = vmatpush1.msra.mxu0 0.0
  %3135 = vmatprep.subr.mxu0 0.0
  %3136 = vmatpush1.msra.mxu0 0.0
  %3137 = vmatprep.subr.mxu0 0.0
  %3138 = vmatpush1.msra.mxu0 0.0
  %3139 = vmatprep.subr.mxu0 0.0
  %3140 = vmatpush1.msra.mxu0 0.0
  %3141 = vmatprep.mubr.f32.mxu0 0.0
  %3142 = vmatmul.mubr.f32.gmra.mrb[0].mxu0 %v3072
  %v3143 = vpop.f32.mrb[0].mxu0
  %v3144 = vadd.f32 0.0, %v3143
  %v3145 = vpop.f32.mrb[0].mxu0
  %v3146 = vadd.f32 0.0, %v3145
  %3147 = vmatprep.mubr.f32.mxu0 0.0
  %3148 = vmatmul.mubr.f32.gmra.mrb[0].mxu0 %v3075
  %v3149 = vpop.f32.mrb[0].mxu0
  %v3150 = vadd.f32 0.0, %v3149
  %v3151 = vpop.f32.mrb[0].mxu0
  %v3152 = vadd.f32 0.0, %v3151
  %3153 = vdwg.mxu0
  %v3154 = vadd.s32 %v2303, 1
  %vm3155 = vcmp.eq.s32.totalorder %v207, %v3154
  %vm3156 = vcmp.eq.s32.totalorder %v208, %v3154
  %vm3157 = vcmp.eq.s32.totalorder %v209, %v3154
  %vm3158 = vcmp.eq.s32.totalorder %v210, %v3154
  %vm3159 = vcmp.eq.s32.totalorder %v211, %v3154
  %vm3160 = vcmp.eq.s32.totalorder %v212, %v3154
  %vm3161 = vcmp.eq.s32.totalorder %v213, %v3154
  %vm3162 = vcmp.eq.s32.totalorder %v214, %v3154
  %vm3163 = vcmp.eq.s32.totalorder %v215, %v3154
  %vm3164 = vcmp.eq.s32.totalorder %v216, %v3154
  %vm3165 = vcmp.eq.s32.totalorder %v217, %v3154
  %vm3166 = vcmp.eq.s32.totalorder %v218, %v3154
  %vm3167 = vcmp.eq.s32.totalorder %v219, %v3154
  %vm3168 = vcmp.eq.s32.totalorder %v220, %v3154
  %vm3169 = vcmp.eq.s32.totalorder %v221, %v3154
  %vm3170 = vcmp.eq.s32.totalorder %v222, %v3154
  %vm3171 = vcmp.eq.s32.totalorder %v223, %v3154
  %vm3172 = vcmp.eq.s32.totalorder %v224, %v3154
  %vm3173 = vcmp.eq.s32.totalorder %v225, %v3154
  %vm3174 = vcmp.eq.s32.totalorder %v226, %v3154
  %vm3175 = vcmp.eq.s32.totalorder %v227, %v3154
  %vm3176 = vcmp.eq.s32.totalorder %v228, %v3154
  %vm3177 = vcmp.eq.s32.totalorder %v229, %v3154
  %vm3178 = vcmp.eq.s32.totalorder %v230, %v3154
  %vm3179 = vcmp.eq.s32.totalorder %v231, %v3154
  %vm3180 = vcmp.eq.s32.totalorder %v232, %v3154
  %vm3181 = vcmp.eq.s32.totalorder %v233, %v3154
  %vm3182 = vcmp.eq.s32.totalorder %v234, %v3154
  %vm3183 = vcmp.eq.s32.totalorder %v235, %v3154
  %vm3184 = vcmp.eq.s32.totalorder %v236, %v3154
  %vm3185 = vcmp.eq.s32.totalorder %v237, %v3154
  %vm3186 = vcmp.eq.s32.totalorder %v238, %v3154
  %vm3187 = vmand %vm143, %vm3155
  %vm3188 = vmand %vm145, %vm3156
  %vm3189 = vmand %vm147, %vm3157
  %vm3190 = vmand %vm149, %vm3158
  %vm3191 = vmand %vm151, %vm3159
  %vm3192 = vmand %vm153, %vm3160
  %vm3193 = vmand %vm155, %vm3161
  %vm3194 = vmand %vm157, %vm3162
  %vm3195 = vmand %vm159, %vm3163
  %vm3196 = vmand %vm161, %vm3164
  %vm3197 = vmand %vm163, %vm3165
  %vm3198 = vmand %vm165, %vm3166
  %vm3199 = vmand %vm167, %vm3167
  %vm3200 = vmand %vm169, %vm3168
  %vm3201 = vmand %vm171, %vm3169
  %vm3202 = vmand %vm173, %vm3170
  %vm3203 = vmand %vm175, %vm3171
  %vm3204 = vmand %vm177, %vm3172
  %vm3205 = vmand %vm179, %vm3173
  %vm3206 = vmand %vm181, %vm3174
  %vm3207 = vmand %vm183, %vm3175
  %vm3208 = vmand %vm185, %vm3176
  %vm3209 = vmand %vm187, %vm3177
  %vm3210 = vmand %vm189, %vm3178
  %vm3211 = vmand %vm191, %vm3179
  %vm3212 = vmand %vm193, %vm3180
  %vm3213 = vmand %vm195, %vm3181
  %vm3214 = vmand %vm197, %vm3182
  %vm3215 = vmand %vm199, %vm3183
  %vm3216 = vmand %vm201, %vm3184
  %vm3217 = vmand %vm203, %vm3185
  %vm3218 = vmand %vm205, %vm3186
  %v3219 = vsel %vm3187, 1.0, 0.0
  %v3220 = vsel %vm3188, 1.0, 0.0
  %v3221 = vsel %vm3189, 1.0, 0.0
  %v3222 = vsel %vm3190, 1.0, 0.0
  %v3223 = vsel %vm3191, 1.0, 0.0
  %v3224 = vsel %vm3192, 1.0, 0.0
  %v3225 = vsel %vm3193, 1.0, 0.0
  %v3226 = vsel %vm3194, 1.0, 0.0
  %v3227 = vsel %vm3195, 1.0, 0.0
  %v3228 = vsel %vm3196, 1.0, 0.0
  %v3229 = vsel %vm3197, 1.0, 0.0
  %v3230 = vsel %vm3198, 1.0, 0.0
  %v3231 = vsel %vm3199, 1.0, 0.0
  %v3232 = vsel %vm3200, 1.0, 0.0
  %v3233 = vsel %vm3201, 1.0, 0.0
  %v3234 = vsel %vm3202, 1.0, 0.0
  %v3235 = vsel %vm3203, 1.0, 0.0
  %v3236 = vsel %vm3204, 1.0, 0.0
  %v3237 = vsel %vm3205, 1.0, 0.0
  %v3238 = vsel %vm3206, 1.0, 0.0
  %v3239 = vsel %vm3207, 1.0, 0.0
  %v3240 = vsel %vm3208, 1.0, 0.0
  %v3241 = vsel %vm3209, 1.0, 0.0
  %v3242 = vsel %vm3210, 1.0, 0.0
  %v3243 = vsel %vm3211, 1.0, 0.0
  %v3244 = vsel %vm3212, 1.0, 0.0
  %v3245 = vsel %vm3213, 1.0, 0.0
  %v3246 = vsel %vm3214, 1.0, 0.0
  %v3247 = vsel %vm3215, 1.0, 0.0
  %v3248 = vsel %vm3216, 1.0, 0.0
  %v3249 = vsel %vm3217, 1.0, 0.0
  %v3250 = vsel %vm3218, 1.0, 0.0
  %3251 = vmatprep.subr.mxu0 0.0
  %3252 = vmatpush1.msra.mxu0 %v3219
  %3253 = vmatprep.subr.mxu0 0.0
  %3254 = vmatpush1.msra.mxu0 %v3220
  %3255 = vmatprep.subr.mxu0 0.0
  %3256 = vmatpush1.msra.mxu0 %v3221
  %3257 = vmatprep.subr.mxu0 0.0
  %3258 = vmatpush1.msra.mxu0 %v3222
  %3259 = vmatprep.subr.mxu0 0.0
  %3260 = vmatpush1.msra.mxu0 %v3223
  %3261 = vmatprep.subr.mxu0 0.0
  %3262 = vmatpush1.msra.mxu0 %v3224
  %3263 = vmatprep.subr.mxu0 0.0
  %3264 = vmatpush1.msra.mxu0 %v3225
  %3265 = vmatprep.subr.mxu0 0.0
  %3266 = vmatpush1.msra.mxu0 %v3226
  %3267 = vmatprep.subr.mxu0 0.0
  %3268 = vmatpush1.msra.mxu0 %v3227
  %3269 = vmatprep.subr.mxu0 0.0
  %3270 = vmatpush1.msra.mxu0 %v3228
  %3271 = vmatprep.subr.mxu0 0.0
  %3272 = vmatpush1.msra.mxu0 %v3229
  %3273 = vmatprep.subr.mxu0 0.0
  %3274 = vmatpush1.msra.mxu0 %v3230
  %3275 = vmatprep.subr.mxu0 0.0
  %3276 = vmatpush1.msra.mxu0 %v3231
  %3277 = vmatprep.subr.mxu0 0.0
  %3278 = vmatpush1.msra.mxu0 %v3232
  %3279 = vmatprep.subr.mxu0 0.0
  %3280 = vmatpush1.msra.mxu0 %v3233
  %3281 = vmatprep.subr.mxu0 0.0
  %3282 = vmatpush1.msra.mxu0 %v3234
  %3283 = vmatprep.subr.mxu0 0.0
  %3284 = vmatpush1.msra.mxu0 %v3235
  %3285 = vmatprep.subr.mxu0 0.0
  %3286 = vmatpush1.msra.mxu0 %v3236
  %3287 = vmatprep.subr.mxu0 0.0
  %3288 = vmatpush1.msra.mxu0 %v3237
  %3289 = vmatprep.subr.mxu0 0.0
  %3290 = vmatpush1.msra.mxu0 %v3238
  %3291 = vmatprep.subr.mxu0 0.0
  %3292 = vmatpush1.msra.mxu0 %v3239
  %3293 = vmatprep.subr.mxu0 0.0
  %3294 = vmatpush1.msra.mxu0 %v3240
  %3295 = vmatprep.subr.mxu0 0.0
  %3296 = vmatpush1.msra.mxu0 %v3241
  %3297 = vmatprep.subr.mxu0 0.0
  %3298 = vmatpush1.msra.mxu0 %v3242
  %3299 = vmatprep.subr.mxu0 0.0
  %3300 = vmatpush1.msra.mxu0 %v3243
  %3301 = vmatprep.subr.mxu0 0.0
  %3302 = vmatpush1.msra.mxu0 %v3244
  %3303 = vmatprep.subr.mxu0 0.0
  %3304 = vmatpush1.msra.mxu0 %v3245
  %3305 = vmatprep.subr.mxu0 0.0
  %3306 = vmatpush1.msra.mxu0 %v3246
  %3307 = vmatprep.subr.mxu0 0.0
  %3308 = vmatpush1.msra.mxu0 %v3247
  %3309 = vmatprep.subr.mxu0 0.0
  %3310 = vmatpush1.msra.mxu0 %v3248
  %3311 = vmatprep.subr.mxu0 0.0
  %3312 = vmatpush1.msra.mxu0 %v3249
  %3313 = vmatprep.subr.mxu0 0.0
  %3314 = vmatpush1.msra.mxu0 %v3250
  %3315 = vmatprep.mubr.f32.mxu0 %v3146
  %3316 = vmatmul.mubr.f32.gmra.mrb[0].mxu0 %v3144
  %v3317 = vpop.f32.mrb[0].mxu0
  %v3318 = vadd.f32 0.0, %v3317
  %v3319 = vpop.f32.mrb[0].mxu0
  %3320 = vmatprep.mubr.f32.mxu0 %v3152
  %3321 = vmatmul.mubr.f32.gmra.mrb[0].mxu0 %v3150
  %v3322 = vpop.f32.mrb[0].mxu0
  %v3323 = vadd.f32 0.0, %v3322
  %v3324 = vpop.f32.mrb[0].mxu0
  %3325 = vdwg.mxu0
  %v3326 = vadd.f32 %v3069, %v3318
  %v3327 = vadd.f32 %v3070, %v3323
  %v3329 = vsel %vm2304, %v2299, 0
  %v3332 = vsel %vm2304, %v2300, 0
  %3334 = vmatprep.subr.mxu0 %v2288
  %3335 = vmatpush1.msra.mxu0 %v2287
  %3336 = vmatprep.subr.mxu0 %v2290
  %3337 = vmatpush1.msra.mxu0 %v2289
  %3338 = vmatprep.subr.mxu0 0.0
  %3339 = vmatpush1.msra.mxu0 0.0
  %3340 = vmatprep.subr.mxu0 0.0
  %3341 = vmatpush1.msra.mxu0 0.0
  %3342 = vmatprep.subr.mxu0 0.0
  %3343 = vmatpush1.msra.mxu0 0.0
  %3344 = vmatprep.subr.mxu0 0.0
  %3345 = vmatpush1.msra.mxu0 0.0
  %3346 = vmatprep.subr.mxu0 0.0
  %3347 = vmatpush1.msra.mxu0 0.0
  %3348 = vmatprep.subr.mxu0 0.0
  %3349 = vmatpush1.msra.mxu0 0.0
  %3350 = vmatprep.subr.mxu0 0.0
  %3351 = vmatpush1.msra.mxu0 0.0
  %3352 = vmatprep.subr.mxu0 0.0
  %3353 = vmatpush1.msra.mxu0 0.0
  %3354 = vmatprep.subr.mxu0 0.0
  %3355 = vmatpush1.msra.mxu0 0.0
  %3356 = vmatprep.subr.mxu0 0.0
  %3357 = vmatpush1.msra.mxu0 0.0
  %3358 = vmatprep.subr.mxu0 0.0
  %3359 = vmatpush1.msra.mxu0 0.0
  %3360 = vmatprep.subr.mxu0 0.0
  %3361 = vmatpush1.msra.mxu0 0.0
  %3362 = vmatprep.subr.mxu0 0.0
  %3363 = vmatpush1.msra.mxu0 0.0
  %3364 = vmatprep.subr.mxu0 0.0
  %3365 = vmatpush1.msra.mxu0 0.0
  %3366 = vmatprep.subr.mxu0 0.0
  %3367 = vmatpush1.msra.mxu0 0.0
  %3368 = vmatprep.subr.mxu0 0.0
  %3369 = vmatpush1.msra.mxu0 0.0
  %3370 = vmatprep.subr.mxu0 0.0
  %3371 = vmatpush1.msra.mxu0 0.0
  %3372 = vmatprep.subr.mxu0 0.0
  %3373 = vmatpush1.msra.mxu0 0.0
  %3374 = vmatprep.subr.mxu0 0.0
  %3375 = vmatpush1.msra.mxu0 0.0
  %3376 = vmatprep.subr.mxu0 0.0
  %3377 = vmatpush1.msra.mxu0 0.0
  %3378 = vmatprep.subr.mxu0 0.0
  %3379 = vmatpush1.msra.mxu0 0.0
  %3380 = vmatprep.subr.mxu0 0.0
  %3381 = vmatpush1.msra.mxu0 0.0
  %3382 = vmatprep.subr.mxu0 0.0
  %3383 = vmatpush1.msra.mxu0 0.0
  %3384 = vmatprep.subr.mxu0 0.0
  %3385 = vmatpush1.msra.mxu0 0.0
  %3386 = vmatprep.subr.mxu0 0.0
  %3387 = vmatpush1.msra.mxu0 0.0
  %3388 = vmatprep.subr.mxu0 0.0
  %3389 = vmatpush1.msra.mxu0 0.0
  %3390 = vmatprep.subr.mxu0 0.0
  %3391 = vmatpush1.msra.mxu0 0.0
  %3392 = vmatprep.subr.mxu0 0.0
  %3393 = vmatpush1.msra.mxu0 0.0
  %3394 = vmatprep.subr.mxu0 0.0
  %3395 = vmatpush1.msra.mxu0 0.0
  %3396 = vmatprep.subr.mxu0 0.0
  %3397 = vmatpush1.msra.mxu0 0.0
  %3398 = vmatprep.mubr.f32.mxu0 0.0
  %3399 = vmatmul.mubr.f32.gmra.mrb[0].mxu0 %v3329
  %v3400 = vpop.f32.mrb[0].mxu0
  %v3401 = vadd.f32 0.0, %v3400
  %v3402 = vpop.f32.mrb[0].mxu0
  %v3403 = vadd.f32 0.0, %v3402
  %3404 = vmatprep.mubr.f32.mxu0 0.0
  %3405 = vmatmul.mubr.f32.gmra.mrb[0].mxu0 %v3332
  %v3406 = vpop.f32.mrb[0].mxu0
  %v3407 = vadd.f32 0.0, %v3406
  %v3408 = vpop.f32.mrb[0].mxu0
  %v3409 = vadd.f32 0.0, %v3408
  %3410 = vdwg.mxu0
  %v3411 = vadd.s32 %v2303, 2
  %vm3412 = vcmp.eq.s32.totalorder %v207, %v3411
  %vm3413 = vcmp.eq.s32.totalorder %v208, %v3411
  %vm3414 = vcmp.eq.s32.totalorder %v209, %v3411
  %vm3415 = vcmp.eq.s32.totalorder %v210, %v3411
  %vm3416 = vcmp.eq.s32.totalorder %v211, %v3411
  %vm3417 = vcmp.eq.s32.totalorder %v212, %v3411
  %vm3418 = vcmp.eq.s32.totalorder %v213, %v3411
  %vm3419 = vcmp.eq.s32.totalorder %v214, %v3411
  %vm3420 = vcmp.eq.s32.totalorder %v215, %v3411
  %vm3421 = vcmp.eq.s32.totalorder %v216, %v3411
  %vm3422 = vcmp.eq.s32.totalorder %v217, %v3411
  %vm3423 = vcmp.eq.s32.totalorder %v218, %v3411
  %vm3424 = vcmp.eq.s32.totalorder %v219, %v3411
  %vm3425 = vcmp.eq.s32.totalorder %v220, %v3411
  %vm3426 = vcmp.eq.s32.totalorder %v221, %v3411
  %vm3427 = vcmp.eq.s32.totalorder %v222, %v3411
  %vm3428 = vcmp.eq.s32.totalorder %v223, %v3411
  %vm3429 = vcmp.eq.s32.totalorder %v224, %v3411
  %vm3430 = vcmp.eq.s32.totalorder %v225, %v3411
  %vm3431 = vcmp.eq.s32.totalorder %v226, %v3411
  %vm3432 = vcmp.eq.s32.totalorder %v227, %v3411
  %vm3433 = vcmp.eq.s32.totalorder %v228, %v3411
  %vm3434 = vcmp.eq.s32.totalorder %v229, %v3411
  %vm3435 = vcmp.eq.s32.totalorder %v230, %v3411
  %vm3436 = vcmp.eq.s32.totalorder %v231, %v3411
  %vm3437 = vcmp.eq.s32.totalorder %v232, %v3411
  %vm3438 = vcmp.eq.s32.totalorder %v233, %v3411
  %vm3439 = vcmp.eq.s32.totalorder %v234, %v3411
  %vm3440 = vcmp.eq.s32.totalorder %v235, %v3411
  %vm3441 = vcmp.eq.s32.totalorder %v236, %v3411
  %vm3442 = vcmp.eq.s32.totalorder %v237, %v3411
  %vm3443 = vcmp.eq.s32.totalorder %v238, %v3411
  %vm3444 = vmand %vm143, %vm3412
  %vm3445 = vmand %vm145, %vm3413
  %vm3446 = vmand %vm147, %vm3414
  %vm3447 = vmand %vm149, %vm3415
  %vm3448 = vmand %vm151, %vm3416
  %vm3449 = vmand %vm153, %vm3417
  %vm3450 = vmand %vm155, %vm3418
  %vm3451 = vmand %vm157, %vm3419
  %vm3452 = vmand %vm159, %vm3420
  %vm3453 = vmand %vm161, %vm3421
  %vm3454 = vmand %vm163, %vm3422
  %vm3455 = vmand %vm165, %vm3423
  %vm3456 = vmand %vm167, %vm3424
  %vm3457 = vmand %vm169, %vm3425
  %vm3458 = vmand %vm171, %vm3426
  %vm3459 = vmand %vm173, %vm3427
  %vm3460 = vmand %vm175, %vm3428
  %vm3461 = vmand %vm177, %vm3429
  %vm3462 = vmand %vm179, %vm3430
  %vm3463 = vmand %vm181, %vm3431
  %vm3464 = vmand %vm183, %vm3432
  %vm3465 = vmand %vm185, %vm3433
  %vm3466 = vmand %vm187, %vm3434
  %vm3467 = vmand %vm189, %vm3435
  %vm3468 = vmand %vm191, %vm3436
  %vm3469 = vmand %vm193, %vm3437
  %vm3470 = vmand %vm195, %vm3438
  %vm3471 = vmand %vm197, %vm3439
  %vm3472 = vmand %vm199, %vm3440
  %vm3473 = vmand %vm201, %vm3441
  %vm3474 = vmand %vm203, %vm3442
  %vm3475 = vmand %vm205, %vm3443
  %v3476 = vsel %vm3444, 1.0, 0.0
  %v3477 = vsel %vm3445, 1.0, 0.0
  %v3478 = vsel %vm3446, 1.0, 0.0
  %v3479 = vsel %vm3447, 1.0, 0.0
  %v3480 = vsel %vm3448, 1.0, 0.0
  %v3481 = vsel %vm3449, 1.0, 0.0
  %v3482 = vsel %vm3450, 1.0, 0.0
  %v3483 = vsel %vm3451, 1.0, 0.0
  %v3484 = vsel %vm3452, 1.0, 0.0
  %v3485 = vsel %vm3453, 1.0, 0.0
  %v3486 = vsel %vm3454, 1.0, 0.0
  %v3487 = vsel %vm3455, 1.0, 0.0
  %v3488 = vsel %vm3456, 1.0, 0.0
  %v3489 = vsel %vm3457, 1.0, 0.0
  %v3490 = vsel %vm3458, 1.0, 0.0
  %v3491 = vsel %vm3459, 1.0, 0.0
  %v3492 = vsel %vm3460, 1.0, 0.0
  %v3493 = vsel %vm3461, 1.0, 0.0
  %v3494 = vsel %vm3462, 1.0, 0.0
  %v3495 = vsel %vm3463, 1.0, 0.0
  %v3496 = vsel %vm3464, 1.0, 0.0
  %v3497 = vsel %vm3465, 1.0, 0.0
  %v3498 = vsel %vm3466, 1.0, 0.0
  %v3499 = vsel %vm3467, 1.0, 0.0
  %v3500 = vsel %vm3468, 1.0, 0.0
  %v3501 = vsel %vm3469, 1.0, 0.0
  %v3502 = vsel %vm3470, 1.0, 0.0
  %v3503 = vsel %vm3471, 1.0, 0.0
  %v3504 = vsel %vm3472, 1.0, 0.0
  %v3505 = vsel %vm3473, 1.0, 0.0
  %v3506 = vsel %vm3474, 1.0, 0.0
  %v3507 = vsel %vm3475, 1.0, 0.0
  %3508 = vmatprep.subr.mxu0 0.0
  %3509 = vmatpush1.msra.mxu0 %v3476
  %3510 = vmatprep.subr.mxu0 0.0
  %3511 = vmatpush1.msra.mxu0 %v3477
  %3512 = vmatprep.subr.mxu0 0.0
  %3513 = vmatpush1.msra.mxu0 %v3478
  %3514 = vmatprep.subr.mxu0 0.0
  %3515 = vmatpush1.msra.mxu0 %v3479
  %3516 = vmatprep.subr.mxu0 0.0
  %3517 = vmatpush1.msra.mxu0 %v3480
  %3518 = vmatprep.subr.mxu0 0.0
  %3519 = vmatpush1.msra.mxu0 %v3481
  %3520 = vmatprep.subr.mxu0 0.0
  %3521 = vmatpush1.msra.mxu0 %v3482
  %3522 = vmatprep.subr.mxu0 0.0
  %3523 = vmatpush1.msra.mxu0 %v3483
  %3524 = vmatprep.subr.mxu0 0.0
  %3525 = vmatpush1.msra.mxu0 %v3484
  %3526 = vmatprep.subr.mxu0 0.0
  %3527 = vmatpush1.msra.mxu0 %v3485
  %3528 = vmatprep.subr.mxu0 0.0
  %3529 = vmatpush1.msra.mxu0 %v3486
  %3530 = vmatprep.subr.mxu0 0.0
  %3531 = vmatpush1.msra.mxu0 %v3487
  %3532 = vmatprep.subr.mxu0 0.0
  %3533 = vmatpush1.msra.mxu0 %v3488
  %3534 = vmatprep.subr.mxu0 0.0
  %3535 = vmatpush1.msra.mxu0 %v3489
  %3536 = vmatprep.subr.mxu0 0.0
  %3537 = vmatpush1.msra.mxu0 %v3490
  %3538 = vmatprep.subr.mxu0 0.0
  %3539 = vmatpush1.msra.mxu0 %v3491
  %3540 = vmatprep.subr.mxu0 0.0
  %3541 = vmatpush1.msra.mxu0 %v3492
  %3542 = vmatprep.subr.mxu0 0.0
  %3543 = vmatpush1.msra.mxu0 %v3493
  %3544 = vmatprep.subr.mxu0 0.0
  %3545 = vmatpush1.msra.mxu0 %v3494
  %3546 = vmatprep.subr.mxu0 0.0
  %3547 = vmatpush1.msra.mxu0 %v3495
  %3548 = vmatprep.subr.mxu0 0.0
  %3549 = vmatpush1.msra.mxu0 %v3496
  %3550 = vmatprep.subr.mxu0 0.0
  %3551 = vmatpush1.msra.mxu0 %v3497
  %3552 = vmatprep.subr.mxu0 0.0
  %3553 = vmatpush1.msra.mxu0 %v3498
  %3554 = vmatprep.subr.mxu0 0.0
  %3555 = vmatpush1.msra.mxu0 %v3499
  %3556 = vmatprep.subr.mxu0 0.0
  %3557 = vmatpush1.msra.mxu0 %v3500
  %3558 = vmatprep.subr.mxu0 0.0
  %3559 = vmatpush1.msra.mxu0 %v3501
  %3560 = vmatprep.subr.mxu0 0.0
  %3561 = vmatpush1.msra.mxu0 %v3502
  %3562 = vmatprep.subr.mxu0 0.0
  %3563 = vmatpush1.msra.mxu0 %v3503
  %3564 = vmatprep.subr.mxu0 0.0
  %3565 = vmatpush1.msra.mxu0 %v3504
  %3566 = vmatprep.subr.mxu0 0.0
  %3567 = vmatpush1.msra.mxu0 %v3505
  %3568 = vmatprep.subr.mxu0 0.0
  %3569 = vmatpush1.msra.mxu0 %v3506
  %3570 = vmatprep.subr.mxu0 0.0
  %3571 = vmatpush1.msra.mxu0 %v3507
  %3572 = vmatprep.mubr.f32.mxu0 %v3403
  %3573 = vmatmul.mubr.f32.gmra.mrb[0].mxu0 %v3401
  %v3574 = vpop.f32.mrb[0].mxu0
  %v3575 = vadd.f32 0.0, %v3574
  %v3576 = vpop.f32.mrb[0].mxu0
  %3577 = vmatprep.mubr.f32.mxu0 %v3409
  %3578 = vmatmul.mubr.f32.gmra.mrb[0].mxu0 %v3407
  %v3579 = vpop.f32.mrb[0].mxu0
  %v3580 = vadd.f32 0.0, %v3579
  %v3581 = vpop.f32.mrb[0].mxu0
  %3582 = vdwg.mxu0
  %v3583 = vadd.f32 %v3326, %v3575
  %v3584 = vadd.f32 %v3327, %v3580
  %3586 = vset.pattern.permute.xlu0 0
  %3587 = vperm.xlu0 %3586, %v2301
  %v3588 = vpop.permute.xlu0 %3587
  %3591 = vset.pattern.permute.xlu0 0
  %3592 = vperm.xlu0 %3591, %v2302
  %v3593 = vpop.permute.xlu0 %3592
  %v3595 = vadd.f32 %v3583, %v3588
  %v3596 = vadd.f32 %v3584, %v3593
  %vm3597 = vcmp.ge.f32.partialorder %v3595, 0.0
  %vm3598 = vcmp.ge.f32.partialorder %v3596, 0.0
  %v3599 = vmul.f32 %v3595, 0.01
  %v3600 = vmul.f32 %v3596, 0.01
  %v3601 = vsel %vm3597, %v3595, %v3599
  %v3602 = vsel %vm3598, %v3596, %v3600
  %v3603 = vld [vmem:[%s5] sm:$0xff]
  %v3604 = vld [vmem:[%s5 + $0x8] sm:$0xff]
  %v3605 = vld [vmem:[%s5 + $0x10] sm:$0xff]
  %v3606 = vld [vmem:[%s5 + $0x18] sm:$0xff]
  %v3607 = vld [vmem:[%s5 + $0x20] sm:$0xff]
  %v3608 = vld [vmem:[%s5 + $0x28] sm:$0xff]
  %v3609 = vld [vmem:[%s5 + $0x30] sm:$0xff]
  %v3610 = vld [vmem:[%s5 + $0x38] sm:$0xff]
  %v3611 = vld [vmem:[%s5 + $0x40] sm:$0xff]
  %v3612 = vld [vmem:[%s5 + $0x48] sm:$0xff]
  %v3613 = vld [vmem:[%s6] sm:$0xff]
  %v3614 = vld [vmem:[%s6 + $0x8] sm:$0xff]
  %v3616 = vsel %vm2304, %v3603, 0
  %v3619 = vsel %vm2304, %v3604, 0
  %3621 = vmatprep.subr.mxu0 0.0
  %3622 = vmatpush1.msra.mxu0 %v3601
  %3623 = vmatprep.subr.mxu0 0.0
  %3624 = vmatpush1.msra.mxu0 %v3602
  %3625 = vmatprep.subr.mxu0 0.0
  %3626 = vmatpush1.msra.mxu0 0.0
  %3627 = vmatprep.subr.mxu0 0.0
  %3628 = vmatpush1.msra.mxu0 0.0
  %3629 = vmatprep.subr.mxu0 0.0
  %3630 = vmatpush1.msra.mxu0 0.0
  %3631 = vmatprep.subr.mxu0 0.0
  %3632 = vmatpush1.msra.mxu0 0.0
  %3633 = vmatprep.subr.mxu0 0.0
  %3634 = vmatpush1.msra.mxu0 0.0
  %3635 = vmatprep.subr.mxu0 0.0
  %3636 = vmatpush1.msra.mxu0 0.0
  %3637 = vmatprep.subr.mxu0 0.0
  %3638 = vmatpush1.msra.mxu0 0.0
  %3639 = vmatprep.subr.mxu0 0.0
  %3640 = vmatpush1.msra.mxu0 0.0
  %3641 = vmatprep.subr.mxu0 0.0
  %3642 = vmatpush1.msra.mxu0 0.0
  %3643 = vmatprep.subr.mxu0 0.0
  %3644 = vmatpush1.msra.mxu0 0.0
  %3645 = vmatprep.subr.mxu0 0.0
  %3646 = vmatpush1.msra.mxu0 0.0
  %3647 = vmatprep.subr.mxu0 0.0
  %3648 = vmatpush1.msra.mxu0 0.0
  %3649 = vmatprep.subr.mxu0 0.0
  %3650 = vmatpush1.msra.mxu0 0.0
  %3651 = vmatprep.subr.mxu0 0.0
  %3652 = vmatpush1.msra.mxu0 0.0
  %3653 = vmatprep.subr.mxu0 0.0
  %3654 = vmatpush1.msra.mxu0 0.0
  %3655 = vmatprep.subr.mxu0 0.0
  %3656 = vmatpush1.msra.mxu0 0.0
  %3657 = vmatprep.subr.mxu0 0.0
  %3658 = vmatpush1.msra.mxu0 0.0
  %3659 = vmatprep.subr.mxu0 0.0
  %3660 = vmatpush1.msra.mxu0 0.0
  %3661 = vmatprep.subr.mxu0 0.0
  %3662 = vmatpush1.msra.mxu0 0.0
  %3663 = vmatprep.subr.mxu0 0.0
  %3664 = vmatpush1.msra.mxu0 0.0
  %3665 = vmatprep.subr.mxu0 0.0
  %3666 = vmatpush1.msra.mxu0 0.0
  %3667 = vmatprep.subr.mxu0 0.0
  %3668 = vmatpush1.msra.mxu0 0.0
  %3669 = vmatprep.subr.mxu0 0.0
  %3670 = vmatpush1.msra.mxu0 0.0
  %3671 = vmatprep.subr.mxu0 0.0
  %3672 = vmatpush1.msra.mxu0 0.0
  %3673 = vmatprep.subr.mxu0 0.0
  %3674 = vmatpush1.msra.mxu0 0.0
  %3675 = vmatprep.subr.mxu0 0.0
  %3676 = vmatpush1.msra.mxu0 0.0
  %3677 = vmatprep.subr.mxu0 0.0
  %3678 = vmatpush1.msra.mxu0 0.0
  %3679 = vmatprep.subr.mxu0 0.0
  %3680 = vmatpush1.msra.mxu0 0.0
  %3681 = vmatprep.subr.mxu0 0.0
  %3682 = vmatpush1.msra.mxu0 0.0
  %3683 = vmatprep.subr.mxu0 0.0
  %3684 = vmatpush1.msra.mxu0 0.0
  %3685 = vmatprep.mubr.f32.mxu0 0.0
  %3686 = vmatmul.mubr.f32.gmra.mrb[0].mxu0 %v3616
  %v3687 = vpop.f32.mrb[0].mxu0
  %v3688 = vadd.f32 0.0, %v3687
  %v3689 = vpop.f32.mrb[0].mxu0
  %3690 = vmatprep.mubr.f32.mxu0 0.0
  %3691 = vmatmul.mubr.f32.gmra.mrb[0].mxu0 %v3619
  %v3692 = vpop.f32.mrb[0].mxu0
  %v3693 = vadd.f32 0.0, %v3692
  %v3694 = vpop.f32.mrb[0].mxu0
  %3695 = vdwg.mxu0
  %v3697 = vsel %vm2304, %v3605, 0
  %v3700 = vsel %vm2304, %v3606, 0
  %3702 = vmatprep.subr.mxu0 0.0
  %3703 = vmatpush1.msra.mxu0 %v3601
  %3704 = vmatprep.subr.mxu0 0.0
  %3705 = vmatpush1.msra.mxu0 %v3602
  %3706 = vmatprep.subr.mxu0 0.0
  %3707 = vmatpush1.msra.mxu0 0.0
  %3708 = vmatprep.subr.mxu0 0.0
  %3709 = vmatpush1.msra.mxu0 0.0
  %3710 = vmatprep.subr.mxu0 0.0
  %3711 = vmatpush1.msra.mxu0 0.0
  %3712 = vmatprep.subr.mxu0 0.0
  %3713 = vmatpush1.msra.mxu0 0.0
  %3714 = vmatprep.subr.mxu0 0.0
  %3715 = vmatpush1.msra.mxu0 0.0
  %3716 = vmatprep.subr.mxu0 0.0
  %3717 = vmatpush1.msra.mxu0 0.0
  %3718 = vmatprep.subr.mxu0 0.0
  %3719 = vmatpush1.msra.mxu0 0.0
  %3720 = vmatprep.subr.mxu0 0.0
  %3721 = vmatpush1.msra.mxu0 0.0
  %3722 = vmatprep.subr.mxu0 0.0
  %3723 = vmatpush1.msra.mxu0 0.0
  %3724 = vmatprep.subr.mxu0 0.0
  %3725 = vmatpush1.msra.mxu0 0.0
  %3726 = vmatprep.subr.mxu0 0.0
  %3727 = vmatpush1.msra.mxu0 0.0
  %3728 = vmatprep.subr.mxu0 0.0
  %3729 = vmatpush1.msra.mxu0 0.0
  %3730 = vmatprep.subr.mxu0 0.0
  %3731 = vmatpush1.msra.mxu0 0.0
  %3732 = vmatprep.subr.mxu0 0.0
  %3733 = vmatpush1.msra.mxu0 0.0
  %3734 = vmatprep.subr.mxu0 0.0
  %3735 = vmatpush1.msra.mxu0 0.0
  %3736 = vmatprep.subr.mxu0 0.0
  %3737 = vmatpush1.msra.mxu0 0.0
  %3738 = vmatprep.subr.mxu0 0.0
  %3739 = vmatpush1.msra.mxu0 0.0
  %3740 = vmatprep.subr.mxu0 0.0
  %3741 = vmatpush1.msra.mxu0 0.0
  %3742 = vmatprep.subr.mxu0 0.0
  %3743 = vmatpush1.msra.mxu0 0.0
  %3744 = vmatprep.subr.mxu0 0.0
  %3745 = vmatpush1.msra.mxu0 0.0
  %3746 = vmatprep.subr.mxu0 0.0
  %3747 = vmatpush1.msra.mxu0 0.0
  %3748 = vmatprep.subr.mxu0 0.0
  %3749 = vmatpush1.msra.mxu0 0.0
  %3750 = vmatprep.subr.mxu0 0.0
  %3751 = vmatpush1.msra.mxu0 0.0
  %3752 = vmatprep.subr.mxu0 0.0
  %3753 = vmatpush1.msra.mxu0 0.0
  %3754 = vmatprep.subr.mxu0 0.0
  %3755 = vmatpush1.msra.mxu0 0.0
  %3756 = vmatprep.subr.mxu0 0.0
  %3757 = vmatpush1.msra.mxu0 0.0
  %3758 = vmatprep.subr.mxu0 0.0
  %3759 = vmatpush1.msra.mxu0 0.0
  %3760 = vmatprep.subr.mxu0 0.0
  %3761 = vmatpush1.msra.mxu0 0.0
  %3762 = vmatprep.subr.mxu0 0.0
  %3763 = vmatpush1.msra.mxu0 0.0
  %3764 = vmatprep.subr.mxu0 0.0
  %3765 = vmatpush1.msra.mxu0 0.0
  %3766 = vmatprep.mubr.f32.mxu0 0.0
  %3767 = vmatmul.mubr.f32.gmra.mrb[0].mxu0 %v3697
  %v3768 = vpop.f32.mrb[0].mxu0
  %v3769 = vadd.f32 0.0, %v3768
  %v3770 = vpop.f32.mrb[0].mxu0
  %3771 = vmatprep.mubr.f32.mxu0 0.0
  %3772 = vmatmul.mubr.f32.gmra.mrb[0].mxu0 %v3700
  %v3773 = vpop.f32.mrb[0].mxu0
  %v3774 = vadd.f32 0.0, %v3773
  %v3775 = vpop.f32.mrb[0].mxu0
  %3776 = vdwg.mxu0
  %3777 = vmatprep.subr.mxu0 0.0
  %3778 = vmatpush1.msra.mxu0 %v2633
  %3779 = vmatprep.subr.mxu0 0.0
  %3780 = vmatpush1.msra.mxu0 %v2634
  %3781 = vmatprep.subr.mxu0 0.0
  %3782 = vmatpush1.msra.mxu0 %v2635
  %3783 = vmatprep.subr.mxu0 0.0
  %3784 = vmatpush1.msra.mxu0 %v2636
  %3785 = vmatprep.subr.mxu0 0.0
  %3786 = vmatpush1.msra.mxu0 %v2637
  %3787 = vmatprep.subr.mxu0 0.0
  %3788 = vmatpush1.msra.mxu0 %v2638
  %3789 = vmatprep.subr.mxu0 0.0
  %3790 = vmatpush1.msra.mxu0 %v2639
  %3791 = vmatprep.subr.mxu0 0.0
  %3792 = vmatpush1.msra.mxu0 %v2640
  %3793 = vmatprep.subr.mxu0 0.0
  %3794 = vmatpush1.msra.mxu0 %v2641
  %3795 = vmatprep.subr.mxu0 0.0
  %3796 = vmatpush1.msra.mxu0 %v2642
  %3797 = vmatprep.subr.mxu0 0.0
  %3798 = vmatpush1.msra.mxu0 %v2643
  %3799 = vmatprep.subr.mxu0 0.0
  %3800 = vmatpush1.msra.mxu0 %v2644
  %3801 = vmatprep.subr.mxu0 0.0
  %3802 = vmatpush1.msra.mxu0 %v2645
  %3803 = vmatprep.subr.mxu0 0.0
  %3804 = vmatpush1.msra.mxu0 %v2646
  %3805 = vmatprep.subr.mxu0 0.0
  %3806 = vmatpush1.msra.mxu0 %v2647
  %3807 = vmatprep.subr.mxu0 0.0
  %3808 = vmatpush1.msra.mxu0 %v2648
  %3809 = vmatprep.subr.mxu0 0.0
  %3810 = vmatpush1.msra.mxu0 0.0
  %3811 = vmatprep.subr.mxu0 0.0
  %3812 = vmatpush1.msra.mxu0 0.0
  %3813 = vmatprep.subr.mxu0 0.0
  %3814 = vmatpush1.msra.mxu0 0.0
  %3815 = vmatprep.subr.mxu0 0.0
  %3816 = vmatpush1.msra.mxu0 0.0
  %3817 = vmatprep.subr.mxu0 0.0
  %3818 = vmatpush1.msra.mxu0 0.0
  %3819 = vmatprep.subr.mxu0 0.0
  %3820 = vmatpush1.msra.mxu0 0.0
  %3821 = vmatprep.subr.mxu0 0.0
  %3822 = vmatpush1.msra.mxu0 0.0
  %3823 = vmatprep.subr.mxu0 0.0
  %3824 = vmatpush1.msra.mxu0 0.0
  %3825 = vmatprep.subr.mxu0 0.0
  %3826 = vmatpush1.msra.mxu0 0.0
  %3827 = vmatprep.subr.mxu0 0.0
  %3828 = vmatpush1.msra.mxu0 0.0
  %3829 = vmatprep.subr.mxu0 0.0
  %3830 = vmatpush1.msra.mxu0 0.0
  %3831 = vmatprep.subr.mxu0 0.0
  %3832 = vmatpush1.msra.mxu0 0.0
  %3833 = vmatprep.subr.mxu0 0.0
  %3834 = vmatpush1.msra.mxu0 0.0
  %3835 = vmatprep.subr.mxu0 0.0
  %3836 = vmatpush1.msra.mxu0 0.0
  %3837 = vmatprep.subr.mxu0 0.0
  %3838 = vmatpush1.msra.mxu0 0.0
  %3839 = vmatprep.subr.mxu0 0.0
  %3840 = vmatpush1.msra.mxu0 0.0
  %3841 = vmatprep.mubr.f32.mxu0 0.0
  %3842 = vmatmul.mubr.f32.gmra.mrb[0].mxu0 %v3769
  %v3843 = vpop.f32.mrb[0].mxu0
  %v3844 = vadd.f32 0.0, %v3843
  %v3845 = vpop.f32.mrb[0].mxu0
  %3846 = vmatprep.mubr.f32.mxu0 0.0
  %3847 = vmatmul.mubr.f32.gmra.mrb[0].mxu0 %v3774
  %v3848 = vpop.f32.mrb[0].mxu0
  %v3849 = vadd.f32 0.0, %v3848
  %v3850 = vpop.f32.mrb[0].mxu0
  %3851 = vdwg.mxu0
  %3852 = vmatprep.subr.mxu0 0.0
  %3853 = vmatpush1.msra.mxu0 %v2453
  %3854 = vmatprep.subr.mxu0 0.0
  %3855 = vmatpush1.msra.mxu0 %v2454
  %3856 = vmatprep.subr.mxu0 0.0
  %3857 = vmatpush1.msra.mxu0 %v2455
  %3858 = vmatprep.subr.mxu0 0.0
  %3859 = vmatpush1.msra.mxu0 %v2456
  %3860 = vmatprep.subr.mxu0 0.0
  %3861 = vmatpush1.msra.mxu0 %v2457
  %3862 = vmatprep.subr.mxu0 0.0
  %3863 = vmatpush1.msra.mxu0 %v2458
  %3864 = vmatprep.subr.mxu0 0.0
  %3865 = vmatpush1.msra.mxu0 %v2459
  %3866 = vmatprep.subr.mxu0 0.0
  %3867 = vmatpush1.msra.mxu0 %v2460
  %3868 = vmatprep.subr.mxu0 0.0
  %3869 = vmatpush1.msra.mxu0 %v2461
  %3870 = vmatprep.subr.mxu0 0.0
  %3871 = vmatpush1.msra.mxu0 %v2462
  %3872 = vmatprep.subr.mxu0 0.0
  %3873 = vmatpush1.msra.mxu0 %v2463
  %3874 = vmatprep.subr.mxu0 0.0
  %3875 = vmatpush1.msra.mxu0 %v2464
  %3876 = vmatprep.subr.mxu0 0.0
  %3877 = vmatpush1.msra.mxu0 %v2465
  %3878 = vmatprep.subr.mxu0 0.0
  %3879 = vmatpush1.msra.mxu0 %v2466
  %3880 = vmatprep.subr.mxu0 0.0
  %3881 = vmatpush1.msra.mxu0 %v2467
  %3882 = vmatprep.subr.mxu0 0.0
  %3883 = vmatpush1.msra.mxu0 %v2468
  %3884 = vmatprep.subr.mxu0 0.0
  %3885 = vmatpush1.msra.mxu0 0.0
  %3886 = vmatprep.subr.mxu0 0.0
  %3887 = vmatpush1.msra.mxu0 0.0
  %3888 = vmatprep.subr.mxu0 0.0
  %3889 = vmatpush1.msra.mxu0 0.0
  %3890 = vmatprep.subr.mxu0 0.0
  %3891 = vmatpush1.msra.mxu0 0.0
  %3892 = vmatprep.subr.mxu0 0.0
  %3893 = vmatpush1.msra.mxu0 0.0
  %3894 = vmatprep.subr.mxu0 0.0
  %3895 = vmatpush1.msra.mxu0 0.0
  %3896 = vmatprep.subr.mxu0 0.0
  %3897 = vmatpush1.msra.mxu0 0.0
  %3898 = vmatprep.subr.mxu0 0.0
  %3899 = vmatpush1.msra.mxu0 0.0
  %3900 = vmatprep.subr.mxu0 0.0
  %3901 = vmatpush1.msra.mxu0 0.0
  %3902 = vmatprep.subr.mxu0 0.0
  %3903 = vmatpush1.msra.mxu0 0.0
  %3904 = vmatprep.subr.mxu0 0.0
  %3905 = vmatpush1.msra.mxu0 0.0
  %3906 = vmatprep.subr.mxu0 0.0
  %3907 = vmatpush1.msra.mxu0 0.0
  %3908 = vmatprep.subr.mxu0 0.0
  %3909 = vmatpush1.msra.mxu0 0.0
  %3910 = vmatprep.subr.mxu0 0.0
  %3911 = vmatpush1.msra.mxu0 0.0
  %3912 = vmatprep.subr.mxu0 0.0
  %3913 = vmatpush1.msra.mxu0 0.0
  %3914 = vmatprep.subr.mxu0 0.0
  %3915 = vmatpush1.msra.mxu0 0.0
  %3916 = vmatprep.mubr.f32.mxu0 0.0
  %3917 = vmatmul.mubr.f32.gmra.mrb[0].mxu0 %v3688
  %v3918 = vpop.f32.mrb[0].mxu0
  %v3919 = vadd.f32 %v3844, %v3918
  %v3920 = vpop.f32.mrb[0].mxu0
  %3921 = vmatprep.mubr.f32.mxu0 0.0
  %3922 = vmatmul.mubr.f32.gmra.mrb[0].mxu0 %v3693
  %v3923 = vpop.f32.mrb[0].mxu0
  %v3924 = vadd.f32 %v3849, %v3923
  %v3925 = vpop.f32.mrb[0].mxu0
  %3926 = vdwg.mxu0
  %v3928 = vsel %vm2304, %v3607, 0
  %v3931 = vsel %vm2304, %v3608, 0
  %3933 = vmatprep.subr.mxu0 0.0
  %3934 = vmatpush1.msra.mxu0 %v3601
  %3935 = vmatprep.subr.mxu0 0.0
  %3936 = vmatpush1.msra.mxu0 %v3602
  %3937 = vmatprep.subr.mxu0 0.0
  %3938 = vmatpush1.msra.mxu0 0.0
  %3939 = vmatprep.subr.mxu0 0.0
  %3940 = vmatpush1.msra.mxu0 0.0
  %3941 = vmatprep.subr.mxu0 0.0
  %3942 = vmatpush1.msra.mxu0 0.0
  %3943 = vmatprep.subr.mxu0 0.0
  %3944 = vmatpush1.msra.mxu0 0.0
  %3945 = vmatprep.subr.mxu0 0.0
  %3946 = vmatpush1.msra.mxu0 0.0
  %3947 = vmatprep.subr.mxu0 0.0
  %3948 = vmatpush1.msra.mxu0 0.0
  %3949 = vmatprep.subr.mxu0 0.0
  %3950 = vmatpush1.msra.mxu0 0.0
  %3951 = vmatprep.subr.mxu0 0.0
  %3952 = vmatpush1.msra.mxu0 0.0
  %3953 = vmatprep.subr.mxu0 0.0
  %3954 = vmatpush1.msra.mxu0 0.0
  %3955 = vmatprep.subr.mxu0 0.0
  %3956 = vmatpush1.msra.mxu0 0.0
  %3957 = vmatprep.subr.mxu0 0.0
  %3958 = vmatpush1.msra.mxu0 0.0
  %3959 = vmatprep.subr.mxu0 0.0
  %3960 = vmatpush1.msra.mxu0 0.0
  %3961 = vmatprep.subr.mxu0 0.0
  %3962 = vmatpush1.msra.mxu0 0.0
  %3963 = vmatprep.subr.mxu0 0.0
  %3964 = vmatpush1.msra.mxu0 0.0
  %3965 = vmatprep.subr.mxu0 0.0
  %3966 = vmatpush1.msra.mxu0 0.0
  %3967 = vmatprep.subr.mxu0 0.0
  %3968 = vmatpush1.msra.mxu0 0.0
  %3969 = vmatprep.subr.mxu0 0.0
  %3970 = vmatpush1.msra.mxu0 0.0
  %3971 = vmatprep.subr.mxu0 0.0
  %3972 = vmatpush1.msra.mxu0 0.0
  %3973 = vmatprep.subr.mxu0 0.0
  %3974 = vmatpush1.msra.mxu0 0.0
  %3975 = vmatprep.subr.mxu0 0.0
  %3976 = vmatpush1.msra.mxu0 0.0
  %3977 = vmatprep.subr.mxu0 0.0
  %3978 = vmatpush1.msra.mxu0 0.0
  %3979 = vmatprep.subr.mxu0 0.0
  %3980 = vmatpush1.msra.mxu0 0.0
  %3981 = vmatprep.subr.mxu0 0.0
  %3982 = vmatpush1.msra.mxu0 0.0
  %3983 = vmatprep.subr.mxu0 0.0
  %3984 = vmatpush1.msra.mxu0 0.0
  %3985 = vmatprep.subr.mxu0 0.0
  %3986 = vmatpush1.msra.mxu0 0.0
  %3987 = vmatprep.subr.mxu0 0.0
  %3988 = vmatpush1.msra.mxu0 0.0
  %3989 = vmatprep.subr.mxu0 0.0
  %3990 = vmatpush1.msra.mxu0 0.0
  %3991 = vmatprep.subr.mxu0 0.0
  %3992 = vmatpush1.msra.mxu0 0.0
  %3993 = vmatprep.subr.mxu0 0.0
  %3994 = vmatpush1.msra.mxu0 0.0
  %3995 = vmatprep.subr.mxu0 0.0
  %3996 = vmatpush1.msra.mxu0 0.0
  %3997 = vmatprep.mubr.f32.mxu0 0.0
  %3998 = vmatmul.mubr.f32.gmra.mrb[0].mxu0 %v3928
  %v3999 = vpop.f32.mrb[0].mxu0
  %v4000 = vadd.f32 0.0, %v3999
  %v4001 = vpop.f32.mrb[0].mxu0
  %4002 = vmatprep.mubr.f32.mxu0 0.0
  %4003 = vmatmul.mubr.f32.gmra.mrb[0].mxu0 %v3931
  %v4004 = vpop.f32.mrb[0].mxu0
  %v4005 = vadd.f32 0.0, %v4004
  %v4006 = vpop.f32.mrb[0].mxu0
  %4007 = vdwg.mxu0
  %4008 = vmatprep.subr.mxu0 0.0
  %4009 = vmatpush1.msra.mxu0 %v2962
  %4010 = vmatprep.subr.mxu0 0.0
  %4011 = vmatpush1.msra.mxu0 %v2963
  %4012 = vmatprep.subr.mxu0 0.0
  %4013 = vmatpush1.msra.mxu0 %v2964
  %4014 = vmatprep.subr.mxu0 0.0
  %4015 = vmatpush1.msra.mxu0 %v2965
  %4016 = vmatprep.subr.mxu0 0.0
  %4017 = vmatpush1.msra.mxu0 %v2966
  %4018 = vmatprep.subr.mxu0 0.0
  %4019 = vmatpush1.msra.mxu0 %v2967
  %4020 = vmatprep.subr.mxu0 0.0
  %4021 = vmatpush1.msra.mxu0 %v2968
  %4022 = vmatprep.subr.mxu0 0.0
  %4023 = vmatpush1.msra.mxu0 %v2969
  %4024 = vmatprep.subr.mxu0 0.0
  %4025 = vmatpush1.msra.mxu0 %v2970
  %4026 = vmatprep.subr.mxu0 0.0
  %4027 = vmatpush1.msra.mxu0 %v2971
  %4028 = vmatprep.subr.mxu0 0.0
  %4029 = vmatpush1.msra.mxu0 %v2972
  %4030 = vmatprep.subr.mxu0 0.0
  %4031 = vmatpush1.msra.mxu0 %v2973
  %4032 = vmatprep.subr.mxu0 0.0
  %4033 = vmatpush1.msra.mxu0 %v2974
  %4034 = vmatprep.subr.mxu0 0.0
  %4035 = vmatpush1.msra.mxu0 %v2975
  %4036 = vmatprep.subr.mxu0 0.0
  %4037 = vmatpush1.msra.mxu0 %v2976
  %4038 = vmatprep.subr.mxu0 0.0
  %4039 = vmatpush1.msra.mxu0 %v2977
  %4040 = vmatprep.subr.mxu0 0.0
  %4041 = vmatpush1.msra.mxu0 0.0
  %4042 = vmatprep.subr.mxu0 0.0
  %4043 = vmatpush1.msra.mxu0 0.0
  %4044 = vmatprep.subr.mxu0 0.0
  %4045 = vmatpush1.msra.mxu0 0.0
  %4046 = vmatprep.subr.mxu0 0.0
  %4047 = vmatpush1.msra.mxu0 0.0
  %4048 = vmatprep.subr.mxu0 0.0
  %4049 = vmatpush1.msra.mxu0 0.0
  %4050 = vmatprep.subr.mxu0 0.0
  %4051 = vmatpush1.msra.mxu0 0.0
  %4052 = vmatprep.subr.mxu0 0.0
  %4053 = vmatpush1.msra.mxu0 0.0
  %4054 = vmatprep.subr.mxu0 0.0
  %4055 = vmatpush1.msra.mxu0 0.0
  %4056 = vmatprep.subr.mxu0 0.0
  %4057 = vmatpush1.msra.mxu0 0.0
  %4058 = vmatprep.subr.mxu0 0.0
  %4059 = vmatpush1.msra.mxu0 0.0
  %4060 = vmatprep.subr.mxu0 0.0
  %4061 = vmatpush1.msra.mxu0 0.0
  %4062 = vmatprep.subr.mxu0 0.0
  %4063 = vmatpush1.msra.mxu0 0.0
  %4064 = vmatprep.subr.mxu0 0.0
  %4065 = vmatpush1.msra.mxu0 0.0
  %4066 = vmatprep.subr.mxu0 0.0
  %4067 = vmatpush1.msra.mxu0 0.0
  %4068 = vmatprep.subr.mxu0 0.0
  %4069 = vmatpush1.msra.mxu0 0.0
  %4070 = vmatprep.subr.mxu0 0.0
  %4071 = vmatpush1.msra.mxu0 0.0
  %4072 = vmatprep.mubr.f32.mxu0 0.0
  %4073 = vmatmul.mubr.f32.gmra.mrb[0].mxu0 %v4000
  %v4074 = vpop.f32.mrb[0].mxu0
  %v4075 = vadd.f32 0.0, %v4074
  %v4076 = vpop.f32.mrb[0].mxu0
  %4077 = vmatprep.mubr.f32.mxu0 0.0
  %4078 = vmatmul.mubr.f32.gmra.mrb[0].mxu0 %v4005
  %v4079 = vpop.f32.mrb[0].mxu0
  %v4080 = vadd.f32 0.0, %v4079
  %v4081 = vpop.f32.mrb[0].mxu0
  %4082 = vdwg.mxu0
  %v4083 = vadd.f32 %v3919, %v4075
  %v4084 = vadd.f32 %v3924, %v4080
  %v4086 = vsel %vm2304, %v3609, 0
  %v4089 = vsel %vm2304, %v3610, 0
  %4091 = vmatprep.subr.mxu0 0.0
  %4092 = vmatpush1.msra.mxu0 %v3601
  %4093 = vmatprep.subr.mxu0 0.0
  %4094 = vmatpush1.msra.mxu0 %v3602
  %4095 = vmatprep.subr.mxu0 0.0
  %4096 = vmatpush1.msra.mxu0 0.0
  %4097 = vmatprep.subr.mxu0 0.0
  %4098 = vmatpush1.msra.mxu0 0.0
  %4099 = vmatprep.subr.mxu0 0.0
  %4100 = vmatpush1.msra.mxu0 0.0
  %4101 = vmatprep.subr.mxu0 0.0
  %4102 = vmatpush1.msra.mxu0 0.0
  %4103 = vmatprep.subr.mxu0 0.0
  %4104 = vmatpush1.msra.mxu0 0.0
  %4105 = vmatprep.subr.mxu0 0.0
  %4106 = vmatpush1.msra.mxu0 0.0
  %4107 = vmatprep.subr.mxu0 0.0
  %4108 = vmatpush1.msra.mxu0 0.0
  %4109 = vmatprep.subr.mxu0 0.0
  %4110 = vmatpush1.msra.mxu0 0.0
  %4111 = vmatprep.subr.mxu0 0.0
  %4112 = vmatpush1.msra.mxu0 0.0
  %4113 = vmatprep.subr.mxu0 0.0
  %4114 = vmatpush1.msra.mxu0 0.0
  %4115 = vmatprep.subr.mxu0 0.0
  %4116 = vmatpush1.msra.mxu0 0.0
  %4117 = vmatprep.subr.mxu0 0.0
  %4118 = vmatpush1.msra.mxu0 0.0
  %4119 = vmatprep.subr.mxu0 0.0
  %4120 = vmatpush1.msra.mxu0 0.0
  %4121 = vmatprep.subr.mxu0 0.0
  %4122 = vmatpush1.msra.mxu0 0.0
  %4123 = vmatprep.subr.mxu0 0.0
  %4124 = vmatpush1.msra.mxu0 0.0
  %4125 = vmatprep.subr.mxu0 0.0
  %4126 = vmatpush1.msra.mxu0 0.0
  %4127 = vmatprep.subr.mxu0 0.0
  %4128 = vmatpush1.msra.mxu0 0.0
  %4129 = vmatprep.subr.mxu0 0.0
  %4130 = vmatpush1.msra.mxu0 0.0
  %4131 = vmatprep.subr.mxu0 0.0
  %4132 = vmatpush1.msra.mxu0 0.0
  %4133 = vmatprep.subr.mxu0 0.0
  %4134 = vmatpush1.msra.mxu0 0.0
  %4135 = vmatprep.subr.mxu0 0.0
  %4136 = vmatpush1.msra.mxu0 0.0
  %4137 = vmatprep.subr.mxu0 0.0
  %4138 = vmatpush1.msra.mxu0 0.0
  %4139 = vmatprep.subr.mxu0 0.0
  %4140 = vmatpush1.msra.mxu0 0.0
  %4141 = vmatprep.subr.mxu0 0.0
  %4142 = vmatpush1.msra.mxu0 0.0
  %4143 = vmatprep.subr.mxu0 0.0
  %4144 = vmatpush1.msra.mxu0 0.0
  %4145 = vmatprep.subr.mxu0 0.0
  %4146 = vmatpush1.msra.mxu0 0.0
  %4147 = vmatprep.subr.mxu0 0.0
  %4148 = vmatpush1.msra.mxu0 0.0
  %4149 = vmatprep.subr.mxu0 0.0
  %4150 = vmatpush1.msra.mxu0 0.0
  %4151 = vmatprep.subr.mxu0 0.0
  %4152 = vmatpush1.msra.mxu0 0.0
  %4153 = vmatprep.subr.mxu0 0.0
  %4154 = vmatpush1.msra.mxu0 0.0
  %4155 = vmatprep.mubr.f32.mxu0 0.0
  %4156 = vmatmul.mubr.f32.gmra.mrb[0].mxu0 %v4086
  %v4157 = vpop.f32.mrb[0].mxu0
  %v4158 = vadd.f32 0.0, %v4157
  %v4159 = vpop.f32.mrb[0].mxu0
  %4160 = vmatprep.mubr.f32.mxu0 0.0
  %4161 = vmatmul.mubr.f32.gmra.mrb[0].mxu0 %v4089
  %v4162 = vpop.f32.mrb[0].mxu0
  %v4163 = vadd.f32 0.0, %v4162
  %v4164 = vpop.f32.mrb[0].mxu0
  %4165 = vdwg.mxu0
  %4166 = vmatprep.subr.mxu0 0.0
  %4167 = vmatpush1.msra.mxu0 %v3219
  %4168 = vmatprep.subr.mxu0 0.0
  %4169 = vmatpush1.msra.mxu0 %v3220
  %4170 = vmatprep.subr.mxu0 0.0
  %4171 = vmatpush1.msra.mxu0 %v3221
  %4172 = vmatprep.subr.mxu0 0.0
  %4173 = vmatpush1.msra.mxu0 %v3222
  %4174 = vmatprep.subr.mxu0 0.0
  %4175 = vmatpush1.msra.mxu0 %v3223
  %4176 = vmatprep.subr.mxu0 0.0
  %4177 = vmatpush1.msra.mxu0 %v3224
  %4178 = vmatprep.subr.mxu0 0.0
  %4179 = vmatpush1.msra.mxu0 %v3225
  %4180 = vmatprep.subr.mxu0 0.0
  %4181 = vmatpush1.msra.mxu0 %v3226
  %4182 = vmatprep.subr.mxu0 0.0
  %4183 = vmatpush1.msra.mxu0 %v3227
  %4184 = vmatprep.subr.mxu0 0.0
  %4185 = vmatpush1.msra.mxu0 %v3228
  %4186 = vmatprep.subr.mxu0 0.0
  %4187 = vmatpush1.msra.mxu0 %v3229
  %4188 = vmatprep.subr.mxu0 0.0
  %4189 = vmatpush1.msra.mxu0 %v3230
  %4190 = vmatprep.subr.mxu0 0.0
  %4191 = vmatpush1.msra.mxu0 %v3231
  %4192 = vmatprep.subr.mxu0 0.0
  %4193 = vmatpush1.msra.mxu0 %v3232
  %4194 = vmatprep.subr.mxu0 0.0
  %4195 = vmatpush1.msra.mxu0 %v3233
  %4196 = vmatprep.subr.mxu0 0.0
  %4197 = vmatpush1.msra.mxu0 %v3234
  %4198 = vmatprep.subr.mxu0 0.0
  %4199 = vmatpush1.msra.mxu0 0.0
  %4200 = vmatprep.subr.mxu0 0.0
  %4201 = vmatpush1.msra.mxu0 0.0
  %4202 = vmatprep.subr.mxu0 0.0
  %4203 = vmatpush1.msra.mxu0 0.0
  %4204 = vmatprep.subr.mxu0 0.0
  %4205 = vmatpush1.msra.mxu0 0.0
  %4206 = vmatprep.subr.mxu0 0.0
  %4207 = vmatpush1.msra.mxu0 0.0
  %4208 = vmatprep.subr.mxu0 0.0
  %4209 = vmatpush1.msra.mxu0 0.0
  %4210 = vmatprep.subr.mxu0 0.0
  %4211 = vmatpush1.msra.mxu0 0.0
  %4212 = vmatprep.subr.mxu0 0.0
  %4213 = vmatpush1.msra.mxu0 0.0
  %4214 = vmatprep.subr.mxu0 0.0
  %4215 = vmatpush1.msra.mxu0 0.0
  %4216 = vmatprep.subr.mxu0 0.0
  %4217 = vmatpush1.msra.mxu0 0.0
  %4218 = vmatprep.subr.mxu0 0.0
  %4219 = vmatpush1.msra.mxu0 0.0
  %4220 = vmatprep.subr.mxu0 0.0
  %4221 = vmatpush1.msra.mxu0 0.0
  %4222 = vmatprep.subr.mxu0 0.0
  %4223 = vmatpush1.msra.mxu0 0.0
  %4224 = vmatprep.subr.mxu0 0.0
  %4225 = vmatpush1.msra.mxu0 0.0
  %4226 = vmatprep.subr.mxu0 0.0
  %4227 = vmatpush1.msra.mxu0 0.0
  %4228 = vmatprep.subr.mxu0 0.0
  %4229 = vmatpush1.msra.mxu0 0.0
  %4230 = vmatprep.mubr.f32.mxu0 0.0
  %4231 = vmatmul.mubr.f32.gmra.mrb[0].mxu0 %v4158
  %v4232 = vpop.f32.mrb[0].mxu0
  %v4233 = vadd.f32 0.0, %v4232
  %v4234 = vpop.f32.mrb[0].mxu0
  %4235 = vmatprep.mubr.f32.mxu0 0.0
  %4236 = vmatmul.mubr.f32.gmra.mrb[0].mxu0 %v4163
  %v4237 = vpop.f32.mrb[0].mxu0
  %v4238 = vadd.f32 0.0, %v4237
  %v4239 = vpop.f32.mrb[0].mxu0
  %4240 = vdwg.mxu0
  %v4241 = vadd.f32 %v4083, %v4233
  %v4242 = vadd.f32 %v4084, %v4238
  %v4244 = vsel %vm2304, %v3611, 0
  %v4247 = vsel %vm2304, %v3612, 0
  %4249 = vmatprep.subr.mxu0 0.0
  %4250 = vmatpush1.msra.mxu0 %v3601
  %4251 = vmatprep.subr.mxu0 0.0
  %4252 = vmatpush1.msra.mxu0 %v3602
  %4253 = vmatprep.subr.mxu0 0.0
  %4254 = vmatpush1.msra.mxu0 0.0
  %4255 = vmatprep.subr.mxu0 0.0
  %4256 = vmatpush1.msra.mxu0 0.0
  %4257 = vmatprep.subr.mxu0 0.0
  %4258 = vmatpush1.msra.mxu0 0.0
  %4259 = vmatprep.subr.mxu0 0.0
  %4260 = vmatpush1.msra.mxu0 0.0
  %4261 = vmatprep.subr.mxu0 0.0
  %4262 = vmatpush1.msra.mxu0 0.0
  %4263 = vmatprep.subr.mxu0 0.0
  %4264 = vmatpush1.msra.mxu0 0.0
  %4265 = vmatprep.subr.mxu0 0.0
  %4266 = vmatpush1.msra.mxu0 0.0
  %4267 = vmatprep.subr.mxu0 0.0
  %4268 = vmatpush1.msra.mxu0 0.0
  %4269 = vmatprep.subr.mxu0 0.0
  %4270 = vmatpush1.msra.mxu0 0.0
  %4271 = vmatprep.subr.mxu0 0.0
  %4272 = vmatpush1.msra.mxu0 0.0
  %4273 = vmatprep.subr.mxu0 0.0
  %4274 = vmatpush1.msra.mxu0 0.0
  %4275 = vmatprep.subr.mxu0 0.0
  %4276 = vmatpush1.msra.mxu0 0.0
  %4277 = vmatprep.subr.mxu0 0.0
  %4278 = vmatpush1.msra.mxu0 0.0
  %4279 = vmatprep.subr.mxu0 0.0
  %4280 = vmatpush1.msra.mxu0 0.0
  %4281 = vmatprep.subr.mxu0 0.0
  %4282 = vmatpush1.msra.mxu0 0.0
  %4283 = vmatprep.subr.mxu0 0.0
  %4284 = vmatpush1.msra.mxu0 0.0
  %4285 = vmatprep.subr.mxu0 0.0
  %4286 = vmatpush1.msra.mxu0 0.0
  %4287 = vmatprep.subr.mxu0 0.0
  %4288 = vmatpush1.msra.mxu0 0.0
  %4289 = vmatprep.subr.mxu0 0.0
  %4290 = vmatpush1.msra.mxu0 0.0
  %4291 = vmatprep.subr.mxu0 0.0
  %4292 = vmatpush1.msra.mxu0 0.0
  %4293 = vmatprep.subr.mxu0 0.0
  %4294 = vmatpush1.msra.mxu0 0.0
  %4295 = vmatprep.subr.mxu0 0.0
  %4296 = vmatpush1.msra.mxu0 0.0
  %4297 = vmatprep.subr.mxu0 0.0
  %4298 = vmatpush1.msra.mxu0 0.0
  %4299 = vmatprep.subr.mxu0 0.0
  %4300 = vmatpush1.msra.mxu0 0.0
  %4301 = vmatprep.subr.mxu0 0.0
  %4302 = vmatpush1.msra.mxu0 0.0
  %4303 = vmatprep.subr.mxu0 0.0
  %4304 = vmatpush1.msra.mxu0 0.0
  %4305 = vmatprep.subr.mxu0 0.0
  %4306 = vmatpush1.msra.mxu0 0.0
  %4307 = vmatprep.subr.mxu0 0.0
  %4308 = vmatpush1.msra.mxu0 0.0
  %4309 = vmatprep.subr.mxu0 0.0
  %4310 = vmatpush1.msra.mxu0 0.0
  %4311 = vmatprep.subr.mxu0 0.0
  %4312 = vmatpush1.msra.mxu0 0.0
  %4313 = vmatprep.mubr.f32.mxu0 0.0
  %4314 = vmatmul.mubr.f32.gmra.mrb[0].mxu0 %v4244
  %v4315 = vpop.f32.mrb[0].mxu0
  %v4316 = vadd.f32 0.0, %v4315
  %v4317 = vpop.f32.mrb[0].mxu0
  %4318 = vmatprep.mubr.f32.mxu0 0.0
  %4319 = vmatmul.mubr.f32.gmra.mrb[0].mxu0 %v4247
  %v4320 = vpop.f32.mrb[0].mxu0
  %v4321 = vadd.f32 0.0, %v4320
  %v4322 = vpop.f32.mrb[0].mxu0
  %4323 = vdwg.mxu0
  %4324 = vmatprep.subr.mxu0 0.0
  %4325 = vmatpush1.msra.mxu0 %v3476
  %4326 = vmatprep.subr.mxu0 0.0
  %4327 = vmatpush1.msra.mxu0 %v3477
  %4328 = vmatprep.subr.mxu0 0.0
  %4329 = vmatpush1.msra.mxu0 %v3478
  %4330 = vmatprep.subr.mxu0 0.0
  %4331 = vmatpush1.msra.mxu0 %v3479
  %4332 = vmatprep.subr.mxu0 0.0
  %4333 = vmatpush1.msra.mxu0 %v3480
  %4334 = vmatprep.subr.mxu0 0.0
  %4335 = vmatpush1.msra.mxu0 %v3481
  %4336 = vmatprep.subr.mxu0 0.0
  %4337 = vmatpush1.msra.mxu0 %v3482
  %4338 = vmatprep.subr.mxu0 0.0
  %4339 = vmatpush1.msra.mxu0 %v3483
  %4340 = vmatprep.subr.mxu0 0.0
  %4341 = vmatpush1.msra.mxu0 %v3484
  %4342 = vmatprep.subr.mxu0 0.0
  %4343 = vmatpush1.msra.mxu0 %v3485
  %4344 = vmatprep.subr.mxu0 0.0
  %4345 = vmatpush1.msra.mxu0 %v3486
  %4346 = vmatprep.subr.mxu0 0.0
  %4347 = vmatpush1.msra.mxu0 %v3487
  %4348 = vmatprep.subr.mxu0 0.0
  %4349 = vmatpush1.msra.mxu0 %v3488
  %4350 = vmatprep.subr.mxu0 0.0
  %4351 = vmatpush1.msra.mxu0 %v3489
  %4352 = vmatprep.subr.mxu0 0.0
  %4353 = vmatpush1.msra.mxu0 %v3490
  %4354 = vmatprep.subr.mxu0 0.0
  %4355 = vmatpush1.msra.mxu0 %v3491
  %4356 = vmatprep.subr.mxu0 0.0
  %4357 = vmatpush1.msra.mxu0 0.0
  %4358 = vmatprep.subr.mxu0 0.0
  %4359 = vmatpush1.msra.mxu0 0.0
  %4360 = vmatprep.subr.mxu0 0.0
  %4361 = vmatpush1.msra.mxu0 0.0
  %4362 = vmatprep.subr.mxu0 0.0
  %4363 = vmatpush1.msra.mxu0 0.0
  %4364 = vmatprep.subr.mxu0 0.0
  %4365 = vmatpush1.msra.mxu0 0.0
  %4366 = vmatprep.subr.mxu0 0.0
  %4367 = vmatpush1.msra.mxu0 0.0
  %4368 = vmatprep.subr.mxu0 0.0
  %4369 = vmatpush1.msra.mxu0 0.0
  %4370 = vmatprep.subr.mxu0 0.0
  %4371 = vmatpush1.msra.mxu0 0.0
  %4372 = vmatprep.subr.mxu0 0.0
  %4373 = vmatpush1.msra.mxu0 0.0
  %4374 = vmatprep.subr.mxu0 0.0
  %4375 = vmatpush1.msra.mxu0 0.0
  %4376 = vmatprep.subr.mxu0 0.0
  %4377 = vmatpush1.msra.mxu0 0.0
  %4378 = vmatprep.subr.mxu0 0.0
  %4379 = vmatpush1.msra.mxu0 0.0
  %4380 = vmatprep.subr.mxu0 0.0
  %4381 = vmatpush1.msra.mxu0 0.0
  %4382 = vmatprep.subr.mxu0 0.0
  %4383 = vmatpush1.msra.mxu0 0.0
  %4384 = vmatprep.subr.mxu0 0.0
  %4385 = vmatpush1.msra.mxu0 0.0
  %4386 = vmatprep.subr.mxu0 0.0
  %4387 = vmatpush1.msra.mxu0 0.0
  %4388 = vmatprep.mubr.f32.mxu0 0.0
  %4389 = vmatmul.mubr.f32.gmra.mrb[0].mxu0 %v4316
  %v4390 = vpop.f32.mrb[0].mxu0
  %v4391 = vadd.f32 0.0, %v4390
  %v4392 = vpop.f32.mrb[0].mxu0
  %4393 = vmatprep.mubr.f32.mxu0 0.0
  %4394 = vmatmul.mubr.f32.gmra.mrb[0].mxu0 %v4321
  %v4395 = vpop.f32.mrb[0].mxu0
  %v4396 = vadd.f32 0.0, %v4395
  %v4397 = vpop.f32.mrb[0].mxu0
  %4398 = vdwg.mxu0
  %v4399 = vadd.f32 %v4241, %v4391
  %v4400 = vadd.f32 %v4242, %v4396
  %4402 = vset.pattern.permute.xlu0 0
  %4403 = vperm.xlu0 %4402, %v3613
  %v4404 = vpop.permute.xlu0 %4403
  %4407 = vset.pattern.permute.xlu0 0
  %4408 = vperm.xlu0 %4407, %v3614
  %v4409 = vpop.permute.xlu0 %4408
  %v4411 = vadd.f32 %v4399, %v4404
  %v4412 = vadd.f32 %v4400, %v4409
  %vm4413 = vcmp.ge.f32.partialorder %v4411, 0.0
  %vm4414 = vcmp.ge.f32.partialorder %v4412, 0.0
  %v4415 = vmul.f32 %v4411, 0.01
  %v4416 = vmul.f32 %v4412, 0.01
  %v4417 = vsel %vm4413, %v4411, %v4415
  %v4418 = vsel %vm4414, %v4412, %v4416
  %v4419 = vld [vmem:[%s7] sm:$0xff]
  %v4420 = vld [vmem:[%s7 + $0x8] sm:$0xff]
  %v4421 = vld [vmem:[%s7 + $0x10] sm:$0xff]
  %v4422 = vld [vmem:[%s7 + $0x18] sm:$0xff]
  %v4423 = vld [vmem:[%s7 + $0x20] sm:$0xff]
  %v4424 = vld [vmem:[%s7 + $0x28] sm:$0xff]
  %v4425 = vld [vmem:[%s8] sm:$0xff]
  %v4426 = vld [vmem:[%s8 + $0x8] sm:$0xff]
  %v4428 = vsel %vm2304, %v4419, 0
  %v4431 = vsel %vm2304, %v4420, 0
  %4433 = vmatprep.subr.mxu0 0.0
  %4434 = vmatpush1.msra.mxu0 %v4417
  %4435 = vmatprep.subr.mxu0 0.0
  %4436 = vmatpush1.msra.mxu0 %v4418
  %4437 = vmatprep.subr.mxu0 0.0
  %4438 = vmatpush1.msra.mxu0 0.0
  %4439 = vmatprep.subr.mxu0 0.0
  %4440 = vmatpush1.msra.mxu0 0.0
  %4441 = vmatprep.subr.mxu0 0.0
  %4442 = vmatpush1.msra.mxu0 0.0
  %4443 = vmatprep.subr.mxu0 0.0
  %4444 = vmatpush1.msra.mxu0 0.0
  %4445 = vmatprep.subr.mxu0 0.0
  %4446 = vmatpush1.msra.mxu0 0.0
  %4447 = vmatprep.subr.mxu0 0.0
  %4448 = vmatpush1.msra.mxu0 0.0
  %4449 = vmatprep.subr.mxu0 0.0
  %4450 = vmatpush1.msra.mxu0 0.0
  %4451 = vmatprep.subr.mxu0 0.0
  %4452 = vmatpush1.msra.mxu0 0.0
  %4453 = vmatprep.subr.mxu0 0.0
  %4454 = vmatpush1.msra.mxu0 0.0
  %4455 = vmatprep.subr.mxu0 0.0
  %4456 = vmatpush1.msra.mxu0 0.0
  %4457 = vmatprep.subr.mxu0 0.0
  %4458 = vmatpush1.msra.mxu0 0.0
  %4459 = vmatprep.subr.mxu0 0.0
  %4460 = vmatpush1.msra.mxu0 0.0
  %4461 = vmatprep.subr.mxu0 0.0
  %4462 = vmatpush1.msra.mxu0 0.0
  %4463 = vmatprep.subr.mxu0 0.0
  %4464 = vmatpush1.msra.mxu0 0.0
  %4465 = vmatprep.subr.mxu0 0.0
  %4466 = vmatpush1.msra.mxu0 0.0
  %4467 = vmatprep.subr.mxu0 0.0
  %4468 = vmatpush1.msra.mxu0 0.0
  %4469 = vmatprep.subr.mxu0 0.0
  %4470 = vmatpush1.msra.mxu0 0.0
  %4471 = vmatprep.subr.mxu0 0.0
  %4472 = vmatpush1.msra.mxu0 0.0
  %4473 = vmatprep.subr.mxu0 0.0
  %4474 = vmatpush1.msra.mxu0 0.0
  %4475 = vmatprep.subr.mxu0 0.0
  %4476 = vmatpush1.msra.mxu0 0.0
  %4477 = vmatprep.subr.mxu0 0.0
  %4478 = vmatpush1.msra.mxu0 0.0
  %4479 = vmatprep.subr.mxu0 0.0
  %4480 = vmatpush1.msra.mxu0 0.0
  %4481 = vmatprep.subr.mxu0 0.0
  %4482 = vmatpush1.msra.mxu0 0.0
  %4483 = vmatprep.subr.mxu0 0.0
  %4484 = vmatpush1.msra.mxu0 0.0
  %4485 = vmatprep.subr.mxu0 0.0
  %4486 = vmatpush1.msra.mxu0 0.0
  %4487 = vmatprep.subr.mxu0 0.0
  %4488 = vmatpush1.msra.mxu0 0.0
  %4489 = vmatprep.subr.mxu0 0.0
  %4490 = vmatpush1.msra.mxu0 0.0
  %4491 = vmatprep.subr.mxu0 0.0
  %4492 = vmatpush1.msra.mxu0 0.0
  %4493 = vmatprep.subr.mxu0 0.0
  %4494 = vmatpush1.msra.mxu0 0.0
  %4495 = vmatprep.subr.mxu0 0.0
  %4496 = vmatpush1.msra.mxu0 0.0
  %4497 = vmatprep.mubr.f32.mxu0 0.0
  %4498 = vmatmul.mubr.f32.gmra.mrb[0].mxu0 %v4428
  %v4499 = vpop.f32.mrb[0].mxu0
  %v4500 = vadd.f32 0.0, %v4499
  %v4501 = vpop.f32.mrb[0].mxu0
  %4502 = vmatprep.mubr.f32.mxu0 0.0
  %4503 = vmatmul.mubr.f32.gmra.mrb[0].mxu0 %v4431
  %v4504 = vpop.f32.mrb[0].mxu0
  %v4505 = vadd.f32 0.0, %v4504
  %v4506 = vpop.f32.mrb[0].mxu0
  %4507 = vdwg.mxu0
  %v4509 = vsel %vm2304, %v4421, 0
  %v4512 = vsel %vm2304, %v4422, 0
  %4514 = vmatprep.subr.mxu0 0.0
  %4515 = vmatpush1.msra.mxu0 %v4417
  %4516 = vmatprep.subr.mxu0 0.0
  %4517 = vmatpush1.msra.mxu0 %v4418
  %4518 = vmatprep.subr.mxu0 0.0
  %4519 = vmatpush1.msra.mxu0 0.0
  %4520 = vmatprep.subr.mxu0 0.0
  %4521 = vmatpush1.msra.mxu0 0.0
  %4522 = vmatprep.subr.mxu0 0.0
  %4523 = vmatpush1.msra.mxu0 0.0
  %4524 = vmatprep.subr.mxu0 0.0
  %4525 = vmatpush1.msra.mxu0 0.0
  %4526 = vmatprep.subr.mxu0 0.0
  %4527 = vmatpush1.msra.mxu0 0.0
  %4528 = vmatprep.subr.mxu0 0.0
  %4529 = vmatpush1.msra.mxu0 0.0
  %4530 = vmatprep.subr.mxu0 0.0
  %4531 = vmatpush1.msra.mxu0 0.0
  %4532 = vmatprep.subr.mxu0 0.0
  %4533 = vmatpush1.msra.mxu0 0.0
  %4534 = vmatprep.subr.mxu0 0.0
  %4535 = vmatpush1.msra.mxu0 0.0
  %4536 = vmatprep.subr.mxu0 0.0
  %4537 = vmatpush1.msra.mxu0 0.0
  %4538 = vmatprep.subr.mxu0 0.0
  %4539 = vmatpush1.msra.mxu0 0.0
  %4540 = vmatprep.subr.mxu0 0.0
  %4541 = vmatpush1.msra.mxu0 0.0
  %4542 = vmatprep.subr.mxu0 0.0
  %4543 = vmatpush1.msra.mxu0 0.0
  %4544 = vmatprep.subr.mxu0 0.0
  %4545 = vmatpush1.msra.mxu0 0.0
  %4546 = vmatprep.subr.mxu0 0.0
  %4547 = vmatpush1.msra.mxu0 0.0
  %4548 = vmatprep.subr.mxu0 0.0
  %4549 = vmatpush1.msra.mxu0 0.0
  %4550 = vmatprep.subr.mxu0 0.0
  %4551 = vmatpush1.msra.mxu0 0.0
  %4552 = vmatprep.subr.mxu0 0.0
  %4553 = vmatpush1.msra.mxu0 0.0
  %4554 = vmatprep.subr.mxu0 0.0
  %4555 = vmatpush1.msra.mxu0 0.0
  %4556 = vmatprep.subr.mxu0 0.0
  %4557 = vmatpush1.msra.mxu0 0.0
  %4558 = vmatprep.subr.mxu0 0.0
  %4559 = vmatpush1.msra.mxu0 0.0
  %4560 = vmatprep.subr.mxu0 0.0
  %4561 = vmatpush1.msra.mxu0 0.0
  %4562 = vmatprep.subr.mxu0 0.0
  %4563 = vmatpush1.msra.mxu0 0.0
  %4564 = vmatprep.subr.mxu0 0.0
  %4565 = vmatpush1.msra.mxu0 0.0
  %4566 = vmatprep.subr.mxu0 0.0
  %4567 = vmatpush1.msra.mxu0 0.0
  %4568 = vmatprep.subr.mxu0 0.0
  %4569 = vmatpush1.msra.mxu0 0.0
  %4570 = vmatprep.subr.mxu0 0.0
  %4571 = vmatpush1.msra.mxu0 0.0
  %4572 = vmatprep.subr.mxu0 0.0
  %4573 = vmatpush1.msra.mxu0 0.0
  %4574 = vmatprep.subr.mxu0 0.0
  %4575 = vmatpush1.msra.mxu0 0.0
  %4576 = vmatprep.subr.mxu0 0.0
  %4577 = vmatpush1.msra.mxu0 0.0
  %4578 = vmatprep.mubr.f32.mxu0 0.0
  %4579 = vmatmul.mubr.f32.gmra.mrb[0].mxu0 %v4509
  %v4580 = vpop.f32.mrb[0].mxu0
  %v4581 = vadd.f32 0.0, %v4580
  %v4582 = vpop.f32.mrb[0].mxu0
  %4583 = vmatprep.mubr.f32.mxu0 0.0
  %4584 = vmatmul.mubr.f32.gmra.mrb[0].mxu0 %v4512
  %v4585 = vpop.f32.mrb[0].mxu0
  %v4586 = vadd.f32 0.0, %v4585
  %v4587 = vpop.f32.mrb[0].mxu0
  %4588 = vdwg.mxu0
  %vm4589 = vcmask 523264
  %v4591 = vsel %vm4589, %v4581, 0
  %v4594 = vsel %vm4589, %v4586, 0
  %4596 = vmatprep.subr.mxu0 0.0
  %4597 = vmatpush1.msra.mxu0 %v2962
  %4598 = vmatprep.subr.mxu0 0.0
  %4599 = vmatpush1.msra.mxu0 %v2963
  %4600 = vmatprep.subr.mxu0 0.0
  %4601 = vmatpush1.msra.mxu0 %v2964
  %4602 = vmatprep.subr.mxu0 0.0
  %4603 = vmatpush1.msra.mxu0 %v2965
  %4604 = vmatprep.subr.mxu0 0.0
  %4605 = vmatpush1.msra.mxu0 %v2966
  %4606 = vmatprep.subr.mxu0 0.0
  %4607 = vmatpush1.msra.mxu0 %v2967
  %4608 = vmatprep.subr.mxu0 0.0
  %4609 = vmatpush1.msra.mxu0 %v2968
  %4610 = vmatprep.subr.mxu0 0.0
  %4611 = vmatpush1.msra.mxu0 %v2969
  %4612 = vmatprep.subr.mxu0 0.0
  %4613 = vmatpush1.msra.mxu0 0.0
  %4614 = vmatprep.subr.mxu0 0.0
  %4615 = vmatpush1.msra.mxu0 0.0
  %4616 = vmatprep.subr.mxu0 0.0
  %4617 = vmatpush1.msra.mxu0 0.0
  %4618 = vmatprep.subr.mxu0 0.0
  %4619 = vmatpush1.msra.mxu0 0.0
  %4620 = vmatprep.subr.mxu0 0.0
  %4621 = vmatpush1.msra.mxu0 0.0
  %4622 = vmatprep.subr.mxu0 0.0
  %4623 = vmatpush1.msra.mxu0 0.0
  %4624 = vmatprep.subr.mxu0 0.0
  %4625 = vmatpush1.msra.mxu0 0.0
  %4626 = vmatprep.subr.mxu0 0.0
  %4627 = vmatpush1.msra.mxu0 0.0
  %4628 = vmatprep.subr.mxu0 0.0
  %4629 = vmatpush1.msra.mxu0 0.0
  %4630 = vmatprep.subr.mxu0 0.0
  %4631 = vmatpush1.msra.mxu0 0.0
  %4632 = vmatprep.subr.mxu0 0.0
  %4633 = vmatpush1.msra.mxu0 0.0
  %4634 = vmatprep.subr.mxu0 0.0
  %4635 = vmatpush1.msra.mxu0 0.0
  %4636 = vmatprep.subr.mxu0 0.0
  %4637 = vmatpush1.msra.mxu0 0.0
  %4638 = vmatprep.subr.mxu0 0.0
  %4639 = vmatpush1.msra.mxu0 0.0
  %4640 = vmatprep.subr.mxu0 0.0
  %4641 = vmatpush1.msra.mxu0 0.0
  %4642 = vmatprep.subr.mxu0 0.0
  %4643 = vmatpush1.msra.mxu0 0.0
  %4644 = vmatprep.subr.mxu0 0.0
  %4645 = vmatpush1.msra.mxu0 0.0
  %4646 = vmatprep.subr.mxu0 0.0
  %4647 = vmatpush1.msra.mxu0 0.0
  %4648 = vmatprep.subr.mxu0 0.0
  %4649 = vmatpush1.msra.mxu0 0.0
  %4650 = vmatprep.subr.mxu0 0.0
  %4651 = vmatpush1.msra.mxu0 0.0
  %4652 = vmatprep.subr.mxu0 0.0
  %4653 = vmatpush1.msra.mxu0 0.0
  %4654 = vmatprep.subr.mxu0 0.0
  %4655 = vmatpush1.msra.mxu0 0.0
  %4656 = vmatprep.subr.mxu0 0.0
  %4657 = vmatpush1.msra.mxu0 0.0
  %4658 = vmatprep.subr.mxu0 0.0
  %4659 = vmatpush1.msra.mxu0 0.0
  %4660 = vmatprep.mubr.f32.mxu0 0.0
  %4661 = vmatmul.mubr.f32.gmra.mrb[0].mxu0 %v4591
  %v4662 = vpop.f32.mrb[0].mxu0
  %v4663 = vadd.f32 0.0, %v4662
  %v4664 = vpop.f32.mrb[0].mxu0
  %4665 = vmatprep.mubr.f32.mxu0 0.0
  %4666 = vmatmul.mubr.f32.gmra.mrb[0].mxu0 %v4594
  %v4667 = vpop.f32.mrb[0].mxu0
  %v4668 = vadd.f32 0.0, %v4667
  %v4669 = vpop.f32.mrb[0].mxu0
  %4670 = vdwg.mxu0
  %v4672 = vsel %vm4589, %v4500, 0
  %v4675 = vsel %vm4589, %v4505, 0
  %4677 = vmatprep.subr.mxu0 0.0
  %4678 = vmatpush1.msra.mxu0 %v2633
  %4679 = vmatprep.subr.mxu0 0.0
  %4680 = vmatpush1.msra.mxu0 %v2634
  %4681 = vmatprep.subr.mxu0 0.0
  %4682 = vmatpush1.msra.mxu0 %v2635
  %4683 = vmatprep.subr.mxu0 0.0
  %4684 = vmatpush1.msra.mxu0 %v2636
  %4685 = vmatprep.subr.mxu0 0.0
  %4686 = vmatpush1.msra.mxu0 %v2637
  %4687 = vmatprep.subr.mxu0 0.0
  %4688 = vmatpush1.msra.mxu0 %v2638
  %4689 = vmatprep.subr.mxu0 0.0
  %4690 = vmatpush1.msra.mxu0 %v2639
  %4691 = vmatprep.subr.mxu0 0.0
  %4692 = vmatpush1.msra.mxu0 %v2640
  %4693 = vmatprep.subr.mxu0 0.0
  %4694 = vmatpush1.msra.mxu0 0.0
  %4695 = vmatprep.subr.mxu0 0.0
  %4696 = vmatpush1.msra.mxu0 0.0
  %4697 = vmatprep.subr.mxu0 0.0
  %4698 = vmatpush1.msra.mxu0 0.0
  %4699 = vmatprep.subr.mxu0 0.0
  %4700 = vmatpush1.msra.mxu0 0.0
  %4701 = vmatprep.subr.mxu0 0.0
  %4702 = vmatpush1.msra.mxu0 0.0
  %4703 = vmatprep.subr.mxu0 0.0
  %4704 = vmatpush1.msra.mxu0 0.0
  %4705 = vmatprep.subr.mxu0 0.0
  %4706 = vmatpush1.msra.mxu0 0.0
  %4707 = vmatprep.subr.mxu0 0.0
  %4708 = vmatpush1.msra.mxu0 0.0
  %4709 = vmatprep.subr.mxu0 0.0
  %4710 = vmatpush1.msra.mxu0 0.0
  %4711 = vmatprep.subr.mxu0 0.0
  %4712 = vmatpush1.msra.mxu0 0.0
  %4713 = vmatprep.subr.mxu0 0.0
  %4714 = vmatpush1.msra.mxu0 0.0
  %4715 = vmatprep.subr.mxu0 0.0
  %4716 = vmatpush1.msra.mxu0 0.0
  %4717 = vmatprep.subr.mxu0 0.0
  %4718 = vmatpush1.msra.mxu0 0.0
  %4719 = vmatprep.subr.mxu0 0.0
  %4720 = vmatpush1.msra.mxu0 0.0
  %4721 = vmatprep.subr.mxu0 0.0
  %4722 = vmatpush1.msra.mxu0 0.0
  %4723 = vmatprep.subr.mxu0 0.0
  %4724 = vmatpush1.msra.mxu0 0.0
  %4725 = vmatprep.subr.mxu0 0.0
  %4726 = vmatpush1.msra.mxu0 0.0
  %4727 = vmatprep.subr.mxu0 0.0
  %4728 = vmatpush1.msra.mxu0 0.0
  %4729 = vmatprep.subr.mxu0 0.0
  %4730 = vmatpush1.msra.mxu0 0.0
  %4731 = vmatprep.subr.mxu0 0.0
  %4732 = vmatpush1.msra.mxu0 0.0
  %4733 = vmatprep.subr.mxu0 0.0
  %4734 = vmatpush1.msra.mxu0 0.0
  %4735 = vmatprep.subr.mxu0 0.0
  %4736 = vmatpush1.msra.mxu0 0.0
  %4737 = vmatprep.subr.mxu0 0.0
  %4738 = vmatpush1.msra.mxu0 0.0
  %4739 = vmatprep.subr.mxu0 0.0
  %4740 = vmatpush1.msra.mxu0 0.0
  %4741 = vmatprep.mubr.f32.mxu0 0.0
  %4742 = vmatmul.mubr.f32.gmra.mrb[0].mxu0 %v4672
  %v4743 = vpop.f32.mrb[0].mxu0
  %v4744 = vadd.f32 %v4663, %v4743
  %v4745 = vpop.f32.mrb[0].mxu0
  %4746 = vmatprep.mubr.f32.mxu0 0.0
  %4747 = vmatmul.mubr.f32.gmra.mrb[0].mxu0 %v4675
  %v4748 = vpop.f32.mrb[0].mxu0
  %v4749 = vadd.f32 %v4668, %v4748
  %v4750 = vpop.f32.mrb[0].mxu0
  %4751 = vdwg.mxu0
  %v4753 = vsel %vm2304, %v4423, 0
  %v4756 = vsel %vm2304, %v4424, 0
  %4758 = vmatprep.subr.mxu0 0.0
  %4759 = vmatpush1.msra.mxu0 %v4417
  %4760 = vmatprep.subr.mxu0 0.0
  %4761 = vmatpush1.msra.mxu0 %v4418
  %4762 = vmatprep.subr.mxu0 0.0
  %4763 = vmatpush1.msra.mxu0 0.0
  %4764 = vmatprep.subr.mxu0 0.0
  %4765 = vmatpush1.msra.mxu0 0.0
  %4766 = vmatprep.subr.mxu0 0.0
  %4767 = vmatpush1.msra.mxu0 0.0
  %4768 = vmatprep.subr.mxu0 0.0
  %4769 = vmatpush1.msra.mxu0 0.0
  %4770 = vmatprep.subr.mxu0 0.0
  %4771 = vmatpush1.msra.mxu0 0.0
  %4772 = vmatprep.subr.mxu0 0.0
  %4773 = vmatpush1.msra.mxu0 0.0
  %4774 = vmatprep.subr.mxu0 0.0
  %4775 = vmatpush1.msra.mxu0 0.0
  %4776 = vmatprep.subr.mxu0 0.0
  %4777 = vmatpush1.msra.mxu0 0.0
  %4778 = vmatprep.subr.mxu0 0.0
  %4779 = vmatpush1.msra.mxu0 0.0
  %4780 = vmatprep.subr.mxu0 0.0
  %4781 = vmatpush1.msra.mxu0 0.0
  %4782 = vmatprep.subr.mxu0 0.0
  %4783 = vmatpush1.msra.mxu0 0.0
  %4784 = vmatprep.subr.mxu0 0.0
  %4785 = vmatpush1.msra.mxu0 0.0
  %4786 = vmatprep.subr.mxu0 0.0
  %4787 = vmatpush1.msra.mxu0 0.0
  %4788 = vmatprep.subr.mxu0 0.0
  %4789 = vmatpush1.msra.mxu0 0.0
  %4790 = vmatprep.subr.mxu0 0.0
  %4791 = vmatpush1.msra.mxu0 0.0
  %4792 = vmatprep.subr.mxu0 0.0
  %4793 = vmatpush1.msra.mxu0 0.0
  %4794 = vmatprep.subr.mxu0 0.0
  %4795 = vmatpush1.msra.mxu0 0.0
  %4796 = vmatprep.subr.mxu0 0.0
  %4797 = vmatpush1.msra.mxu0 0.0
  %4798 = vmatprep.subr.mxu0 0.0
  %4799 = vmatpush1.msra.mxu0 0.0
  %4800 = vmatprep.subr.mxu0 0.0
  %4801 = vmatpush1.msra.mxu0 0.0
  %4802 = vmatprep.subr.mxu0 0.0
  %4803 = vmatpush1.msra.mxu0 0.0
  %4804 = vmatprep.subr.mxu0 0.0
  %4805 = vmatpush1.msra.mxu0 0.0
  %4806 = vmatprep.subr.mxu0 0.0
  %4807 = vmatpush1.msra.mxu0 0.0
  %4808 = vmatprep.subr.mxu0 0.0
  %4809 = vmatpush1.msra.mxu0 0.0
  %4810 = vmatprep.subr.mxu0 0.0
  %4811 = vmatpush1.msra.mxu0 0.0
  %4812 = vmatprep.subr.mxu0 0.0
  %4813 = vmatpush1.msra.mxu0 0.0
  %4814 = vmatprep.subr.mxu0 0.0
  %4815 = vmatpush1.msra.mxu0 0.0
  %4816 = vmatprep.subr.mxu0 0.0
  %4817 = vmatpush1.msra.mxu0 0.0
  %4818 = vmatprep.subr.mxu0 0.0
  %4819 = vmatpush1.msra.mxu0 0.0
  %4820 = vmatprep.subr.mxu0 0.0
  %4821 = vmatpush1.msra.mxu0 0.0
  %4822 = vmatprep.mubr.f32.mxu0 0.0
  %4823 = vmatmul.mubr.f32.gmra.mrb[0].mxu0 %v4753
  %v4824 = vpop.f32.mrb[0].mxu0
  %v4825 = vadd.f32 0.0, %v4824
  %v4826 = vpop.f32.mrb[0].mxu0
  %4827 = vmatprep.mubr.f32.mxu0 0.0
  %4828 = vmatmul.mubr.f32.gmra.mrb[0].mxu0 %v4756
  %v4829 = vpop.f32.mrb[0].mxu0
  %v4830 = vadd.f32 0.0, %v4829
  %v4831 = vpop.f32.mrb[0].mxu0
  %4832 = vdwg.mxu0
  %v4834 = vsel %vm4589, %v4825, 0
  %v4837 = vsel %vm4589, %v4830, 0
  %4839 = vmatprep.subr.mxu0 0.0
  %4840 = vmatpush1.msra.mxu0 %v3219
  %4841 = vmatprep.subr.mxu0 0.0
  %4842 = vmatpush1.msra.mxu0 %v3220
  %4843 = vmatprep.subr.mxu0 0.0
  %4844 = vmatpush1.msra.mxu0 %v3221
  %4845 = vmatprep.subr.mxu0 0.0
  %4846 = vmatpush1.msra.mxu0 %v3222
  %4847 = vmatprep.subr.mxu0 0.0
  %4848 = vmatpush1.msra.mxu0 %v3223
  %4849 = vmatprep.subr.mxu0 0.0
  %4850 = vmatpush1.msra.mxu0 %v3224
  %4851 = vmatprep.subr.mxu0 0.0
  %4852 = vmatpush1.msra.mxu0 %v3225
  %4853 = vmatprep.subr.mxu0 0.0
  %4854 = vmatpush1.msra.mxu0 %v3226
  %4855 = vmatprep.subr.mxu0 0.0
  %4856 = vmatpush1.msra.mxu0 0.0
  %4857 = vmatprep.subr.mxu0 0.0
  %4858 = vmatpush1.msra.mxu0 0.0
  %4859 = vmatprep.subr.mxu0 0.0
  %4860 = vmatpush1.msra.mxu0 0.0
  %4861 = vmatprep.subr.mxu0 0.0
  %4862 = vmatpush1.msra.mxu0 0.0
  %4863 = vmatprep.subr.mxu0 0.0
  %4864 = vmatpush1.msra.mxu0 0.0
  %4865 = vmatprep.subr.mxu0 0.0
  %4866 = vmatpush1.msra.mxu0 0.0
  %4867 = vmatprep.subr.mxu0 0.0
  %4868 = vmatpush1.msra.mxu0 0.0
  %4869 = vmatprep.subr.mxu0 0.0
  %4870 = vmatpush1.msra.mxu0 0.0
  %4871 = vmatprep.subr.mxu0 0.0
  %4872 = vmatpush1.msra.mxu0 0.0
  %4873 = vmatprep.subr.mxu0 0.0
  %4874 = vmatpush1.msra.mxu0 0.0
  %4875 = vmatprep.subr.mxu0 0.0
  %4876 = vmatpush1.msra.mxu0 0.0
  %4877 = vmatprep.subr.mxu0 0.0
  %4878 = vmatpush1.msra.mxu0 0.0
  %4879 = vmatprep.subr.mxu0 0.0
  %4880 = vmatpush1.msra.mxu0 0.0
  %4881 = vmatprep.subr.mxu0 0.0
  %4882 = vmatpush1.msra.mxu0 0.0
  %4883 = vmatprep.subr.mxu0 0.0
  %4884 = vmatpush1.msra.mxu0 0.0
  %4885 = vmatprep.subr.mxu0 0.0
  %4886 = vmatpush1.msra.mxu0 0.0
  %4887 = vmatprep.subr.mxu0 0.0
  %4888 = vmatpush1.msra.mxu0 0.0
  %4889 = vmatprep.subr.mxu0 0.0
  %4890 = vmatpush1.msra.mxu0 0.0
  %4891 = vmatprep.subr.mxu0 0.0
  %4892 = vmatpush1.msra.mxu0 0.0
  %4893 = vmatprep.subr.mxu0 0.0
  %4894 = vmatpush1.msra.mxu0 0.0
  %4895 = vmatprep.subr.mxu0 0.0
  %4896 = vmatpush1.msra.mxu0 0.0
  %4897 = vmatprep.subr.mxu0 0.0
  %4898 = vmatpush1.msra.mxu0 0.0
  %4899 = vmatprep.subr.mxu0 0.0
  %4900 = vmatpush1.msra.mxu0 0.0
  %4901 = vmatprep.subr.mxu0 0.0
  %4902 = vmatpush1.msra.mxu0 0.0
  %4903 = vmatprep.mubr.f32.mxu0 0.0
  %4904 = vmatmul.mubr.f32.gmra.mrb[0].mxu0 %v4834
  %v4905 = vpop.f32.mrb[0].mxu0
  %v4906 = vadd.f32 0.0, %v4905
  %v4907 = vpop.f32.mrb[0].mxu0
  %4908 = vmatprep.mubr.f32.mxu0 0.0
  %4909 = vmatmul.mubr.f32.gmra.mrb[0].mxu0 %v4837
  %v4910 = vpop.f32.mrb[0].mxu0
  %v4911 = vadd.f32 0.0, %v4910
  %v4912 = vpop.f32.mrb[0].mxu0
  %4913 = vdwg.mxu0
  %v4914 = vadd.f32 %v4744, %v4906
  %v4915 = vadd.f32 %v4749, %v4911
  %4917 = vset.pattern.permute.xlu0 0
  %4918 = vperm.xlu0 %4917, %v4425
  %v4919 = vpop.permute.xlu0 %4918
  %4922 = vset.pattern.permute.xlu0 0
  %4923 = vperm.xlu0 %4922, %v4426
  %v4924 = vpop.permute.xlu0 %4923
  %v4926 = vadd.f32 %v4914, %v4919
  %v4927 = vadd.f32 %v4915, %v4924
  %vm4928 = vcmp.ge.f32.partialorder %v4926, 0.0
  %vm4929 = vcmp.ge.f32.partialorder %v4927, 0.0
  %v4930 = vmul.f32 %v4926, 0.01
  %v4931 = vmul.f32 %v4927, 0.01
  %v4932 = vsel %vm4928, %v4926, %v4930
  %v4933 = vsel %vm4929, %v4927, %v4931
  %v4934 = vld [vmem:[%s9] sm:$0xff]
  %v4935 = vld [vmem:[%s9 + $0x8] sm:$0xff]
  %v4936 = vld [vmem:[%s9 + $0x10] sm:$0xff]
  %v4937 = vld [vmem:[%s9 + $0x18] sm:$0xff]
  %v4938 = vld [vmem:[%s9 + $0x20] sm:$0xff]
  %v4939 = vld [vmem:[%s9 + $0x28] sm:$0xff]
  %v4940 = vld [vmem:[%s9 + $0x30] sm:$0xff]
  %v4941 = vld [vmem:[%s9 + $0x38] sm:$0xff]
  %v4942 = vld [vmem:[%s9 + $0x40] sm:$0xff]
  %v4943 = vld [vmem:[%s9 + $0x48] sm:$0xff]
  %v4944 = vld [vmem:[%s9 + $0x50] sm:$0xff]
  %v4945 = vld [vmem:[%s9 + $0x58] sm:$0xff]
  %v4946 = vld [vmem:[%s10] sm:$0xff]
  %v4947 = vld [vmem:[%s10 + $0x8] sm:$0xff]
  %v4948 = vld [vmem:[%s10 + $0x10] sm:$0xff]
  %v4949 = vld [vmem:[%s10 + $0x18] sm:$0xff]
  %v4951 = vsel %vm2304, %v4934, 0
  %v4954 = vsel %vm2304, %v4935, 0
  %v4957 = vsel %vm2304, %v4936, 0
  %v4960 = vsel %vm2304, %v4937, 0
  %4962 = vmatprep.subr.mxu0 0.0
  %4963 = vmatpush1.msra.mxu0 %v4932
  %4964 = vmatprep.subr.mxu0 0.0
  %4965 = vmatpush1.msra.mxu0 %v4933
  %4966 = vmatprep.subr.mxu0 0.0
  %4967 = vmatpush1.msra.mxu0 0.0
  %4968 = vmatprep.subr.mxu0 0.0
  %4969 = vmatpush1.msra.mxu0 0.0
  %4970 = vmatprep.subr.mxu0 0.0
  %4971 = vmatpush1.msra.mxu0 0.0
  %4972 = vmatprep.subr.mxu0 0.0
  %4973 = vmatpush1.msra.mxu0 0.0
  %4974 = vmatprep.subr.mxu0 0.0
  %4975 = vmatpush1.msra.mxu0 0.0
  %4976 = vmatprep.subr.mxu0 0.0
  %4977 = vmatpush1.msra.mxu0 0.0
  %4978 = vmatprep.subr.mxu0 0.0
  %4979 = vmatpush1.msra.mxu0 0.0
  %4980 = vmatprep.subr.mxu0 0.0
  %4981 = vmatpush1.msra.mxu0 0.0
  %4982 = vmatprep.subr.mxu0 0.0
  %4983 = vmatpush1.msra.mxu0 0.0
  %4984 = vmatprep.subr.mxu0 0.0
  %4985 = vmatpush1.msra.mxu0 0.0
  %4986 = vmatprep.subr.mxu0 0.0
  %4987 = vmatpush1.msra.mxu0 0.0
  %4988 = vmatprep.subr.mxu0 0.0
  %4989 = vmatpush1.msra.mxu0 0.0
  %4990 = vmatprep.subr.mxu0 0.0
  %4991 = vmatpush1.msra.mxu0 0.0
  %4992 = vmatprep.subr.mxu0 0.0
  %4993 = vmatpush1.msra.mxu0 0.0
  %4994 = vmatprep.subr.mxu0 0.0
  %4995 = vmatpush1.msra.mxu0 0.0
  %4996 = vmatprep.subr.mxu0 0.0
  %4997 = vmatpush1.msra.mxu0 0.0
  %4998 = vmatprep.subr.mxu0 0.0
  %4999 = vmatpush1.msra.mxu0 0.0
  %5000 = vmatprep.subr.mxu0 0.0
  %5001 = vmatpush1.msra.mxu0 0.0
  %5002 = vmatprep.subr.mxu0 0.0
  %5003 = vmatpush1.msra.mxu0 0.0
  %5004 = vmatprep.subr.mxu0 0.0
  %5005 = vmatpush1.msra.mxu0 0.0
  %5006 = vmatprep.subr.mxu0 0.0
  %5007 = vmatpush1.msra.mxu0 0.0
  %5008 = vmatprep.subr.mxu0 0.0
  %5009 = vmatpush1.msra.mxu0 0.0
  %5010 = vmatprep.subr.mxu0 0.0
  %5011 = vmatpush1.msra.mxu0 0.0
  %5012 = vmatprep.subr.mxu0 0.0
  %5013 = vmatpush1.msra.mxu0 0.0
  %5014 = vmatprep.subr.mxu0 0.0
  %5015 = vmatpush1.msra.mxu0 0.0
  %5016 = vmatprep.subr.mxu0 0.0
  %5017 = vmatpush1.msra.mxu0 0.0
  %5018 = vmatprep.subr.mxu0 0.0
  %5019 = vmatpush1.msra.mxu0 0.0
  %5020 = vmatprep.subr.mxu0 0.0
  %5021 = vmatpush1.msra.mxu0 0.0
  %5022 = vmatprep.subr.mxu0 0.0
  %5023 = vmatpush1.msra.mxu0 0.0
  %5024 = vmatprep.subr.mxu0 0.0
  %5025 = vmatpush1.msra.mxu0 0.0
  %5026 = vmatprep.mubr.f32.mxu0 0.0
  %5027 = vmatmul.mubr.f32.gmra.mrb[0].mxu0 %v4951
  %v5028 = vpop.f32.mrb[0].mxu0
  %v5029 = vadd.f32 0.0, %v5028
  %v5030 = vpop.f32.mrb[0].mxu0
  %5031 = vmatprep.mubr.f32.mxu0 0.0
  %5032 = vmatmul.mubr.f32.gmra.mrb[0].mxu0 %v4954
  %v5033 = vpop.f32.mrb[0].mxu0
  %v5034 = vadd.f32 0.0, %v5033
  %v5035 = vpop.f32.mrb[0].mxu0
  %5036 = vmatprep.mubr.f32.mxu0 0.0
  %5037 = vmatmul.mubr.f32.gmra.mrb[0].mxu0 %v4957
  %v5038 = vpop.f32.mrb[0].mxu0
  %v5039 = vadd.f32 0.0, %v5038
  %v5040 = vpop.f32.mrb[0].mxu0
  %5041 = vmatprep.mubr.f32.mxu0 0.0
  %5042 = vmatmul.mubr.f32.gmra.mrb[0].mxu0 %v4960
  %v5043 = vpop.f32.mrb[0].mxu0
  %v5044 = vadd.f32 0.0, %v5043
  %v5045 = vpop.f32.mrb[0].mxu0
  %5046 = vdwg.mxu0
  %v5048 = vsel %vm2304, %v4938, 0
  %v5051 = vsel %vm2304, %v4939, 0
  %v5054 = vsel %vm2304, %v4940, 0
  %v5057 = vsel %vm2304, %v4941, 0
  %5059 = vmatprep.subr.mxu0 0.0
  %5060 = vmatpush1.msra.mxu0 %v4932
  %5061 = vmatprep.subr.mxu0 0.0
  %5062 = vmatpush1.msra.mxu0 %v4933
  %5063 = vmatprep.subr.mxu0 0.0
  %5064 = vmatpush1.msra.mxu0 0.0
  %5065 = vmatprep.subr.mxu0 0.0
  %5066 = vmatpush1.msra.mxu0 0.0
  %5067 = vmatprep.subr.mxu0 0.0
  %5068 = vmatpush1.msra.mxu0 0.0
  %5069 = vmatprep.subr.mxu0 0.0
  %5070 = vmatpush1.msra.mxu0 0.0
  %5071 = vmatprep.subr.mxu0 0.0
  %5072 = vmatpush1.msra.mxu0 0.0
  %5073 = vmatprep.subr.mxu0 0.0
  %5074 = vmatpush1.msra.mxu0 0.0
  %5075 = vmatprep.subr.mxu0 0.0
  %5076 = vmatpush1.msra.mxu0 0.0
  %5077 = vmatprep.subr.mxu0 0.0
  %5078 = vmatpush1.msra.mxu0 0.0
  %5079 = vmatprep.subr.mxu0 0.0
  %5080 = vmatpush1.msra.mxu0 0.0
  %5081 = vmatprep.subr.mxu0 0.0
  %5082 = vmatpush1.msra.mxu0 0.0
  %5083 = vmatprep.subr.mxu0 0.0
  %5084 = vmatpush1.msra.mxu0 0.0
  %5085 = vmatprep.subr.mxu0 0.0
  %5086 = vmatpush1.msra.mxu0 0.0
  %5087 = vmatprep.subr.mxu0 0.0
  %5088 = vmatpush1.msra.mxu0 0.0
  %5089 = vmatprep.subr.mxu0 0.0
  %5090 = vmatpush1.msra.mxu0 0.0
  %5091 = vmatprep.subr.mxu0 0.0
  %5092 = vmatpush1.msra.mxu0 0.0
  %5093 = vmatprep.subr.mxu0 0.0
  %5094 = vmatpush1.msra.mxu0 0.0
  %5095 = vmatprep.subr.mxu0 0.0
  %5096 = vmatpush1.msra.mxu0 0.0
  %5097 = vmatprep.subr.mxu0 0.0
  %5098 = vmatpush1.msra.mxu0 0.0
  %5099 = vmatprep.subr.mxu0 0.0
  %5100 = vmatpush1.msra.mxu0 0.0
  %5101 = vmatprep.subr.mxu0 0.0
  %5102 = vmatpush1.msra.mxu0 0.0
  %5103 = vmatprep.subr.mxu0 0.0
  %5104 = vmatpush1.msra.mxu0 0.0
  %5105 = vmatprep.subr.mxu0 0.0
  %5106 = vmatpush1.msra.mxu0 0.0
  %5107 = vmatprep.subr.mxu0 0.0
  %5108 = vmatpush1.msra.mxu0 0.0
  %5109 = vmatprep.subr.mxu0 0.0
  %5110 = vmatpush1.msra.mxu0 0.0
  %5111 = vmatprep.subr.mxu0 0.0
  %5112 = vmatpush1.msra.mxu0 0.0
  %5113 = vmatprep.subr.mxu0 0.0
  %5114 = vmatpush1.msra.mxu0 0.0
  %5115 = vmatprep.subr.mxu0 0.0
  %5116 = vmatpush1.msra.mxu0 0.0
  %5117 = vmatprep.subr.mxu0 0.0
  %5118 = vmatpush1.msra.mxu0 0.0
  %5119 = vmatprep.subr.mxu0 0.0
  %5120 = vmatpush1.msra.mxu0 0.0
  %5121 = vmatprep.subr.mxu0 0.0
  %5122 = vmatpush1.msra.mxu0 0.0
  %5123 = vmatprep.mubr.f32.mxu0 0.0
  %5124 = vmatmul.mubr.f32.gmra.mrb[0].mxu0 %v5048
  %v5125 = vpop.f32.mrb[0].mxu0
  %v5126 = vadd.f32 0.0, %v5125
  %v5127 = vpop.f32.mrb[0].mxu0
  %5128 = vmatprep.mubr.f32.mxu0 0.0
  %5129 = vmatmul.mubr.f32.gmra.mrb[0].mxu0 %v5051
  %v5130 = vpop.f32.mrb[0].mxu0
  %v5131 = vadd.f32 0.0, %v5130
  %v5132 = vpop.f32.mrb[0].mxu0
  %5133 = vmatprep.mubr.f32.mxu0 0.0
  %5134 = vmatmul.mubr.f32.gmra.mrb[0].mxu0 %v5054
  %v5135 = vpop.f32.mrb[0].mxu0
  %v5136 = vadd.f32 0.0, %v5135
  %v5137 = vpop.f32.mrb[0].mxu0
  %5138 = vmatprep.mubr.f32.mxu0 0.0
  %5139 = vmatmul.mubr.f32.gmra.mrb[0].mxu0 %v5057
  %v5140 = vpop.f32.mrb[0].mxu0
  %v5141 = vadd.f32 0.0, %v5140
  %v5142 = vpop.f32.mrb[0].mxu0
  %5143 = vdwg.mxu0
  %vm5144 = vcmask 261120
  %v5146 = vsel %vm5144, %v5126, 0
  %v5149 = vsel %vm5144, %v5131, 0
  %v5152 = vsel %vm5144, %v5136, 0
  %v5155 = vsel %vm5144, %v5141, 0
  %5157 = vmatprep.subr.mxu0 0.0
  %5158 = vmatpush1.msra.mxu0 %v1253
  %5159 = vmatprep.subr.mxu0 0.0
  %5160 = vmatpush1.msra.mxu0 %v1255
  %5161 = vmatprep.subr.mxu0 0.0
  %5162 = vmatpush1.msra.mxu0 %v1257
  %5163 = vmatprep.subr.mxu0 0.0
  %5164 = vmatpush1.msra.mxu0 %v1259
  %5165 = vmatprep.subr.mxu0 0.0
  %5166 = vmatpush1.msra.mxu0 0.0
  %5167 = vmatprep.subr.mxu0 0.0
  %5168 = vmatpush1.msra.mxu0 0.0
  %5169 = vmatprep.subr.mxu0 0.0
  %5170 = vmatpush1.msra.mxu0 0.0
  %5171 = vmatprep.subr.mxu0 0.0
  %5172 = vmatpush1.msra.mxu0 0.0
  %5173 = vmatprep.subr.mxu0 0.0
  %5174 = vmatpush1.msra.mxu0 0.0
  %5175 = vmatprep.subr.mxu0 0.0
  %5176 = vmatpush1.msra.mxu0 0.0
  %5177 = vmatprep.subr.mxu0 0.0
  %5178 = vmatpush1.msra.mxu0 0.0
  %5179 = vmatprep.subr.mxu0 0.0
  %5180 = vmatpush1.msra.mxu0 0.0
  %5181 = vmatprep.subr.mxu0 0.0
  %5182 = vmatpush1.msra.mxu0 0.0
  %5183 = vmatprep.subr.mxu0 0.0
  %5184 = vmatpush1.msra.mxu0 0.0
  %5185 = vmatprep.subr.mxu0 0.0
  %5186 = vmatpush1.msra.mxu0 0.0
  %5187 = vmatprep.subr.mxu0 0.0
  %5188 = vmatpush1.msra.mxu0 0.0
  %5189 = vmatprep.subr.mxu0 0.0
  %5190 = vmatpush1.msra.mxu0 0.0
  %5191 = vmatprep.subr.mxu0 0.0
  %5192 = vmatpush1.msra.mxu0 0.0
  %5193 = vmatprep.subr.mxu0 0.0
  %5194 = vmatpush1.msra.mxu0 0.0
  %5195 = vmatprep.subr.mxu0 0.0
  %5196 = vmatpush1.msra.mxu0 0.0
  %5197 = vmatprep.subr.mxu0 0.0
  %5198 = vmatpush1.msra.mxu0 0.0
  %5199 = vmatprep.subr.mxu0 0.0
  %5200 = vmatpush1.msra.mxu0 0.0
  %5201 = vmatprep.subr.mxu0 0.0
  %5202 = vmatpush1.msra.mxu0 0.0
  %5203 = vmatprep.subr.mxu0 0.0
  %5204 = vmatpush1.msra.mxu0 0.0
  %5205 = vmatprep.subr.mxu0 0.0
  %5206 = vmatpush1.msra.mxu0 0.0
  %5207 = vmatprep.subr.mxu0 0.0
  %5208 = vmatpush1.msra.mxu0 0.0
  %5209 = vmatprep.subr.mxu0 0.0
  %5210 = vmatpush1.msra.mxu0 0.0
  %5211 = vmatprep.subr.mxu0 0.0
  %5212 = vmatpush1.msra.mxu0 0.0
  %5213 = vmatprep.subr.mxu0 0.0
  %5214 = vmatpush1.msra.mxu0 0.0
  %5215 = vmatprep.subr.mxu0 0.0
  %5216 = vmatpush1.msra.mxu0 0.0
  %5217 = vmatprep.subr.mxu0 0.0
  %5218 = vmatpush1.msra.mxu0 0.0
  %5219 = vmatprep.subr.mxu0 0.0
  %5220 = vmatpush1.msra.mxu0 0.0
  %5221 = vmatprep.mubr.f32.mxu0 0.0
  %5222 = vmatmul.mubr.f32.gmra.mrb[0].mxu0 %v5146
  %v5223 = vpop.f32.mrb[0].mxu0
  %v5224 = vadd.f32 0.0, %v5223
  %v5225 = vpop.f32.mrb[0].mxu0
  %5226 = vmatprep.mubr.f32.mxu0 0.0
  %5227 = vmatmul.mubr.f32.gmra.mrb[0].mxu0 %v5149
  %v5228 = vpop.f32.mrb[0].mxu0
  %v5229 = vadd.f32 0.0, %v5228
  %v5230 = vpop.f32.mrb[0].mxu0
  %5231 = vmatprep.mubr.f32.mxu0 0.0
  %5232 = vmatmul.mubr.f32.gmra.mrb[0].mxu0 %v5152
  %v5233 = vpop.f32.mrb[0].mxu0
  %v5234 = vadd.f32 0.0, %v5233
  %v5235 = vpop.f32.mrb[0].mxu0
  %5236 = vmatprep.mubr.f32.mxu0 0.0
  %5237 = vmatmul.mubr.f32.gmra.mrb[0].mxu0 %v5155
  %v5238 = vpop.f32.mrb[0].mxu0
  %v5239 = vadd.f32 0.0, %v5238
  %v5240 = vpop.f32.mrb[0].mxu0
  %5241 = vdwg.mxu0
  %v5243 = vsel %vm5144, %v5029, 0
  %v5246 = vsel %vm5144, %v5034, 0
  %v5249 = vsel %vm5144, %v5039, 0
  %v5252 = vsel %vm5144, %v5044, 0
  %5254 = vmatprep.subr.mxu0 0.0
  %5255 = vmatpush1.msra.mxu0 %v966
  %5256 = vmatprep.subr.mxu0 0.0
  %5257 = vmatpush1.msra.mxu0 %v968
  %5258 = vmatprep.subr.mxu0 0.0
  %5259 = vmatpush1.msra.mxu0 %v970
  %5260 = vmatprep.subr.mxu0 0.0
  %5261 = vmatpush1.msra.mxu0 %v972
  %5262 = vmatprep.subr.mxu0 0.0
  %5263 = vmatpush1.msra.mxu0 0.0
  %5264 = vmatprep.subr.mxu0 0.0
  %5265 = vmatpush1.msra.mxu0 0.0
  %5266 = vmatprep.subr.mxu0 0.0
  %5267 = vmatpush1.msra.mxu0 0.0
  %5268 = vmatprep.subr.mxu0 0.0
  %5269 = vmatpush1.msra.mxu0 0.0
  %5270 = vmatprep.subr.mxu0 0.0
  %5271 = vmatpush1.msra.mxu0 0.0
  %5272 = vmatprep.subr.mxu0 0.0
  %5273 = vmatpush1.msra.mxu0 0.0
  %5274 = vmatprep.subr.mxu0 0.0
  %5275 = vmatpush1.msra.mxu0 0.0
  %5276 = vmatprep.subr.mxu0 0.0
  %5277 = vmatpush1.msra.mxu0 0.0
  %5278 = vmatprep.subr.mxu0 0.0
  %5279 = vmatpush1.msra.mxu0 0.0
  %5280 = vmatprep.subr.mxu0 0.0
  %5281 = vmatpush1.msra.mxu0 0.0
  %5282 = vmatprep.subr.mxu0 0.0
  %5283 = vmatpush1.msra.mxu0 0.0
  %5284 = vmatprep.subr.mxu0 0.0
  %5285 = vmatpush1.msra.mxu0 0.0
  %5286 = vmatprep.subr.mxu0 0.0
  %5287 = vmatpush1.msra.mxu0 0.0
  %5288 = vmatprep.subr.mxu0 0.0
  %5289 = vmatpush1.msra.mxu0 0.0
  %5290 = vmatprep.subr.mxu0 0.0
  %5291 = vmatpush1.msra.mxu0 0.0
  %5292 = vmatprep.subr.mxu0 0.0
  %5293 = vmatpush1.msra.mxu0 0.0
  %5294 = vmatprep.subr.mxu0 0.0
  %5295 = vmatpush1.msra.mxu0 0.0
  %5296 = vmatprep.subr.mxu0 0.0
  %5297 = vmatpush1.msra.mxu0 0.0
  %5298 = vmatprep.subr.mxu0 0.0
  %5299 = vmatpush1.msra.mxu0 0.0
  %5300 = vmatprep.subr.mxu0 0.0
  %5301 = vmatpush1.msra.mxu0 0.0
  %5302 = vmatprep.subr.mxu0 0.0
  %5303 = vmatpush1.msra.mxu0 0.0
  %5304 = vmatprep.subr.mxu0 0.0
  %5305 = vmatpush1.msra.mxu0 0.0
  %5306 = vmatprep.subr.mxu0 0.0
  %5307 = vmatpush1.msra.mxu0 0.0
  %5308 = vmatprep.subr.mxu0 0.0
  %5309 = vmatpush1.msra.mxu0 0.0
  %5310 = vmatprep.subr.mxu0 0.0
  %5311 = vmatpush1.msra.mxu0 0.0
  %5312 = vmatprep.subr.mxu0 0.0
  %5313 = vmatpush1.msra.mxu0 0.0
  %5314 = vmatprep.subr.mxu0 0.0
  %5315 = vmatpush1.msra.mxu0 0.0
  %5316 = vmatprep.subr.mxu0 0.0
  %5317 = vmatpush1.msra.mxu0 0.0
  %5318 = vmatprep.mubr.f32.mxu0 0.0
  %5319 = vmatmul.mubr.f32.gmra.mrb[0].mxu0 %v5243
  %v5320 = vpop.f32.mrb[0].mxu0
  %v5321 = vadd.f32 %v5224, %v5320
  %v5322 = vpop.f32.mrb[0].mxu0
  %5323 = vmatprep.mubr.f32.mxu0 0.0
  %5324 = vmatmul.mubr.f32.gmra.mrb[0].mxu0 %v5246
  %v5325 = vpop.f32.mrb[0].mxu0
  %v5326 = vadd.f32 %v5229, %v5325
  %v5327 = vpop.f32.mrb[0].mxu0
  %5328 = vmatprep.mubr.f32.mxu0 0.0
  %5329 = vmatmul.mubr.f32.gmra.mrb[0].mxu0 %v5249
  %v5330 = vpop.f32.mrb[0].mxu0
  %v5331 = vadd.f32 %v5234, %v5330
  %v5332 = vpop.f32.mrb[0].mxu0
  %5333 = vmatprep.mubr.f32.mxu0 0.0
  %5334 = vmatmul.mubr.f32.gmra.mrb[0].mxu0 %v5252
  %v5335 = vpop.f32.mrb[0].mxu0
  %v5336 = vadd.f32 %v5239, %v5335
  %v5337 = vpop.f32.mrb[0].mxu0
  %5338 = vdwg.mxu0
  %v5340 = vsel %vm2304, %v4942, 0
  %v5343 = vsel %vm2304, %v4943, 0
  %v5346 = vsel %vm2304, %v4944, 0
  %v5349 = vsel %vm2304, %v4945, 0
  %5351 = vmatprep.subr.mxu0 0.0
  %5352 = vmatpush1.msra.mxu0 %v4932
  %5353 = vmatprep.subr.mxu0 0.0
  %5354 = vmatpush1.msra.mxu0 %v4933
  %5355 = vmatprep.subr.mxu0 0.0
  %5356 = vmatpush1.msra.mxu0 0.0
  %5357 = vmatprep.subr.mxu0 0.0
  %5358 = vmatpush1.msra.mxu0 0.0
  %5359 = vmatprep.subr.mxu0 0.0
  %5360 = vmatpush1.msra.mxu0 0.0
  %5361 = vmatprep.subr.mxu0 0.0
  %5362 = vmatpush1.msra.mxu0 0.0
  %5363 = vmatprep.subr.mxu0 0.0
  %5364 = vmatpush1.msra.mxu0 0.0
  %5365 = vmatprep.subr.mxu0 0.0
  %5366 = vmatpush1.msra.mxu0 0.0
  %5367 = vmatprep.subr.mxu0 0.0
  %5368 = vmatpush1.msra.mxu0 0.0
  %5369 = vmatprep.subr.mxu0 0.0
  %5370 = vmatpush1.msra.mxu0 0.0
  %5371 = vmatprep.subr.mxu0 0.0
  %5372 = vmatpush1.msra.mxu0 0.0
  %5373 = vmatprep.subr.mxu0 0.0
  %5374 = vmatpush1.msra.mxu0 0.0
  %5375 = vmatprep.subr.mxu0 0.0
  %5376 = vmatpush1.msra.mxu0 0.0
  %5377 = vmatprep.subr.mxu0 0.0
  %5378 = vmatpush1.msra.mxu0 0.0
  %5379 = vmatprep.subr.mxu0 0.0
  %5380 = vmatpush1.msra.mxu0 0.0
  %5381 = vmatprep.subr.mxu0 0.0
  %5382 = vmatpush1.msra.mxu0 0.0
  %5383 = vmatprep.subr.mxu0 0.0
  %5384 = vmatpush1.msra.mxu0 0.0
  %5385 = vmatprep.subr.mxu0 0.0
  %5386 = vmatpush1.msra.mxu0 0.0
  %5387 = vmatprep.subr.mxu0 0.0
  %5388 = vmatpush1.msra.mxu0 0.0
  %5389 = vmatprep.subr.mxu0 0.0
  %5390 = vmatpush1.msra.mxu0 0.0
  %5391 = vmatprep.subr.mxu0 0.0
  %5392 = vmatpush1.msra.mxu0 0.0
  %5393 = vmatprep.subr.mxu0 0.0
  %5394 = vmatpush1.msra.mxu0 0.0
  %5395 = vmatprep.subr.mxu0 0.0
  %5396 = vmatpush1.msra.mxu0 0.0
  %5397 = vmatprep.subr.mxu0 0.0
  %5398 = vmatpush1.msra.mxu0 0.0
  %5399 = vmatprep.subr.mxu0 0.0
  %5400 = vmatpush1.msra.mxu0 0.0
  %5401 = vmatprep.subr.mxu0 0.0
  %5402 = vmatpush1.msra.mxu0 0.0
  %5403 = vmatprep.subr.mxu0 0.0
  %5404 = vmatpush1.msra.mxu0 0.0
  %5405 = vmatprep.subr.mxu0 0.0
  %5406 = vmatpush1.msra.mxu0 0.0
  %5407 = vmatprep.subr.mxu0 0.0
  %5408 = vmatpush1.msra.mxu0 0.0
  %5409 = vmatprep.subr.mxu0 0.0
  %5410 = vmatpush1.msra.mxu0 0.0
  %5411 = vmatprep.subr.mxu0 0.0
  %5412 = vmatpush1.msra.mxu0 0.0
  %5413 = vmatprep.subr.mxu0 0.0
  %5414 = vmatpush1.msra.mxu0 0.0
  %5415 = vmatprep.mubr.f32.mxu0 0.0
  %5416 = vmatmul.mubr.f32.gmra.mrb[0].mxu0 %v5340
  %v5417 = vpop.f32.mrb[0].mxu0
  %v5418 = vadd.f32 0.0, %v5417
  %v5419 = vpop.f32.mrb[0].mxu0
  %5420 = vmatprep.mubr.f32.mxu0 0.0
  %5421 = vmatmul.mubr.f32.gmra.mrb[0].mxu0 %v5343
  %v5422 = vpop.f32.mrb[0].mxu0
  %v5423 = vadd.f32 0.0, %v5422
  %v5424 = vpop.f32.mrb[0].mxu0
  %5425 = vmatprep.mubr.f32.mxu0 0.0
  %5426 = vmatmul.mubr.f32.gmra.mrb[0].mxu0 %v5346
  %v5427 = vpop.f32.mrb[0].mxu0
  %v5428 = vadd.f32 0.0, %v5427
  %v5429 = vpop.f32.mrb[0].mxu0
  %5430 = vmatprep.mubr.f32.mxu0 0.0
  %5431 = vmatmul.mubr.f32.gmra.mrb[0].mxu0 %v5349
  %v5432 = vpop.f32.mrb[0].mxu0
  %v5433 = vadd.f32 0.0, %v5432
  %v5434 = vpop.f32.mrb[0].mxu0
  %5435 = vdwg.mxu0
  %v5437 = vsel %vm5144, %v5418, 0
  %v5440 = vsel %vm5144, %v5423, 0
  %v5443 = vsel %vm5144, %v5428, 0
  %v5446 = vsel %vm5144, %v5433, 0
  %5448 = vmatprep.subr.mxu0 0.0
  %5449 = vmatpush1.msra.mxu0 %v1542
  %5450 = vmatprep.subr.mxu0 0.0
  %5451 = vmatpush1.msra.mxu0 %v1544
  %5452 = vmatprep.subr.mxu0 0.0
  %5453 = vmatpush1.msra.mxu0 %v1546
  %5454 = vmatprep.subr.mxu0 0.0
  %5455 = vmatpush1.msra.mxu0 %v1548
  %5456 = vmatprep.subr.mxu0 0.0
  %5457 = vmatpush1.msra.mxu0 0.0
  %5458 = vmatprep.subr.mxu0 0.0
  %5459 = vmatpush1.msra.mxu0 0.0
  %5460 = vmatprep.subr.mxu0 0.0
  %5461 = vmatpush1.msra.mxu0 0.0
  %5462 = vmatprep.subr.mxu0 0.0
  %5463 = vmatpush1.msra.mxu0 0.0
  %5464 = vmatprep.subr.mxu0 0.0
  %5465 = vmatpush1.msra.mxu0 0.0
  %5466 = vmatprep.subr.mxu0 0.0
  %5467 = vmatpush1.msra.mxu0 0.0
  %5468 = vmatprep.subr.mxu0 0.0
  %5469 = vmatpush1.msra.mxu0 0.0
  %5470 = vmatprep.subr.mxu0 0.0
  %5471 = vmatpush1.msra.mxu0 0.0
  %5472 = vmatprep.subr.mxu0 0.0
  %5473 = vmatpush1.msra.mxu0 0.0
  %5474 = vmatprep.subr.mxu0 0.0
  %5475 = vmatpush1.msra.mxu0 0.0
  %5476 = vmatprep.subr.mxu0 0.0
  %5477 = vmatpush1.msra.mxu0 0.0
  %5478 = vmatprep.subr.mxu0 0.0
  %5479 = vmatpush1.msra.mxu0 0.0
  %5480 = vmatprep.subr.mxu0 0.0
  %5481 = vmatpush1.msra.mxu0 0.0
  %5482 = vmatprep.subr.mxu0 0.0
  %5483 = vmatpush1.msra.mxu0 0.0
  %5484 = vmatprep.subr.mxu0 0.0
  %5485 = vmatpush1.msra.mxu0 0.0
  %5486 = vmatprep.subr.mxu0 0.0
  %5487 = vmatpush1.msra.mxu0 0.0
  %5488 = vmatprep.subr.mxu0 0.0
  %5489 = vmatpush1.msra.mxu0 0.0
  %5490 = vmatprep.subr.mxu0 0.0
  %5491 = vmatpush1.msra.mxu0 0.0
  %5492 = vmatprep.subr.mxu0 0.0
  %5493 = vmatpush1.msra.mxu0 0.0
  %5494 = vmatprep.subr.mxu0 0.0
  %5495 = vmatpush1.msra.mxu0 0.0
  %5496 = vmatprep.subr.mxu0 0.0
  %5497 = vmatpush1.msra.mxu0 0.0
  %5498 = vmatprep.subr.mxu0 0.0
  %5499 = vmatpush1.msra.mxu0 0.0
  %5500 = vmatprep.subr.mxu0 0.0
  %5501 = vmatpush1.msra.mxu0 0.0
  %5502 = vmatprep.subr.mxu0 0.0
  %5503 = vmatpush1.msra.mxu0 0.0
  %5504 = vmatprep.subr.mxu0 0.0
  %5505 = vmatpush1.msra.mxu0 0.0
  %5506 = vmatprep.subr.mxu0 0.0
  %5507 = vmatpush1.msra.mxu0 0.0
  %5508 = vmatprep.subr.mxu0 0.0
  %5509 = vmatpush1.msra.mxu0 0.0
  %5510 = vmatprep.subr.mxu0 0.0
  %5511 = vmatpush1.msra.mxu0 0.0
  %5512 = vmatprep.mubr.f32.mxu0 0.0
  %5513 = vmatmul.mubr.f32.gmra.mrb[0].mxu0 %v5437
  %v5514 = vpop.f32.mrb[0].mxu0
  %v5515 = vadd.f32 0.0, %v5514
  %v5516 = vpop.f32.mrb[0].mxu0
  %5517 = vmatprep.mubr.f32.mxu0 0.0
  %5518 = vmatmul.mubr.f32.gmra.mrb[0].mxu0 %v5440
  %v5519 = vpop.f32.mrb[0].mxu0
  %v5520 = vadd.f32 0.0, %v5519
  %v5521 = vpop.f32.mrb[0].mxu0
  %5522 = vmatprep.mubr.f32.mxu0 0.0
  %5523 = vmatmul.mubr.f32.gmra.mrb[0].mxu0 %v5443
  %v5524 = vpop.f32.mrb[0].mxu0
  %v5525 = vadd.f32 0.0, %v5524
  %v5526 = vpop.f32.mrb[0].mxu0
  %5527 = vmatprep.mubr.f32.mxu0 0.0
  %5528 = vmatmul.mubr.f32.gmra.mrb[0].mxu0 %v5446
  %v5529 = vpop.f32.mrb[0].mxu0
  %v5530 = vadd.f32 0.0, %v5529
  %v5531 = vpop.f32.mrb[0].mxu0
  %5532 = vdwg.mxu0
  %v5533 = vadd.f32 %v5321, %v5515
  %v5534 = vadd.f32 %v5326, %v5520
  %v5535 = vadd.f32 %v5331, %v5525
  %v5536 = vadd.f32 %v5336, %v5530
  %5538 = vset.pattern.permute.xlu0 0
  %5539 = vperm.xlu0 %5538, %v4946
  %v5540 = vpop.permute.xlu0 %5539
  %5543 = vset.pattern.permute.xlu0 0
  %5544 = vperm.xlu0 %5543, %v4947
  %v5545 = vpop.permute.xlu0 %5544
  %5548 = vset.pattern.permute.xlu0 0
  %5549 = vperm.xlu0 %5548, %v4948
  %v5550 = vpop.permute.xlu0 %5549
  %5553 = vset.pattern.permute.xlu0 0
  %5554 = vperm.xlu0 %5553, %v4949
  %v5555 = vpop.permute.xlu0 %5554
  %v5557 = vadd.f32 %v5533, %v5540
  %v5558 = vadd.f32 %v5534, %v5545
  %v5559 = vadd.f32 %v5535, %v5550
  %v5560 = vadd.f32 %v5536, %v5555
  %vm5561 = vcmp.ge.f32.partialorder %v5557, 0.0
  %vm5562 = vcmp.ge.f32.partialorder %v5558, 0.0
  %vm5563 = vcmp.ge.f32.partialorder %v5559, 0.0
  %vm5564 = vcmp.ge.f32.partialorder %v5560, 0.0
  %v5565 = vmul.f32 %v5557, 0.01
  %v5566 = vmul.f32 %v5558, 0.01
  %v5567 = vmul.f32 %v5559, 0.01
  %v5568 = vmul.f32 %v5560, 0.01
  %v5569 = vsel %vm5561, %v5557, %v5565
  %v5570 = vsel %vm5562, %v5558, %v5566
  %v5571 = vsel %vm5563, %v5559, %v5567
  %v5572 = vsel %vm5564, %v5560, %v5568
  %v5573 = vld [vmem:[%s11] sm:$0xff]
  %v5574 = vld [vmem:[%s11 + $0x8] sm:$0xff]
  %v5575 = vld [vmem:[%s11 + $0x10] sm:$0xff]
  %v5576 = vld [vmem:[%s11 + $0x18] sm:$0xff]
  %v5577 = vld [vmem:[%s11 + $0x20] sm:$0xff]
  %v5578 = vld [vmem:[%s11 + $0x28] sm:$0xff]
  %v5579 = vld [vmem:[%s11 + $0x30] sm:$0xff]
  %v5580 = vld [vmem:[%s11 + $0x38] sm:$0xff]
  %v5581 = vld [vmem:[%s11 + $0x40] sm:$0xff]
  %v5582 = vld [vmem:[%s11 + $0x48] sm:$0xff]
  %v5583 = vld [vmem:[%s11 + $0x50] sm:$0xff]
  %v5584 = vld [vmem:[%s11 + $0x58] sm:$0xff]
  %v5585 = vld [vmem:[%s11 + $0x60] sm:$0xff]
  %v5586 = vld [vmem:[%s11 + $0x68] sm:$0xff]
  %v5587 = vld [vmem:[%s11 + $0x70] sm:$0xff]
  %v5588 = vld [vmem:[%s11 + $0x78] sm:$0xff]
  %v5589 = vld [vmem:[%s11 + $0x80] sm:$0xff]
  %v5590 = vld [vmem:[%s11 + $0x88] sm:$0xff]
  %v5591 = vld [vmem:[%s11 + $0x90] sm:$0xff]
  %v5592 = vld [vmem:[%s11 + $0x98] sm:$0xff]
  %v5593 = vld [vmem:[%s11 + $0xa0] sm:$0xff]
  %v5594 = vld [vmem:[%s11 + $0xa8] sm:$0xff]
  %v5595 = vld [vmem:[%s11 + $0xb0] sm:$0xff]
  %v5596 = vld [vmem:[%s11 + $0xb8] sm:$0xff]
  %v5597 = vld [vmem:[%s11 + $0xc0] sm:$0xff]
  %v5598 = vld [vmem:[%s11 + $0xc8] sm:$0xff]
  %v5599 = vld [vmem:[%s11 + $0xd0] sm:$0xff]
  %v5600 = vld [vmem:[%s11 + $0xd8] sm:$0xff]
  %v5601 = vld [vmem:[%s11 + $0xe0] sm:$0xff]
  %v5602 = vld [vmem:[%s11 + $0xe8] sm:$0xff]
  %v5603 = vld [vmem:[%s11 + $0xf0] sm:$0xff]
  %v5604 = vld [vmem:[%s11 + $0xf8] sm:$0xff]
  %v5605 = vld [vmem:[%s11 + $0x100] sm:$0xff]
  %v5606 = vld [vmem:[%s11 + $0x108] sm:$0xff]
  %v5607 = vld [vmem:[%s11 + $0x110] sm:$0xff]
  %v5608 = vld [vmem:[%s11 + $0x118] sm:$0xff]
  %v5609 = vld [vmem:[%s11 + $0x120] sm:$0xff]
  %v5610 = vld [vmem:[%s11 + $0x128] sm:$0xff]
  %v5611 = vld [vmem:[%s11 + $0x130] sm:$0xff]
  %v5612 = vld [vmem:[%s11 + $0x138] sm:$0xff]
  %v5613 = vld [vmem:[%s11 + $0x140] sm:$0xff]
  %v5614 = vld [vmem:[%s11 + $0x148] sm:$0xff]
  %v5615 = vld [vmem:[%s11 + $0x150] sm:$0xff]
  %v5616 = vld [vmem:[%s11 + $0x158] sm:$0xff]
  %v5617 = vld [vmem:[%s11 + $0x160] sm:$0xff]
  %v5618 = vld [vmem:[%s11 + $0x168] sm:$0xff]
  %v5619 = vld [vmem:[%s11 + $0x170] sm:$0xff]
  %v5620 = vld [vmem:[%s11 + $0x178] sm:$0xff]
  %v5621 = vld [vmem:[%s11 + $0x180] sm:$0xff]
  %v5622 = vld [vmem:[%s11 + $0x188] sm:$0xff]
  %v5623 = vld [vmem:[%s11 + $0x190] sm:$0xff]
  %v5624 = vld [vmem:[%s11 + $0x198] sm:$0xff]
  %v5625 = vld [vmem:[%s11 + $0x1a0] sm:$0xff]
  %v5626 = vld [vmem:[%s11 + $0x1a8] sm:$0xff]
  %v5627 = vld [vmem:[%s11 + $0x1b0] sm:$0xff]
  %v5628 = vld [vmem:[%s11 + $0x1b8] sm:$0xff]
  %v5629 = vld [vmem:[%s11 + $0x1c0] sm:$0xff]
  %v5630 = vld [vmem:[%s11 + $0x1c8] sm:$0xff]
  %v5631 = vld [vmem:[%s11 + $0x1d0] sm:$0xff]
  %v5632 = vld [vmem:[%s11 + $0x1d8] sm:$0xff]
  %v5633 = vld [vmem:[%s11 + $0x1e0] sm:$0xff]
  %v5634 = vld [vmem:[%s11 + $0x1e8] sm:$0xff]
  %v5635 = vld [vmem:[%s11 + $0x1f0] sm:$0xff]
  %v5636 = vld [vmem:[%s11 + $0x1f8] sm:$0xff]
  %v5637 = vld [vmem:[%s11 + $0x200] sm:$0xff]
  %v5638 = vld [vmem:[%s11 + $0x208] sm:$0xff]
  %v5639 = vld [vmem:[%s11 + $0x210] sm:$0xff]
  %v5640 = vld [vmem:[%s11 + $0x218] sm:$0xff]
  %v5641 = vld [vmem:[%s11 + $0x220] sm:$0xff]
  %v5642 = vld [vmem:[%s11 + $0x228] sm:$0xff]
  %v5643 = vld [vmem:[%s11 + $0x230] sm:$0xff]
  %v5644 = vld [vmem:[%s11 + $0x238] sm:$0xff]
  %v5645 = vld [vmem:[%s11 + $0x240] sm:$0xff]
  %v5646 = vld [vmem:[%s11 + $0x248] sm:$0xff]
  %v5647 = vld [vmem:[%s11 + $0x250] sm:$0xff]
  %v5648 = vld [vmem:[%s11 + $0x258] sm:$0xff]
  %v5649 = vld [vmem:[%s11 + $0x260] sm:$0xff]
  %v5650 = vld [vmem:[%s11 + $0x268] sm:$0xff]
  %v5651 = vld [vmem:[%s11 + $0x270] sm:$0xff]
  %v5652 = vld [vmem:[%s11 + $0x278] sm:$0xff]
  %v5653 = vld [vmem:[%s11 + $0x280] sm:$0xff]
  %v5654 = vld [vmem:[%s11 + $0x288] sm:$0xff]
  %v5655 = vld [vmem:[%s11 + $0x290] sm:$0xff]
  %v5656 = vld [vmem:[%s11 + $0x298] sm:$0xff]
  %v5657 = vld [vmem:[%s11 + $0x2a0] sm:$0xff]
  %v5658 = vld [vmem:[%s11 + $0x2a8] sm:$0xff]
  %v5659 = vld [vmem:[%s11 + $0x2b0] sm:$0xff]
  %v5660 = vld [vmem:[%s11 + $0x2b8] sm:$0xff]
  %v5661 = vld [vmem:[%s11 + $0x2c0] sm:$0xff]
  %v5662 = vld [vmem:[%s11 + $0x2c8] sm:$0xff]
  %v5663 = vld [vmem:[%s11 + $0x2d0] sm:$0xff]
  %v5664 = vld [vmem:[%s11 + $0x2d8] sm:$0xff]
  %v5665 = vld [vmem:[%s11 + $0x2e0] sm:$0xff]
  %v5666 = vld [vmem:[%s11 + $0x2e8] sm:$0xff]
  %v5667 = vld [vmem:[%s11 + $0x2f0] sm:$0xff]
  %v5668 = vld [vmem:[%s11 + $0x2f8] sm:$0xff]
  %v5669 = vld [vmem:[%s11 + $0x300] sm:$0xff]
  %v5670 = vld [vmem:[%s11 + $0x308] sm:$0xff]
  %v5671 = vld [vmem:[%s11 + $0x310] sm:$0xff]
  %v5672 = vld [vmem:[%s11 + $0x318] sm:$0xff]
  %v5673 = vld [vmem:[%s11 + $0x320] sm:$0xff]
  %v5674 = vld [vmem:[%s11 + $0x328] sm:$0xff]
  %v5675 = vld [vmem:[%s11 + $0x330] sm:$0xff]
  %v5676 = vld [vmem:[%s11 + $0x338] sm:$0xff]
  %v5677 = vld [vmem:[%s11 + $0x340] sm:$0xff]
  %v5678 = vld [vmem:[%s11 + $0x348] sm:$0xff]
  %v5679 = vld [vmem:[%s11 + $0x350] sm:$0xff]
  %v5680 = vld [vmem:[%s11 + $0x358] sm:$0xff]
  %v5681 = vld [vmem:[%s11 + $0x360] sm:$0xff]
  %v5682 = vld [vmem:[%s11 + $0x368] sm:$0xff]
  %v5683 = vld [vmem:[%s11 + $0x370] sm:$0xff]
  %v5684 = vld [vmem:[%s11 + $0x378] sm:$0xff]
  %v5685 = vld [vmem:[%s11 + $0x380] sm:$0xff]
  %v5686 = vld [vmem:[%s11 + $0x388] sm:$0xff]
  %v5687 = vld [vmem:[%s11 + $0x390] sm:$0xff]
  %v5688 = vld [vmem:[%s11 + $0x398] sm:$0xff]
  %v5689 = vld [vmem:[%s11 + $0x3a0] sm:$0xff]
  %v5690 = vld [vmem:[%s11 + $0x3a8] sm:$0xff]
  %v5691 = vld [vmem:[%s11 + $0x3b0] sm:$0xff]
  %v5692 = vld [vmem:[%s11 + $0x3b8] sm:$0xff]
  %v5693 = vld [vmem:[%s11 + $0x3c0] sm:$0xff]
  %v5694 = vld [vmem:[%s11 + $0x3c8] sm:$0xff]
  %v5695 = vld [vmem:[%s11 + $0x3d0] sm:$0xff]
  %v5696 = vld [vmem:[%s11 + $0x3d8] sm:$0xff]
  %v5697 = vld [vmem:[%s11 + $0x3e0] sm:$0xff]
  %v5698 = vld [vmem:[%s11 + $0x3e8] sm:$0xff]
  %v5699 = vld [vmem:[%s11 + $0x3f0] sm:$0xff]
  %v5700 = vld [vmem:[%s11 + $0x3f8] sm:$0xff]
  %v5701 = vld [vmem:[%s12] sm:$0xff]
  %v5702 = vld [vmem:[%s12 + $0x8] sm:$0xff]
  %v5703 = vld [vmem:[%s12 + $0x10] sm:$0xff]
  %v5704 = vld [vmem:[%s12 + $0x18] sm:$0xff]
  %v5705 = vld [vmem:[%s12 + $0x20] sm:$0xff]
  %v5706 = vld [vmem:[%s12 + $0x28] sm:$0xff]
  %v5707 = vld [vmem:[%s12 + $0x30] sm:$0xff]
  %v5708 = vld [vmem:[%s12 + $0x38] sm:$0xff]
  %vm5709 = vcmp.eq.s32.totalorder %v74, %v107
  %vm5710 = vcmp.eq.s32.totalorder %v75, %v107
  %vm5711 = vcmp.eq.s32.totalorder %v76, %v107
  %vm5712 = vcmp.eq.s32.totalorder %v77, %v107
  %v5713 = vsel %vm5709, 1.0, 0.0
  %v5714 = vsel %vm5710, 1.0, 0.0
  %v5715 = vsel %vm5711, 1.0, 0.0
  %v5716 = vsel %vm5712, 1.0, 0.0
  %v5718 = vsel %vm5144, %v5569, 0
  %v5721 = vsel %vm5144, %v5570, 0
  %v5724 = vsel %vm5144, %v5571, 0
  %v5727 = vsel %vm5144, %v5572, 0
  %5729 = vmatprep.subr.mxu0 0.0
  %5730 = vmatpush1.msra.mxu0 %v5713
  %5731 = vmatprep.subr.mxu0 0.0
  %5732 = vmatpush1.msra.mxu0 %v5714
  %5733 = vmatprep.subr.mxu0 0.0
  %5734 = vmatpush1.msra.mxu0 %v5715
  %5735 = vmatprep.subr.mxu0 0.0
  %5736 = vmatpush1.msra.mxu0 %v5716
  %5737 = vmatprep.subr.mxu0 0.0
  %5738 = vmatpush1.msra.mxu0 0.0
  %5739 = vmatprep.subr.mxu0 0.0
  %5740 = vmatpush1.msra.mxu0 0.0
  %5741 = vmatprep.subr.mxu0 0.0
  %5742 = vmatpush1.msra.mxu0 0.0
  %5743 = vmatprep.subr.mxu0 0.0
  %5744 = vmatpush1.msra.mxu0 0.0
  %5745 = vmatprep.subr.mxu0 0.0
  %5746 = vmatpush1.msra.mxu0 0.0
  %5747 = vmatprep.subr.mxu0 0.0
  %5748 = vmatpush1.msra.mxu0 0.0
  %5749 = vmatprep.subr.mxu0 0.0
  %5750 = vmatpush1.msra.mxu0 0.0
  %5751 = vmatprep.subr.mxu0 0.0
  %5752 = vmatpush1.msra.mxu0 0.0
  %5753 = vmatprep.subr.mxu0 0.0
  %5754 = vmatpush1.msra.mxu0 0.0
  %5755 = vmatprep.subr.mxu0 0.0
  %5756 = vmatpush1.msra.mxu0 0.0
  %5757 = vmatprep.subr.mxu0 0.0
  %5758 = vmatpush1.msra.mxu0 0.0
  %5759 = vmatprep.subr.mxu0 0.0
  %5760 = vmatpush1.msra.mxu0 0.0
  %5761 = vmatprep.subr.mxu0 0.0
  %5762 = vmatpush1.msra.mxu0 0.0
  %5763 = vmatprep.subr.mxu0 0.0
  %5764 = vmatpush1.msra.mxu0 0.0
  %5765 = vmatprep.subr.mxu0 0.0
  %5766 = vmatpush1.msra.mxu0 0.0
  %5767 = vmatprep.subr.mxu0 0.0
  %5768 = vmatpush1.msra.mxu0 0.0
  %5769 = vmatprep.subr.mxu0 0.0
  %5770 = vmatpush1.msra.mxu0 0.0
  %5771 = vmatprep.subr.mxu0 0.0
  %5772 = vmatpush1.msra.mxu0 0.0
  %5773 = vmatprep.subr.mxu0 0.0
  %5774 = vmatpush1.msra.mxu0 0.0
  %5775 = vmatprep.subr.mxu0 0.0
  %5776 = vmatpush1.msra.mxu0 0.0
  %5777 = vmatprep.subr.mxu0 0.0
  %5778 = vmatpush1.msra.mxu0 0.0
  %5779 = vmatprep.subr.mxu0 0.0
  %5780 = vmatpush1.msra.mxu0 0.0
  %5781 = vmatprep.subr.mxu0 0.0
  %5782 = vmatpush1.msra.mxu0 0.0
  %5783 = vmatprep.subr.mxu0 0.0
  %5784 = vmatpush1.msra.mxu0 0.0
  %5785 = vmatprep.subr.mxu0 0.0
  %5786 = vmatpush1.msra.mxu0 0.0
  %5787 = vmatprep.subr.mxu0 0.0
  %5788 = vmatpush1.msra.mxu0 0.0
  %5789 = vmatprep.subr.mxu0 0.0
  %5790 = vmatpush1.msra.mxu0 0.0
  %5791 = vmatprep.subr.mxu0 0.0
  %5792 = vmatpush1.msra.mxu0 0.0
  %5793 = vmatprep.mubr.f32.mxu0 0.0
  %5794 = vmatmul.mubr.f32.gmra.mrb[0].mxu0 %v5718
  %v5795 = vpop.f32.mrb[0].mxu0
  %v5796 = vadd.f32 0.0, %v5795
  %v5797 = vpop.f32.mrb[0].mxu0
  %5798 = vmatprep.mubr.f32.mxu0 0.0
  %5799 = vmatmul.mubr.f32.gmra.mrb[0].mxu0 %v5721
  %v5800 = vpop.f32.mrb[0].mxu0
  %v5801 = vadd.f32 0.0, %v5800
  %v5802 = vpop.f32.mrb[0].mxu0
  %5803 = vmatprep.mubr.f32.mxu0 0.0
  %5804 = vmatmul.mubr.f32.gmra.mrb[0].mxu0 %v5724
  %v5805 = vpop.f32.mrb[0].mxu0
  %v5806 = vadd.f32 0.0, %v5805
  %v5807 = vpop.f32.mrb[0].mxu0
  %5808 = vmatprep.mubr.f32.mxu0 0.0
  %5809 = vmatmul.mubr.f32.gmra.mrb[0].mxu0 %v5727
  %v5810 = vpop.f32.mrb[0].mxu0
  %v5811 = vadd.f32 0.0, %v5810
  %v5812 = vpop.f32.mrb[0].mxu0
  %5813 = vdwg.mxu0
  %v5814 = vadd.s32 %v107, 2
  %vm5815 = vcmp.eq.s32.totalorder %v74, %v5814
  %vm5816 = vcmp.eq.s32.totalorder %v75, %v5814
  %vm5817 = vcmp.eq.s32.totalorder %v76, %v5814
  %vm5818 = vcmp.eq.s32.totalorder %v77, %v5814
  %v5819 = vsel %vm5815, 1.0, 0.0
  %v5820 = vsel %vm5816, 1.0, 0.0
  %v5821 = vsel %vm5817, 1.0, 0.0
  %v5822 = vsel %vm5818, 1.0, 0.0
  %5823 = vmatprep.subr.mxu0 0.0
  %5824 = vmatpush1.msra.mxu0 %v5819
  %5825 = vmatprep.subr.mxu0 0.0
  %5826 = vmatpush1.msra.mxu0 %v5820
  %5827 = vmatprep.subr.mxu0 0.0
  %5828 = vmatpush1.msra.mxu0 %v5821
  %5829 = vmatprep.subr.mxu0 0.0
  %5830 = vmatpush1.msra.mxu0 %v5822
  %5831 = vmatprep.subr.mxu0 0.0
  %5832 = vmatpush1.msra.mxu0 0.0
  %5833 = vmatprep.subr.mxu0 0.0
  %5834 = vmatpush1.msra.mxu0 0.0
  %5835 = vmatprep.subr.mxu0 0.0
  %5836 = vmatpush1.msra.mxu0 0.0
  %5837 = vmatprep.subr.mxu0 0.0
  %5838 = vmatpush1.msra.mxu0 0.0
  %5839 = vmatprep.subr.mxu0 0.0
  %5840 = vmatpush1.msra.mxu0 0.0
  %5841 = vmatprep.subr.mxu0 0.0
  %5842 = vmatpush1.msra.mxu0 0.0
  %5843 = vmatprep.subr.mxu0 0.0
  %5844 = vmatpush1.msra.mxu0 0.0
  %5845 = vmatprep.subr.mxu0 0.0
  %5846 = vmatpush1.msra.mxu0 0.0
  %5847 = vmatprep.subr.mxu0 0.0
  %5848 = vmatpush1.msra.mxu0 0.0
  %5849 = vmatprep.subr.mxu0 0.0
  %5850 = vmatpush1.msra.mxu0 0.0
  %5851 = vmatprep.subr.mxu0 0.0
  %5852 = vmatpush1.msra.mxu0 0.0
  %5853 = vmatprep.subr.mxu0 0.0
  %5854 = vmatpush1.msra.mxu0 0.0
  %5855 = vmatprep.subr.mxu0 0.0
  %5856 = vmatpush1.msra.mxu0 0.0
  %5857 = vmatprep.subr.mxu0 0.0
  %5858 = vmatpush1.msra.mxu0 0.0
  %5859 = vmatprep.subr.mxu0 0.0
  %5860 = vmatpush1.msra.mxu0 0.0
  %5861 = vmatprep.subr.mxu0 0.0
  %5862 = vmatpush1.msra.mxu0 0.0
  %5863 = vmatprep.subr.mxu0 0.0
  %5864 = vmatpush1.msra.mxu0 0.0
  %5865 = vmatprep.subr.mxu0 0.0
  %5866 = vmatpush1.msra.mxu0 0.0
  %5867 = vmatprep.subr.mxu0 0.0
  %5868 = vmatpush1.msra.mxu0 0.0
  %5869 = vmatprep.subr.mxu0 0.0
  %5870 = vmatpush1.msra.mxu0 0.0
  %5871 = vmatprep.subr.mxu0 0.0
  %5872 = vmatpush1.msra.mxu0 0.0
  %5873 = vmatprep.subr.mxu0 0.0
  %5874 = vmatpush1.msra.mxu0 0.0
  %5875 = vmatprep.subr.mxu0 0.0
  %5876 = vmatpush1.msra.mxu0 0.0
  %5877 = vmatprep.subr.mxu0 0.0
  %5878 = vmatpush1.msra.mxu0 0.0
  %5879 = vmatprep.subr.mxu0 0.0
  %5880 = vmatpush1.msra.mxu0 0.0
  %5881 = vmatprep.subr.mxu0 0.0
  %5882 = vmatpush1.msra.mxu0 0.0
  %5883 = vmatprep.subr.mxu0 0.0
  %5884 = vmatpush1.msra.mxu0 0.0
  %5885 = vmatprep.subr.mxu0 0.0
  %5886 = vmatpush1.msra.mxu0 0.0
  %5887 = vmatprep.mubr.f32.mxu0 0.0
  %5888 = vmatmul.mubr.f32.gmra.mrb[0].mxu0 %v5718
  %v5889 = vpop.f32.mrb[0].mxu0
  %v5890 = vadd.f32 0.0, %v5889
  %v5891 = vpop.f32.mrb[0].mxu0
  %5892 = vmatprep.mubr.f32.mxu0 0.0
  %5893 = vmatmul.mubr.f32.gmra.mrb[0].mxu0 %v5721
  %v5894 = vpop.f32.mrb[0].mxu0
  %v5895 = vadd.f32 0.0, %v5894
  %v5896 = vpop.f32.mrb[0].mxu0
  %5897 = vmatprep.mubr.f32.mxu0 0.0
  %5898 = vmatmul.mubr.f32.gmra.mrb[0].mxu0 %v5724
  %v5899 = vpop.f32.mrb[0].mxu0
  %v5900 = vadd.f32 0.0, %v5899
  %v5901 = vpop.f32.mrb[0].mxu0
  %5902 = vmatprep.mubr.f32.mxu0 0.0
  %5903 = vmatmul.mubr.f32.gmra.mrb[0].mxu0 %v5727
  %v5904 = vpop.f32.mrb[0].mxu0
  %v5905 = vadd.f32 0.0, %v5904
  %v5906 = vpop.f32.mrb[0].mxu0
  %5907 = vdwg.mxu0
  %v5909 = vsel %vm5144, %v5581, 0
  %v5912 = vsel %vm5144, %v5582, 0
  %v5915 = vsel %vm5144, %v5583, 0
  %v5918 = vsel %vm5144, %v5584, 0
  %v5921 = vsel %vm5144, %v5585, 0
  %v5924 = vsel %vm5144, %v5586, 0
  %v5927 = vsel %vm5144, %v5587, 0
  %v5930 = vsel %vm5144, %v5588, 0
  %5932 = vmatprep.subr.mxu0 0.0
  %5933 = vmatpush1.msra.mxu0 %v5890
  %5934 = vmatprep.subr.mxu0 0.0
  %5935 = vmatpush1.msra.mxu0 %v5895
  %5936 = vmatprep.subr.mxu0 0.0
  %5937 = vmatpush1.msra.mxu0 %v5900
  %5938 = vmatprep.subr.mxu0 0.0
  %5939 = vmatpush1.msra.mxu0 %v5905
  %5940 = vmatprep.subr.mxu0 0.0
  %5941 = vmatpush1.msra.mxu0 0.0
  %5942 = vmatprep.subr.mxu0 0.0
  %5943 = vmatpush1.msra.mxu0 0.0
  %5944 = vmatprep.subr.mxu0 0.0
  %5945 = vmatpush1.msra.mxu0 0.0
  %5946 = vmatprep.subr.mxu0 0.0
  %5947 = vmatpush1.msra.mxu0 0.0
  %5948 = vmatprep.subr.mxu0 0.0
  %5949 = vmatpush1.msra.mxu0 0.0
  %5950 = vmatprep.subr.mxu0 0.0
  %5951 = vmatpush1.msra.mxu0 0.0
  %5952 = vmatprep.subr.mxu0 0.0
  %5953 = vmatpush1.msra.mxu0 0.0
  %5954 = vmatprep.subr.mxu0 0.0
  %5955 = vmatpush1.msra.mxu0 0.0
  %5956 = vmatprep.subr.mxu0 0.0
  %5957 = vmatpush1.msra.mxu0 0.0
  %5958 = vmatprep.subr.mxu0 0.0
  %5959 = vmatpush1.msra.mxu0 0.0
  %5960 = vmatprep.subr.mxu0 0.0
  %5961 = vmatpush1.msra.mxu0 0.0
  %5962 = vmatprep.subr.mxu0 0.0
  %5963 = vmatpush1.msra.mxu0 0.0
  %5964 = vmatprep.subr.mxu0 0.0
  %5965 = vmatpush1.msra.mxu0 0.0
  %5966 = vmatprep.subr.mxu0 0.0
  %5967 = vmatpush1.msra.mxu0 0.0
  %5968 = vmatprep.subr.mxu0 0.0
  %5969 = vmatpush1.msra.mxu0 0.0
  %5970 = vmatprep.subr.mxu0 0.0
  %5971 = vmatpush1.msra.mxu0 0.0
  %5972 = vmatprep.subr.mxu0 0.0
  %5973 = vmatpush1.msra.mxu0 0.0
  %5974 = vmatprep.subr.mxu0 0.0
  %5975 = vmatpush1.msra.mxu0 0.0
  %5976 = vmatprep.subr.mxu0 0.0
  %5977 = vmatpush1.msra.mxu0 0.0
  %5978 = vmatprep.subr.mxu0 0.0
  %5979 = vmatpush1.msra.mxu0 0.0
  %5980 = vmatprep.subr.mxu0 0.0
  %5981 = vmatpush1.msra.mxu0 0.0
  %5982 = vmatprep.subr.mxu0 0.0
  %5983 = vmatpush1.msra.mxu0 0.0
  %5984 = vmatprep.subr.mxu0 0.0
  %5985 = vmatpush1.msra.mxu0 0.0
  %5986 = vmatprep.subr.mxu0 0.0
  %5987 = vmatpush1.msra.mxu0 0.0
  %5988 = vmatprep.subr.mxu0 0.0
  %5989 = vmatpush1.msra.mxu0 0.0
  %5990 = vmatprep.subr.mxu0 0.0
  %5991 = vmatpush1.msra.mxu0 0.0
  %5992 = vmatprep.subr.mxu0 0.0
  %5993 = vmatpush1.msra.mxu0 0.0
  %5994 = vmatprep.subr.mxu0 0.0
  %5995 = vmatpush1.msra.mxu0 0.0
  %5996 = vmatprep.mubr.f32.mxu0 0.0
  %5997 = vmatmul.mubr.f32.gmra.mrb[0].mxu0 %v5909
  %v5998 = vpop.f32.mrb[0].mxu0
  %v5999 = vadd.f32 0.0, %v5998
  %v6000 = vpop.f32.mrb[0].mxu0
  %6001 = vmatprep.mubr.f32.mxu0 0.0
  %6002 = vmatmul.mubr.f32.gmra.mrb[0].mxu0 %v5912
  %v6003 = vpop.f32.mrb[0].mxu0
  %v6004 = vadd.f32 0.0, %v6003
  %v6005 = vpop.f32.mrb[0].mxu0
  %6006 = vmatprep.mubr.f32.mxu0 0.0
  %6007 = vmatmul.mubr.f32.gmra.mrb[0].mxu0 %v5915
  %v6008 = vpop.f32.mrb[0].mxu0
  %v6009 = vadd.f32 0.0, %v6008
  %v6010 = vpop.f32.mrb[0].mxu0
  %6011 = vmatprep.mubr.f32.mxu0 0.0
  %6012 = vmatmul.mubr.f32.gmra.mrb[0].mxu0 %v5918
  %v6013 = vpop.f32.mrb[0].mxu0
  %v6014 = vadd.f32 0.0, %v6013
  %v6015 = vpop.f32.mrb[0].mxu0
  %6016 = vmatprep.mubr.f32.mxu0 0.0
  %6017 = vmatmul.mubr.f32.gmra.mrb[0].mxu0 %v5921
  %v6018 = vpop.f32.mrb[0].mxu0
  %v6019 = vadd.f32 0.0, %v6018
  %v6020 = vpop.f32.mrb[0].mxu0
  %6021 = vmatprep.mubr.f32.mxu0 0.0
  %6022 = vmatmul.mubr.f32.gmra.mrb[0].mxu0 %v5924
  %v6023 = vpop.f32.mrb[0].mxu0
  %v6024 = vadd.f32 0.0, %v6023
  %v6025 = vpop.f32.mrb[0].mxu0
  %6026 = vmatprep.mubr.f32.mxu0 0.0
  %6027 = vmatmul.mubr.f32.gmra.mrb[0].mxu0 %v5927
  %v6028 = vpop.f32.mrb[0].mxu0
  %v6029 = vadd.f32 0.0, %v6028
  %v6030 = vpop.f32.mrb[0].mxu0
  %6031 = vmatprep.mubr.f32.mxu0 0.0
  %6032 = vmatmul.mubr.f32.gmra.mrb[0].mxu0 %v5930
  %v6033 = vpop.f32.mrb[0].mxu0
  %v6034 = vadd.f32 0.0, %v6033
  %v6035 = vpop.f32.mrb[0].mxu0
  %6036 = vdwg.mxu0
  %v6038 = vsel %vm5144, %v5573, 0
  %v6041 = vsel %vm5144, %v5574, 0
  %v6044 = vsel %vm5144, %v5575, 0
  %v6047 = vsel %vm5144, %v5576, 0
  %v6050 = vsel %vm5144, %v5577, 0
  %v6053 = vsel %vm5144, %v5578, 0
  %v6056 = vsel %vm5144, %v5579, 0
  %v6059 = vsel %vm5144, %v5580, 0
  %6061 = vmatprep.subr.mxu0 0.0
  %6062 = vmatpush1.msra.mxu0 %v5796
  %6063 = vmatprep.subr.mxu0 0.0
  %6064 = vmatpush1.msra.mxu0 %v5801
  %6065 = vmatprep.subr.mxu0 0.0
  %6066 = vmatpush1.msra.mxu0 %v5806
  %6067 = vmatprep.subr.mxu0 0.0
  %6068 = vmatpush1.msra.mxu0 %v5811
  %6069 = vmatprep.subr.mxu0 0.0
  %6070 = vmatpush1.msra.mxu0 0.0
  %6071 = vmatprep.subr.mxu0 0.0
  %6072 = vmatpush1.msra.mxu0 0.0
  %6073 = vmatprep.subr.mxu0 0.0
  %6074 = vmatpush1.msra.mxu0 0.0
  %6075 = vmatprep.subr.mxu0 0.0
  %6076 = vmatpush1.msra.mxu0 0.0
  %6077 = vmatprep.subr.mxu0 0.0
  %6078 = vmatpush1.msra.mxu0 0.0
  %6079 = vmatprep.subr.mxu0 0.0
  %6080 = vmatpush1.msra.mxu0 0.0
  %6081 = vmatprep.subr.mxu0 0.0
  %6082 = vmatpush1.msra.mxu0 0.0
  %6083 = vmatprep.subr.mxu0 0.0
  %6084 = vmatpush1.msra.mxu0 0.0
  %6085 = vmatprep.subr.mxu0 0.0
  %6086 = vmatpush1.msra.mxu0 0.0
  %6087 = vmatprep.subr.mxu0 0.0
  %6088 = vmatpush1.msra.mxu0 0.0
  %6089 = vmatprep.subr.mxu0 0.0
  %6090 = vmatpush1.msra.mxu0 0.0
  %6091 = vmatprep.subr.mxu0 0.0
  %6092 = vmatpush1.msra.mxu0 0.0
  %6093 = vmatprep.subr.mxu0 0.0
  %6094 = vmatpush1.msra.mxu0 0.0
  %6095 = vmatprep.subr.mxu0 0.0
  %6096 = vmatpush1.msra.mxu0 0.0
  %6097 = vmatprep.subr.mxu0 0.0
  %6098 = vmatpush1.msra.mxu0 0.0
  %6099 = vmatprep.subr.mxu0 0.0
  %6100 = vmatpush1.msra.mxu0 0.0
  %6101 = vmatprep.subr.mxu0 0.0
  %6102 = vmatpush1.msra.mxu0 0.0
  %6103 = vmatprep.subr.mxu0 0.0
  %6104 = vmatpush1.msra.mxu0 0.0
  %6105 = vmatprep.subr.mxu0 0.0
  %6106 = vmatpush1.msra.mxu0 0.0
  %6107 = vmatprep.subr.mxu0 0.0
  %6108 = vmatpush1.msra.mxu0 0.0
  %6109 = vmatprep.subr.mxu0 0.0
  %6110 = vmatpush1.msra.mxu0 0.0
  %6111 = vmatprep.subr.mxu0 0.0
  %6112 = vmatpush1.msra.mxu0 0.0
  %6113 = vmatprep.subr.mxu0 0.0
  %6114 = vmatpush1.msra.mxu0 0.0
  %6115 = vmatprep.subr.mxu0 0.0
  %6116 = vmatpush1.msra.mxu0 0.0
  %6117 = vmatprep.subr.mxu0 0.0
  %6118 = vmatpush1.msra.mxu0 0.0
  %6119 = vmatprep.subr.mxu0 0.0
  %6120 = vmatpush1.msra.mxu0 0.0
  %6121 = vmatprep.subr.mxu0 0.0
  %6122 = vmatpush1.msra.mxu0 0.0
  %6123 = vmatprep.subr.mxu0 0.0
  %6124 = vmatpush1.msra.mxu0 0.0
  %6125 = vmatprep.mubr.f32.mxu0 0.0
  %6126 = vmatmul.mubr.f32.gmra.mrb[0].mxu0 %v6038
  %v6127 = vpop.f32.mrb[0].mxu0
  %v6128 = vadd.f32 %v5999, %v6127
  %v6129 = vpop.f32.mrb[0].mxu0
  %6130 = vmatprep.mubr.f32.mxu0 0.0
  %6131 = vmatmul.mubr.f32.gmra.mrb[0].mxu0 %v6041
  %v6132 = vpop.f32.mrb[0].mxu0
  %v6133 = vadd.f32 %v6004, %v6132
  %v6134 = vpop.f32.mrb[0].mxu0
  %6135 = vmatprep.mubr.f32.mxu0 0.0
  %6136 = vmatmul.mubr.f32.gmra.mrb[0].mxu0 %v6044
  %v6137 = vpop.f32.mrb[0].mxu0
  %v6138 = vadd.f32 %v6009, %v6137
  %v6139 = vpop.f32.mrb[0].mxu0
  %6140 = vmatprep.mubr.f32.mxu0 0.0
  %6141 = vmatmul.mubr.f32.gmra.mrb[0].mxu0 %v6047
  %v6142 = vpop.f32.mrb[0].mxu0
  %v6143 = vadd.f32 %v6014, %v6142
  %v6144 = vpop.f32.mrb[0].mxu0
  %6145 = vmatprep.mubr.f32.mxu0 0.0
  %6146 = vmatmul.mubr.f32.gmra.mrb[0].mxu0 %v6050
  %v6147 = vpop.f32.mrb[0].mxu0
  %v6148 = vadd.f32 %v6019, %v6147
  %v6149 = vpop.f32.mrb[0].mxu0
  %6150 = vmatprep.mubr.f32.mxu0 0.0
  %6151 = vmatmul.mubr.f32.gmra.mrb[0].mxu0 %v6053
  %v6152 = vpop.f32.mrb[0].mxu0
  %v6153 = vadd.f32 %v6024, %v6152
  %v6154 = vpop.f32.mrb[0].mxu0
  %6155 = vmatprep.mubr.f32.mxu0 0.0
  %6156 = vmatmul.mubr.f32.gmra.mrb[0].mxu0 %v6056
  %v6157 = vpop.f32.mrb[0].mxu0
  %v6158 = vadd.f32 %v6029, %v6157
  %v6159 = vpop.f32.mrb[0].mxu0
  %6160 = vmatprep.mubr.f32.mxu0 0.0
  %6161 = vmatmul.mubr.f32.gmra.mrb[0].mxu0 %v6059
  %v6162 = vpop.f32.mrb[0].mxu0
  %v6163 = vadd.f32 %v6034, %v6162
  %v6164 = vpop.f32.mrb[0].mxu0
  %6165 = vdwg.mxu0
  %v6166 = vadd.s32 %v107, 4
  %vm6167 = vcmp.eq.s32.totalorder %v74, %v6166
  %vm6168 = vcmp.eq.s32.totalorder %v75, %v6166
  %vm6169 = vcmp.eq.s32.totalorder %v76, %v6166
  %vm6170 = vcmp.eq.s32.totalorder %v77, %v6166
  %v6171 = vsel %vm6167, 1.0, 0.0
  %v6172 = vsel %vm6168, 1.0, 0.0
  %v6173 = vsel %vm6169, 1.0, 0.0
  %v6174 = vsel %vm6170, 1.0, 0.0
  %6175 = vmatprep.subr.mxu0 0.0
  %6176 = vmatpush1.msra.mxu0 %v6171
  %6177 = vmatprep.subr.mxu0 0.0
  %6178 = vmatpush1.msra.mxu0 %v6172
  %6179 = vmatprep.subr.mxu0 0.0
  %6180 = vmatpush1.msra.mxu0 %v6173
  %6181 = vmatprep.subr.mxu0 0.0
  %6182 = vmatpush1.msra.mxu0 %v6174
  %6183 = vmatprep.subr.mxu0 0.0
  %6184 = vmatpush1.msra.mxu0 0.0
  %6185 = vmatprep.subr.mxu0 0.0
  %6186 = vmatpush1.msra.mxu0 0.0
  %6187 = vmatprep.subr.mxu0 0.0
  %6188 = vmatpush1.msra.mxu0 0.0
  %6189 = vmatprep.subr.mxu0 0.0
  %6190 = vmatpush1.msra.mxu0 0.0
  %6191 = vmatprep.subr.mxu0 0.0
  %6192 = vmatpush1.msra.mxu0 0.0
  %6193 = vmatprep.subr.mxu0 0.0
  %6194 = vmatpush1.msra.mxu0 0.0
  %6195 = vmatprep.subr.mxu0 0.0
  %6196 = vmatpush1.msra.mxu0 0.0
  %6197 = vmatprep.subr.mxu0 0.0
  %6198 = vmatpush1.msra.mxu0 0.0
  %6199 = vmatprep.subr.mxu0 0.0
  %6200 = vmatpush1.msra.mxu0 0.0
  %6201 = vmatprep.subr.mxu0 0.0
  %6202 = vmatpush1.msra.mxu0 0.0
  %6203 = vmatprep.subr.mxu0 0.0
  %6204 = vmatpush1.msra.mxu0 0.0
  %6205 = vmatprep.subr.mxu0 0.0
  %6206 = vmatpush1.msra.mxu0 0.0
  %6207 = vmatprep.subr.mxu0 0.0
  %6208 = vmatpush1.msra.mxu0 0.0
  %6209 = vmatprep.subr.mxu0 0.0
  %6210 = vmatpush1.msra.mxu0 0.0
  %6211 = vmatprep.subr.mxu0 0.0
  %6212 = vmatpush1.msra.mxu0 0.0
  %6213 = vmatprep.subr.mxu0 0.0
  %6214 = vmatpush1.msra.mxu0 0.0
  %6215 = vmatprep.subr.mxu0 0.0
  %6216 = vmatpush1.msra.mxu0 0.0
  %6217 = vmatprep.subr.mxu0 0.0
  %6218 = vmatpush1.msra.mxu0 0.0
  %6219 = vmatprep.subr.mxu0 0.0
  %6220 = vmatpush1.msra.mxu0 0.0
  %6221 = vmatprep.subr.mxu0 0.0
  %6222 = vmatpush1.msra.mxu0 0.0
  %6223 = vmatprep.subr.mxu0 0.0
  %6224 = vmatpush1.msra.mxu0 0.0
  %6225 = vmatprep.subr.mxu0 0.0
  %6226 = vmatpush1.msra.mxu0 0.0
  %6227 = vmatprep.subr.mxu0 0.0
  %6228 = vmatpush1.msra.mxu0 0.0
  %6229 = vmatprep.subr.mxu0 0.0
  %6230 = vmatpush1.msra.mxu0 0.0
  %6231 = vmatprep.subr.mxu0 0.0
  %6232 = vmatpush1.msra.mxu0 0.0
  %6233 = vmatprep.subr.mxu0 0.0
  %6234 = vmatpush1.msra.mxu0 0.0
  %6235 = vmatprep.subr.mxu0 0.0
  %6236 = vmatpush1.msra.mxu0 0.0
  %6237 = vmatprep.subr.mxu0 0.0
  %6238 = vmatpush1.msra.mxu0 0.0
  %6239 = vmatprep.mubr.f32.mxu0 0.0
  %6240 = vmatmul.mubr.f32.gmra.mrb[0].mxu0 %v5718
  %v6241 = vpop.f32.mrb[0].mxu0
  %v6242 = vadd.f32 0.0, %v6241
  %v6243 = vpop.f32.mrb[0].mxu0
  %6244 = vmatprep.mubr.f32.mxu0 0.0
  %6245 = vmatmul.mubr.f32.gmra.mrb[0].mxu0 %v5721
  %v6246 = vpop.f32.mrb[0].mxu0
  %v6247 = vadd.f32 0.0, %v6246
  %v6248 = vpop.f32.mrb[0].mxu0
  %6249 = vmatprep.mubr.f32.mxu0 0.0
  %6250 = vmatmul.mubr.f32.gmra.mrb[0].mxu0 %v5724
  %v6251 = vpop.f32.mrb[0].mxu0
  %v6252 = vadd.f32 0.0, %v6251
  %v6253 = vpop.f32.mrb[0].mxu0
  %6254 = vmatprep.mubr.f32.mxu0 0.0
  %6255 = vmatmul.mubr.f32.gmra.mrb[0].mxu0 %v5727
  %v6256 = vpop.f32.mrb[0].mxu0
  %v6257 = vadd.f32 0.0, %v6256
  %v6258 = vpop.f32.mrb[0].mxu0
  %6259 = vdwg.mxu0
  %v6261 = vsel %vm5144, %v5589, 0
  %v6264 = vsel %vm5144, %v5590, 0
  %v6267 = vsel %vm5144, %v5591, 0
  %v6270 = vsel %vm5144, %v5592, 0
  %v6273 = vsel %vm5144, %v5593, 0
  %v6276 = vsel %vm5144, %v5594, 0
  %v6279 = vsel %vm5144, %v5595, 0
  %v6282 = vsel %vm5144, %v5596, 0
  %6284 = vmatprep.subr.mxu0 0.0
  %6285 = vmatpush1.msra.mxu0 %v6242
  %6286 = vmatprep.subr.mxu0 0.0
  %6287 = vmatpush1.msra.mxu0 %v6247
  %6288 = vmatprep.subr.mxu0 0.0
  %6289 = vmatpush1.msra.mxu0 %v6252
  %6290 = vmatprep.subr.mxu0 0.0
  %6291 = vmatpush1.msra.mxu0 %v6257
  %6292 = vmatprep.subr.mxu0 0.0
  %6293 = vmatpush1.msra.mxu0 0.0
  %6294 = vmatprep.subr.mxu0 0.0
  %6295 = vmatpush1.msra.mxu0 0.0
  %6296 = vmatprep.subr.mxu0 0.0
  %6297 = vmatpush1.msra.mxu0 0.0
  %6298 = vmatprep.subr.mxu0 0.0
  %6299 = vmatpush1.msra.mxu0 0.0
  %6300 = vmatprep.subr.mxu0 0.0
  %6301 = vmatpush1.msra.mxu0 0.0
  %6302 = vmatprep.subr.mxu0 0.0
  %6303 = vmatpush1.msra.mxu0 0.0
  %6304 = vmatprep.subr.mxu0 0.0
  %6305 = vmatpush1.msra.mxu0 0.0
  %6306 = vmatprep.subr.mxu0 0.0
  %6307 = vmatpush1.msra.mxu0 0.0
  %6308 = vmatprep.subr.mxu0 0.0
  %6309 = vmatpush1.msra.mxu0 0.0
  %6310 = vmatprep.subr.mxu0 0.0
  %6311 = vmatpush1.msra.mxu0 0.0
  %6312 = vmatprep.subr.mxu0 0.0
  %6313 = vmatpush1.msra.mxu0 0.0
  %6314 = vmatprep.subr.mxu0 0.0
  %6315 = vmatpush1.msra.mxu0 0.0
  %6316 = vmatprep.subr.mxu0 0.0
  %6317 = vmatpush1.msra.mxu0 0.0
  %6318 = vmatprep.subr.mxu0 0.0
  %6319 = vmatpush1.msra.mxu0 0.0
  %6320 = vmatprep.subr.mxu0 0.0
  %6321 = vmatpush1.msra.mxu0 0.0
  %6322 = vmatprep.subr.mxu0 0.0
  %6323 = vmatpush1.msra.mxu0 0.0
  %6324 = vmatprep.subr.mxu0 0.0
  %6325 = vmatpush1.msra.mxu0 0.0
  %6326 = vmatprep.subr.mxu0 0.0
  %6327 = vmatpush1.msra.mxu0 0.0
  %6328 = vmatprep.subr.mxu0 0.0
  %6329 = vmatpush1.msra.mxu0 0.0
  %6330 = vmatprep.subr.mxu0 0.0
  %6331 = vmatpush1.msra.mxu0 0.0
  %6332 = vmatprep.subr.mxu0 0.0
  %6333 = vmatpush1.msra.mxu0 0.0
  %6334 = vmatprep.subr.mxu0 0.0
  %6335 = vmatpush1.msra.mxu0 0.0
  %6336 = vmatprep.subr.mxu0 0.0
  %6337 = vmatpush1.msra.mxu0 0.0
  %6338 = vmatprep.subr.mxu0 0.0
  %6339 = vmatpush1.msra.mxu0 0.0
  %6340 = vmatprep.subr.mxu0 0.0
  %6341 = vmatpush1.msra.mxu0 0.0
  %6342 = vmatprep.subr.mxu0 0.0
  %6343 = vmatpush1.msra.mxu0 0.0
  %6344 = vmatprep.subr.mxu0 0.0
  %6345 = vmatpush1.msra.mxu0 0.0
  %6346 = vmatprep.subr.mxu0 0.0
  %6347 = vmatpush1.msra.mxu0 0.0
  %6348 = vmatprep.mubr.f32.mxu0 0.0
  %6349 = vmatmul.mubr.f32.gmra.mrb[0].mxu0 %v6261
  %v6350 = vpop.f32.mrb[0].mxu0
  %v6351 = vadd.f32 0.0, %v6350
  %v6352 = vpop.f32.mrb[0].mxu0
  %6353 = vmatprep.mubr.f32.mxu0 0.0
  %6354 = vmatmul.mubr.f32.gmra.mrb[0].mxu0 %v6264
  %v6355 = vpop.f32.mrb[0].mxu0
  %v6356 = vadd.f32 0.0, %v6355
  %v6357 = vpop.f32.mrb[0].mxu0
  %6358 = vmatprep.mubr.f32.mxu0 0.0
  %6359 = vmatmul.mubr.f32.gmra.mrb[0].mxu0 %v6267
  %v6360 = vpop.f32.mrb[0].mxu0
  %v6361 = vadd.f32 0.0, %v6360
  %v6362 = vpop.f32.mrb[0].mxu0
  %6363 = vmatprep.mubr.f32.mxu0 0.0
  %6364 = vmatmul.mubr.f32.gmra.mrb[0].mxu0 %v6270
  %v6365 = vpop.f32.mrb[0].mxu0
  %v6366 = vadd.f32 0.0, %v6365
  %v6367 = vpop.f32.mrb[0].mxu0
  %6368 = vmatprep.mubr.f32.mxu0 0.0
  %6369 = vmatmul.mubr.f32.gmra.mrb[0].mxu0 %v6273
  %v6370 = vpop.f32.mrb[0].mxu0
  %v6371 = vadd.f32 0.0, %v6370
  %v6372 = vpop.f32.mrb[0].mxu0
  %6373 = vmatprep.mubr.f32.mxu0 0.0
  %6374 = vmatmul.mubr.f32.gmra.mrb[0].mxu0 %v6276
  %v6375 = vpop.f32.mrb[0].mxu0
  %v6376 = vadd.f32 0.0, %v6375
  %v6377 = vpop.f32.mrb[0].mxu0
  %6378 = vmatprep.mubr.f32.mxu0 0.0
  %6379 = vmatmul.mubr.f32.gmra.mrb[0].mxu0 %v6279
  %v6380 = vpop.f32.mrb[0].mxu0
  %v6381 = vadd.f32 0.0, %v6380
  %v6382 = vpop.f32.mrb[0].mxu0
  %6383 = vmatprep.mubr.f32.mxu0 0.0
  %6384 = vmatmul.mubr.f32.gmra.mrb[0].mxu0 %v6282
  %v6385 = vpop.f32.mrb[0].mxu0
  %v6386 = vadd.f32 0.0, %v6385
  %v6387 = vpop.f32.mrb[0].mxu0
  %6388 = vdwg.mxu0
  %v6389 = vadd.f32 %v6128, %v6351
  %v6390 = vadd.f32 %v6133, %v6356
  %v6391 = vadd.f32 %v6138, %v6361
  %v6392 = vadd.f32 %v6143, %v6366
  %v6393 = vadd.f32 %v6148, %v6371
  %v6394 = vadd.f32 %v6153, %v6376
  %v6395 = vadd.f32 %v6158, %v6381
  %v6396 = vadd.f32 %v6163, %v6386
  %v6397 = vadd.s32 %v107, 6
  %vm6398 = vcmp.eq.s32.totalorder %v74, %v6397
  %vm6399 = vcmp.eq.s32.totalorder %v75, %v6397
  %vm6400 = vcmp.eq.s32.totalorder %v76, %v6397
  %vm6401 = vcmp.eq.s32.totalorder %v77, %v6397
  %v6402 = vsel %vm6398, 1.0, 0.0
  %v6403 = vsel %vm6399, 1.0, 0.0
  %v6404 = vsel %vm6400, 1.0, 0.0
  %v6405 = vsel %vm6401, 1.0, 0.0
  %6406 = vmatprep.subr.mxu0 0.0
  %6407 = vmatpush1.msra.mxu0 %v6402
  %6408 = vmatprep.subr.mxu0 0.0
  %6409 = vmatpush1.msra.mxu0 %v6403
  %6410 = vmatprep.subr.mxu0 0.0
  %6411 = vmatpush1.msra.mxu0 %v6404
  %6412 = vmatprep.subr.mxu0 0.0
  %6413 = vmatpush1.msra.mxu0 %v6405
  %6414 = vmatprep.subr.mxu0 0.0
  %6415 = vmatpush1.msra.mxu0 0.0
  %6416 = vmatprep.subr.mxu0 0.0
  %6417 = vmatpush1.msra.mxu0 0.0
  %6418 = vmatprep.subr.mxu0 0.0
  %6419 = vmatpush1.msra.mxu0 0.0
  %6420 = vmatprep.subr.mxu0 0.0
  %6421 = vmatpush1.msra.mxu0 0.0
  %6422 = vmatprep.subr.mxu0 0.0
  %6423 = vmatpush1.msra.mxu0 0.0
  %6424 = vmatprep.subr.mxu0 0.0
  %6425 = vmatpush1.msra.mxu0 0.0
  %6426 = vmatprep.subr.mxu0 0.0
  %6427 = vmatpush1.msra.mxu0 0.0
  %6428 = vmatprep.subr.mxu0 0.0
  %6429 = vmatpush1.msra.mxu0 0.0
  %6430 = vmatprep.subr.mxu0 0.0
  %6431 = vmatpush1.msra.mxu0 0.0
  %6432 = vmatprep.subr.mxu0 0.0
  %6433 = vmatpush1.msra.mxu0 0.0
  %6434 = vmatprep.subr.mxu0 0.0
  %6435 = vmatpush1.msra.mxu0 0.0
  %6436 = vmatprep.subr.mxu0 0.0
  %6437 = vmatpush1.msra.mxu0 0.0
  %6438 = vmatprep.subr.mxu0 0.0
  %6439 = vmatpush1.msra.mxu0 0.0
  %6440 = vmatprep.subr.mxu0 0.0
  %6441 = vmatpush1.msra.mxu0 0.0
  %6442 = vmatprep.subr.mxu0 0.0
  %6443 = vmatpush1.msra.mxu0 0.0
  %6444 = vmatprep.subr.mxu0 0.0
  %6445 = vmatpush1.msra.mxu0 0.0
  %6446 = vmatprep.subr.mxu0 0.0
  %6447 = vmatpush1.msra.mxu0 0.0
  %6448 = vmatprep.subr.mxu0 0.0
  %6449 = vmatpush1.msra.mxu0 0.0
  %6450 = vmatprep.subr.mxu0 0.0
  %6451 = vmatpush1.msra.mxu0 0.0
  %6452 = vmatprep.subr.mxu0 0.0
  %6453 = vmatpush1.msra.mxu0 0.0
  %6454 = vmatprep.subr.mxu0 0.0
  %6455 = vmatpush1.msra.mxu0 0.0
  %6456 = vmatprep.subr.mxu0 0.0
  %6457 = vmatpush1.msra.mxu0 0.0
  %6458 = vmatprep.subr.mxu0 0.0
  %6459 = vmatpush1.msra.mxu0 0.0
  %6460 = vmatprep.subr.mxu0 0.0
  %6461 = vmatpush1.msra.mxu0 0.0
  %6462 = vmatprep.subr.mxu0 0.0
  %6463 = vmatpush1.msra.mxu0 0.0
  %6464 = vmatprep.subr.mxu0 0.0
  %6465 = vmatpush1.msra.mxu0 0.0
  %6466 = vmatprep.subr.mxu0 0.0
  %6467 = vmatpush1.msra.mxu0 0.0
  %6468 = vmatprep.subr.mxu0 0.0
  %6469 = vmatpush1.msra.mxu0 0.0
  %6470 = vmatprep.mubr.f32.mxu0 0.0
  %6471 = vmatmul.mubr.f32.gmra.mrb[0].mxu0 %v5718
  %v6472 = vpop.f32.mrb[0].mxu0
  %v6473 = vadd.f32 0.0, %v6472
  %v6474 = vpop.f32.mrb[0].mxu0
  %6475 = vmatprep.mubr.f32.mxu0 0.0
  %6476 = vmatmul.mubr.f32.gmra.mrb[0].mxu0 %v5721
  %v6477 = vpop.f32.mrb[0].mxu0
  %v6478 = vadd.f32 0.0, %v6477
  %v6479 = vpop.f32.mrb[0].mxu0
  %6480 = vmatprep.mubr.f32.mxu0 0.0
  %6481 = vmatmul.mubr.f32.gmra.mrb[0].mxu0 %v5724
  %v6482 = vpop.f32.mrb[0].mxu0
  %v6483 = vadd.f32 0.0, %v6482
  %v6484 = vpop.f32.mrb[0].mxu0
  %6485 = vmatprep.mubr.f32.mxu0 0.0
  %6486 = vmatmul.mubr.f32.gmra.mrb[0].mxu0 %v5727
  %v6487 = vpop.f32.mrb[0].mxu0
  %v6488 = vadd.f32 0.0, %v6487
  %v6489 = vpop.f32.mrb[0].mxu0
  %6490 = vdwg.mxu0
  %v6492 = vsel %vm5144, %v5597, 0
  %v6495 = vsel %vm5144, %v5598, 0
  %v6498 = vsel %vm5144, %v5599, 0
  %v6501 = vsel %vm5144, %v5600, 0
  %v6504 = vsel %vm5144, %v5601, 0
  %v6507 = vsel %vm5144, %v5602, 0
  %v6510 = vsel %vm5144, %v5603, 0
  %v6513 = vsel %vm5144, %v5604, 0
  %6515 = vmatprep.subr.mxu0 0.0
  %6516 = vmatpush1.msra.mxu0 %v6473
  %6517 = vmatprep.subr.mxu0 0.0
  %6518 = vmatpush1.msra.mxu0 %v6478
  %6519 = vmatprep.subr.mxu0 0.0
  %6520 = vmatpush1.msra.mxu0 %v6483
  %6521 = vmatprep.subr.mxu0 0.0
  %6522 = vmatpush1.msra.mxu0 %v6488
  %6523 = vmatprep.subr.mxu0 0.0
  %6524 = vmatpush1.msra.mxu0 0.0
  %6525 = vmatprep.subr.mxu0 0.0
  %6526 = vmatpush1.msra.mxu0 0.0
  %6527 = vmatprep.subr.mxu0 0.0
  %6528 = vmatpush1.msra.mxu0 0.0
  %6529 = vmatprep.subr.mxu0 0.0
  %6530 = vmatpush1.msra.mxu0 0.0
  %6531 = vmatprep.subr.mxu0 0.0
  %6532 = vmatpush1.msra.mxu0 0.0
  %6533 = vmatprep.subr.mxu0 0.0
  %6534 = vmatpush1.msra.mxu0 0.0
  %6535 = vmatprep.subr.mxu0 0.0
  %6536 = vmatpush1.msra.mxu0 0.0
  %6537 = vmatprep.subr.mxu0 0.0
  %6538 = vmatpush1.msra.mxu0 0.0
  %6539 = vmatprep.subr.mxu0 0.0
  %6540 = vmatpush1.msra.mxu0 0.0
  %6541 = vmatprep.subr.mxu0 0.0
  %6542 = vmatpush1.msra.mxu0 0.0
  %6543 = vmatprep.subr.mxu0 0.0
  %6544 = vmatpush1.msra.mxu0 0.0
  %6545 = vmatprep.subr.mxu0 0.0
  %6546 = vmatpush1.msra.mxu0 0.0
  %6547 = vmatprep.subr.mxu0 0.0
  %6548 = vmatpush1.msra.mxu0 0.0
  %6549 = vmatprep.subr.mxu0 0.0
  %6550 = vmatpush1.msra.mxu0 0.0
  %6551 = vmatprep.subr.mxu0 0.0
  %6552 = vmatpush1.msra.mxu0 0.0
  %6553 = vmatprep.subr.mxu0 0.0
  %6554 = vmatpush1.msra.mxu0 0.0
  %6555 = vmatprep.subr.mxu0 0.0
  %6556 = vmatpush1.msra.mxu0 0.0
  %6557 = vmatprep.subr.mxu0 0.0
  %6558 = vmatpush1.msra.mxu0 0.0
  %6559 = vmatprep.subr.mxu0 0.0
  %6560 = vmatpush1.msra.mxu0 0.0
  %6561 = vmatprep.subr.mxu0 0.0
  %6562 = vmatpush1.msra.mxu0 0.0
  %6563 = vmatprep.subr.mxu0 0.0
  %6564 = vmatpush1.msra.mxu0 0.0
  %6565 = vmatprep.subr.mxu0 0.0
  %6566 = vmatpush1.msra.mxu0 0.0
  %6567 = vmatprep.subr.mxu0 0.0
  %6568 = vmatpush1.msra.mxu0 0.0
  %6569 = vmatprep.subr.mxu0 0.0
  %6570 = vmatpush1.msra.mxu0 0.0
  %6571 = vmatprep.subr.mxu0 0.0
  %6572 = vmatpush1.msra.mxu0 0.0
  %6573 = vmatprep.subr.mxu0 0.0
  %6574 = vmatpush1.msra.mxu0 0.0
  %6575 = vmatprep.subr.mxu0 0.0
  %6576 = vmatpush1.msra.mxu0 0.0
  %6577 = vmatprep.subr.mxu0 0.0
  %6578 = vmatpush1.msra.mxu0 0.0
  %6579 = vmatprep.mubr.f32.mxu0 0.0
  %6580 = vmatmul.mubr.f32.gmra.mrb[0].mxu0 %v6492
  %v6581 = vpop.f32.mrb[0].mxu0
  %v6582 = vadd.f32 0.0, %v6581
  %v6583 = vpop.f32.mrb[0].mxu0
  %6584 = vmatprep.mubr.f32.mxu0 0.0
  %6585 = vmatmul.mubr.f32.gmra.mrb[0].mxu0 %v6495
  %v6586 = vpop.f32.mrb[0].mxu0
  %v6587 = vadd.f32 0.0, %v6586
  %v6588 = vpop.f32.mrb[0].mxu0
  %6589 = vmatprep.mubr.f32.mxu0 0.0
  %6590 = vmatmul.mubr.f32.gmra.mrb[0].mxu0 %v6498
  %v6591 = vpop.f32.mrb[0].mxu0
  %v6592 = vadd.f32 0.0, %v6591
  %v6593 = vpop.f32.mrb[0].mxu0
  %6594 = vmatprep.mubr.f32.mxu0 0.0
  %6595 = vmatmul.mubr.f32.gmra.mrb[0].mxu0 %v6501
  %v6596 = vpop.f32.mrb[0].mxu0
  %v6597 = vadd.f32 0.0, %v6596
  %v6598 = vpop.f32.mrb[0].mxu0
  %6599 = vmatprep.mubr.f32.mxu0 0.0
  %6600 = vmatmul.mubr.f32.gmra.mrb[0].mxu0 %v6504
  %v6601 = vpop.f32.mrb[0].mxu0
  %v6602 = vadd.f32 0.0, %v6601
  %v6603 = vpop.f32.mrb[0].mxu0
  %6604 = vmatprep.mubr.f32.mxu0 0.0
  %6605 = vmatmul.mubr.f32.gmra.mrb[0].mxu0 %v6507
  %v6606 = vpop.f32.mrb[0].mxu0
  %v6607 = vadd.f32 0.0, %v6606
  %v6608 = vpop.f32.mrb[0].mxu0
  %6609 = vmatprep.mubr.f32.mxu0 0.0
  %6610 = vmatmul.mubr.f32.gmra.mrb[0].mxu0 %v6510
  %v6611 = vpop.f32.mrb[0].mxu0
  %v6612 = vadd.f32 0.0, %v6611
  %v6613 = vpop.f32.mrb[0].mxu0
  %6614 = vmatprep.mubr.f32.mxu0 0.0
  %6615 = vmatmul.mubr.f32.gmra.mrb[0].mxu0 %v6513
  %v6616 = vpop.f32.mrb[0].mxu0
  %v6617 = vadd.f32 0.0, %v6616
  %v6618 = vpop.f32.mrb[0].mxu0
  %6619 = vdwg.mxu0
  %v6620 = vadd.f32 %v6389, %v6582
  %v6621 = vadd.f32 %v6390, %v6587
  %v6622 = vadd.f32 %v6391, %v6592
  %v6623 = vadd.f32 %v6392, %v6597
  %v6624 = vadd.f32 %v6393, %v6602
  %v6625 = vadd.f32 %v6394, %v6607
  %v6626 = vadd.f32 %v6395, %v6612
  %v6627 = vadd.f32 %v6396, %v6617
  %v6628 = vadd.s32 %v107, 8
  %vm6629 = vcmp.eq.s32.totalorder %v74, %v6628
  %vm6630 = vcmp.eq.s32.totalorder %v75, %v6628
  %vm6631 = vcmp.eq.s32.totalorder %v76, %v6628
  %vm6632 = vcmp.eq.s32.totalorder %v77, %v6628
  %v6633 = vsel %vm6629, 1.0, 0.0
  %v6634 = vsel %vm6630, 1.0, 0.0
  %v6635 = vsel %vm6631, 1.0, 0.0
  %v6636 = vsel %vm6632, 1.0, 0.0
  %6637 = vmatprep.subr.mxu0 0.0
  %6638 = vmatpush1.msra.mxu0 %v6633
  %6639 = vmatprep.subr.mxu0 0.0
  %6640 = vmatpush1.msra.mxu0 %v6634
  %6641 = vmatprep.subr.mxu0 0.0
  %6642 = vmatpush1.msra.mxu0 %v6635
  %6643 = vmatprep.subr.mxu0 0.0
  %6644 = vmatpush1.msra.mxu0 %v6636
  %6645 = vmatprep.subr.mxu0 0.0
  %6646 = vmatpush1.msra.mxu0 0.0
  %6647 = vmatprep.subr.mxu0 0.0
  %6648 = vmatpush1.msra.mxu0 0.0
  %6649 = vmatprep.subr.mxu0 0.0
  %6650 = vmatpush1.msra.mxu0 0.0
  %6651 = vmatprep.subr.mxu0 0.0
  %6652 = vmatpush1.msra.mxu0 0.0
  %6653 = vmatprep.subr.mxu0 0.0
  %6654 = vmatpush1.msra.mxu0 0.0
  %6655 = vmatprep.subr.mxu0 0.0
  %6656 = vmatpush1.msra.mxu0 0.0
  %6657 = vmatprep.subr.mxu0 0.0
  %6658 = vmatpush1.msra.mxu0 0.0
  %6659 = vmatprep.subr.mxu0 0.0
  %6660 = vmatpush1.msra.mxu0 0.0
  %6661 = vmatprep.subr.mxu0 0.0
  %6662 = vmatpush1.msra.mxu0 0.0
  %6663 = vmatprep.subr.mxu0 0.0
  %6664 = vmatpush1.msra.mxu0 0.0
  %6665 = vmatprep.subr.mxu0 0.0
  %6666 = vmatpush1.msra.mxu0 0.0
  %6667 = vmatprep.subr.mxu0 0.0
  %6668 = vmatpush1.msra.mxu0 0.0
  %6669 = vmatprep.subr.mxu0 0.0
  %6670 = vmatpush1.msra.mxu0 0.0
  %6671 = vmatprep.subr.mxu0 0.0
  %6672 = vmatpush1.msra.mxu0 0.0
  %6673 = vmatprep.subr.mxu0 0.0
  %6674 = vmatpush1.msra.mxu0 0.0
  %6675 = vmatprep.subr.mxu0 0.0
  %6676 = vmatpush1.msra.mxu0 0.0
  %6677 = vmatprep.subr.mxu0 0.0
  %6678 = vmatpush1.msra.mxu0 0.0
  %6679 = vmatprep.subr.mxu0 0.0
  %6680 = vmatpush1.msra.mxu0 0.0
  %6681 = vmatprep.subr.mxu0 0.0
  %6682 = vmatpush1.msra.mxu0 0.0
  %6683 = vmatprep.subr.mxu0 0.0
  %6684 = vmatpush1.msra.mxu0 0.0
  %6685 = vmatprep.subr.mxu0 0.0
  %6686 = vmatpush1.msra.mxu0 0.0
  %6687 = vmatprep.subr.mxu0 0.0
  %6688 = vmatpush1.msra.mxu0 0.0
  %6689 = vmatprep.subr.mxu0 0.0
  %6690 = vmatpush1.msra.mxu0 0.0
  %6691 = vmatprep.subr.mxu0 0.0
  %6692 = vmatpush1.msra.mxu0 0.0
  %6693 = vmatprep.subr.mxu0 0.0
  %6694 = vmatpush1.msra.mxu0 0.0
  %6695 = vmatprep.subr.mxu0 0.0
  %6696 = vmatpush1.msra.mxu0 0.0
  %6697 = vmatprep.subr.mxu0 0.0
  %6698 = vmatpush1.msra.mxu0 0.0
  %6699 = vmatprep.subr.mxu0 0.0
  %6700 = vmatpush1.msra.mxu0 0.0
  %6701 = vmatprep.mubr.f32.mxu0 0.0
  %6702 = vmatmul.mubr.f32.gmra.mrb[0].mxu0 %v5718
  %v6703 = vpop.f32.mrb[0].mxu0
  %v6704 = vadd.f32 0.0, %v6703
  %v6705 = vpop.f32.mrb[0].mxu0
  %6706 = vmatprep.mubr.f32.mxu0 0.0
  %6707 = vmatmul.mubr.f32.gmra.mrb[0].mxu0 %v5721
  %v6708 = vpop.f32.mrb[0].mxu0
  %v6709 = vadd.f32 0.0, %v6708
  %v6710 = vpop.f32.mrb[0].mxu0
  %6711 = vmatprep.mubr.f32.mxu0 0.0
  %6712 = vmatmul.mubr.f32.gmra.mrb[0].mxu0 %v5724
  %v6713 = vpop.f32.mrb[0].mxu0
  %v6714 = vadd.f32 0.0, %v6713
  %v6715 = vpop.f32.mrb[0].mxu0
  %6716 = vmatprep.mubr.f32.mxu0 0.0
  %6717 = vmatmul.mubr.f32.gmra.mrb[0].mxu0 %v5727
  %v6718 = vpop.f32.mrb[0].mxu0
  %v6719 = vadd.f32 0.0, %v6718
  %v6720 = vpop.f32.mrb[0].mxu0
  %6721 = vdwg.mxu0
  %v6723 = vsel %vm5144, %v5605, 0
  %v6726 = vsel %vm5144, %v5606, 0
  %v6729 = vsel %vm5144, %v5607, 0
  %v6732 = vsel %vm5144, %v5608, 0
  %v6735 = vsel %vm5144, %v5609, 0
  %v6738 = vsel %vm5144, %v5610, 0
  %v6741 = vsel %vm5144, %v5611, 0
  %v6744 = vsel %vm5144, %v5612, 0
  %6746 = vmatprep.subr.mxu0 0.0
  %6747 = vmatpush1.msra.mxu0 %v6704
  %6748 = vmatprep.subr.mxu0 0.0
  %6749 = vmatpush1.msra.mxu0 %v6709
  %6750 = vmatprep.subr.mxu0 0.0
  %6751 = vmatpush1.msra.mxu0 %v6714
  %6752 = vmatprep.subr.mxu0 0.0
  %6753 = vmatpush1.msra.mxu0 %v6719
  %6754 = vmatprep.subr.mxu0 0.0
  %6755 = vmatpush1.msra.mxu0 0.0
  %6756 = vmatprep.subr.mxu0 0.0
  %6757 = vmatpush1.msra.mxu0 0.0
  %6758 = vmatprep.subr.mxu0 0.0
  %6759 = vmatpush1.msra.mxu0 0.0
  %6760 = vmatprep.subr.mxu0 0.0
  %6761 = vmatpush1.msra.mxu0 0.0
  %6762 = vmatprep.subr.mxu0 0.0
  %6763 = vmatpush1.msra.mxu0 0.0
  %6764 = vmatprep.subr.mxu0 0.0
  %6765 = vmatpush1.msra.mxu0 0.0
  %6766 = vmatprep.subr.mxu0 0.0
  %6767 = vmatpush1.msra.mxu0 0.0
  %6768 = vmatprep.subr.mxu0 0.0
  %6769 = vmatpush1.msra.mxu0 0.0
  %6770 = vmatprep.subr.mxu0 0.0
  %6771 = vmatpush1.msra.mxu0 0.0
  %6772 = vmatprep.subr.mxu0 0.0
  %6773 = vmatpush1.msra.mxu0 0.0
  %6774 = vmatprep.subr.mxu0 0.0
  %6775 = vmatpush1.msra.mxu0 0.0
  %6776 = vmatprep.subr.mxu0 0.0
  %6777 = vmatpush1.msra.mxu0 0.0
  %6778 = vmatprep.subr.mxu0 0.0
  %6779 = vmatpush1.msra.mxu0 0.0
  %6780 = vmatprep.subr.mxu0 0.0
  %6781 = vmatpush1.msra.mxu0 0.0
  %6782 = vmatprep.subr.mxu0 0.0
  %6783 = vmatpush1.msra.mxu0 0.0
  %6784 = vmatprep.subr.mxu0 0.0
  %6785 = vmatpush1.msra.mxu0 0.0
  %6786 = vmatprep.subr.mxu0 0.0
  %6787 = vmatpush1.msra.mxu0 0.0
  %6788 = vmatprep.subr.mxu0 0.0
  %6789 = vmatpush1.msra.mxu0 0.0
  %6790 = vmatprep.subr.mxu0 0.0
  %6791 = vmatpush1.msra.mxu0 0.0
  %6792 = vmatprep.subr.mxu0 0.0
  %6793 = vmatpush1.msra.mxu0 0.0
  %6794 = vmatprep.subr.mxu0 0.0
  %6795 = vmatpush1.msra.mxu0 0.0
  %6796 = vmatprep.subr.mxu0 0.0
  %6797 = vmatpush1.msra.mxu0 0.0
  %6798 = vmatprep.subr.mxu0 0.0
  %6799 = vmatpush1.msra.mxu0 0.0
  %6800 = vmatprep.subr.mxu0 0.0
  %6801 = vmatpush1.msra.mxu0 0.0
  %6802 = vmatprep.subr.mxu0 0.0
  %6803 = vmatpush1.msra.mxu0 0.0
  %6804 = vmatprep.subr.mxu0 0.0
  %6805 = vmatpush1.msra.mxu0 0.0
  %6806 = vmatprep.subr.mxu0 0.0
  %6807 = vmatpush1.msra.mxu0 0.0
  %6808 = vmatprep.subr.mxu0 0.0
  %6809 = vmatpush1.msra.mxu0 0.0
  %6810 = vmatprep.mubr.f32.mxu0 0.0
  %6811 = vmatmul.mubr.f32.gmra.mrb[0].mxu0 %v6723
  %v6812 = vpop.f32.mrb[0].mxu0
  %v6813 = vadd.f32 0.0, %v6812
  %v6814 = vpop.f32.mrb[0].mxu0
  %6815 = vmatprep.mubr.f32.mxu0 0.0
  %6816 = vmatmul.mubr.f32.gmra.mrb[0].mxu0 %v6726
  %v6817 = vpop.f32.mrb[0].mxu0
  %v6818 = vadd.f32 0.0, %v6817
  %v6819 = vpop.f32.mrb[0].mxu0
  %6820 = vmatprep.mubr.f32.mxu0 0.0
  %6821 = vmatmul.mubr.f32.gmra.mrb[0].mxu0 %v6729
  %v6822 = vpop.f32.mrb[0].mxu0
  %v6823 = vadd.f32 0.0, %v6822
  %v6824 = vpop.f32.mrb[0].mxu0
  %6825 = vmatprep.mubr.f32.mxu0 0.0
  %6826 = vmatmul.mubr.f32.gmra.mrb[0].mxu0 %v6732
  %v6827 = vpop.f32.mrb[0].mxu0
  %v6828 = vadd.f32 0.0, %v6827
  %v6829 = vpop.f32.mrb[0].mxu0
  %6830 = vmatprep.mubr.f32.mxu0 0.0
  %6831 = vmatmul.mubr.f32.gmra.mrb[0].mxu0 %v6735
  %v6832 = vpop.f32.mrb[0].mxu0
  %v6833 = vadd.f32 0.0, %v6832
  %v6834 = vpop.f32.mrb[0].mxu0
  %6835 = vmatprep.mubr.f32.mxu0 0.0
  %6836 = vmatmul.mubr.f32.gmra.mrb[0].mxu0 %v6738
  %v6837 = vpop.f32.mrb[0].mxu0
  %v6838 = vadd.f32 0.0, %v6837
  %v6839 = vpop.f32.mrb[0].mxu0
  %6840 = vmatprep.mubr.f32.mxu0 0.0
  %6841 = vmatmul.mubr.f32.gmra.mrb[0].mxu0 %v6741
  %v6842 = vpop.f32.mrb[0].mxu0
  %v6843 = vadd.f32 0.0, %v6842
  %v6844 = vpop.f32.mrb[0].mxu0
  %6845 = vmatprep.mubr.f32.mxu0 0.0
  %6846 = vmatmul.mubr.f32.gmra.mrb[0].mxu0 %v6744
  %v6847 = vpop.f32.mrb[0].mxu0
  %v6848 = vadd.f32 0.0, %v6847
  %v6849 = vpop.f32.mrb[0].mxu0
  %6850 = vdwg.mxu0
  %v6851 = vadd.f32 %v6620, %v6813
  %v6852 = vadd.f32 %v6621, %v6818
  %v6853 = vadd.f32 %v6622, %v6823
  %v6854 = vadd.f32 %v6623, %v6828
  %v6855 = vadd.f32 %v6624, %v6833
  %v6856 = vadd.f32 %v6625, %v6838
  %v6857 = vadd.f32 %v6626, %v6843
  %v6858 = vadd.f32 %v6627, %v6848
  %v6859 = vadd.s32 %v107, 10
  %vm6860 = vcmp.eq.s32.totalorder %v74, %v6859
  %vm6861 = vcmp.eq.s32.totalorder %v75, %v6859
  %vm6862 = vcmp.eq.s32.totalorder %v76, %v6859
  %vm6863 = vcmp.eq.s32.totalorder %v77, %v6859
  %v6864 = vsel %vm6860, 1.0, 0.0
  %v6865 = vsel %vm6861, 1.0, 0.0
  %v6866 = vsel %vm6862, 1.0, 0.0
  %v6867 = vsel %vm6863, 1.0, 0.0
  %6868 = vmatprep.subr.mxu0 0.0
  %6869 = vmatpush1.msra.mxu0 %v6864
  %6870 = vmatprep.subr.mxu0 0.0
  %6871 = vmatpush1.msra.mxu0 %v6865
  %6872 = vmatprep.subr.mxu0 0.0
  %6873 = vmatpush1.msra.mxu0 %v6866
  %6874 = vmatprep.subr.mxu0 0.0
  %6875 = vmatpush1.msra.mxu0 %v6867
  %6876 = vmatprep.subr.mxu0 0.0
  %6877 = vmatpush1.msra.mxu0 0.0
  %6878 = vmatprep.subr.mxu0 0.0
  %6879 = vmatpush1.msra.mxu0 0.0
  %6880 = vmatprep.subr.mxu0 0.0
  %6881 = vmatpush1.msra.mxu0 0.0
  %6882 = vmatprep.subr.mxu0 0.0
  %6883 = vmatpush1.msra.mxu0 0.0
  %6884 = vmatprep.subr.mxu0 0.0
  %6885 = vmatpush1.msra.mxu0 0.0
  %6886 = vmatprep.subr.mxu0 0.0
  %6887 = vmatpush1.msra.mxu0 0.0
  %6888 = vmatprep.subr.mxu0 0.0
  %6889 = vmatpush1.msra.mxu0 0.0
  %6890 = vmatprep.subr.mxu0 0.0
  %6891 = vmatpush1.msra.mxu0 0.0
  %6892 = vmatprep.subr.mxu0 0.0
  %6893 = vmatpush1.msra.mxu0 0.0
  %6894 = vmatprep.subr.mxu0 0.0
  %6895 = vmatpush1.msra.mxu0 0.0
  %6896 = vmatprep.subr.mxu0 0.0
  %6897 = vmatpush1.msra.mxu0 0.0
  %6898 = vmatprep.subr.mxu0 0.0
  %6899 = vmatpush1.msra.mxu0 0.0
  %6900 = vmatprep.subr.mxu0 0.0
  %6901 = vmatpush1.msra.mxu0 0.0
  %6902 = vmatprep.subr.mxu0 0.0
  %6903 = vmatpush1.msra.mxu0 0.0
  %6904 = vmatprep.subr.mxu0 0.0
  %6905 = vmatpush1.msra.mxu0 0.0
  %6906 = vmatprep.subr.mxu0 0.0
  %6907 = vmatpush1.msra.mxu0 0.0
  %6908 = vmatprep.subr.mxu0 0.0
  %6909 = vmatpush1.msra.mxu0 0.0
  %6910 = vmatprep.subr.mxu0 0.0
  %6911 = vmatpush1.msra.mxu0 0.0
  %6912 = vmatprep.subr.mxu0 0.0
  %6913 = vmatpush1.msra.mxu0 0.0
  %6914 = vmatprep.subr.mxu0 0.0
  %6915 = vmatpush1.msra.mxu0 0.0
  %6916 = vmatprep.subr.mxu0 0.0
  %6917 = vmatpush1.msra.mxu0 0.0
  %6918 = vmatprep.subr.mxu0 0.0
  %6919 = vmatpush1.msra.mxu0 0.0
  %6920 = vmatprep.subr.mxu0 0.0
  %6921 = vmatpush1.msra.mxu0 0.0
  %6922 = vmatprep.subr.mxu0 0.0
  %6923 = vmatpush1.msra.mxu0 0.0
  %6924 = vmatprep.subr.mxu0 0.0
  %6925 = vmatpush1.msra.mxu0 0.0
  %6926 = vmatprep.subr.mxu0 0.0
  %6927 = vmatpush1.msra.mxu0 0.0
  %6928 = vmatprep.subr.mxu0 0.0
  %6929 = vmatpush1.msra.mxu0 0.0
  %6930 = vmatprep.subr.mxu0 0.0
  %6931 = vmatpush1.msra.mxu0 0.0
  %6932 = vmatprep.mubr.f32.mxu0 0.0
  %6933 = vmatmul.mubr.f32.gmra.mrb[0].mxu0 %v5718
  %v6934 = vpop.f32.mrb[0].mxu0
  %v6935 = vadd.f32 0.0, %v6934
  %v6936 = vpop.f32.mrb[0].mxu0
  %6937 = vmatprep.mubr.f32.mxu0 0.0
  %6938 = vmatmul.mubr.f32.gmra.mrb[0].mxu0 %v5721
  %v6939 = vpop.f32.mrb[0].mxu0
  %v6940 = vadd.f32 0.0, %v6939
  %v6941 = vpop.f32.mrb[0].mxu0
  %6942 = vmatprep.mubr.f32.mxu0 0.0
  %6943 = vmatmul.mubr.f32.gmra.mrb[0].mxu0 %v5724
  %v6944 = vpop.f32.mrb[0].mxu0
  %v6945 = vadd.f32 0.0, %v6944
  %v6946 = vpop.f32.mrb[0].mxu0
  %6947 = vmatprep.mubr.f32.mxu0 0.0
  %6948 = vmatmul.mubr.f32.gmra.mrb[0].mxu0 %v5727
  %v6949 = vpop.f32.mrb[0].mxu0
  %v6950 = vadd.f32 0.0, %v6949
  %v6951 = vpop.f32.mrb[0].mxu0
  %6952 = vdwg.mxu0
  %v6954 = vsel %vm5144, %v5613, 0
  %v6957 = vsel %vm5144, %v5614, 0
  %v6960 = vsel %vm5144, %v5615, 0
  %v6963 = vsel %vm5144, %v5616, 0
  %v6966 = vsel %vm5144, %v5617, 0
  %v6969 = vsel %vm5144, %v5618, 0
  %v6972 = vsel %vm5144, %v5619, 0
  %v6975 = vsel %vm5144, %v5620, 0
  %6977 = vmatprep.subr.mxu0 0.0
  %6978 = vmatpush1.msra.mxu0 %v6935
  %6979 = vmatprep.subr.mxu0 0.0
  %6980 = vmatpush1.msra.mxu0 %v6940
  %6981 = vmatprep.subr.mxu0 0.0
  %6982 = vmatpush1.msra.mxu0 %v6945
  %6983 = vmatprep.subr.mxu0 0.0
  %6984 = vmatpush1.msra.mxu0 %v6950
  %6985 = vmatprep.subr.mxu0 0.0
  %6986 = vmatpush1.msra.mxu0 0.0
  %6987 = vmatprep.subr.mxu0 0.0
  %6988 = vmatpush1.msra.mxu0 0.0
  %6989 = vmatprep.subr.mxu0 0.0
  %6990 = vmatpush1.msra.mxu0 0.0
  %6991 = vmatprep.subr.mxu0 0.0
  %6992 = vmatpush1.msra.mxu0 0.0
  %6993 = vmatprep.subr.mxu0 0.0
  %6994 = vmatpush1.msra.mxu0 0.0
  %6995 = vmatprep.subr.mxu0 0.0
  %6996 = vmatpush1.msra.mxu0 0.0
  %6997 = vmatprep.subr.mxu0 0.0
  %6998 = vmatpush1.msra.mxu0 0.0
  %6999 = vmatprep.subr.mxu0 0.0
  %7000 = vmatpush1.msra.mxu0 0.0
  %7001 = vmatprep.subr.mxu0 0.0
  %7002 = vmatpush1.msra.mxu0 0.0
  %7003 = vmatprep.subr.mxu0 0.0
  %7004 = vmatpush1.msra.mxu0 0.0
  %7005 = vmatprep.subr.mxu0 0.0
  %7006 = vmatpush1.msra.mxu0 0.0
  %7007 = vmatprep.subr.mxu0 0.0
  %7008 = vmatpush1.msra.mxu0 0.0
  %7009 = vmatprep.subr.mxu0 0.0
  %7010 = vmatpush1.msra.mxu0 0.0
  %7011 = vmatprep.subr.mxu0 0.0
  %7012 = vmatpush1.msra.mxu0 0.0
  %7013 = vmatprep.subr.mxu0 0.0
  %7014 = vmatpush1.msra.mxu0 0.0
  %7015 = vmatprep.subr.mxu0 0.0
  %7016 = vmatpush1.msra.mxu0 0.0
  %7017 = vmatprep.subr.mxu0 0.0
  %7018 = vmatpush1.msra.mxu0 0.0
  %7019 = vmatprep.subr.mxu0 0.0
  %7020 = vmatpush1.msra.mxu0 0.0
  %7021 = vmatprep.subr.mxu0 0.0
  %7022 = vmatpush1.msra.mxu0 0.0
  %7023 = vmatprep.subr.mxu0 0.0
  %7024 = vmatpush1.msra.mxu0 0.0
  %7025 = vmatprep.subr.mxu0 0.0
  %7026 = vmatpush1.msra.mxu0 0.0
  %7027 = vmatprep.subr.mxu0 0.0
  %7028 = vmatpush1.msra.mxu0 0.0
  %7029 = vmatprep.subr.mxu0 0.0
  %7030 = vmatpush1.msra.mxu0 0.0
  %7031 = vmatprep.subr.mxu0 0.0
  %7032 = vmatpush1.msra.mxu0 0.0
  %7033 = vmatprep.subr.mxu0 0.0
  %7034 = vmatpush1.msra.mxu0 0.0
  %7035 = vmatprep.subr.mxu0 0.0
  %7036 = vmatpush1.msra.mxu0 0.0
  %7037 = vmatprep.subr.mxu0 0.0
  %7038 = vmatpush1.msra.mxu0 0.0
  %7039 = vmatprep.subr.mxu0 0.0
  %7040 = vmatpush1.msra.mxu0 0.0
  %7041 = vmatprep.mubr.f32.mxu0 0.0
  %7042 = vmatmul.mubr.f32.gmra.mrb[0].mxu0 %v6954
  %v7043 = vpop.f32.mrb[0].mxu0
  %v7044 = vadd.f32 0.0, %v7043
  %v7045 = vpop.f32.mrb[0].mxu0
  %7046 = vmatprep.mubr.f32.mxu0 0.0
  %7047 = vmatmul.mubr.f32.gmra.mrb[0].mxu0 %v6957
  %v7048 = vpop.f32.mrb[0].mxu0
  %v7049 = vadd.f32 0.0, %v7048
  %v7050 = vpop.f32.mrb[0].mxu0
  %7051 = vmatprep.mubr.f32.mxu0 0.0
  %7052 = vmatmul.mubr.f32.gmra.mrb[0].mxu0 %v6960
  %v7053 = vpop.f32.mrb[0].mxu0
  %v7054 = vadd.f32 0.0, %v7053
  %v7055 = vpop.f32.mrb[0].mxu0
  %7056 = vmatprep.mubr.f32.mxu0 0.0
  %7057 = vmatmul.mubr.f32.gmra.mrb[0].mxu0 %v6963
  %v7058 = vpop.f32.mrb[0].mxu0
  %v7059 = vadd.f32 0.0, %v7058
  %v7060 = vpop.f32.mrb[0].mxu0
  %7061 = vmatprep.mubr.f32.mxu0 0.0
  %7062 = vmatmul.mubr.f32.gmra.mrb[0].mxu0 %v6966
  %v7063 = vpop.f32.mrb[0].mxu0
  %v7064 = vadd.f32 0.0, %v7063
  %v7065 = vpop.f32.mrb[0].mxu0
  %7066 = vmatprep.mubr.f32.mxu0 0.0
  %7067 = vmatmul.mubr.f32.gmra.mrb[0].mxu0 %v6969
  %v7068 = vpop.f32.mrb[0].mxu0
  %v7069 = vadd.f32 0.0, %v7068
  %v7070 = vpop.f32.mrb[0].mxu0
  %7071 = vmatprep.mubr.f32.mxu0 0.0
  %7072 = vmatmul.mubr.f32.gmra.mrb[0].mxu0 %v6972
  %v7073 = vpop.f32.mrb[0].mxu0
  %v7074 = vadd.f32 0.0, %v7073
  %v7075 = vpop.f32.mrb[0].mxu0
  %7076 = vmatprep.mubr.f32.mxu0 0.0
  %7077 = vmatmul.mubr.f32.gmra.mrb[0].mxu0 %v6975
  %v7078 = vpop.f32.mrb[0].mxu0
  %v7079 = vadd.f32 0.0, %v7078
  %v7080 = vpop.f32.mrb[0].mxu0
  %7081 = vdwg.mxu0
  %v7082 = vadd.f32 %v6851, %v7044
  %v7083 = vadd.f32 %v6852, %v7049
  %v7084 = vadd.f32 %v6853, %v7054
  %v7085 = vadd.f32 %v6854, %v7059
  %v7086 = vadd.f32 %v6855, %v7064
  %v7087 = vadd.f32 %v6856, %v7069
  %v7088 = vadd.f32 %v6857, %v7074
  %v7089 = vadd.f32 %v6858, %v7079
  %v7090 = vadd.s32 %v107, 12
  %vm7091 = vcmp.eq.s32.totalorder %v74, %v7090
  %vm7092 = vcmp.eq.s32.totalorder %v75, %v7090
  %vm7093 = vcmp.eq.s32.totalorder %v76, %v7090
  %vm7094 = vcmp.eq.s32.totalorder %v77, %v7090
  %v7095 = vsel %vm7091, 1.0, 0.0
  %v7096 = vsel %vm7092, 1.0, 0.0
  %v7097 = vsel %vm7093, 1.0, 0.0
  %v7098 = vsel %vm7094, 1.0, 0.0
  %7099 = vmatprep.subr.mxu0 0.0
  %7100 = vmatpush1.msra.mxu0 %v7095
  %7101 = vmatprep.subr.mxu0 0.0
  %7102 = vmatpush1.msra.mxu0 %v7096
  %7103 = vmatprep.subr.mxu0 0.0
  %7104 = vmatpush1.msra.mxu0 %v7097
  %7105 = vmatprep.subr.mxu0 0.0
  %7106 = vmatpush1.msra.mxu0 %v7098
  %7107 = vmatprep.subr.mxu0 0.0
  %7108 = vmatpush1.msra.mxu0 0.0
  %7109 = vmatprep.subr.mxu0 0.0
  %7110 = vmatpush1.msra.mxu0 0.0
  %7111 = vmatprep.subr.mxu0 0.0
  %7112 = vmatpush1.msra.mxu0 0.0
  %7113 = vmatprep.subr.mxu0 0.0
  %7114 = vmatpush1.msra.mxu0 0.0
  %7115 = vmatprep.subr.mxu0 0.0
  %7116 = vmatpush1.msra.mxu0 0.0
  %7117 = vmatprep.subr.mxu0 0.0
  %7118 = vmatpush1.msra.mxu0 0.0
  %7119 = vmatprep.subr.mxu0 0.0
  %7120 = vmatpush1.msra.mxu0 0.0
  %7121 = vmatprep.subr.mxu0 0.0
  %7122 = vmatpush1.msra.mxu0 0.0
  %7123 = vmatprep.subr.mxu0 0.0
  %7124 = vmatpush1.msra.mxu0 0.0
  %7125 = vmatprep.subr.mxu0 0.0
  %7126 = vmatpush1.msra.mxu0 0.0
  %7127 = vmatprep.subr.mxu0 0.0
  %7128 = vmatpush1.msra.mxu0 0.0
  %7129 = vmatprep.subr.mxu0 0.0
  %7130 = vmatpush1.msra.mxu0 0.0
  %7131 = vmatprep.subr.mxu0 0.0
  %7132 = vmatpush1.msra.mxu0 0.0
  %7133 = vmatprep.subr.mxu0 0.0
  %7134 = vmatpush1.msra.mxu0 0.0
  %7135 = vmatprep.subr.mxu0 0.0
  %7136 = vmatpush1.msra.mxu0 0.0
  %7137 = vmatprep.subr.mxu0 0.0
  %7138 = vmatpush1.msra.mxu0 0.0
  %7139 = vmatprep.subr.mxu0 0.0
  %7140 = vmatpush1.msra.mxu0 0.0
  %7141 = vmatprep.subr.mxu0 0.0
  %7142 = vmatpush1.msra.mxu0 0.0
  %7143 = vmatprep.subr.mxu0 0.0
  %7144 = vmatpush1.msra.mxu0 0.0
  %7145 = vmatprep.subr.mxu0 0.0
  %7146 = vmatpush1.msra.mxu0 0.0
  %7147 = vmatprep.subr.mxu0 0.0
  %7148 = vmatpush1.msra.mxu0 0.0
  %7149 = vmatprep.subr.mxu0 0.0
  %7150 = vmatpush1.msra.mxu0 0.0
  %7151 = vmatprep.subr.mxu0 0.0
  %7152 = vmatpush1.msra.mxu0 0.0
  %7153 = vmatprep.subr.mxu0 0.0
  %7154 = vmatpush1.msra.mxu0 0.0
  %7155 = vmatprep.subr.mxu0 0.0
  %7156 = vmatpush1.msra.mxu0 0.0
  %7157 = vmatprep.subr.mxu0 0.0
  %7158 = vmatpush1.msra.mxu0 0.0
  %7159 = vmatprep.subr.mxu0 0.0
  %7160 = vmatpush1.msra.mxu0 0.0
  %7161 = vmatprep.subr.mxu0 0.0
  %7162 = vmatpush1.msra.mxu0 0.0
  %7163 = vmatprep.mubr.f32.mxu0 0.0
  %7164 = vmatmul.mubr.f32.gmra.mrb[0].mxu0 %v5718
  %v7165 = vpop.f32.mrb[0].mxu0
  %v7166 = vadd.f32 0.0, %v7165
  %v7167 = vpop.f32.mrb[0].mxu0
  %7168 = vmatprep.mubr.f32.mxu0 0.0
  %7169 = vmatmul.mubr.f32.gmra.mrb[0].mxu0 %v5721
  %v7170 = vpop.f32.mrb[0].mxu0
  %v7171 = vadd.f32 0.0, %v7170
  %v7172 = vpop.f32.mrb[0].mxu0
  %7173 = vmatprep.mubr.f32.mxu0 0.0
  %7174 = vmatmul.mubr.f32.gmra.mrb[0].mxu0 %v5724
  %v7175 = vpop.f32.mrb[0].mxu0
  %v7176 = vadd.f32 0.0, %v7175
  %v7177 = vpop.f32.mrb[0].mxu0
  %7178 = vmatprep.mubr.f32.mxu0 0.0
  %7179 = vmatmul.mubr.f32.gmra.mrb[0].mxu0 %v5727
  %v7180 = vpop.f32.mrb[0].mxu0
  %v7181 = vadd.f32 0.0, %v7180
  %v7182 = vpop.f32.mrb[0].mxu0
  %7183 = vdwg.mxu0
  %v7185 = vsel %vm5144, %v5621, 0
  %v7188 = vsel %vm5144, %v5622, 0
  %v7191 = vsel %vm5144, %v5623, 0
  %v7194 = vsel %vm5144, %v5624, 0
  %v7197 = vsel %vm5144, %v5625, 0
  %v7200 = vsel %vm5144, %v5626, 0
  %v7203 = vsel %vm5144, %v5627, 0
  %v7206 = vsel %vm5144, %v5628, 0
  %7208 = vmatprep.subr.mxu0 0.0
  %7209 = vmatpush1.msra.mxu0 %v7166
  %7210 = vmatprep.subr.mxu0 0.0
  %7211 = vmatpush1.msra.mxu0 %v7171
  %7212 = vmatprep.subr.mxu0 0.0
  %7213 = vmatpush1.msra.mxu0 %v7176
  %7214 = vmatprep.subr.mxu0 0.0
  %7215 = vmatpush1.msra.mxu0 %v7181
  %7216 = vmatprep.subr.mxu0 0.0
  %7217 = vmatpush1.msra.mxu0 0.0
  %7218 = vmatprep.subr.mxu0 0.0
  %7219 = vmatpush1.msra.mxu0 0.0
  %7220 = vmatprep.subr.mxu0 0.0
  %7221 = vmatpush1.msra.mxu0 0.0
  %7222 = vmatprep.subr.mxu0 0.0
  %7223 = vmatpush1.msra.mxu0 0.0
  %7224 = vmatprep.subr.mxu0 0.0
  %7225 = vmatpush1.msra.mxu0 0.0
  %7226 = vmatprep.subr.mxu0 0.0
  %7227 = vmatpush1.msra.mxu0 0.0
  %7228 = vmatprep.subr.mxu0 0.0
  %7229 = vmatpush1.msra.mxu0 0.0
  %7230 = vmatprep.subr.mxu0 0.0
  %7231 = vmatpush1.msra.mxu0 0.0
  %7232 = vmatprep.subr.mxu0 0.0
  %7233 = vmatpush1.msra.mxu0 0.0
  %7234 = vmatprep.subr.mxu0 0.0
  %7235 = vmatpush1.msra.mxu0 0.0
  %7236 = vmatprep.subr.mxu0 0.0
  %7237 = vmatpush1.msra.mxu0 0.0
  %7238 = vmatprep.subr.mxu0 0.0
  %7239 = vmatpush1.msra.mxu0 0.0
  %7240 = vmatprep.subr.mxu0 0.0
  %7241 = vmatpush1.msra.mxu0 0.0
  %7242 = vmatprep.subr.mxu0 0.0
  %7243 = vmatpush1.msra.mxu0 0.0
  %7244 = vmatprep.subr.mxu0 0.0
  %7245 = vmatpush1.msra.mxu0 0.0
  %7246 = vmatprep.subr.mxu0 0.0
  %7247 = vmatpush1.msra.mxu0 0.0
  %7248 = vmatprep.subr.mxu0 0.0
  %7249 = vmatpush1.msra.mxu0 0.0
  %7250 = vmatprep.subr.mxu0 0.0
  %7251 = vmatpush1.msra.mxu0 0.0
  %7252 = vmatprep.subr.mxu0 0.0
  %7253 = vmatpush1.msra.mxu0 0.0
  %7254 = vmatprep.subr.mxu0 0.0
  %7255 = vmatpush1.msra.mxu0 0.0
  %7256 = vmatprep.subr.mxu0 0.0
  %7257 = vmatpush1.msra.mxu0 0.0
  %7258 = vmatprep.subr.mxu0 0.0
  %7259 = vmatpush1.msra.mxu0 0.0
  %7260 = vmatprep.subr.mxu0 0.0
  %7261 = vmatpush1.msra.mxu0 0.0
  %7262 = vmatprep.subr.mxu0 0.0
  %7263 = vmatpush1.msra.mxu0 0.0
  %7264 = vmatprep.subr.mxu0 0.0
  %7265 = vmatpush1.msra.mxu0 0.0
  %7266 = vmatprep.subr.mxu0 0.0
  %7267 = vmatpush1.msra.mxu0 0.0
  %7268 = vmatprep.subr.mxu0 0.0
  %7269 = vmatpush1.msra.mxu0 0.0
  %7270 = vmatprep.subr.mxu0 0.0
  %7271 = vmatpush1.msra.mxu0 0.0
  %7272 = vmatprep.mubr.f32.mxu0 0.0
  %7273 = vmatmul.mubr.f32.gmra.mrb[0].mxu0 %v7185
  %v7274 = vpop.f32.mrb[0].mxu0
  %v7275 = vadd.f32 0.0, %v7274
  %v7276 = vpop.f32.mrb[0].mxu0
  %7277 = vmatprep.mubr.f32.mxu0 0.0
  %7278 = vmatmul.mubr.f32.gmra.mrb[0].mxu0 %v7188
  %v7279 = vpop.f32.mrb[0].mxu0
  %v7280 = vadd.f32 0.0, %v7279
  %v7281 = vpop.f32.mrb[0].mxu0
  %7282 = vmatprep.mubr.f32.mxu0 0.0
  %7283 = vmatmul.mubr.f32.gmra.mrb[0].mxu0 %v7191
  %v7284 = vpop.f32.mrb[0].mxu0
  %v7285 = vadd.f32 0.0, %v7284
  %v7286 = vpop.f32.mrb[0].mxu0
  %7287 = vmatprep.mubr.f32.mxu0 0.0
  %7288 = vmatmul.mubr.f32.gmra.mrb[0].mxu0 %v7194
  %v7289 = vpop.f32.mrb[0].mxu0
  %v7290 = vadd.f32 0.0, %v7289
  %v7291 = vpop.f32.mrb[0].mxu0
  %7292 = vmatprep.mubr.f32.mxu0 0.0
  %7293 = vmatmul.mubr.f32.gmra.mrb[0].mxu0 %v7197
  %v7294 = vpop.f32.mrb[0].mxu0
  %v7295 = vadd.f32 0.0, %v7294
  %v7296 = vpop.f32.mrb[0].mxu0
  %7297 = vmatprep.mubr.f32.mxu0 0.0
  %7298 = vmatmul.mubr.f32.gmra.mrb[0].mxu0 %v7200
  %v7299 = vpop.f32.mrb[0].mxu0
  %v7300 = vadd.f32 0.0, %v7299
  %v7301 = vpop.f32.mrb[0].mxu0
  %7302 = vmatprep.mubr.f32.mxu0 0.0
  %7303 = vmatmul.mubr.f32.gmra.mrb[0].mxu0 %v7203
  %v7304 = vpop.f32.mrb[0].mxu0
  %v7305 = vadd.f32 0.0, %v7304
  %v7306 = vpop.f32.mrb[0].mxu0
  %7307 = vmatprep.mubr.f32.mxu0 0.0
  %7308 = vmatmul.mubr.f32.gmra.mrb[0].mxu0 %v7206
  %v7309 = vpop.f32.mrb[0].mxu0
  %v7310 = vadd.f32 0.0, %v7309
  %v7311 = vpop.f32.mrb[0].mxu0
  %7312 = vdwg.mxu0
  %v7313 = vadd.f32 %v7082, %v7275
  %v7314 = vadd.f32 %v7083, %v7280
  %v7315 = vadd.f32 %v7084, %v7285
  %v7316 = vadd.f32 %v7085, %v7290
  %v7317 = vadd.f32 %v7086, %v7295
  %v7318 = vadd.f32 %v7087, %v7300
  %v7319 = vadd.f32 %v7088, %v7305
  %v7320 = vadd.f32 %v7089, %v7310
  %v7321 = vadd.s32 %v107, 14
  %vm7322 = vcmp.eq.s32.totalorder %v74, %v7321
  %vm7323 = vcmp.eq.s32.totalorder %v75, %v7321
  %vm7324 = vcmp.eq.s32.totalorder %v76, %v7321
  %vm7325 = vcmp.eq.s32.totalorder %v77, %v7321
  %v7326 = vsel %vm7322, 1.0, 0.0
  %v7327 = vsel %vm7323, 1.0, 0.0
  %v7328 = vsel %vm7324, 1.0, 0.0
  %v7329 = vsel %vm7325, 1.0, 0.0
  %7330 = vmatprep.subr.mxu0 0.0
  %7331 = vmatpush1.msra.mxu0 %v7326
  %7332 = vmatprep.subr.mxu0 0.0
  %7333 = vmatpush1.msra.mxu0 %v7327
  %7334 = vmatprep.subr.mxu0 0.0
  %7335 = vmatpush1.msra.mxu0 %v7328
  %7336 = vmatprep.subr.mxu0 0.0
  %7337 = vmatpush1.msra.mxu0 %v7329
  %7338 = vmatprep.subr.mxu0 0.0
  %7339 = vmatpush1.msra.mxu0 0.0
  %7340 = vmatprep.subr.mxu0 0.0
  %7341 = vmatpush1.msra.mxu0 0.0
  %7342 = vmatprep.subr.mxu0 0.0
  %7343 = vmatpush1.msra.mxu0 0.0
  %7344 = vmatprep.subr.mxu0 0.0
  %7345 = vmatpush1.msra.mxu0 0.0
  %7346 = vmatprep.subr.mxu0 0.0
  %7347 = vmatpush1.msra.mxu0 0.0
  %7348 = vmatprep.subr.mxu0 0.0
  %7349 = vmatpush1.msra.mxu0 0.0
  %7350 = vmatprep.subr.mxu0 0.0
  %7351 = vmatpush1.msra.mxu0 0.0
  %7352 = vmatprep.subr.mxu0 0.0
  %7353 = vmatpush1.msra.mxu0 0.0
  %7354 = vmatprep.subr.mxu0 0.0
  %7355 = vmatpush1.msra.mxu0 0.0
  %7356 = vmatprep.subr.mxu0 0.0
  %7357 = vmatpush1.msra.mxu0 0.0
  %7358 = vmatprep.subr.mxu0 0.0
  %7359 = vmatpush1.msra.mxu0 0.0
  %7360 = vmatprep.subr.mxu0 0.0
  %7361 = vmatpush1.msra.mxu0 0.0
  %7362 = vmatprep.subr.mxu0 0.0
  %7363 = vmatpush1.msra.mxu0 0.0
  %7364 = vmatprep.subr.mxu0 0.0
  %7365 = vmatpush1.msra.mxu0 0.0
  %7366 = vmatprep.subr.mxu0 0.0
  %7367 = vmatpush1.msra.mxu0 0.0
  %7368 = vmatprep.subr.mxu0 0.0
  %7369 = vmatpush1.msra.mxu0 0.0
  %7370 = vmatprep.subr.mxu0 0.0
  %7371 = vmatpush1.msra.mxu0 0.0
  %7372 = vmatprep.subr.mxu0 0.0
  %7373 = vmatpush1.msra.mxu0 0.0
  %7374 = vmatprep.subr.mxu0 0.0
  %7375 = vmatpush1.msra.mxu0 0.0
  %7376 = vmatprep.subr.mxu0 0.0
  %7377 = vmatpush1.msra.mxu0 0.0
  %7378 = vmatprep.subr.mxu0 0.0
  %7379 = vmatpush1.msra.mxu0 0.0
  %7380 = vmatprep.subr.mxu0 0.0
  %7381 = vmatpush1.msra.mxu0 0.0
  %7382 = vmatprep.subr.mxu0 0.0
  %7383 = vmatpush1.msra.mxu0 0.0
  %7384 = vmatprep.subr.mxu0 0.0
  %7385 = vmatpush1.msra.mxu0 0.0
  %7386 = vmatprep.subr.mxu0 0.0
  %7387 = vmatpush1.msra.mxu0 0.0
  %7388 = vmatprep.subr.mxu0 0.0
  %7389 = vmatpush1.msra.mxu0 0.0
  %7390 = vmatprep.subr.mxu0 0.0
  %7391 = vmatpush1.msra.mxu0 0.0
  %7392 = vmatprep.subr.mxu0 0.0
  %7393 = vmatpush1.msra.mxu0 0.0
  %7394 = vmatprep.mubr.f32.mxu0 0.0
  %7395 = vmatmul.mubr.f32.gmra.mrb[0].mxu0 %v5718
  %v7396 = vpop.f32.mrb[0].mxu0
  %v7397 = vadd.f32 0.0, %v7396
  %v7398 = vpop.f32.mrb[0].mxu0
  %7399 = vmatprep.mubr.f32.mxu0 0.0
  %7400 = vmatmul.mubr.f32.gmra.mrb[0].mxu0 %v5721
  %v7401 = vpop.f32.mrb[0].mxu0
  %v7402 = vadd.f32 0.0, %v7401
  %v7403 = vpop.f32.mrb[0].mxu0
  %7404 = vmatprep.mubr.f32.mxu0 0.0
  %7405 = vmatmul.mubr.f32.gmra.mrb[0].mxu0 %v5724
  %v7406 = vpop.f32.mrb[0].mxu0
  %v7407 = vadd.f32 0.0, %v7406
  %v7408 = vpop.f32.mrb[0].mxu0
  %7409 = vmatprep.mubr.f32.mxu0 0.0
  %7410 = vmatmul.mubr.f32.gmra.mrb[0].mxu0 %v5727
  %v7411 = vpop.f32.mrb[0].mxu0
  %v7412 = vadd.f32 0.0, %v7411
  %v7413 = vpop.f32.mrb[0].mxu0
  %7414 = vdwg.mxu0
  %v7416 = vsel %vm5144, %v5629, 0
  %v7419 = vsel %vm5144, %v5630, 0
  %v7422 = vsel %vm5144, %v5631, 0
  %v7425 = vsel %vm5144, %v5632, 0
  %v7428 = vsel %vm5144, %v5633, 0
  %v7431 = vsel %vm5144, %v5634, 0
  %v7434 = vsel %vm5144, %v5635, 0
  %v7437 = vsel %vm5144, %v5636, 0
  %7439 = vmatprep.subr.mxu0 0.0
  %7440 = vmatpush1.msra.mxu0 %v7397
  %7441 = vmatprep.subr.mxu0 0.0
  %7442 = vmatpush1.msra.mxu0 %v7402
  %7443 = vmatprep.subr.mxu0 0.0
  %7444 = vmatpush1.msra.mxu0 %v7407
  %7445 = vmatprep.subr.mxu0 0.0
  %7446 = vmatpush1.msra.mxu0 %v7412
  %7447 = vmatprep.subr.mxu0 0.0
  %7448 = vmatpush1.msra.mxu0 0.0
  %7449 = vmatprep.subr.mxu0 0.0
  %7450 = vmatpush1.msra.mxu0 0.0
  %7451 = vmatprep.subr.mxu0 0.0
  %7452 = vmatpush1.msra.mxu0 0.0
  %7453 = vmatprep.subr.mxu0 0.0
  %7454 = vmatpush1.msra.mxu0 0.0
  %7455 = vmatprep.subr.mxu0 0.0
  %7456 = vmatpush1.msra.mxu0 0.0
  %7457 = vmatprep.subr.mxu0 0.0
  %7458 = vmatpush1.msra.mxu0 0.0
  %7459 = vmatprep.subr.mxu0 0.0
  %7460 = vmatpush1.msra.mxu0 0.0
  %7461 = vmatprep.subr.mxu0 0.0
  %7462 = vmatpush1.msra.mxu0 0.0
  %7463 = vmatprep.subr.mxu0 0.0
  %7464 = vmatpush1.msra.mxu0 0.0
  %7465 = vmatprep.subr.mxu0 0.0
  %7466 = vmatpush1.msra.mxu0 0.0
  %7467 = vmatprep.subr.mxu0 0.0
  %7468 = vmatpush1.msra.mxu0 0.0
  %7469 = vmatprep.subr.mxu0 0.0
  %7470 = vmatpush1.msra.mxu0 0.0
  %7471 = vmatprep.subr.mxu0 0.0
  %7472 = vmatpush1.msra.mxu0 0.0
  %7473 = vmatprep.subr.mxu0 0.0
  %7474 = vmatpush1.msra.mxu0 0.0
  %7475 = vmatprep.subr.mxu0 0.0
  %7476 = vmatpush1.msra.mxu0 0.0
  %7477 = vmatprep.subr.mxu0 0.0
  %7478 = vmatpush1.msra.mxu0 0.0
  %7479 = vmatprep.subr.mxu0 0.0
  %7480 = vmatpush1.msra.mxu0 0.0
  %7481 = vmatprep.subr.mxu0 0.0
  %7482 = vmatpush1.msra.mxu0 0.0
  %7483 = vmatprep.subr.mxu0 0.0
  %7484 = vmatpush1.msra.mxu0 0.0
  %7485 = vmatprep.subr.mxu0 0.0
  %7486 = vmatpush1.msra.mxu0 0.0
  %7487 = vmatprep.subr.mxu0 0.0
  %7488 = vmatpush1.msra.mxu0 0.0
  %7489 = vmatprep.subr.mxu0 0.0
  %7490 = vmatpush1.msra.mxu0 0.0
  %7491 = vmatprep.subr.mxu0 0.0
  %7492 = vmatpush1.msra.mxu0 0.0
  %7493 = vmatprep.subr.mxu0 0.0
  %7494 = vmatpush1.msra.mxu0 0.0
  %7495 = vmatprep.subr.mxu0 0.0
  %7496 = vmatpush1.msra.mxu0 0.0
  %7497 = vmatprep.subr.mxu0 0.0
  %7498 = vmatpush1.msra.mxu0 0.0
  %7499 = vmatprep.subr.mxu0 0.0
  %7500 = vmatpush1.msra.mxu0 0.0
  %7501 = vmatprep.subr.mxu0 0.0
  %7502 = vmatpush1.msra.mxu0 0.0
  %7503 = vmatprep.mubr.f32.mxu0 0.0
  %7504 = vmatmul.mubr.f32.gmra.mrb[0].mxu0 %v7416
  %v7505 = vpop.f32.mrb[0].mxu0
  %v7506 = vadd.f32 0.0, %v7505
  %v7507 = vpop.f32.mrb[0].mxu0
  %7508 = vmatprep.mubr.f32.mxu0 0.0
  %7509 = vmatmul.mubr.f32.gmra.mrb[0].mxu0 %v7419
  %v7510 = vpop.f32.mrb[0].mxu0
  %v7511 = vadd.f32 0.0, %v7510
  %v7512 = vpop.f32.mrb[0].mxu0
  %7513 = vmatprep.mubr.f32.mxu0 0.0
  %7514 = vmatmul.mubr.f32.gmra.mrb[0].mxu0 %v7422
  %v7515 = vpop.f32.mrb[0].mxu0
  %v7516 = vadd.f32 0.0, %v7515
  %v7517 = vpop.f32.mrb[0].mxu0
  %7518 = vmatprep.mubr.f32.mxu0 0.0
  %7519 = vmatmul.mubr.f32.gmra.mrb[0].mxu0 %v7425
  %v7520 = vpop.f32.mrb[0].mxu0
  %v7521 = vadd.f32 0.0, %v7520
  %v7522 = vpop.f32.mrb[0].mxu0
  %7523 = vmatprep.mubr.f32.mxu0 0.0
  %7524 = vmatmul.mubr.f32.gmra.mrb[0].mxu0 %v7428
  %v7525 = vpop.f32.mrb[0].mxu0
  %v7526 = vadd.f32 0.0, %v7525
  %v7527 = vpop.f32.mrb[0].mxu0
  %7528 = vmatprep.mubr.f32.mxu0 0.0
  %7529 = vmatmul.mubr.f32.gmra.mrb[0].mxu0 %v7431
  %v7530 = vpop.f32.mrb[0].mxu0
  %v7531 = vadd.f32 0.0, %v7530
  %v7532 = vpop.f32.mrb[0].mxu0
  %7533 = vmatprep.mubr.f32.mxu0 0.0
  %7534 = vmatmul.mubr.f32.gmra.mrb[0].mxu0 %v7434
  %v7535 = vpop.f32.mrb[0].mxu0
  %v7536 = vadd.f32 0.0, %v7535
  %v7537 = vpop.f32.mrb[0].mxu0
  %7538 = vmatprep.mubr.f32.mxu0 0.0
  %7539 = vmatmul.mubr.f32.gmra.mrb[0].mxu0 %v7437
  %v7540 = vpop.f32.mrb[0].mxu0
  %v7541 = vadd.f32 0.0, %v7540
  %v7542 = vpop.f32.mrb[0].mxu0
  %7543 = vdwg.mxu0
  %v7544 = vadd.f32 %v7313, %v7506
  %v7545 = vadd.f32 %v7314, %v7511
  %v7546 = vadd.f32 %v7315, %v7516
  %v7547 = vadd.f32 %v7316, %v7521
  %v7548 = vadd.f32 %v7317, %v7526
  %v7549 = vadd.f32 %v7318, %v7531
  %v7550 = vadd.f32 %v7319, %v7536
  %v7551 = vadd.f32 %v7320, %v7541
  %v7552 = vadd.s32 %v107, 16
  %vm7553 = vcmp.eq.s32.totalorder %v74, %v7552
  %vm7554 = vcmp.eq.s32.totalorder %v75, %v7552
  %vm7555 = vcmp.eq.s32.totalorder %v76, %v7552
  %vm7556 = vcmp.eq.s32.totalorder %v77, %v7552
  %v7557 = vsel %vm7553, 1.0, 0.0
  %v7558 = vsel %vm7554, 1.0, 0.0
  %v7559 = vsel %vm7555, 1.0, 0.0
  %v7560 = vsel %vm7556, 1.0, 0.0
  %7561 = vmatprep.subr.mxu0 0.0
  %7562 = vmatpush1.msra.mxu0 %v7557
  %7563 = vmatprep.subr.mxu0 0.0
  %7564 = vmatpush1.msra.mxu0 %v7558
  %7565 = vmatprep.subr.mxu0 0.0
  %7566 = vmatpush1.msra.mxu0 %v7559
  %7567 = vmatprep.subr.mxu0 0.0
  %7568 = vmatpush1.msra.mxu0 %v7560
  %7569 = vmatprep.subr.mxu0 0.0
  %7570 = vmatpush1.msra.mxu0 0.0
  %7571 = vmatprep.subr.mxu0 0.0
  %7572 = vmatpush1.msra.mxu0 0.0
  %7573 = vmatprep.subr.mxu0 0.0
  %7574 = vmatpush1.msra.mxu0 0.0
  %7575 = vmatprep.subr.mxu0 0.0
  %7576 = vmatpush1.msra.mxu0 0.0
  %7577 = vmatprep.subr.mxu0 0.0
  %7578 = vmatpush1.msra.mxu0 0.0
  %7579 = vmatprep.subr.mxu0 0.0
  %7580 = vmatpush1.msra.mxu0 0.0
  %7581 = vmatprep.subr.mxu0 0.0
  %7582 = vmatpush1.msra.mxu0 0.0
  %7583 = vmatprep.subr.mxu0 0.0
  %7584 = vmatpush1.msra.mxu0 0.0
  %7585 = vmatprep.subr.mxu0 0.0
  %7586 = vmatpush1.msra.mxu0 0.0
  %7587 = vmatprep.subr.mxu0 0.0
  %7588 = vmatpush1.msra.mxu0 0.0
  %7589 = vmatprep.subr.mxu0 0.0
  %7590 = vmatpush1.msra.mxu0 0.0
  %7591 = vmatprep.subr.mxu0 0.0
  %7592 = vmatpush1.msra.mxu0 0.0
  %7593 = vmatprep.subr.mxu0 0.0
  %7594 = vmatpush1.msra.mxu0 0.0
  %7595 = vmatprep.subr.mxu0 0.0
  %7596 = vmatpush1.msra.mxu0 0.0
  %7597 = vmatprep.subr.mxu0 0.0
  %7598 = vmatpush1.msra.mxu0 0.0
  %7599 = vmatprep.subr.mxu0 0.0
  %7600 = vmatpush1.msra.mxu0 0.0
  %7601 = vmatprep.subr.mxu0 0.0
  %7602 = vmatpush1.msra.mxu0 0.0
  %7603 = vmatprep.subr.mxu0 0.0
  %7604 = vmatpush1.msra.mxu0 0.0
  %7605 = vmatprep.subr.mxu0 0.0
  %7606 = vmatpush1.msra.mxu0 0.0
  %7607 = vmatprep.subr.mxu0 0.0
  %7608 = vmatpush1.msra.mxu0 0.0
  %7609 = vmatprep.subr.mxu0 0.0
  %7610 = vmatpush1.msra.mxu0 0.0
  %7611 = vmatprep.subr.mxu0 0.0
  %7612 = vmatpush1.msra.mxu0 0.0
  %7613 = vmatprep.subr.mxu0 0.0
  %7614 = vmatpush1.msra.mxu0 0.0
  %7615 = vmatprep.subr.mxu0 0.0
  %7616 = vmatpush1.msra.mxu0 0.0
  %7617 = vmatprep.subr.mxu0 0.0
  %7618 = vmatpush1.msra.mxu0 0.0
  %7619 = vmatprep.subr.mxu0 0.0
  %7620 = vmatpush1.msra.mxu0 0.0
  %7621 = vmatprep.subr.mxu0 0.0
  %7622 = vmatpush1.msra.mxu0 0.0
  %7623 = vmatprep.subr.mxu0 0.0
  %7624 = vmatpush1.msra.mxu0 0.0
  %7625 = vmatprep.mubr.f32.mxu0 0.0
  %7626 = vmatmul.mubr.f32.gmra.mrb[0].mxu0 %v5718
  %v7627 = vpop.f32.mrb[0].mxu0
  %v7628 = vadd.f32 0.0, %v7627
  %v7629 = vpop.f32.mrb[0].mxu0
  %7630 = vmatprep.mubr.f32.mxu0 0.0
  %7631 = vmatmul.mubr.f32.gmra.mrb[0].mxu0 %v5721
  %v7632 = vpop.f32.mrb[0].mxu0
  %v7633 = vadd.f32 0.0, %v7632
  %v7634 = vpop.f32.mrb[0].mxu0
  %7635 = vmatprep.mubr.f32.mxu0 0.0
  %7636 = vmatmul.mubr.f32.gmra.mrb[0].mxu0 %v5724
  %v7637 = vpop.f32.mrb[0].mxu0
  %v7638 = vadd.f32 0.0, %v7637
  %v7639 = vpop.f32.mrb[0].mxu0
  %7640 = vmatprep.mubr.f32.mxu0 0.0
  %7641 = vmatmul.mubr.f32.gmra.mrb[0].mxu0 %v5727
  %v7642 = vpop.f32.mrb[0].mxu0
  %v7643 = vadd.f32 0.0, %v7642
  %v7644 = vpop.f32.mrb[0].mxu0
  %7645 = vdwg.mxu0
  %v7647 = vsel %vm5144, %v5637, 0
  %v7650 = vsel %vm5144, %v5638, 0
  %v7653 = vsel %vm5144, %v5639, 0
  %v7656 = vsel %vm5144, %v5640, 0
  %v7659 = vsel %vm5144, %v5641, 0
  %v7662 = vsel %vm5144, %v5642, 0
  %v7665 = vsel %vm5144, %v5643, 0
  %v7668 = vsel %vm5144, %v5644, 0
  %7670 = vmatprep.subr.mxu0 0.0
  %7671 = vmatpush1.msra.mxu0 %v7628
  %7672 = vmatprep.subr.mxu0 0.0
  %7673 = vmatpush1.msra.mxu0 %v7633
  %7674 = vmatprep.subr.mxu0 0.0
  %7675 = vmatpush1.msra.mxu0 %v7638
  %7676 = vmatprep.subr.mxu0 0.0
  %7677 = vmatpush1.msra.mxu0 %v7643
  %7678 = vmatprep.subr.mxu0 0.0
  %7679 = vmatpush1.msra.mxu0 0.0
  %7680 = vmatprep.subr.mxu0 0.0
  %7681 = vmatpush1.msra.mxu0 0.0
  %7682 = vmatprep.subr.mxu0 0.0
  %7683 = vmatpush1.msra.mxu0 0.0
  %7684 = vmatprep.subr.mxu0 0.0
  %7685 = vmatpush1.msra.mxu0 0.0
  %7686 = vmatprep.subr.mxu0 0.0
  %7687 = vmatpush1.msra.mxu0 0.0
  %7688 = vmatprep.subr.mxu0 0.0
  %7689 = vmatpush1.msra.mxu0 0.0
  %7690 = vmatprep.subr.mxu0 0.0
  %7691 = vmatpush1.msra.mxu0 0.0
  %7692 = vmatprep.subr.mxu0 0.0
  %7693 = vmatpush1.msra.mxu0 0.0
  %7694 = vmatprep.subr.mxu0 0.0
  %7695 = vmatpush1.msra.mxu0 0.0
  %7696 = vmatprep.subr.mxu0 0.0
  %7697 = vmatpush1.msra.mxu0 0.0
  %7698 = vmatprep.subr.mxu0 0.0
  %7699 = vmatpush1.msra.mxu0 0.0
  %7700 = vmatprep.subr.mxu0 0.0
  %7701 = vmatpush1.msra.mxu0 0.0
  %7702 = vmatprep.subr.mxu0 0.0
  %7703 = vmatpush1.msra.mxu0 0.0
  %7704 = vmatprep.subr.mxu0 0.0
  %7705 = vmatpush1.msra.mxu0 0.0
  %7706 = vmatprep.subr.mxu0 0.0
  %7707 = vmatpush1.msra.mxu0 0.0
  %7708 = vmatprep.subr.mxu0 0.0
  %7709 = vmatpush1.msra.mxu0 0.0
  %7710 = vmatprep.subr.mxu0 0.0
  %7711 = vmatpush1.msra.mxu0 0.0
  %7712 = vmatprep.subr.mxu0 0.0
  %7713 = vmatpush1.msra.mxu0 0.0
  %7714 = vmatprep.subr.mxu0 0.0
  %7715 = vmatpush1.msra.mxu0 0.0
  %7716 = vmatprep.subr.mxu0 0.0
  %7717 = vmatpush1.msra.mxu0 0.0
  %7718 = vmatprep.subr.mxu0 0.0
  %7719 = vmatpush1.msra.mxu0 0.0
  %7720 = vmatprep.subr.mxu0 0.0
  %7721 = vmatpush1.msra.mxu0 0.0
  %7722 = vmatprep.subr.mxu0 0.0
  %7723 = vmatpush1.msra.mxu0 0.0
  %7724 = vmatprep.subr.mxu0 0.0
  %7725 = vmatpush1.msra.mxu0 0.0
  %7726 = vmatprep.subr.mxu0 0.0
  %7727 = vmatpush1.msra.mxu0 0.0
  %7728 = vmatprep.subr.mxu0 0.0
  %7729 = vmatpush1.msra.mxu0 0.0
  %7730 = vmatprep.subr.mxu0 0.0
  %7731 = vmatpush1.msra.mxu0 0.0
  %7732 = vmatprep.subr.mxu0 0.0
  %7733 = vmatpush1.msra.mxu0 0.0
  %7734 = vmatprep.mubr.f32.mxu0 0.0
  %7735 = vmatmul.mubr.f32.gmra.mrb[0].mxu0 %v7647
  %v7736 = vpop.f32.mrb[0].mxu0
  %v7737 = vadd.f32 0.0, %v7736
  %v7738 = vpop.f32.mrb[0].mxu0
  %7739 = vmatprep.mubr.f32.mxu0 0.0
  %7740 = vmatmul.mubr.f32.gmra.mrb[0].mxu0 %v7650
  %v7741 = vpop.f32.mrb[0].mxu0
  %v7742 = vadd.f32 0.0, %v7741
  %v7743 = vpop.f32.mrb[0].mxu0
  %7744 = vmatprep.mubr.f32.mxu0 0.0
  %7745 = vmatmul.mubr.f32.gmra.mrb[0].mxu0 %v7653
  %v7746 = vpop.f32.mrb[0].mxu0
  %v7747 = vadd.f32 0.0, %v7746
  %v7748 = vpop.f32.mrb[0].mxu0
  %7749 = vmatprep.mubr.f32.mxu0 0.0
  %7750 = vmatmul.mubr.f32.gmra.mrb[0].mxu0 %v7656
  %v7751 = vpop.f32.mrb[0].mxu0
  %v7752 = vadd.f32 0.0, %v7751
  %v7753 = vpop.f32.mrb[0].mxu0
  %7754 = vmatprep.mubr.f32.mxu0 0.0
  %7755 = vmatmul.mubr.f32.gmra.mrb[0].mxu0 %v7659
  %v7756 = vpop.f32.mrb[0].mxu0
  %v7757 = vadd.f32 0.0, %v7756
  %v7758 = vpop.f32.mrb[0].mxu0
  %7759 = vmatprep.mubr.f32.mxu0 0.0
  %7760 = vmatmul.mubr.f32.gmra.mrb[0].mxu0 %v7662
  %v7761 = vpop.f32.mrb[0].mxu0
  %v7762 = vadd.f32 0.0, %v7761
  %v7763 = vpop.f32.mrb[0].mxu0
  %7764 = vmatprep.mubr.f32.mxu0 0.0
  %7765 = vmatmul.mubr.f32.gmra.mrb[0].mxu0 %v7665
  %v7766 = vpop.f32.mrb[0].mxu0
  %v7767 = vadd.f32 0.0, %v7766
  %v7768 = vpop.f32.mrb[0].mxu0
  %7769 = vmatprep.mubr.f32.mxu0 0.0
  %7770 = vmatmul.mubr.f32.gmra.mrb[0].mxu0 %v7668
  %v7771 = vpop.f32.mrb[0].mxu0
  %v7772 = vadd.f32 0.0, %v7771
  %v7773 = vpop.f32.mrb[0].mxu0
  %7774 = vdwg.mxu0
  %v7775 = vadd.f32 %v7544, %v7737
  %v7776 = vadd.f32 %v7545, %v7742
  %v7777 = vadd.f32 %v7546, %v7747
  %v7778 = vadd.f32 %v7547, %v7752
  %v7779 = vadd.f32 %v7548, %v7757
  %v7780 = vadd.f32 %v7549, %v7762
  %v7781 = vadd.f32 %v7550, %v7767
  %v7782 = vadd.f32 %v7551, %v7772
  %v7783 = vadd.s32 %v107, 18
  %vm7784 = vcmp.eq.s32.totalorder %v74, %v7783
  %vm7785 = vcmp.eq.s32.totalorder %v75, %v7783
  %vm7786 = vcmp.eq.s32.totalorder %v76, %v7783
  %vm7787 = vcmp.eq.s32.totalorder %v77, %v7783
  %v7788 = vsel %vm7784, 1.0, 0.0
  %v7789 = vsel %vm7785, 1.0, 0.0
  %v7790 = vsel %vm7786, 1.0, 0.0
  %v7791 = vsel %vm7787, 1.0, 0.0
  %7792 = vmatprep.subr.mxu0 0.0
  %7793 = vmatpush1.msra.mxu0 %v7788
  %7794 = vmatprep.subr.mxu0 0.0
  %7795 = vmatpush1.msra.mxu0 %v7789
  %7796 = vmatprep.subr.mxu0 0.0
  %7797 = vmatpush1.msra.mxu0 %v7790
  %7798 = vmatprep.subr.mxu0 0.0
  %7799 = vmatpush1.msra.mxu0 %v7791
  %7800 = vmatprep.subr.mxu0 0.0
  %7801 = vmatpush1.msra.mxu0 0.0
  %7802 = vmatprep.subr.mxu0 0.0
  %7803 = vmatpush1.msra.mxu0 0.0
  %7804 = vmatprep.subr.mxu0 0.0
  %7805 = vmatpush1.msra.mxu0 0.0
  %7806 = vmatprep.subr.mxu0 0.0
  %7807 = vmatpush1.msra.mxu0 0.0
  %7808 = vmatprep.subr.mxu0 0.0
  %7809 = vmatpush1.msra.mxu0 0.0
  %7810 = vmatprep.subr.mxu0 0.0
  %7811 = vmatpush1.msra.mxu0 0.0
  %7812 = vmatprep.subr.mxu0 0.0
  %7813 = vmatpush1.msra.mxu0 0.0
  %7814 = vmatprep.subr.mxu0 0.0
  %7815 = vmatpush1.msra.mxu0 0.0
  %7816 = vmatprep.subr.mxu0 0.0
  %7817 = vmatpush1.msra.mxu0 0.0
  %7818 = vmatprep.subr.mxu0 0.0
  %7819 = vmatpush1.msra.mxu0 0.0
  %7820 = vmatprep.subr.mxu0 0.0
  %7821 = vmatpush1.msra.mxu0 0.0
  %7822 = vmatprep.subr.mxu0 0.0
  %7823 = vmatpush1.msra.mxu0 0.0
  %7824 = vmatprep.subr.mxu0 0.0
  %7825 = vmatpush1.msra.mxu0 0.0
  %7826 = vmatprep.subr.mxu0 0.0
  %7827 = vmatpush1.msra.mxu0 0.0
  %7828 = vmatprep.subr.mxu0 0.0
  %7829 = vmatpush1.msra.mxu0 0.0
  %7830 = vmatprep.subr.mxu0 0.0
  %7831 = vmatpush1.msra.mxu0 0.0
  %7832 = vmatprep.subr.mxu0 0.0
  %7833 = vmatpush1.msra.mxu0 0.0
  %7834 = vmatprep.subr.mxu0 0.0
  %7835 = vmatpush1.msra.mxu0 0.0
  %7836 = vmatprep.subr.mxu0 0.0
  %7837 = vmatpush1.msra.mxu0 0.0
  %7838 = vmatprep.subr.mxu0 0.0
  %7839 = vmatpush1.msra.mxu0 0.0
  %7840 = vmatprep.subr.mxu0 0.0
  %7841 = vmatpush1.msra.mxu0 0.0
  %7842 = vmatprep.subr.mxu0 0.0
  %7843 = vmatpush1.msra.mxu0 0.0
  %7844 = vmatprep.subr.mxu0 0.0
  %7845 = vmatpush1.msra.mxu0 0.0
  %7846 = vmatprep.subr.mxu0 0.0
  %7847 = vmatpush1.msra.mxu0 0.0
  %7848 = vmatprep.subr.mxu0 0.0
  %7849 = vmatpush1.msra.mxu0 0.0
  %7850 = vmatprep.subr.mxu0 0.0
  %7851 = vmatpush1.msra.mxu0 0.0
  %7852 = vmatprep.subr.mxu0 0.0
  %7853 = vmatpush1.msra.mxu0 0.0
  %7854 = vmatprep.subr.mxu0 0.0
  %7855 = vmatpush1.msra.mxu0 0.0
  %7856 = vmatprep.mubr.f32.mxu0 0.0
  %7857 = vmatmul.mubr.f32.gmra.mrb[0].mxu0 %v5718
  %v7858 = vpop.f32.mrb[0].mxu0
  %v7859 = vadd.f32 0.0, %v7858
  %v7860 = vpop.f32.mrb[0].mxu0
  %7861 = vmatprep.mubr.f32.mxu0 0.0
  %7862 = vmatmul.mubr.f32.gmra.mrb[0].mxu0 %v5721
  %v7863 = vpop.f32.mrb[0].mxu0
  %v7864 = vadd.f32 0.0, %v7863
  %v7865 = vpop.f32.mrb[0].mxu0
  %7866 = vmatprep.mubr.f32.mxu0 0.0
  %7867 = vmatmul.mubr.f32.gmra.mrb[0].mxu0 %v5724
  %v7868 = vpop.f32.mrb[0].mxu0
  %v7869 = vadd.f32 0.0, %v7868
  %v7870 = vpop.f32.mrb[0].mxu0
  %7871 = vmatprep.mubr.f32.mxu0 0.0
  %7872 = vmatmul.mubr.f32.gmra.mrb[0].mxu0 %v5727
  %v7873 = vpop.f32.mrb[0].mxu0
  %v7874 = vadd.f32 0.0, %v7873
  %v7875 = vpop.f32.mrb[0].mxu0
  %7876 = vdwg.mxu0
  %v7878 = vsel %vm5144, %v5645, 0
  %v7881 = vsel %vm5144, %v5646, 0
  %v7884 = vsel %vm5144, %v5647, 0
  %v7887 = vsel %vm5144, %v5648, 0
  %v7890 = vsel %vm5144, %v5649, 0
  %v7893 = vsel %vm5144, %v5650, 0
  %v7896 = vsel %vm5144, %v5651, 0
  %v7899 = vsel %vm5144, %v5652, 0
  %7901 = vmatprep.subr.mxu0 0.0
  %7902 = vmatpush1.msra.mxu0 %v7859
  %7903 = vmatprep.subr.mxu0 0.0
  %7904 = vmatpush1.msra.mxu0 %v7864
  %7905 = vmatprep.subr.mxu0 0.0
  %7906 = vmatpush1.msra.mxu0 %v7869
  %7907 = vmatprep.subr.mxu0 0.0
  %7908 = vmatpush1.msra.mxu0 %v7874
  %7909 = vmatprep.subr.mxu0 0.0
  %7910 = vmatpush1.msra.mxu0 0.0
  %7911 = vmatprep.subr.mxu0 0.0
  %7912 = vmatpush1.msra.mxu0 0.0
  %7913 = vmatprep.subr.mxu0 0.0
  %7914 = vmatpush1.msra.mxu0 0.0
  %7915 = vmatprep.subr.mxu0 0.0
  %7916 = vmatpush1.msra.mxu0 0.0
  %7917 = vmatprep.subr.mxu0 0.0
  %7918 = vmatpush1.msra.mxu0 0.0
  %7919 = vmatprep.subr.mxu0 0.0
  %7920 = vmatpush1.msra.mxu0 0.0
  %7921 = vmatprep.subr.mxu0 0.0
  %7922 = vmatpush1.msra.mxu0 0.0
  %7923 = vmatprep.subr.mxu0 0.0
  %7924 = vmatpush1.msra.mxu0 0.0
  %7925 = vmatprep.subr.mxu0 0.0
  %7926 = vmatpush1.msra.mxu0 0.0
  %7927 = vmatprep.subr.mxu0 0.0
  %7928 = vmatpush1.msra.mxu0 0.0
  %7929 = vmatprep.subr.mxu0 0.0
  %7930 = vmatpush1.msra.mxu0 0.0
  %7931 = vmatprep.subr.mxu0 0.0
  %7932 = vmatpush1.msra.mxu0 0.0
  %7933 = vmatprep.subr.mxu0 0.0
  %7934 = vmatpush1.msra.mxu0 0.0
  %7935 = vmatprep.subr.mxu0 0.0
  %7936 = vmatpush1.msra.mxu0 0.0
  %7937 = vmatprep.subr.mxu0 0.0
  %7938 = vmatpush1.msra.mxu0 0.0
  %7939 = vmatprep.subr.mxu0 0.0
  %7940 = vmatpush1.msra.mxu0 0.0
  %7941 = vmatprep.subr.mxu0 0.0
  %7942 = vmatpush1.msra.mxu0 0.0
  %7943 = vmatprep.subr.mxu0 0.0
  %7944 = vmatpush1.msra.mxu0 0.0
  %7945 = vmatprep.subr.mxu0 0.0
  %7946 = vmatpush1.msra.mxu0 0.0
  %7947 = vmatprep.subr.mxu0 0.0
  %7948 = vmatpush1.msra.mxu0 0.0
  %7949 = vmatprep.subr.mxu0 0.0
  %7950 = vmatpush1.msra.mxu0 0.0
  %7951 = vmatprep.subr.mxu0 0.0
  %7952 = vmatpush1.msra.mxu0 0.0
  %7953 = vmatprep.subr.mxu0 0.0
  %7954 = vmatpush1.msra.mxu0 0.0
  %7955 = vmatprep.subr.mxu0 0.0
  %7956 = vmatpush1.msra.mxu0 0.0
  %7957 = vmatprep.subr.mxu0 0.0
  %7958 = vmatpush1.msra.mxu0 0.0
  %7959 = vmatprep.subr.mxu0 0.0
  %7960 = vmatpush1.msra.mxu0 0.0
  %7961 = vmatprep.subr.mxu0 0.0
  %7962 = vmatpush1.msra.mxu0 0.0
  %7963 = vmatprep.subr.mxu0 0.0
  %7964 = vmatpush1.msra.mxu0 0.0
  %7965 = vmatprep.mubr.f32.mxu0 0.0
  %7966 = vmatmul.mubr.f32.gmra.mrb[0].mxu0 %v7878
  %v7967 = vpop.f32.mrb[0].mxu0
  %v7968 = vadd.f32 0.0, %v7967
  %v7969 = vpop.f32.mrb[0].mxu0
  %7970 = vmatprep.mubr.f32.mxu0 0.0
  %7971 = vmatmul.mubr.f32.gmra.mrb[0].mxu0 %v7881
  %v7972 = vpop.f32.mrb[0].mxu0
  %v7973 = vadd.f32 0.0, %v7972
  %v7974 = vpop.f32.mrb[0].mxu0
  %7975 = vmatprep.mubr.f32.mxu0 0.0
  %7976 = vmatmul.mubr.f32.gmra.mrb[0].mxu0 %v7884
  %v7977 = vpop.f32.mrb[0].mxu0
  %v7978 = vadd.f32 0.0, %v7977
  %v7979 = vpop.f32.mrb[0].mxu0
  %7980 = vmatprep.mubr.f32.mxu0 0.0
  %7981 = vmatmul.mubr.f32.gmra.mrb[0].mxu0 %v7887
  %v7982 = vpop.f32.mrb[0].mxu0
  %v7983 = vadd.f32 0.0, %v7982
  %v7984 = vpop.f32.mrb[0].mxu0
  %7985 = vmatprep.mubr.f32.mxu0 0.0
  %7986 = vmatmul.mubr.f32.gmra.mrb[0].mxu0 %v7890
  %v7987 = vpop.f32.mrb[0].mxu0
  %v7988 = vadd.f32 0.0, %v7987
  %v7989 = vpop.f32.mrb[0].mxu0
  %7990 = vmatprep.mubr.f32.mxu0 0.0
  %7991 = vmatmul.mubr.f32.gmra.mrb[0].mxu0 %v7893
  %v7992 = vpop.f32.mrb[0].mxu0
  %v7993 = vadd.f32 0.0, %v7992
  %v7994 = vpop.f32.mrb[0].mxu0
  %7995 = vmatprep.mubr.f32.mxu0 0.0
  %7996 = vmatmul.mubr.f32.gmra.mrb[0].mxu0 %v7896
  %v7997 = vpop.f32.mrb[0].mxu0
  %v7998 = vadd.f32 0.0, %v7997
  %v7999 = vpop.f32.mrb[0].mxu0
  %8000 = vmatprep.mubr.f32.mxu0 0.0
  %8001 = vmatmul.mubr.f32.gmra.mrb[0].mxu0 %v7899
  %v8002 = vpop.f32.mrb[0].mxu0
  %v8003 = vadd.f32 0.0, %v8002
  %v8004 = vpop.f32.mrb[0].mxu0
  %8005 = vdwg.mxu0
  %v8006 = vadd.f32 %v7775, %v7968
  %v8007 = vadd.f32 %v7776, %v7973
  %v8008 = vadd.f32 %v7777, %v7978
  %v8009 = vadd.f32 %v7778, %v7983
  %v8010 = vadd.f32 %v7779, %v7988
  %v8011 = vadd.f32 %v7780, %v7993
  %v8012 = vadd.f32 %v7781, %v7998
  %v8013 = vadd.f32 %v7782, %v8003
  %v8014 = vadd.s32 %v107, 20
  %vm8015 = vcmp.eq.s32.totalorder %v74, %v8014
  %vm8016 = vcmp.eq.s32.totalorder %v75, %v8014
  %vm8017 = vcmp.eq.s32.totalorder %v76, %v8014
  %vm8018 = vcmp.eq.s32.totalorder %v77, %v8014
  %v8019 = vsel %vm8015, 1.0, 0.0
  %v8020 = vsel %vm8016, 1.0, 0.0
  %v8021 = vsel %vm8017, 1.0, 0.0
  %v8022 = vsel %vm8018, 1.0, 0.0
  %8023 = vmatprep.subr.mxu0 0.0
  %8024 = vmatpush1.msra.mxu0 %v8019
  %8025 = vmatprep.subr.mxu0 0.0
  %8026 = vmatpush1.msra.mxu0 %v8020
  %8027 = vmatprep.subr.mxu0 0.0
  %8028 = vmatpush1.msra.mxu0 %v8021
  %8029 = vmatprep.subr.mxu0 0.0
  %8030 = vmatpush1.msra.mxu0 %v8022
  %8031 = vmatprep.subr.mxu0 0.0
  %8032 = vmatpush1.msra.mxu0 0.0
  %8033 = vmatprep.subr.mxu0 0.0
  %8034 = vmatpush1.msra.mxu0 0.0
  %8035 = vmatprep.subr.mxu0 0.0
  %8036 = vmatpush1.msra.mxu0 0.0
  %8037 = vmatprep.subr.mxu0 0.0
  %8038 = vmatpush1.msra.mxu0 0.0
  %8039 = vmatprep.subr.mxu0 0.0
  %8040 = vmatpush1.msra.mxu0 0.0
  %8041 = vmatprep.subr.mxu0 0.0
  %8042 = vmatpush1.msra.mxu0 0.0
  %8043 = vmatprep.subr.mxu0 0.0
  %8044 = vmatpush1.msra.mxu0 0.0
  %8045 = vmatprep.subr.mxu0 0.0
  %8046 = vmatpush1.msra.mxu0 0.0
  %8047 = vmatprep.subr.mxu0 0.0
  %8048 = vmatpush1.msra.mxu0 0.0
  %8049 = vmatprep.subr.mxu0 0.0
  %8050 = vmatpush1.msra.mxu0 0.0
  %8051 = vmatprep.subr.mxu0 0.0
  %8052 = vmatpush1.msra.mxu0 0.0
  %8053 = vmatprep.subr.mxu0 0.0
  %8054 = vmatpush1.msra.mxu0 0.0
  %8055 = vmatprep.subr.mxu0 0.0
  %8056 = vmatpush1.msra.mxu0 0.0
  %8057 = vmatprep.subr.mxu0 0.0
  %8058 = vmatpush1.msra.mxu0 0.0
  %8059 = vmatprep.subr.mxu0 0.0
  %8060 = vmatpush1.msra.mxu0 0.0
  %8061 = vmatprep.subr.mxu0 0.0
  %8062 = vmatpush1.msra.mxu0 0.0
  %8063 = vmatprep.subr.mxu0 0.0
  %8064 = vmatpush1.msra.mxu0 0.0
  %8065 = vmatprep.subr.mxu0 0.0
  %8066 = vmatpush1.msra.mxu0 0.0
  %8067 = vmatprep.subr.mxu0 0.0
  %8068 = vmatpush1.msra.mxu0 0.0
  %8069 = vmatprep.subr.mxu0 0.0
  %8070 = vmatpush1.msra.mxu0 0.0
  %8071 = vmatprep.subr.mxu0 0.0
  %8072 = vmatpush1.msra.mxu0 0.0
  %8073 = vmatprep.subr.mxu0 0.0
  %8074 = vmatpush1.msra.mxu0 0.0
  %8075 = vmatprep.subr.mxu0 0.0
  %8076 = vmatpush1.msra.mxu0 0.0
  %8077 = vmatprep.subr.mxu0 0.0
  %8078 = vmatpush1.msra.mxu0 0.0
  %8079 = vmatprep.subr.mxu0 0.0
  %8080 = vmatpush1.msra.mxu0 0.0
  %8081 = vmatprep.subr.mxu0 0.0
  %8082 = vmatpush1.msra.mxu0 0.0
  %8083 = vmatprep.subr.mxu0 0.0
  %8084 = vmatpush1.msra.mxu0 0.0
  %8085 = vmatprep.subr.mxu0 0.0
  %8086 = vmatpush1.msra.mxu0 0.0
  %8087 = vmatprep.mubr.f32.mxu0 0.0
  %8088 = vmatmul.mubr.f32.gmra.mrb[0].mxu0 %v5718
  %v8089 = vpop.f32.mrb[0].mxu0
  %v8090 = vadd.f32 0.0, %v8089
  %v8091 = vpop.f32.mrb[0].mxu0
  %8092 = vmatprep.mubr.f32.mxu0 0.0
  %8093 = vmatmul.mubr.f32.gmra.mrb[0].mxu0 %v5721
  %v8094 = vpop.f32.mrb[0].mxu0
  %v8095 = vadd.f32 0.0, %v8094
  %v8096 = vpop.f32.mrb[0].mxu0
  %8097 = vmatprep.mubr.f32.mxu0 0.0
  %8098 = vmatmul.mubr.f32.gmra.mrb[0].mxu0 %v5724
  %v8099 = vpop.f32.mrb[0].mxu0
  %v8100 = vadd.f32 0.0, %v8099
  %v8101 = vpop.f32.mrb[0].mxu0
  %8102 = vmatprep.mubr.f32.mxu0 0.0
  %8103 = vmatmul.mubr.f32.gmra.mrb[0].mxu0 %v5727
  %v8104 = vpop.f32.mrb[0].mxu0
  %v8105 = vadd.f32 0.0, %v8104
  %v8106 = vpop.f32.mrb[0].mxu0
  %8107 = vdwg.mxu0
  %v8109 = vsel %vm5144, %v5653, 0
  %v8112 = vsel %vm5144, %v5654, 0
  %v8115 = vsel %vm5144, %v5655, 0
  %v8118 = vsel %vm5144, %v5656, 0
  %v8121 = vsel %vm5144, %v5657, 0
  %v8124 = vsel %vm5144, %v5658, 0
  %v8127 = vsel %vm5144, %v5659, 0
  %v8130 = vsel %vm5144, %v5660, 0
  %8132 = vmatprep.subr.mxu0 0.0
  %8133 = vmatpush1.msra.mxu0 %v8090
  %8134 = vmatprep.subr.mxu0 0.0
  %8135 = vmatpush1.msra.mxu0 %v8095
  %8136 = vmatprep.subr.mxu0 0.0
  %8137 = vmatpush1.msra.mxu0 %v8100
  %8138 = vmatprep.subr.mxu0 0.0
  %8139 = vmatpush1.msra.mxu0 %v8105
  %8140 = vmatprep.subr.mxu0 0.0
  %8141 = vmatpush1.msra.mxu0 0.0
  %8142 = vmatprep.subr.mxu0 0.0
  %8143 = vmatpush1.msra.mxu0 0.0
  %8144 = vmatprep.subr.mxu0 0.0
  %8145 = vmatpush1.msra.mxu0 0.0
  %8146 = vmatprep.subr.mxu0 0.0
  %8147 = vmatpush1.msra.mxu0 0.0
  %8148 = vmatprep.subr.mxu0 0.0
  %8149 = vmatpush1.msra.mxu0 0.0
  %8150 = vmatprep.subr.mxu0 0.0
  %8151 = vmatpush1.msra.mxu0 0.0
  %8152 = vmatprep.subr.mxu0 0.0
  %8153 = vmatpush1.msra.mxu0 0.0
  %8154 = vmatprep.subr.mxu0 0.0
  %8155 = vmatpush1.msra.mxu0 0.0
  %8156 = vmatprep.subr.mxu0 0.0
  %8157 = vmatpush1.msra.mxu0 0.0
  %8158 = vmatprep.subr.mxu0 0.0
  %8159 = vmatpush1.msra.mxu0 0.0
  %8160 = vmatprep.subr.mxu0 0.0
  %8161 = vmatpush1.msra.mxu0 0.0
  %8162 = vmatprep.subr.mxu0 0.0
  %8163 = vmatpush1.msra.mxu0 0.0
  %8164 = vmatprep.subr.mxu0 0.0
  %8165 = vmatpush1.msra.mxu0 0.0
  %8166 = vmatprep.subr.mxu0 0.0
  %8167 = vmatpush1.msra.mxu0 0.0
  %8168 = vmatprep.subr.mxu0 0.0
  %8169 = vmatpush1.msra.mxu0 0.0
  %8170 = vmatprep.subr.mxu0 0.0
  %8171 = vmatpush1.msra.mxu0 0.0
  %8172 = vmatprep.subr.mxu0 0.0
  %8173 = vmatpush1.msra.mxu0 0.0
  %8174 = vmatprep.subr.mxu0 0.0
  %8175 = vmatpush1.msra.mxu0 0.0
  %8176 = vmatprep.subr.mxu0 0.0
  %8177 = vmatpush1.msra.mxu0 0.0
  %8178 = vmatprep.subr.mxu0 0.0
  %8179 = vmatpush1.msra.mxu0 0.0
  %8180 = vmatprep.subr.mxu0 0.0
  %8181 = vmatpush1.msra.mxu0 0.0
  %8182 = vmatprep.subr.mxu0 0.0
  %8183 = vmatpush1.msra.mxu0 0.0
  %8184 = vmatprep.subr.mxu0 0.0
  %8185 = vmatpush1.msra.mxu0 0.0
  %8186 = vmatprep.subr.mxu0 0.0
  %8187 = vmatpush1.msra.mxu0 0.0
  %8188 = vmatprep.subr.mxu0 0.0
  %8189 = vmatpush1.msra.mxu0 0.0
  %8190 = vmatprep.subr.mxu0 0.0
  %8191 = vmatpush1.msra.mxu0 0.0
  %8192 = vmatprep.subr.mxu0 0.0
  %8193 = vmatpush1.msra.mxu0 0.0
  %8194 = vmatprep.subr.mxu0 0.0
  %8195 = vmatpush1.msra.mxu0 0.0
  %8196 = vmatprep.mubr.f32.mxu0 0.0
  %8197 = vmatmul.mubr.f32.gmra.mrb[0].mxu0 %v8109
  %v8198 = vpop.f32.mrb[0].mxu0
  %v8199 = vadd.f32 0.0, %v8198
  %v8200 = vpop.f32.mrb[0].mxu0
  %8201 = vmatprep.mubr.f32.mxu0 0.0
  %8202 = vmatmul.mubr.f32.gmra.mrb[0].mxu0 %v8112
  %v8203 = vpop.f32.mrb[0].mxu0
  %v8204 = vadd.f32 0.0, %v8203
  %v8205 = vpop.f32.mrb[0].mxu0
  %8206 = vmatprep.mubr.f32.mxu0 0.0
  %8207 = vmatmul.mubr.f32.gmra.mrb[0].mxu0 %v8115
  %v8208 = vpop.f32.mrb[0].mxu0
  %v8209 = vadd.f32 0.0, %v8208
  %v8210 = vpop.f32.mrb[0].mxu0
  %8211 = vmatprep.mubr.f32.mxu0 0.0
  %8212 = vmatmul.mubr.f32.gmra.mrb[0].mxu0 %v8118
  %v8213 = vpop.f32.mrb[0].mxu0
  %v8214 = vadd.f32 0.0, %v8213
  %v8215 = vpop.f32.mrb[0].mxu0
  %8216 = vmatprep.mubr.f32.mxu0 0.0
  %8217 = vmatmul.mubr.f32.gmra.mrb[0].mxu0 %v8121
  %v8218 = vpop.f32.mrb[0].mxu0
  %v8219 = vadd.f32 0.0, %v8218
  %v8220 = vpop.f32.mrb[0].mxu0
  %8221 = vmatprep.mubr.f32.mxu0 0.0
  %8222 = vmatmul.mubr.f32.gmra.mrb[0].mxu0 %v8124
  %v8223 = vpop.f32.mrb[0].mxu0
  %v8224 = vadd.f32 0.0, %v8223
  %v8225 = vpop.f32.mrb[0].mxu0
  %8226 = vmatprep.mubr.f32.mxu0 0.0
  %8227 = vmatmul.mubr.f32.gmra.mrb[0].mxu0 %v8127
  %v8228 = vpop.f32.mrb[0].mxu0
  %v8229 = vadd.f32 0.0, %v8228
  %v8230 = vpop.f32.mrb[0].mxu0
  %8231 = vmatprep.mubr.f32.mxu0 0.0
  %8232 = vmatmul.mubr.f32.gmra.mrb[0].mxu0 %v8130
  %v8233 = vpop.f32.mrb[0].mxu0
  %v8234 = vadd.f32 0.0, %v8233
  %v8235 = vpop.f32.mrb[0].mxu0
  %8236 = vdwg.mxu0
  %v8237 = vadd.f32 %v8006, %v8199
  %v8238 = vadd.f32 %v8007, %v8204
  %v8239 = vadd.f32 %v8008, %v8209
  %v8240 = vadd.f32 %v8009, %v8214
  %v8241 = vadd.f32 %v8010, %v8219
  %v8242 = vadd.f32 %v8011, %v8224
  %v8243 = vadd.f32 %v8012, %v8229
  %v8244 = vadd.f32 %v8013, %v8234
  %v8245 = vadd.s32 %v107, 22
  %vm8246 = vcmp.eq.s32.totalorder %v74, %v8245
  %vm8247 = vcmp.eq.s32.totalorder %v75, %v8245
  %vm8248 = vcmp.eq.s32.totalorder %v76, %v8245
  %vm8249 = vcmp.eq.s32.totalorder %v77, %v8245
  %v8250 = vsel %vm8246, 1.0, 0.0
  %v8251 = vsel %vm8247, 1.0, 0.0
  %v8252 = vsel %vm8248, 1.0, 0.0
  %v8253 = vsel %vm8249, 1.0, 0.0
  %8254 = vmatprep.subr.mxu0 0.0
  %8255 = vmatpush1.msra.mxu0 %v8250
  %8256 = vmatprep.subr.mxu0 0.0
  %8257 = vmatpush1.msra.mxu0 %v8251
  %8258 = vmatprep.subr.mxu0 0.0
  %8259 = vmatpush1.msra.mxu0 %v8252
  %8260 = vmatprep.subr.mxu0 0.0
  %8261 = vmatpush1.msra.mxu0 %v8253
  %8262 = vmatprep.subr.mxu0 0.0
  %8263 = vmatpush1.msra.mxu0 0.0
  %8264 = vmatprep.subr.mxu0 0.0
  %8265 = vmatpush1.msra.mxu0 0.0
  %8266 = vmatprep.subr.mxu0 0.0
  %8267 = vmatpush1.msra.mxu0 0.0
  %8268 = vmatprep.subr.mxu0 0.0
  %8269 = vmatpush1.msra.mxu0 0.0
  %8270 = vmatprep.subr.mxu0 0.0
  %8271 = vmatpush1.msra.mxu0 0.0
  %8272 = vmatprep.subr.mxu0 0.0
  %8273 = vmatpush1.msra.mxu0 0.0
  %8274 = vmatprep.subr.mxu0 0.0
  %8275 = vmatpush1.msra.mxu0 0.0
  %8276 = vmatprep.subr.mxu0 0.0
  %8277 = vmatpush1.msra.mxu0 0.0
  %8278 = vmatprep.subr.mxu0 0.0
  %8279 = vmatpush1.msra.mxu0 0.0
  %8280 = vmatprep.subr.mxu0 0.0
  %8281 = vmatpush1.msra.mxu0 0.0
  %8282 = vmatprep.subr.mxu0 0.0
  %8283 = vmatpush1.msra.mxu0 0.0
  %8284 = vmatprep.subr.mxu0 0.0
  %8285 = vmatpush1.msra.mxu0 0.0
  %8286 = vmatprep.subr.mxu0 0.0
  %8287 = vmatpush1.msra.mxu0 0.0
  %8288 = vmatprep.subr.mxu0 0.0
  %8289 = vmatpush1.msra.mxu0 0.0
  %8290 = vmatprep.subr.mxu0 0.0
  %8291 = vmatpush1.msra.mxu0 0.0
  %8292 = vmatprep.subr.mxu0 0.0
  %8293 = vmatpush1.msra.mxu0 0.0
  %8294 = vmatprep.subr.mxu0 0.0
  %8295 = vmatpush1.msra.mxu0 0.0
  %8296 = vmatprep.subr.mxu0 0.0
  %8297 = vmatpush1.msra.mxu0 0.0
  %8298 = vmatprep.subr.mxu0 0.0
  %8299 = vmatpush1.msra.mxu0 0.0
  %8300 = vmatprep.subr.mxu0 0.0
  %8301 = vmatpush1.msra.mxu0 0.0
  %8302 = vmatprep.subr.mxu0 0.0
  %8303 = vmatpush1.msra.mxu0 0.0
  %8304 = vmatprep.subr.mxu0 0.0
  %8305 = vmatpush1.msra.mxu0 0.0
  %8306 = vmatprep.subr.mxu0 0.0
  %8307 = vmatpush1.msra.mxu0 0.0
  %8308 = vmatprep.subr.mxu0 0.0
  %8309 = vmatpush1.msra.mxu0 0.0
  %8310 = vmatprep.subr.mxu0 0.0
  %8311 = vmatpush1.msra.mxu0 0.0
  %8312 = vmatprep.subr.mxu0 0.0
  %8313 = vmatpush1.msra.mxu0 0.0
  %8314 = vmatprep.subr.mxu0 0.0
  %8315 = vmatpush1.msra.mxu0 0.0
  %8316 = vmatprep.subr.mxu0 0.0
  %8317 = vmatpush1.msra.mxu0 0.0
  %8318 = vmatprep.mubr.f32.mxu0 0.0
  %8319 = vmatmul.mubr.f32.gmra.mrb[0].mxu0 %v5718
  %v8320 = vpop.f32.mrb[0].mxu0
  %v8321 = vadd.f32 0.0, %v8320
  %v8322 = vpop.f32.mrb[0].mxu0
  %8323 = vmatprep.mubr.f32.mxu0 0.0
  %8324 = vmatmul.mubr.f32.gmra.mrb[0].mxu0 %v5721
  %v8325 = vpop.f32.mrb[0].mxu0
  %v8326 = vadd.f32 0.0, %v8325
  %v8327 = vpop.f32.mrb[0].mxu0
  %8328 = vmatprep.mubr.f32.mxu0 0.0
  %8329 = vmatmul.mubr.f32.gmra.mrb[0].mxu0 %v5724
  %v8330 = vpop.f32.mrb[0].mxu0
  %v8331 = vadd.f32 0.0, %v8330
  %v8332 = vpop.f32.mrb[0].mxu0
  %8333 = vmatprep.mubr.f32.mxu0 0.0
  %8334 = vmatmul.mubr.f32.gmra.mrb[0].mxu0 %v5727
  %v8335 = vpop.f32.mrb[0].mxu0
  %v8336 = vadd.f32 0.0, %v8335
  %v8337 = vpop.f32.mrb[0].mxu0
  %8338 = vdwg.mxu0
  %v8340 = vsel %vm5144, %v5661, 0
  %v8343 = vsel %vm5144, %v5662, 0
  %v8346 = vsel %vm5144, %v5663, 0
  %v8349 = vsel %vm5144, %v5664, 0
  %v8352 = vsel %vm5144, %v5665, 0
  %v8355 = vsel %vm5144, %v5666, 0
  %v8358 = vsel %vm5144, %v5667, 0
  %v8361 = vsel %vm5144, %v5668, 0
  %8363 = vmatprep.subr.mxu0 0.0
  %8364 = vmatpush1.msra.mxu0 %v8321
  %8365 = vmatprep.subr.mxu0 0.0
  %8366 = vmatpush1.msra.mxu0 %v8326
  %8367 = vmatprep.subr.mxu0 0.0
  %8368 = vmatpush1.msra.mxu0 %v8331
  %8369 = vmatprep.subr.mxu0 0.0
  %8370 = vmatpush1.msra.mxu0 %v8336
  %8371 = vmatprep.subr.mxu0 0.0
  %8372 = vmatpush1.msra.mxu0 0.0
  %8373 = vmatprep.subr.mxu0 0.0
  %8374 = vmatpush1.msra.mxu0 0.0
  %8375 = vmatprep.subr.mxu0 0.0
  %8376 = vmatpush1.msra.mxu0 0.0
  %8377 = vmatprep.subr.mxu0 0.0
  %8378 = vmatpush1.msra.mxu0 0.0
  %8379 = vmatprep.subr.mxu0 0.0
  %8380 = vmatpush1.msra.mxu0 0.0
  %8381 = vmatprep.subr.mxu0 0.0
  %8382 = vmatpush1.msra.mxu0 0.0
  %8383 = vmatprep.subr.mxu0 0.0
  %8384 = vmatpush1.msra.mxu0 0.0
  %8385 = vmatprep.subr.mxu0 0.0
  %8386 = vmatpush1.msra.mxu0 0.0
  %8387 = vmatprep.subr.mxu0 0.0
  %8388 = vmatpush1.msra.mxu0 0.0
  %8389 = vmatprep.subr.mxu0 0.0
  %8390 = vmatpush1.msra.mxu0 0.0
  %8391 = vmatprep.subr.mxu0 0.0
  %8392 = vmatpush1.msra.mxu0 0.0
  %8393 = vmatprep.subr.mxu0 0.0
  %8394 = vmatpush1.msra.mxu0 0.0
  %8395 = vmatprep.subr.mxu0 0.0
  %8396 = vmatpush1.msra.mxu0 0.0
  %8397 = vmatprep.subr.mxu0 0.0
  %8398 = vmatpush1.msra.mxu0 0.0
  %8399 = vmatprep.subr.mxu0 0.0
  %8400 = vmatpush1.msra.mxu0 0.0
  %8401 = vmatprep.subr.mxu0 0.0
  %8402 = vmatpush1.msra.mxu0 0.0
  %8403 = vmatprep.subr.mxu0 0.0
  %8404 = vmatpush1.msra.mxu0 0.0
  %8405 = vmatprep.subr.mxu0 0.0
  %8406 = vmatpush1.msra.mxu0 0.0
  %8407 = vmatprep.subr.mxu0 0.0
  %8408 = vmatpush1.msra.mxu0 0.0
  %8409 = vmatprep.subr.mxu0 0.0
  %8410 = vmatpush1.msra.mxu0 0.0
  %8411 = vmatprep.subr.mxu0 0.0
  %8412 = vmatpush1.msra.mxu0 0.0
  %8413 = vmatprep.subr.mxu0 0.0
  %8414 = vmatpush1.msra.mxu0 0.0
  %8415 = vmatprep.subr.mxu0 0.0
  %8416 = vmatpush1.msra.mxu0 0.0
  %8417 = vmatprep.subr.mxu0 0.0
  %8418 = vmatpush1.msra.mxu0 0.0
  %8419 = vmatprep.subr.mxu0 0.0
  %8420 = vmatpush1.msra.mxu0 0.0
  %8421 = vmatprep.subr.mxu0 0.0
  %8422 = vmatpush1.msra.mxu0 0.0
  %8423 = vmatprep.subr.mxu0 0.0
  %8424 = vmatpush1.msra.mxu0 0.0
  %8425 = vmatprep.subr.mxu0 0.0
  %8426 = vmatpush1.msra.mxu0 0.0
  %8427 = vmatprep.mubr.f32.mxu0 0.0
  %8428 = vmatmul.mubr.f32.gmra.mrb[0].mxu0 %v8340
  %v8429 = vpop.f32.mrb[0].mxu0
  %v8430 = vadd.f32 0.0, %v8429
  %v8431 = vpop.f32.mrb[0].mxu0
  %8432 = vmatprep.mubr.f32.mxu0 0.0
  %8433 = vmatmul.mubr.f32.gmra.mrb[0].mxu0 %v8343
  %v8434 = vpop.f32.mrb[0].mxu0
  %v8435 = vadd.f32 0.0, %v8434
  %v8436 = vpop.f32.mrb[0].mxu0
  %8437 = vmatprep.mubr.f32.mxu0 0.0
  %8438 = vmatmul.mubr.f32.gmra.mrb[0].mxu0 %v8346
  %v8439 = vpop.f32.mrb[0].mxu0
  %v8440 = vadd.f32 0.0, %v8439
  %v8441 = vpop.f32.mrb[0].mxu0
  %8442 = vmatprep.mubr.f32.mxu0 0.0
  %8443 = vmatmul.mubr.f32.gmra.mrb[0].mxu0 %v8349
  %v8444 = vpop.f32.mrb[0].mxu0
  %v8445 = vadd.f32 0.0, %v8444
  %v8446 = vpop.f32.mrb[0].mxu0
  %8447 = vmatprep.mubr.f32.mxu0 0.0
  %8448 = vmatmul.mubr.f32.gmra.mrb[0].mxu0 %v8352
  %v8449 = vpop.f32.mrb[0].mxu0
  %v8450 = vadd.f32 0.0, %v8449
  %v8451 = vpop.f32.mrb[0].mxu0
  %8452 = vmatprep.mubr.f32.mxu0 0.0
  %8453 = vmatmul.mubr.f32.gmra.mrb[0].mxu0 %v8355
  %v8454 = vpop.f32.mrb[0].mxu0
  %v8455 = vadd.f32 0.0, %v8454
  %v8456 = vpop.f32.mrb[0].mxu0
  %8457 = vmatprep.mubr.f32.mxu0 0.0
  %8458 = vmatmul.mubr.f32.gmra.mrb[0].mxu0 %v8358
  %v8459 = vpop.f32.mrb[0].mxu0
  %v8460 = vadd.f32 0.0, %v8459
  %v8461 = vpop.f32.mrb[0].mxu0
  %8462 = vmatprep.mubr.f32.mxu0 0.0
  %8463 = vmatmul.mubr.f32.gmra.mrb[0].mxu0 %v8361
  %v8464 = vpop.f32.mrb[0].mxu0
  %v8465 = vadd.f32 0.0, %v8464
  %v8466 = vpop.f32.mrb[0].mxu0
  %8467 = vdwg.mxu0
  %v8468 = vadd.f32 %v8237, %v8430
  %v8469 = vadd.f32 %v8238, %v8435
  %v8470 = vadd.f32 %v8239, %v8440
  %v8471 = vadd.f32 %v8240, %v8445
  %v8472 = vadd.f32 %v8241, %v8450
  %v8473 = vadd.f32 %v8242, %v8455
  %v8474 = vadd.f32 %v8243, %v8460
  %v8475 = vadd.f32 %v8244, %v8465
  %v8476 = vadd.s32 %v107, 24
  %vm8477 = vcmp.eq.s32.totalorder %v74, %v8476
  %vm8478 = vcmp.eq.s32.totalorder %v75, %v8476
  %vm8479 = vcmp.eq.s32.totalorder %v76, %v8476
  %vm8480 = vcmp.eq.s32.totalorder %v77, %v8476
  %v8481 = vsel %vm8477, 1.0, 0.0
  %v8482 = vsel %vm8478, 1.0, 0.0
  %v8483 = vsel %vm8479, 1.0, 0.0
  %v8484 = vsel %vm8480, 1.0, 0.0
  %8485 = vmatprep.subr.mxu0 0.0
  %8486 = vmatpush1.msra.mxu0 %v8481
  %8487 = vmatprep.subr.mxu0 0.0
  %8488 = vmatpush1.msra.mxu0 %v8482
  %8489 = vmatprep.subr.mxu0 0.0
  %8490 = vmatpush1.msra.mxu0 %v8483
  %8491 = vmatprep.subr.mxu0 0.0
  %8492 = vmatpush1.msra.mxu0 %v8484
  %8493 = vmatprep.subr.mxu0 0.0
  %8494 = vmatpush1.msra.mxu0 0.0
  %8495 = vmatprep.subr.mxu0 0.0
  %8496 = vmatpush1.msra.mxu0 0.0
  %8497 = vmatprep.subr.mxu0 0.0
  %8498 = vmatpush1.msra.mxu0 0.0
  %8499 = vmatprep.subr.mxu0 0.0
  %8500 = vmatpush1.msra.mxu0 0.0
  %8501 = vmatprep.subr.mxu0 0.0
  %8502 = vmatpush1.msra.mxu0 0.0
  %8503 = vmatprep.subr.mxu0 0.0
  %8504 = vmatpush1.msra.mxu0 0.0
  %8505 = vmatprep.subr.mxu0 0.0
  %8506 = vmatpush1.msra.mxu0 0.0
  %8507 = vmatprep.subr.mxu0 0.0
  %8508 = vmatpush1.msra.mxu0 0.0
  %8509 = vmatprep.subr.mxu0 0.0
  %8510 = vmatpush1.msra.mxu0 0.0
  %8511 = vmatprep.subr.mxu0 0.0
  %8512 = vmatpush1.msra.mxu0 0.0
  %8513 = vmatprep.subr.mxu0 0.0
  %8514 = vmatpush1.msra.mxu0 0.0
  %8515 = vmatprep.subr.mxu0 0.0
  %8516 = vmatpush1.msra.mxu0 0.0
  %8517 = vmatprep.subr.mxu0 0.0
  %8518 = vmatpush1.msra.mxu0 0.0
  %8519 = vmatprep.subr.mxu0 0.0
  %8520 = vmatpush1.msra.mxu0 0.0
  %8521 = vmatprep.subr.mxu0 0.0
  %8522 = vmatpush1.msra.mxu0 0.0
  %8523 = vmatprep.subr.mxu0 0.0
  %8524 = vmatpush1.msra.mxu0 0.0
  %8525 = vmatprep.subr.mxu0 0.0
  %8526 = vmatpush1.msra.mxu0 0.0
  %8527 = vmatprep.subr.mxu0 0.0
  %8528 = vmatpush1.msra.mxu0 0.0
  %8529 = vmatprep.subr.mxu0 0.0
  %8530 = vmatpush1.msra.mxu0 0.0
  %8531 = vmatprep.subr.mxu0 0.0
  %8532 = vmatpush1.msra.mxu0 0.0
  %8533 = vmatprep.subr.mxu0 0.0
  %8534 = vmatpush1.msra.mxu0 0.0
  %8535 = vmatprep.subr.mxu0 0.0
  %8536 = vmatpush1.msra.mxu0 0.0
  %8537 = vmatprep.subr.mxu0 0.0
  %8538 = vmatpush1.msra.mxu0 0.0
  %8539 = vmatprep.subr.mxu0 0.0
  %8540 = vmatpush1.msra.mxu0 0.0
  %8541 = vmatprep.subr.mxu0 0.0
  %8542 = vmatpush1.msra.mxu0 0.0
  %8543 = vmatprep.subr.mxu0 0.0
  %8544 = vmatpush1.msra.mxu0 0.0
  %8545 = vmatprep.subr.mxu0 0.0
  %8546 = vmatpush1.msra.mxu0 0.0
  %8547 = vmatprep.subr.mxu0 0.0
  %8548 = vmatpush1.msra.mxu0 0.0
  %8549 = vmatprep.mubr.f32.mxu0 0.0
  %8550 = vmatmul.mubr.f32.gmra.mrb[0].mxu0 %v5718
  %v8551 = vpop.f32.mrb[0].mxu0
  %v8552 = vadd.f32 0.0, %v8551
  %v8553 = vpop.f32.mrb[0].mxu0
  %8554 = vmatprep.mubr.f32.mxu0 0.0
  %8555 = vmatmul.mubr.f32.gmra.mrb[0].mxu0 %v5721
  %v8556 = vpop.f32.mrb[0].mxu0
  %v8557 = vadd.f32 0.0, %v8556
  %v8558 = vpop.f32.mrb[0].mxu0
  %8559 = vmatprep.mubr.f32.mxu0 0.0
  %8560 = vmatmul.mubr.f32.gmra.mrb[0].mxu0 %v5724
  %v8561 = vpop.f32.mrb[0].mxu0
  %v8562 = vadd.f32 0.0, %v8561
  %v8563 = vpop.f32.mrb[0].mxu0
  %8564 = vmatprep.mubr.f32.mxu0 0.0
  %8565 = vmatmul.mubr.f32.gmra.mrb[0].mxu0 %v5727
  %v8566 = vpop.f32.mrb[0].mxu0
  %v8567 = vadd.f32 0.0, %v8566
  %v8568 = vpop.f32.mrb[0].mxu0
  %8569 = vdwg.mxu0
  %v8571 = vsel %vm5144, %v5669, 0
  %v8574 = vsel %vm5144, %v5670, 0
  %v8577 = vsel %vm5144, %v5671, 0
  %v8580 = vsel %vm5144, %v5672, 0
  %v8583 = vsel %vm5144, %v5673, 0
  %v8586 = vsel %vm5144, %v5674, 0
  %v8589 = vsel %vm5144, %v5675, 0
  %v8592 = vsel %vm5144, %v5676, 0
  %8594 = vmatprep.subr.mxu0 0.0
  %8595 = vmatpush1.msra.mxu0 %v8552
  %8596 = vmatprep.subr.mxu0 0.0
  %8597 = vmatpush1.msra.mxu0 %v8557
  %8598 = vmatprep.subr.mxu0 0.0
  %8599 = vmatpush1.msra.mxu0 %v8562
  %8600 = vmatprep.subr.mxu0 0.0
  %8601 = vmatpush1.msra.mxu0 %v8567
  %8602 = vmatprep.subr.mxu0 0.0
  %8603 = vmatpush1.msra.mxu0 0.0
  %8604 = vmatprep.subr.mxu0 0.0
  %8605 = vmatpush1.msra.mxu0 0.0
  %8606 = vmatprep.subr.mxu0 0.0
  %8607 = vmatpush1.msra.mxu0 0.0
  %8608 = vmatprep.subr.mxu0 0.0
  %8609 = vmatpush1.msra.mxu0 0.0
  %8610 = vmatprep.subr.mxu0 0.0
  %8611 = vmatpush1.msra.mxu0 0.0
  %8612 = vmatprep.subr.mxu0 0.0
  %8613 = vmatpush1.msra.mxu0 0.0
  %8614 = vmatprep.subr.mxu0 0.0
  %8615 = vmatpush1.msra.mxu0 0.0
  %8616 = vmatprep.subr.mxu0 0.0
  %8617 = vmatpush1.msra.mxu0 0.0
  %8618 = vmatprep.subr.mxu0 0.0
  %8619 = vmatpush1.msra.mxu0 0.0
  %8620 = vmatprep.subr.mxu0 0.0
  %8621 = vmatpush1.msra.mxu0 0.0
  %8622 = vmatprep.subr.mxu0 0.0
  %8623 = vmatpush1.msra.mxu0 0.0
  %8624 = vmatprep.subr.mxu0 0.0
  %8625 = vmatpush1.msra.mxu0 0.0
  %8626 = vmatprep.subr.mxu0 0.0
  %8627 = vmatpush1.msra.mxu0 0.0
  %8628 = vmatprep.subr.mxu0 0.0
  %8629 = vmatpush1.msra.mxu0 0.0
  %8630 = vmatprep.subr.mxu0 0.0
  %8631 = vmatpush1.msra.mxu0 0.0
  %8632 = vmatprep.subr.mxu0 0.0
  %8633 = vmatpush1.msra.mxu0 0.0
  %8634 = vmatprep.subr.mxu0 0.0
  %8635 = vmatpush1.msra.mxu0 0.0
  %8636 = vmatprep.subr.mxu0 0.0
  %8637 = vmatpush1.msra.mxu0 0.0
  %8638 = vmatprep.subr.mxu0 0.0
  %8639 = vmatpush1.msra.mxu0 0.0
  %8640 = vmatprep.subr.mxu0 0.0
  %8641 = vmatpush1.msra.mxu0 0.0
  %8642 = vmatprep.subr.mxu0 0.0
  %8643 = vmatpush1.msra.mxu0 0.0
  %8644 = vmatprep.subr.mxu0 0.0
  %8645 = vmatpush1.msra.mxu0 0.0
  %8646 = vmatprep.subr.mxu0 0.0
  %8647 = vmatpush1.msra.mxu0 0.0
  %8648 = vmatprep.subr.mxu0 0.0
  %8649 = vmatpush1.msra.mxu0 0.0
  %8650 = vmatprep.subr.mxu0 0.0
  %8651 = vmatpush1.msra.mxu0 0.0
  %8652 = vmatprep.subr.mxu0 0.0
  %8653 = vmatpush1.msra.mxu0 0.0
  %8654 = vmatprep.subr.mxu0 0.0
  %8655 = vmatpush1.msra.mxu0 0.0
  %8656 = vmatprep.subr.mxu0 0.0
  %8657 = vmatpush1.msra.mxu0 0.0
  %8658 = vmatprep.mubr.f32.mxu0 0.0
  %8659 = vmatmul.mubr.f32.gmra.mrb[0].mxu0 %v8571
  %v8660 = vpop.f32.mrb[0].mxu0
  %v8661 = vadd.f32 0.0, %v8660
  %v8662 = vpop.f32.mrb[0].mxu0
  %8663 = vmatprep.mubr.f32.mxu0 0.0
  %8664 = vmatmul.mubr.f32.gmra.mrb[0].mxu0 %v8574
  %v8665 = vpop.f32.mrb[0].mxu0
  %v8666 = vadd.f32 0.0, %v8665
  %v8667 = vpop.f32.mrb[0].mxu0
  %8668 = vmatprep.mubr.f32.mxu0 0.0
  %8669 = vmatmul.mubr.f32.gmra.mrb[0].mxu0 %v8577
  %v8670 = vpop.f32.mrb[0].mxu0
  %v8671 = vadd.f32 0.0, %v8670
  %v8672 = vpop.f32.mrb[0].mxu0
  %8673 = vmatprep.mubr.f32.mxu0 0.0
  %8674 = vmatmul.mubr.f32.gmra.mrb[0].mxu0 %v8580
  %v8675 = vpop.f32.mrb[0].mxu0
  %v8676 = vadd.f32 0.0, %v8675
  %v8677 = vpop.f32.mrb[0].mxu0
  %8678 = vmatprep.mubr.f32.mxu0 0.0
  %8679 = vmatmul.mubr.f32.gmra.mrb[0].mxu0 %v8583
  %v8680 = vpop.f32.mrb[0].mxu0
  %v8681 = vadd.f32 0.0, %v8680
  %v8682 = vpop.f32.mrb[0].mxu0
  %8683 = vmatprep.mubr.f32.mxu0 0.0
  %8684 = vmatmul.mubr.f32.gmra.mrb[0].mxu0 %v8586
  %v8685 = vpop.f32.mrb[0].mxu0
  %v8686 = vadd.f32 0.0, %v8685
  %v8687 = vpop.f32.mrb[0].mxu0
  %8688 = vmatprep.mubr.f32.mxu0 0.0
  %8689 = vmatmul.mubr.f32.gmra.mrb[0].mxu0 %v8589
  %v8690 = vpop.f32.mrb[0].mxu0
  %v8691 = vadd.f32 0.0, %v8690
  %v8692 = vpop.f32.mrb[0].mxu0
  %8693 = vmatprep.mubr.f32.mxu0 0.0
  %8694 = vmatmul.mubr.f32.gmra.mrb[0].mxu0 %v8592
  %v8695 = vpop.f32.mrb[0].mxu0
  %v8696 = vadd.f32 0.0, %v8695
  %v8697 = vpop.f32.mrb[0].mxu0
  %8698 = vdwg.mxu0
  %v8699 = vadd.f32 %v8468, %v8661
  %v8700 = vadd.f32 %v8469, %v8666
  %v8701 = vadd.f32 %v8470, %v8671
  %v8702 = vadd.f32 %v8471, %v8676
  %v8703 = vadd.f32 %v8472, %v8681
  %v8704 = vadd.f32 %v8473, %v8686
  %v8705 = vadd.f32 %v8474, %v8691
  %v8706 = vadd.f32 %v8475, %v8696
  %v8707 = vadd.s32 %v107, 26
  %vm8708 = vcmp.eq.s32.totalorder %v74, %v8707
  %vm8709 = vcmp.eq.s32.totalorder %v75, %v8707
  %vm8710 = vcmp.eq.s32.totalorder %v76, %v8707
  %vm8711 = vcmp.eq.s32.totalorder %v77, %v8707
  %v8712 = vsel %vm8708, 1.0, 0.0
  %v8713 = vsel %vm8709, 1.0, 0.0
  %v8714 = vsel %vm8710, 1.0, 0.0
  %v8715 = vsel %vm8711, 1.0, 0.0
  %8716 = vmatprep.subr.mxu0 0.0
  %8717 = vmatpush1.msra.mxu0 %v8712
  %8718 = vmatprep.subr.mxu0 0.0
  %8719 = vmatpush1.msra.mxu0 %v8713
  %8720 = vmatprep.subr.mxu0 0.0
  %8721 = vmatpush1.msra.mxu0 %v8714
  %8722 = vmatprep.subr.mxu0 0.0
  %8723 = vmatpush1.msra.mxu0 %v8715
  %8724 = vmatprep.subr.mxu0 0.0
  %8725 = vmatpush1.msra.mxu0 0.0
  %8726 = vmatprep.subr.mxu0 0.0
  %8727 = vmatpush1.msra.mxu0 0.0
  %8728 = vmatprep.subr.mxu0 0.0
  %8729 = vmatpush1.msra.mxu0 0.0
  %8730 = vmatprep.subr.mxu0 0.0
  %8731 = vmatpush1.msra.mxu0 0.0
  %8732 = vmatprep.subr.mxu0 0.0
  %8733 = vmatpush1.msra.mxu0 0.0
  %8734 = vmatprep.subr.mxu0 0.0
  %8735 = vmatpush1.msra.mxu0 0.0
  %8736 = vmatprep.subr.mxu0 0.0
  %8737 = vmatpush1.msra.mxu0 0.0
  %8738 = vmatprep.subr.mxu0 0.0
  %8739 = vmatpush1.msra.mxu0 0.0
  %8740 = vmatprep.subr.mxu0 0.0
  %8741 = vmatpush1.msra.mxu0 0.0
  %8742 = vmatprep.subr.mxu0 0.0
  %8743 = vmatpush1.msra.mxu0 0.0
  %8744 = vmatprep.subr.mxu0 0.0
  %8745 = vmatpush1.msra.mxu0 0.0
  %8746 = vmatprep.subr.mxu0 0.0
  %8747 = vmatpush1.msra.mxu0 0.0
  %8748 = vmatprep.subr.mxu0 0.0
  %8749 = vmatpush1.msra.mxu0 0.0
  %8750 = vmatprep.subr.mxu0 0.0
  %8751 = vmatpush1.msra.mxu0 0.0
  %8752 = vmatprep.subr.mxu0 0.0
  %8753 = vmatpush1.msra.mxu0 0.0
  %8754 = vmatprep.subr.mxu0 0.0
  %8755 = vmatpush1.msra.mxu0 0.0
  %8756 = vmatprep.subr.mxu0 0.0
  %8757 = vmatpush1.msra.mxu0 0.0
  %8758 = vmatprep.subr.mxu0 0.0
  %8759 = vmatpush1.msra.mxu0 0.0
  %8760 = vmatprep.subr.mxu0 0.0
  %8761 = vmatpush1.msra.mxu0 0.0
  %8762 = vmatprep.subr.mxu0 0.0
  %8763 = vmatpush1.msra.mxu0 0.0
  %8764 = vmatprep.subr.mxu0 0.0
  %8765 = vmatpush1.msra.mxu0 0.0
  %8766 = vmatprep.subr.mxu0 0.0
  %8767 = vmatpush1.msra.mxu0 0.0
  %8768 = vmatprep.subr.mxu0 0.0
  %8769 = vmatpush1.msra.mxu0 0.0
  %8770 = vmatprep.subr.mxu0 0.0
  %8771 = vmatpush1.msra.mxu0 0.0
  %8772 = vmatprep.subr.mxu0 0.0
  %8773 = vmatpush1.msra.mxu0 0.0
  %8774 = vmatprep.subr.mxu0 0.0
  %8775 = vmatpush1.msra.mxu0 0.0
  %8776 = vmatprep.subr.mxu0 0.0
  %8777 = vmatpush1.msra.mxu0 0.0
  %8778 = vmatprep.subr.mxu0 0.0
  %8779 = vmatpush1.msra.mxu0 0.0
  %8780 = vmatprep.mubr.f32.mxu0 0.0
  %8781 = vmatmul.mubr.f32.gmra.mrb[0].mxu0 %v5718
  %v8782 = vpop.f32.mrb[0].mxu0
  %v8783 = vadd.f32 0.0, %v8782
  %v8784 = vpop.f32.mrb[0].mxu0
  %8785 = vmatprep.mubr.f32.mxu0 0.0
  %8786 = vmatmul.mubr.f32.gmra.mrb[0].mxu0 %v5721
  %v8787 = vpop.f32.mrb[0].mxu0
  %v8788 = vadd.f32 0.0, %v8787
  %v8789 = vpop.f32.mrb[0].mxu0
  %8790 = vmatprep.mubr.f32.mxu0 0.0
  %8791 = vmatmul.mubr.f32.gmra.mrb[0].mxu0 %v5724
  %v8792 = vpop.f32.mrb[0].mxu0
  %v8793 = vadd.f32 0.0, %v8792
  %v8794 = vpop.f32.mrb[0].mxu0
  %8795 = vmatprep.mubr.f32.mxu0 0.0
  %8796 = vmatmul.mubr.f32.gmra.mrb[0].mxu0 %v5727
  %v8797 = vpop.f32.mrb[0].mxu0
  %v8798 = vadd.f32 0.0, %v8797
  %v8799 = vpop.f32.mrb[0].mxu0
  %8800 = vdwg.mxu0
  %v8802 = vsel %vm5144, %v5677, 0
  %v8805 = vsel %vm5144, %v5678, 0
  %v8808 = vsel %vm5144, %v5679, 0
  %v8811 = vsel %vm5144, %v5680, 0
  %v8814 = vsel %vm5144, %v5681, 0
  %v8817 = vsel %vm5144, %v5682, 0
  %v8820 = vsel %vm5144, %v5683, 0
  %v8823 = vsel %vm5144, %v5684, 0
  %8825 = vmatprep.subr.mxu0 0.0
  %8826 = vmatpush1.msra.mxu0 %v8783
  %8827 = vmatprep.subr.mxu0 0.0
  %8828 = vmatpush1.msra.mxu0 %v8788
  %8829 = vmatprep.subr.mxu0 0.0
  %8830 = vmatpush1.msra.mxu0 %v8793
  %8831 = vmatprep.subr.mxu0 0.0
  %8832 = vmatpush1.msra.mxu0 %v8798
  %8833 = vmatprep.subr.mxu0 0.0
  %8834 = vmatpush1.msra.mxu0 0.0
  %8835 = vmatprep.subr.mxu0 0.0
  %8836 = vmatpush1.msra.mxu0 0.0
  %8837 = vmatprep.subr.mxu0 0.0
  %8838 = vmatpush1.msra.mxu0 0.0
  %8839 = vmatprep.subr.mxu0 0.0
  %8840 = vmatpush1.msra.mxu0 0.0
  %8841 = vmatprep.subr.mxu0 0.0
  %8842 = vmatpush1.msra.mxu0 0.0
  %8843 = vmatprep.subr.mxu0 0.0
  %8844 = vmatpush1.msra.mxu0 0.0
  %8845 = vmatprep.subr.mxu0 0.0
  %8846 = vmatpush1.msra.mxu0 0.0
  %8847 = vmatprep.subr.mxu0 0.0
  %8848 = vmatpush1.msra.mxu0 0.0
  %8849 = vmatprep.subr.mxu0 0.0
  %8850 = vmatpush1.msra.mxu0 0.0
  %8851 = vmatprep.subr.mxu0 0.0
  %8852 = vmatpush1.msra.mxu0 0.0
  %8853 = vmatprep.subr.mxu0 0.0
  %8854 = vmatpush1.msra.mxu0 0.0
  %8855 = vmatprep.subr.mxu0 0.0
  %8856 = vmatpush1.msra.mxu0 0.0
  %8857 = vmatprep.subr.mxu0 0.0
  %8858 = vmatpush1.msra.mxu0 0.0
  %8859 = vmatprep.subr.mxu0 0.0
  %8860 = vmatpush1.msra.mxu0 0.0
  %8861 = vmatprep.subr.mxu0 0.0
  %8862 = vmatpush1.msra.mxu0 0.0
  %8863 = vmatprep.subr.mxu0 0.0
  %8864 = vmatpush1.msra.mxu0 0.0
  %8865 = vmatprep.subr.mxu0 0.0
  %8866 = vmatpush1.msra.mxu0 0.0
  %8867 = vmatprep.subr.mxu0 0.0
  %8868 = vmatpush1.msra.mxu0 0.0
  %8869 = vmatprep.subr.mxu0 0.0
  %8870 = vmatpush1.msra.mxu0 0.0
  %8871 = vmatprep.subr.mxu0 0.0
  %8872 = vmatpush1.msra.mxu0 0.0
  %8873 = vmatprep.subr.mxu0 0.0
  %8874 = vmatpush1.msra.mxu0 0.0
  %8875 = vmatprep.subr.mxu0 0.0
  %8876 = vmatpush1.msra.mxu0 0.0
  %8877 = vmatprep.subr.mxu0 0.0
  %8878 = vmatpush1.msra.mxu0 0.0
  %8879 = vmatprep.subr.mxu0 0.0
  %8880 = vmatpush1.msra.mxu0 0.0
  %8881 = vmatprep.subr.mxu0 0.0
  %8882 = vmatpush1.msra.mxu0 0.0
  %8883 = vmatprep.subr.mxu0 0.0
  %8884 = vmatpush1.msra.mxu0 0.0
  %8885 = vmatprep.subr.mxu0 0.0
  %8886 = vmatpush1.msra.mxu0 0.0
  %8887 = vmatprep.subr.mxu0 0.0
  %8888 = vmatpush1.msra.mxu0 0.0
  %8889 = vmatprep.mubr.f32.mxu0 0.0
  %8890 = vmatmul.mubr.f32.gmra.mrb[0].mxu0 %v8802
  %v8891 = vpop.f32.mrb[0].mxu0
  %v8892 = vadd.f32 0.0, %v8891
  %v8893 = vpop.f32.mrb[0].mxu0
  %8894 = vmatprep.mubr.f32.mxu0 0.0
  %8895 = vmatmul.mubr.f32.gmra.mrb[0].mxu0 %v8805
  %v8896 = vpop.f32.mrb[0].mxu0
  %v8897 = vadd.f32 0.0, %v8896
  %v8898 = vpop.f32.mrb[0].mxu0
  %8899 = vmatprep.mubr.f32.mxu0 0.0
  %8900 = vmatmul.mubr.f32.gmra.mrb[0].mxu0 %v8808
  %v8901 = vpop.f32.mrb[0].mxu0
  %v8902 = vadd.f32 0.0, %v8901
  %v8903 = vpop.f32.mrb[0].mxu0
  %8904 = vmatprep.mubr.f32.mxu0 0.0
  %8905 = vmatmul.mubr.f32.gmra.mrb[0].mxu0 %v8811
  %v8906 = vpop.f32.mrb[0].mxu0
  %v8907 = vadd.f32 0.0, %v8906
  %v8908 = vpop.f32.mrb[0].mxu0
  %8909 = vmatprep.mubr.f32.mxu0 0.0
  %8910 = vmatmul.mubr.f32.gmra.mrb[0].mxu0 %v8814
  %v8911 = vpop.f32.mrb[0].mxu0
  %v8912 = vadd.f32 0.0, %v8911
  %v8913 = vpop.f32.mrb[0].mxu0
  %8914 = vmatprep.mubr.f32.mxu0 0.0
  %8915 = vmatmul.mubr.f32.gmra.mrb[0].mxu0 %v8817
  %v8916 = vpop.f32.mrb[0].mxu0
  %v8917 = vadd.f32 0.0, %v8916
  %v8918 = vpop.f32.mrb[0].mxu0
  %8919 = vmatprep.mubr.f32.mxu0 0.0
  %8920 = vmatmul.mubr.f32.gmra.mrb[0].mxu0 %v8820
  %v8921 = vpop.f32.mrb[0].mxu0
  %v8922 = vadd.f32 0.0, %v8921
  %v8923 = vpop.f32.mrb[0].mxu0
  %8924 = vmatprep.mubr.f32.mxu0 0.0
  %8925 = vmatmul.mubr.f32.gmra.mrb[0].mxu0 %v8823
  %v8926 = vpop.f32.mrb[0].mxu0
  %v8927 = vadd.f32 0.0, %v8926
  %v8928 = vpop.f32.mrb[0].mxu0
  %8929 = vdwg.mxu0
  %v8930 = vadd.f32 %v8699, %v8892
  %v8931 = vadd.f32 %v8700, %v8897
  %v8932 = vadd.f32 %v8701, %v8902
  %v8933 = vadd.f32 %v8702, %v8907
  %v8934 = vadd.f32 %v8703, %v8912
  %v8935 = vadd.f32 %v8704, %v8917
  %v8936 = vadd.f32 %v8705, %v8922
  %v8937 = vadd.f32 %v8706, %v8927
  %v8938 = vadd.s32 %v107, 28
  %vm8939 = vcmp.eq.s32.totalorder %v74, %v8938
  %vm8940 = vcmp.eq.s32.totalorder %v75, %v8938
  %vm8941 = vcmp.eq.s32.totalorder %v76, %v8938
  %vm8942 = vcmp.eq.s32.totalorder %v77, %v8938
  %v8943 = vsel %vm8939, 1.0, 0.0
  %v8944 = vsel %vm8940, 1.0, 0.0
  %v8945 = vsel %vm8941, 1.0, 0.0
  %v8946 = vsel %vm8942, 1.0, 0.0
  %8947 = vmatprep.subr.mxu0 0.0
  %8948 = vmatpush1.msra.mxu0 %v8943
  %8949 = vmatprep.subr.mxu0 0.0
  %8950 = vmatpush1.msra.mxu0 %v8944
  %8951 = vmatprep.subr.mxu0 0.0
  %8952 = vmatpush1.msra.mxu0 %v8945
  %8953 = vmatprep.subr.mxu0 0.0
  %8954 = vmatpush1.msra.mxu0 %v8946
  %8955 = vmatprep.subr.mxu0 0.0
  %8956 = vmatpush1.msra.mxu0 0.0
  %8957 = vmatprep.subr.mxu0 0.0
  %8958 = vmatpush1.msra.mxu0 0.0
  %8959 = vmatprep.subr.mxu0 0.0
  %8960 = vmatpush1.msra.mxu0 0.0
  %8961 = vmatprep.subr.mxu0 0.0
  %8962 = vmatpush1.msra.mxu0 0.0
  %8963 = vmatprep.subr.mxu0 0.0
  %8964 = vmatpush1.msra.mxu0 0.0
  %8965 = vmatprep.subr.mxu0 0.0
  %8966 = vmatpush1.msra.mxu0 0.0
  %8967 = vmatprep.subr.mxu0 0.0
  %8968 = vmatpush1.msra.mxu0 0.0
  %8969 = vmatprep.subr.mxu0 0.0
  %8970 = vmatpush1.msra.mxu0 0.0
  %8971 = vmatprep.subr.mxu0 0.0
  %8972 = vmatpush1.msra.mxu0 0.0
  %8973 = vmatprep.subr.mxu0 0.0
  %8974 = vmatpush1.msra.mxu0 0.0
  %8975 = vmatprep.subr.mxu0 0.0
  %8976 = vmatpush1.msra.mxu0 0.0
  %8977 = vmatprep.subr.mxu0 0.0
  %8978 = vmatpush1.msra.mxu0 0.0
  %8979 = vmatprep.subr.mxu0 0.0
  %8980 = vmatpush1.msra.mxu0 0.0
  %8981 = vmatprep.subr.mxu0 0.0
  %8982 = vmatpush1.msra.mxu0 0.0
  %8983 = vmatprep.subr.mxu0 0.0
  %8984 = vmatpush1.msra.mxu0 0.0
  %8985 = vmatprep.subr.mxu0 0.0
  %8986 = vmatpush1.msra.mxu0 0.0
  %8987 = vmatprep.subr.mxu0 0.0
  %8988 = vmatpush1.msra.mxu0 0.0
  %8989 = vmatprep.subr.mxu0 0.0
  %8990 = vmatpush1.msra.mxu0 0.0
  %8991 = vmatprep.subr.mxu0 0.0
  %8992 = vmatpush1.msra.mxu0 0.0
  %8993 = vmatprep.subr.mxu0 0.0
  %8994 = vmatpush1.msra.mxu0 0.0
  %8995 = vmatprep.subr.mxu0 0.0
  %8996 = vmatpush1.msra.mxu0 0.0
  %8997 = vmatprep.subr.mxu0 0.0
  %8998 = vmatpush1.msra.mxu0 0.0
  %8999 = vmatprep.subr.mxu0 0.0
  %9000 = vmatpush1.msra.mxu0 0.0
  %9001 = vmatprep.subr.mxu0 0.0
  %9002 = vmatpush1.msra.mxu0 0.0
  %9003 = vmatprep.subr.mxu0 0.0
  %9004 = vmatpush1.msra.mxu0 0.0
  %9005 = vmatprep.subr.mxu0 0.0
  %9006 = vmatpush1.msra.mxu0 0.0
  %9007 = vmatprep.subr.mxu0 0.0
  %9008 = vmatpush1.msra.mxu0 0.0
  %9009 = vmatprep.subr.mxu0 0.0
  %9010 = vmatpush1.msra.mxu0 0.0
  %9011 = vmatprep.mubr.f32.mxu0 0.0
  %9012 = vmatmul.mubr.f32.gmra.mrb[0].mxu0 %v5718
  %v9013 = vpop.f32.mrb[0].mxu0
  %v9014 = vadd.f32 0.0, %v9013
  %v9015 = vpop.f32.mrb[0].mxu0
  %9016 = vmatprep.mubr.f32.mxu0 0.0
  %9017 = vmatmul.mubr.f32.gmra.mrb[0].mxu0 %v5721
  %v9018 = vpop.f32.mrb[0].mxu0
  %v9019 = vadd.f32 0.0, %v9018
  %v9020 = vpop.f32.mrb[0].mxu0
  %9021 = vmatprep.mubr.f32.mxu0 0.0
  %9022 = vmatmul.mubr.f32.gmra.mrb[0].mxu0 %v5724
  %v9023 = vpop.f32.mrb[0].mxu0
  %v9024 = vadd.f32 0.0, %v9023
  %v9025 = vpop.f32.mrb[0].mxu0
  %9026 = vmatprep.mubr.f32.mxu0 0.0
  %9027 = vmatmul.mubr.f32.gmra.mrb[0].mxu0 %v5727
  %v9028 = vpop.f32.mrb[0].mxu0
  %v9029 = vadd.f32 0.0, %v9028
  %v9030 = vpop.f32.mrb[0].mxu0
  %9031 = vdwg.mxu0
  %v9033 = vsel %vm5144, %v5685, 0
  %v9036 = vsel %vm5144, %v5686, 0
  %v9039 = vsel %vm5144, %v5687, 0
  %v9042 = vsel %vm5144, %v5688, 0
  %v9045 = vsel %vm5144, %v5689, 0
  %v9048 = vsel %vm5144, %v5690, 0
  %v9051 = vsel %vm5144, %v5691, 0
  %v9054 = vsel %vm5144, %v5692, 0
  %9056 = vmatprep.subr.mxu0 0.0
  %9057 = vmatpush1.msra.mxu0 %v9014
  %9058 = vmatprep.subr.mxu0 0.0
  %9059 = vmatpush1.msra.mxu0 %v9019
  %9060 = vmatprep.subr.mxu0 0.0
  %9061 = vmatpush1.msra.mxu0 %v9024
  %9062 = vmatprep.subr.mxu0 0.0
  %9063 = vmatpush1.msra.mxu0 %v9029
  %9064 = vmatprep.subr.mxu0 0.0
  %9065 = vmatpush1.msra.mxu0 0.0
  %9066 = vmatprep.subr.mxu0 0.0
  %9067 = vmatpush1.msra.mxu0 0.0
  %9068 = vmatprep.subr.mxu0 0.0
  %9069 = vmatpush1.msra.mxu0 0.0
  %9070 = vmatprep.subr.mxu0 0.0
  %9071 = vmatpush1.msra.mxu0 0.0
  %9072 = vmatprep.subr.mxu0 0.0
  %9073 = vmatpush1.msra.mxu0 0.0
  %9074 = vmatprep.subr.mxu0 0.0
  %9075 = vmatpush1.msra.mxu0 0.0
  %9076 = vmatprep.subr.mxu0 0.0
  %9077 = vmatpush1.msra.mxu0 0.0
  %9078 = vmatprep.subr.mxu0 0.0
  %9079 = vmatpush1.msra.mxu0 0.0
  %9080 = vmatprep.subr.mxu0 0.0
  %9081 = vmatpush1.msra.mxu0 0.0
  %9082 = vmatprep.subr.mxu0 0.0
  %9083 = vmatpush1.msra.mxu0 0.0
  %9084 = vmatprep.subr.mxu0 0.0
  %9085 = vmatpush1.msra.mxu0 0.0
  %9086 = vmatprep.subr.mxu0 0.0
  %9087 = vmatpush1.msra.mxu0 0.0
  %9088 = vmatprep.subr.mxu0 0.0
  %9089 = vmatpush1.msra.mxu0 0.0
  %9090 = vmatprep.subr.mxu0 0.0
  %9091 = vmatpush1.msra.mxu0 0.0
  %9092 = vmatprep.subr.mxu0 0.0
  %9093 = vmatpush1.msra.mxu0 0.0
  %9094 = vmatprep.subr.mxu0 0.0
  %9095 = vmatpush1.msra.mxu0 0.0
  %9096 = vmatprep.subr.mxu0 0.0
  %9097 = vmatpush1.msra.mxu0 0.0
  %9098 = vmatprep.subr.mxu0 0.0
  %9099 = vmatpush1.msra.mxu0 0.0
  %9100 = vmatprep.subr.mxu0 0.0
  %9101 = vmatpush1.msra.mxu0 0.0
  %9102 = vmatprep.subr.mxu0 0.0
  %9103 = vmatpush1.msra.mxu0 0.0
  %9104 = vmatprep.subr.mxu0 0.0
  %9105 = vmatpush1.msra.mxu0 0.0
  %9106 = vmatprep.subr.mxu0 0.0
  %9107 = vmatpush1.msra.mxu0 0.0
  %9108 = vmatprep.subr.mxu0 0.0
  %9109 = vmatpush1.msra.mxu0 0.0
  %9110 = vmatprep.subr.mxu0 0.0
  %9111 = vmatpush1.msra.mxu0 0.0
  %9112 = vmatprep.subr.mxu0 0.0
  %9113 = vmatpush1.msra.mxu0 0.0
  %9114 = vmatprep.subr.mxu0 0.0
  %9115 = vmatpush1.msra.mxu0 0.0
  %9116 = vmatprep.subr.mxu0 0.0
  %9117 = vmatpush1.msra.mxu0 0.0
  %9118 = vmatprep.subr.mxu0 0.0
  %9119 = vmatpush1.msra.mxu0 0.0
  %9120 = vmatprep.mubr.f32.mxu0 0.0
  %9121 = vmatmul.mubr.f32.gmra.mrb[0].mxu0 %v9033
  %v9122 = vpop.f32.mrb[0].mxu0
  %v9123 = vadd.f32 0.0, %v9122
  %v9124 = vpop.f32.mrb[0].mxu0
  %9125 = vmatprep.mubr.f32.mxu0 0.0
  %9126 = vmatmul.mubr.f32.gmra.mrb[0].mxu0 %v9036
  %v9127 = vpop.f32.mrb[0].mxu0
  %v9128 = vadd.f32 0.0, %v9127
  %v9129 = vpop.f32.mrb[0].mxu0
  %9130 = vmatprep.mubr.f32.mxu0 0.0
  %9131 = vmatmul.mubr.f32.gmra.mrb[0].mxu0 %v9039
  %v9132 = vpop.f32.mrb[0].mxu0
  %v9133 = vadd.f32 0.0, %v9132
  %v9134 = vpop.f32.mrb[0].mxu0
  %9135 = vmatprep.mubr.f32.mxu0 0.0
  %9136 = vmatmul.mubr.f32.gmra.mrb[0].mxu0 %v9042
  %v9137 = vpop.f32.mrb[0].mxu0
  %v9138 = vadd.f32 0.0, %v9137
  %v9139 = vpop.f32.mrb[0].mxu0
  %9140 = vmatprep.mubr.f32.mxu0 0.0
  %9141 = vmatmul.mubr.f32.gmra.mrb[0].mxu0 %v9045
  %v9142 = vpop.f32.mrb[0].mxu0
  %v9143 = vadd.f32 0.0, %v9142
  %v9144 = vpop.f32.mrb[0].mxu0
  %9145 = vmatprep.mubr.f32.mxu0 0.0
  %9146 = vmatmul.mubr.f32.gmra.mrb[0].mxu0 %v9048
  %v9147 = vpop.f32.mrb[0].mxu0
  %v9148 = vadd.f32 0.0, %v9147
  %v9149 = vpop.f32.mrb[0].mxu0
  %9150 = vmatprep.mubr.f32.mxu0 0.0
  %9151 = vmatmul.mubr.f32.gmra.mrb[0].mxu0 %v9051
  %v9152 = vpop.f32.mrb[0].mxu0
  %v9153 = vadd.f32 0.0, %v9152
  %v9154 = vpop.f32.mrb[0].mxu0
  %9155 = vmatprep.mubr.f32.mxu0 0.0
  %9156 = vmatmul.mubr.f32.gmra.mrb[0].mxu0 %v9054
  %v9157 = vpop.f32.mrb[0].mxu0
  %v9158 = vadd.f32 0.0, %v9157
  %v9159 = vpop.f32.mrb[0].mxu0
  %9160 = vdwg.mxu0
  %v9161 = vadd.f32 %v8930, %v9123
  %v9162 = vadd.f32 %v8931, %v9128
  %v9163 = vadd.f32 %v8932, %v9133
  %v9164 = vadd.f32 %v8933, %v9138
  %v9165 = vadd.f32 %v8934, %v9143
  %v9166 = vadd.f32 %v8935, %v9148
  %v9167 = vadd.f32 %v8936, %v9153
  %v9168 = vadd.f32 %v8937, %v9158
  %v9169 = vadd.s32 %v107, 30
  %vm9170 = vcmp.eq.s32.totalorder %v74, %v9169
  %vm9171 = vcmp.eq.s32.totalorder %v75, %v9169
  %vm9172 = vcmp.eq.s32.totalorder %v76, %v9169
  %vm9173 = vcmp.eq.s32.totalorder %v77, %v9169
  %v9174 = vsel %vm9170, 1.0, 0.0
  %v9175 = vsel %vm9171, 1.0, 0.0
  %v9176 = vsel %vm9172, 1.0, 0.0
  %v9177 = vsel %vm9173, 1.0, 0.0
  %9178 = vmatprep.subr.mxu0 0.0
  %9179 = vmatpush1.msra.mxu0 %v9174
  %9180 = vmatprep.subr.mxu0 0.0
  %9181 = vmatpush1.msra.mxu0 %v9175
  %9182 = vmatprep.subr.mxu0 0.0
  %9183 = vmatpush1.msra.mxu0 %v9176
  %9184 = vmatprep.subr.mxu0 0.0
  %9185 = vmatpush1.msra.mxu0 %v9177
  %9186 = vmatprep.subr.mxu0 0.0
  %9187 = vmatpush1.msra.mxu0 0.0
  %9188 = vmatprep.subr.mxu0 0.0
  %9189 = vmatpush1.msra.mxu0 0.0
  %9190 = vmatprep.subr.mxu0 0.0
  %9191 = vmatpush1.msra.mxu0 0.0
  %9192 = vmatprep.subr.mxu0 0.0
  %9193 = vmatpush1.msra.mxu0 0.0
  %9194 = vmatprep.subr.mxu0 0.0
  %9195 = vmatpush1.msra.mxu0 0.0
  %9196 = vmatprep.subr.mxu0 0.0
  %9197 = vmatpush1.msra.mxu0 0.0
  %9198 = vmatprep.subr.mxu0 0.0
  %9199 = vmatpush1.msra.mxu0 0.0
  %9200 = vmatprep.subr.mxu0 0.0
  %9201 = vmatpush1.msra.mxu0 0.0
  %9202 = vmatprep.subr.mxu0 0.0
  %9203 = vmatpush1.msra.mxu0 0.0
  %9204 = vmatprep.subr.mxu0 0.0
  %9205 = vmatpush1.msra.mxu0 0.0
  %9206 = vmatprep.subr.mxu0 0.0
  %9207 = vmatpush1.msra.mxu0 0.0
  %9208 = vmatprep.subr.mxu0 0.0
  %9209 = vmatpush1.msra.mxu0 0.0
  %9210 = vmatprep.subr.mxu0 0.0
  %9211 = vmatpush1.msra.mxu0 0.0
  %9212 = vmatprep.subr.mxu0 0.0
  %9213 = vmatpush1.msra.mxu0 0.0
  %9214 = vmatprep.subr.mxu0 0.0
  %9215 = vmatpush1.msra.mxu0 0.0
  %9216 = vmatprep.subr.mxu0 0.0
  %9217 = vmatpush1.msra.mxu0 0.0
  %9218 = vmatprep.subr.mxu0 0.0
  %9219 = vmatpush1.msra.mxu0 0.0
  %9220 = vmatprep.subr.mxu0 0.0
  %9221 = vmatpush1.msra.mxu0 0.0
  %9222 = vmatprep.subr.mxu0 0.0
  %9223 = vmatpush1.msra.mxu0 0.0
  %9224 = vmatprep.subr.mxu0 0.0
  %9225 = vmatpush1.msra.mxu0 0.0
  %9226 = vmatprep.subr.mxu0 0.0
  %9227 = vmatpush1.msra.mxu0 0.0
  %9228 = vmatprep.subr.mxu0 0.0
  %9229 = vmatpush1.msra.mxu0 0.0
  %9230 = vmatprep.subr.mxu0 0.0
  %9231 = vmatpush1.msra.mxu0 0.0
  %9232 = vmatprep.subr.mxu0 0.0
  %9233 = vmatpush1.msra.mxu0 0.0
  %9234 = vmatprep.subr.mxu0 0.0
  %9235 = vmatpush1.msra.mxu0 0.0
  %9236 = vmatprep.subr.mxu0 0.0
  %9237 = vmatpush1.msra.mxu0 0.0
  %9238 = vmatprep.subr.mxu0 0.0
  %9239 = vmatpush1.msra.mxu0 0.0
  %9240 = vmatprep.subr.mxu0 0.0
  %9241 = vmatpush1.msra.mxu0 0.0
  %9242 = vmatprep.mubr.f32.mxu0 0.0
  %9243 = vmatmul.mubr.f32.gmra.mrb[0].mxu0 %v5718
  %v9244 = vpop.f32.mrb[0].mxu0
  %v9245 = vadd.f32 0.0, %v9244
  %v9246 = vpop.f32.mrb[0].mxu0
  %9247 = vmatprep.mubr.f32.mxu0 0.0
  %9248 = vmatmul.mubr.f32.gmra.mrb[0].mxu0 %v5721
  %v9249 = vpop.f32.mrb[0].mxu0
  %v9250 = vadd.f32 0.0, %v9249
  %v9251 = vpop.f32.mrb[0].mxu0
  %9252 = vmatprep.mubr.f32.mxu0 0.0
  %9253 = vmatmul.mubr.f32.gmra.mrb[0].mxu0 %v5724
  %v9254 = vpop.f32.mrb[0].mxu0
  %v9255 = vadd.f32 0.0, %v9254
  %v9256 = vpop.f32.mrb[0].mxu0
  %9257 = vmatprep.mubr.f32.mxu0 0.0
  %9258 = vmatmul.mubr.f32.gmra.mrb[0].mxu0 %v5727
  %v9259 = vpop.f32.mrb[0].mxu0
  %v9260 = vadd.f32 0.0, %v9259
  %v9261 = vpop.f32.mrb[0].mxu0
  %9262 = vdwg.mxu0
  %v9264 = vsel %vm5144, %v5693, 0
  %v9267 = vsel %vm5144, %v5694, 0
  %v9270 = vsel %vm5144, %v5695, 0
  %v9273 = vsel %vm5144, %v5696, 0
  %v9276 = vsel %vm5144, %v5697, 0
  %v9279 = vsel %vm5144, %v5698, 0
  %v9282 = vsel %vm5144, %v5699, 0
  %v9285 = vsel %vm5144, %v5700, 0
  %9287 = vmatprep.subr.mxu0 0.0
  %9288 = vmatpush1.msra.mxu0 %v9245
  %9289 = vmatprep.subr.mxu0 0.0
  %9290 = vmatpush1.msra.mxu0 %v9250
  %9291 = vmatprep.subr.mxu0 0.0
  %9292 = vmatpush1.msra.mxu0 %v9255
  %9293 = vmatprep.subr.mxu0 0.0
  %9294 = vmatpush1.msra.mxu0 %v9260
  %9295 = vmatprep.subr.mxu0 0.0
  %9296 = vmatpush1.msra.mxu0 0.0
  %9297 = vmatprep.subr.mxu0 0.0
  %9298 = vmatpush1.msra.mxu0 0.0
  %9299 = vmatprep.subr.mxu0 0.0
  %9300 = vmatpush1.msra.mxu0 0.0
  %9301 = vmatprep.subr.mxu0 0.0
  %9302 = vmatpush1.msra.mxu0 0.0
  %9303 = vmatprep.subr.mxu0 0.0
  %9304 = vmatpush1.msra.mxu0 0.0
  %9305 = vmatprep.subr.mxu0 0.0
  %9306 = vmatpush1.msra.mxu0 0.0
  %9307 = vmatprep.subr.mxu0 0.0
  %9308 = vmatpush1.msra.mxu0 0.0
  %9309 = vmatprep.subr.mxu0 0.0
  %9310 = vmatpush1.msra.mxu0 0.0
  %9311 = vmatprep.subr.mxu0 0.0
  %9312 = vmatpush1.msra.mxu0 0.0
  %9313 = vmatprep.subr.mxu0 0.0
  %9314 = vmatpush1.msra.mxu0 0.0
  %9315 = vmatprep.subr.mxu0 0.0
  %9316 = vmatpush1.msra.mxu0 0.0
  %9317 = vmatprep.subr.mxu0 0.0
  %9318 = vmatpush1.msra.mxu0 0.0
  %9319 = vmatprep.subr.mxu0 0.0
  %9320 = vmatpush1.msra.mxu0 0.0
  %9321 = vmatprep.subr.mxu0 0.0
  %9322 = vmatpush1.msra.mxu0 0.0
  %9323 = vmatprep.subr.mxu0 0.0
  %9324 = vmatpush1.msra.mxu0 0.0
  %9325 = vmatprep.subr.mxu0 0.0
  %9326 = vmatpush1.msra.mxu0 0.0
  %9327 = vmatprep.subr.mxu0 0.0
  %9328 = vmatpush1.msra.mxu0 0.0
  %9329 = vmatprep.subr.mxu0 0.0
  %9330 = vmatpush1.msra.mxu0 0.0
  %9331 = vmatprep.subr.mxu0 0.0
  %9332 = vmatpush1.msra.mxu0 0.0
  %9333 = vmatprep.subr.mxu0 0.0
  %9334 = vmatpush1.msra.mxu0 0.0
  %9335 = vmatprep.subr.mxu0 0.0
  %9336 = vmatpush1.msra.mxu0 0.0
  %9337 = vmatprep.subr.mxu0 0.0
  %9338 = vmatpush1.msra.mxu0 0.0
  %9339 = vmatprep.subr.mxu0 0.0
  %9340 = vmatpush1.msra.mxu0 0.0
  %9341 = vmatprep.subr.mxu0 0.0
  %9342 = vmatpush1.msra.mxu0 0.0
  %9343 = vmatprep.subr.mxu0 0.0
  %9344 = vmatpush1.msra.mxu0 0.0
  %9345 = vmatprep.subr.mxu0 0.0
  %9346 = vmatpush1.msra.mxu0 0.0
  %9347 = vmatprep.subr.mxu0 0.0
  %9348 = vmatpush1.msra.mxu0 0.0
  %9349 = vmatprep.subr.mxu0 0.0
  %9350 = vmatpush1.msra.mxu0 0.0
  %9351 = vmatprep.mubr.f32.mxu0 0.0
  %9352 = vmatmul.mubr.f32.gmra.mrb[0].mxu0 %v9264
  %v9353 = vpop.f32.mrb[0].mxu0
  %v9354 = vadd.f32 0.0, %v9353
  %v9355 = vpop.f32.mrb[0].mxu0
  %9356 = vmatprep.mubr.f32.mxu0 0.0
  %9357 = vmatmul.mubr.f32.gmra.mrb[0].mxu0 %v9267
  %v9358 = vpop.f32.mrb[0].mxu0
  %v9359 = vadd.f32 0.0, %v9358
  %v9360 = vpop.f32.mrb[0].mxu0
  %9361 = vmatprep.mubr.f32.mxu0 0.0
  %9362 = vmatmul.mubr.f32.gmra.mrb[0].mxu0 %v9270
  %v9363 = vpop.f32.mrb[0].mxu0
  %v9364 = vadd.f32 0.0, %v9363
  %v9365 = vpop.f32.mrb[0].mxu0
  %9366 = vmatprep.mubr.f32.mxu0 0.0
  %9367 = vmatmul.mubr.f32.gmra.mrb[0].mxu0 %v9273
  %v9368 = vpop.f32.mrb[0].mxu0
  %v9369 = vadd.f32 0.0, %v9368
  %v9370 = vpop.f32.mrb[0].mxu0
  %9371 = vmatprep.mubr.f32.mxu0 0.0
  %9372 = vmatmul.mubr.f32.gmra.mrb[0].mxu0 %v9276
  %v9373 = vpop.f32.mrb[0].mxu0
  %v9374 = vadd.f32 0.0, %v9373
  %v9375 = vpop.f32.mrb[0].mxu0
  %9376 = vmatprep.mubr.f32.mxu0 0.0
  %9377 = vmatmul.mubr.f32.gmra.mrb[0].mxu0 %v9279
  %v9378 = vpop.f32.mrb[0].mxu0
  %v9379 = vadd.f32 0.0, %v9378
  %v9380 = vpop.f32.mrb[0].mxu0
  %9381 = vmatprep.mubr.f32.mxu0 0.0
  %9382 = vmatmul.mubr.f32.gmra.mrb[0].mxu0 %v9282
  %v9383 = vpop.f32.mrb[0].mxu0
  %v9384 = vadd.f32 0.0, %v9383
  %v9385 = vpop.f32.mrb[0].mxu0
  %9386 = vmatprep.mubr.f32.mxu0 0.0
  %9387 = vmatmul.mubr.f32.gmra.mrb[0].mxu0 %v9285
  %v9388 = vpop.f32.mrb[0].mxu0
  %v9389 = vadd.f32 0.0, %v9388
  %v9390 = vpop.f32.mrb[0].mxu0
  %9391 = vdwg.mxu0
  %v9392 = vadd.f32 %v9161, %v9354
  %v9393 = vadd.f32 %v9162, %v9359
  %v9394 = vadd.f32 %v9163, %v9364
  %v9395 = vadd.f32 %v9164, %v9369
  %v9396 = vadd.f32 %v9165, %v9374
  %v9397 = vadd.f32 %v9166, %v9379
  %v9398 = vadd.f32 %v9167, %v9384
  %v9399 = vadd.f32 %v9168, %v9389
  %9401 = vset.pattern.permute.xlu0 0
  %9402 = vperm.xlu0 %9401, %v5701
  %v9403 = vpop.permute.xlu0 %9402
  %9406 = vset.pattern.permute.xlu0 0
  %9407 = vperm.xlu0 %9406, %v5702
  %v9408 = vpop.permute.xlu0 %9407
  %9411 = vset.pattern.permute.xlu0 0
  %9412 = vperm.xlu0 %9411, %v5703
  %v9413 = vpop.permute.xlu0 %9412
  %9416 = vset.pattern.permute.xlu0 0
  %9417 = vperm.xlu0 %9416, %v5704
  %v9418 = vpop.permute.xlu0 %9417
  %9421 = vset.pattern.permute.xlu0 0
  %9422 = vperm.xlu0 %9421, %v5705
  %v9423 = vpop.permute.xlu0 %9422
  %9426 = vset.pattern.permute.xlu0 0
  %9427 = vperm.xlu0 %9426, %v5706
  %v9428 = vpop.permute.xlu0 %9427
  %9431 = vset.pattern.permute.xlu0 0
  %9432 = vperm.xlu0 %9431, %v5707
  %v9433 = vpop.permute.xlu0 %9432
  %9436 = vset.pattern.permute.xlu0 0
  %9437 = vperm.xlu0 %9436, %v5708
  %v9438 = vpop.permute.xlu0 %9437
  %v9440 = vadd.f32 %v9392, %v9403
  %v9441 = vadd.f32 %v9393, %v9408
  %v9442 = vadd.f32 %v9394, %v9413
  %v9443 = vadd.f32 %v9395, %v9418
  %v9444 = vadd.f32 %v9396, %v9423
  %v9445 = vadd.f32 %v9397, %v9428
  %v9446 = vadd.f32 %v9398, %v9433
  %v9447 = vadd.f32 %v9399, %v9438
  %vm9448 = vcmp.ge.f32.partialorder %v9440, 0.0
  %vm9449 = vcmp.ge.f32.partialorder %v9441, 0.0
  %vm9450 = vcmp.ge.f32.partialorder %v9442, 0.0
  %vm9451 = vcmp.ge.f32.partialorder %v9443, 0.0
  %vm9452 = vcmp.ge.f32.partialorder %v9444, 0.0
  %vm9453 = vcmp.ge.f32.partialorder %v9445, 0.0
  %vm9454 = vcmp.ge.f32.partialorder %v9446, 0.0
  %vm9455 = vcmp.ge.f32.partialorder %v9447, 0.0
  %v9456 = vmul.f32 %v9440, 0.01
  %v9457 = vmul.f32 %v9441, 0.01
  %v9458 = vmul.f32 %v9442, 0.01
  %v9459 = vmul.f32 %v9443, 0.01
  %v9460 = vmul.f32 %v9444, 0.01
  %v9461 = vmul.f32 %v9445, 0.01
  %v9462 = vmul.f32 %v9446, 0.01
  %v9463 = vmul.f32 %v9447, 0.01
  %v9464 = vsel %vm9448, %v9440, %v9456
  %v9465 = vsel %vm9449, %v9441, %v9457
  %v9466 = vsel %vm9450, %v9442, %v9458
  %v9467 = vsel %vm9451, %v9443, %v9459
  %v9468 = vsel %vm9452, %v9444, %v9460
  %v9469 = vsel %vm9453, %v9445, %v9461
  %v9470 = vsel %vm9454, %v9446, %v9462
  %v9471 = vsel %vm9455, %v9447, %v9463
  %v9472 = vld [vmem:[%s13] sm:$0xff]
  %v9473 = vld [vmem:[%s13 + $0x8] sm:$0xff]
  %v9474 = vld [vmem:[%s13 + $0x10] sm:$0xff]
  %v9475 = vld [vmem:[%s13 + $0x18] sm:$0xff]
  %v9476 = vld [vmem:[%s14] sm:$0xff]
  %v9477 = vld [vmem:[%s14 + $0x8] sm:$0xff]
  %v9478 = vld [vmem:[%s14 + $0x10] sm:$0xff]
  %v9479 = vld [vmem:[%s14 + $0x18] sm:$0xff]
  %9481 = vset.pattern.permute.xlu0 0
  %9482 = vperm.xlu0 %9481, %v9476
  %v9483 = vpop.permute.xlu0 %9482
  %9486 = vset.pattern.permute.xlu0 0
  %9487 = vperm.xlu0 %9486, %v9477
  %v9488 = vpop.permute.xlu0 %9487
  %9491 = vset.pattern.permute.xlu0 0
  %9492 = vperm.xlu0 %9491, %v9478
  %v9493 = vpop.permute.xlu0 %9492
  %9496 = vset.pattern.permute.xlu0 0
  %9497 = vperm.xlu0 %9496, %v9479
  %v9498 = vpop.permute.xlu0 %9497
  %v9501 = vsel %vm4589, %v9472, 0
  %v9504 = vsel %vm4589, %v9473, 0
  %v9507 = vsel %vm4589, %v9474, 0
  %v9510 = vsel %vm4589, %v9475, 0
  %9512 = vmatprep.subr.mxu0 0.0
  %9513 = vmatpush1.msra.mxu0 %v9464
  %9514 = vmatprep.subr.mxu0 0.0
  %9515 = vmatpush1.msra.mxu0 %v9465
  %9516 = vmatprep.subr.mxu0 0.0
  %9517 = vmatpush1.msra.mxu0 %v9466
  %9518 = vmatprep.subr.mxu0 0.0
  %9519 = vmatpush1.msra.mxu0 %v9467
  %9520 = vmatprep.subr.mxu0 0.0
  %9521 = vmatpush1.msra.mxu0 %v9468
  %9522 = vmatprep.subr.mxu0 0.0
  %9523 = vmatpush1.msra.mxu0 %v9469
  %9524 = vmatprep.subr.mxu0 0.0
  %9525 = vmatpush1.msra.mxu0 %v9470
  %9526 = vmatprep.subr.mxu0 0.0
  %9527 = vmatpush1.msra.mxu0 %v9471
  %9528 = vmatprep.subr.mxu0 0.0
  %9529 = vmatpush1.msra.mxu0 0.0
  %9530 = vmatprep.subr.mxu0 0.0
  %9531 = vmatpush1.msra.mxu0 0.0
  %9532 = vmatprep.subr.mxu0 0.0
  %9533 = vmatpush1.msra.mxu0 0.0
  %9534 = vmatprep.subr.mxu0 0.0
  %9535 = vmatpush1.msra.mxu0 0.0
  %9536 = vmatprep.subr.mxu0 0.0
  %9537 = vmatpush1.msra.mxu0 0.0
  %9538 = vmatprep.subr.mxu0 0.0
  %9539 = vmatpush1.msra.mxu0 0.0
  %9540 = vmatprep.subr.mxu0 0.0
  %9541 = vmatpush1.msra.mxu0 0.0
  %9542 = vmatprep.subr.mxu0 0.0
  %9543 = vmatpush1.msra.mxu0 0.0
  %9544 = vmatprep.subr.mxu0 0.0
  %9545 = vmatpush1.msra.mxu0 0.0
  %9546 = vmatprep.subr.mxu0 0.0
  %9547 = vmatpush1.msra.mxu0 0.0
  %9548 = vmatprep.subr.mxu0 0.0
  %9549 = vmatpush1.msra.mxu0 0.0
  %9550 = vmatprep.subr.mxu0 0.0
  %9551 = vmatpush1.msra.mxu0 0.0
  %9552 = vmatprep.subr.mxu0 0.0
  %9553 = vmatpush1.msra.mxu0 0.0
  %9554 = vmatprep.subr.mxu0 0.0
  %9555 = vmatpush1.msra.mxu0 0.0
  %9556 = vmatprep.subr.mxu0 0.0
  %9557 = vmatpush1.msra.mxu0 0.0
  %9558 = vmatprep.subr.mxu0 0.0
  %9559 = vmatpush1.msra.mxu0 0.0
  %9560 = vmatprep.subr.mxu0 0.0
  %9561 = vmatpush1.msra.mxu0 0.0
  %9562 = vmatprep.subr.mxu0 0.0
  %9563 = vmatpush1.msra.mxu0 0.0
  %9564 = vmatprep.subr.mxu0 0.0
  %9565 = vmatpush1.msra.mxu0 0.0
  %9566 = vmatprep.subr.mxu0 0.0
  %9567 = vmatpush1.msra.mxu0 0.0
  %9568 = vmatprep.subr.mxu0 0.0
  %9569 = vmatpush1.msra.mxu0 0.0
  %9570 = vmatprep.subr.mxu0 0.0
  %9571 = vmatpush1.msra.mxu0 0.0
  %9572 = vmatprep.subr.mxu0 0.0
  %9573 = vmatpush1.msra.mxu0 0.0
  %9574 = vmatprep.subr.mxu0 0.0
  %9575 = vmatpush1.msra.mxu0 0.0
  %9576 = vmatprep.mubr.f32.mxu0 0.0
  %9577 = vmatmul.mubr.f32.gmra.mrb[0].mxu0 %v9501
  %v9578 = vpop.f32.mrb[0].mxu0
  %v9579 = vadd.f32 %v9483, %v9578
  %v9580 = vpop.f32.mrb[0].mxu0
  %9581 = vmatprep.mubr.f32.mxu0 0.0
  %9582 = vmatmul.mubr.f32.gmra.mrb[0].mxu0 %v9504
  %v9583 = vpop.f32.mrb[0].mxu0
  %v9584 = vadd.f32 %v9488, %v9583
  %v9585 = vpop.f32.mrb[0].mxu0
  %9586 = vmatprep.mubr.f32.mxu0 0.0
  %9587 = vmatmul.mubr.f32.gmra.mrb[0].mxu0 %v9507
  %v9588 = vpop.f32.mrb[0].mxu0
  %v9589 = vadd.f32 %v9493, %v9588
  %v9590 = vpop.f32.mrb[0].mxu0
  %9591 = vmatprep.mubr.f32.mxu0 0.0
  %9592 = vmatmul.mubr.f32.gmra.mrb[0].mxu0 %v9510
  %v9593 = vpop.f32.mrb[0].mxu0
  %v9594 = vadd.f32 %v9498, %v9593
  %v9595 = vpop.f32.mrb[0].mxu0
  %9596 = vdwg.mxu0
  %vm9597 = vcmp.ge.f32.partialorder %v9579, 0.0
  %vm9598 = vcmp.ge.f32.partialorder %v9584, 0.0
  %vm9599 = vcmp.ge.f32.partialorder %v9589, 0.0
  %vm9600 = vcmp.ge.f32.partialorder %v9594, 0.0
  %v9601 = vmul.f32 %v9579, 0.01
  %v9602 = vmul.f32 %v9584, 0.01
  %v9603 = vmul.f32 %v9589, 0.01
  %v9604 = vmul.f32 %v9594, 0.01
  %v9605 = vsel %vm9597, %v9579, %v9601
  %v9606 = vsel %vm9598, %v9584, %v9602
  %v9607 = vsel %vm9599, %v9589, %v9603
  %v9608 = vsel %vm9600, %v9594, %v9604
  %v9609 = vld [vmem:[%s15] sm:$0x1f]
  %v9610 = vld [vmem:[%s16] sm:$0x1f]
  %9612 = vset.pattern.permute.xlu0 0
  %9613 = vperm.xlu0 %9612, %v9610
  %v9614 = vpop.permute.xlu0 %9613
  %v9617 = vsel %vm5144, %v9609, 0
  %9619 = vmatprep.subr.mxu0 0.0
  %9620 = vmatpush1.msra.mxu0 %v9605
  %9621 = vmatprep.subr.mxu0 0.0
  %9622 = vmatpush1.msra.mxu0 %v9606
  %9623 = vmatprep.subr.mxu0 0.0
  %9624 = vmatpush1.msra.mxu0 %v9607
  %9625 = vmatprep.subr.mxu0 0.0
  %9626 = vmatpush1.msra.mxu0 %v9608
  %9627 = vmatprep.subr.mxu0 0.0
  %9628 = vmatpush1.msra.mxu0 0.0
  %9629 = vmatprep.subr.mxu0 0.0
  %9630 = vmatpush1.msra.mxu0 0.0
  %9631 = vmatprep.subr.mxu0 0.0
  %9632 = vmatpush1.msra.mxu0 0.0
  %9633 = vmatprep.subr.mxu0 0.0
  %9634 = vmatpush1.msra.mxu0 0.0
  %9635 = vmatprep.subr.mxu0 0.0
  %9636 = vmatpush1.msra.mxu0 0.0
  %9637 = vmatprep.subr.mxu0 0.0
  %9638 = vmatpush1.msra.mxu0 0.0
  %9639 = vmatprep.subr.mxu0 0.0
  %9640 = vmatpush1.msra.mxu0 0.0
  %9641 = vmatprep.subr.mxu0 0.0
  %9642 = vmatpush1.msra.mxu0 0.0
  %9643 = vmatprep.subr.mxu0 0.0
  %9644 = vmatpush1.msra.mxu0 0.0
  %9645 = vmatprep.subr.mxu0 0.0
  %9646 = vmatpush1.msra.mxu0 0.0
  %9647 = vmatprep.subr.mxu0 0.0
  %9648 = vmatpush1.msra.mxu0 0.0
  %9649 = vmatprep.subr.mxu0 0.0
  %9650 = vmatpush1.msra.mxu0 0.0
  %9651 = vmatprep.subr.mxu0 0.0
  %9652 = vmatpush1.msra.mxu0 0.0
  %9653 = vmatprep.subr.mxu0 0.0
  %9654 = vmatpush1.msra.mxu0 0.0
  %9655 = vmatprep.subr.mxu0 0.0
  %9656 = vmatpush1.msra.mxu0 0.0
  %9657 = vmatprep.subr.mxu0 0.0
  %9658 = vmatpush1.msra.mxu0 0.0
  %9659 = vmatprep.subr.mxu0 0.0
  %9660 = vmatpush1.msra.mxu0 0.0
  %9661 = vmatprep.subr.mxu0 0.0
  %9662 = vmatpush1.msra.mxu0 0.0
  %9663 = vmatprep.subr.mxu0 0.0
  %9664 = vmatpush1.msra.mxu0 0.0
  %9665 = vmatprep.subr.mxu0 0.0
  %9666 = vmatpush1.msra.mxu0 0.0
  %9667 = vmatprep.subr.mxu0 0.0
  %9668 = vmatpush1.msra.mxu0 0.0
  %9669 = vmatprep.subr.mxu0 0.0
  %9670 = vmatpush1.msra.mxu0 0.0
  %9671 = vmatprep.subr.mxu0 0.0
  %9672 = vmatpush1.msra.mxu0 0.0
  %9673 = vmatprep.subr.mxu0 0.0
  %9674 = vmatpush1.msra.mxu0 0.0
  %9675 = vmatprep.subr.mxu0 0.0
  %9676 = vmatpush1.msra.mxu0 0.0
  %9677 = vmatprep.subr.mxu0 0.0
  %9678 = vmatpush1.msra.mxu0 0.0
  %9679 = vmatprep.subr.mxu0 0.0
  %9680 = vmatpush1.msra.mxu0 0.0
  %9681 = vmatprep.subr.mxu0 0.0
  %9682 = vmatpush1.msra.mxu0 0.0
  %9683 = vmatprep.mubr.f32.mxu0 0.0
  %9684 = vmatmul.mubr.f32.gmra.mrb[0].mxu0 %v9617
  %v9685 = vpop.f32.mrb[0].mxu0
  %v9686 = vadd.f32 %v9614, %v9685
  %v9687 = vpop.f32.mrb[0].mxu0
  %9688 = vdwg.mxu0
  %vm9689 = vcmp.ge.f32.partialorder %v9686, 0.0
  %v9690 = vmul.f32 %v9686, 0.01
  %v9691 = vsel %vm9689, %v9686, %v9690
  %vm9692 = vcmask 12288
  %9693 = vst.msk [vmem:[%s17] sm:$0x1f] %vm9692, %v9691
  // Predicated region
  $region70: #{tpu_custom_call.1} parent=0 // pred_check
    _
  $region71: #{tpu_custom_call.1} parent=0 // pred_check_branch
    %9695 = sbr.rel (0) target = $region73
  $region72: #{tpu_custom_call.1} parent=0 // pred_region
    _
  $region73: #{tpu_custom_call.1} parent=0 // pred_fallthru
    _
  // Predicated region
  $region74: #{tpu_custom_call.1} parent=0 // pred_check
    _
  $region75: #{tpu_custom_call.1} parent=0 // pred_check_branch
    %9697 = sbr.rel (0) target = $region77
  $region76: #{tpu_custom_call.1} parent=0 // pred_region
    _
  $region77: #{tpu_custom_call.1} parent=0 // pred_fallthru
    _

</llo_original>
